<compile_context>
chip_gen: v6e
topology: v6e:2x2x1
jax: 0.10.0
libtpu: 0.0.40
codegen_flags: <defaults>
</compile_context>

<pallas_src>
import functools
import math

import numpy as np
import jax
import jax.numpy as jnp
from jax.experimental import pallas as pl
from jax.experimental.pallas import tpu as pltpu


# ------------------------------- fused kernel --------------------------------

def _tak_forward_kernel(x_ref, masks_ref, stem_w_ref, wqkv_ref, wo_ref, w1_ref,
                        w2_ref, head_w_ref, vec_ref, out_ref,
                        pad_ref, col_ref, attn_ref,
                        *, B, H, W, cmax, d_model, nhead, num_layers, dim_ff,
                        pad_rows):
    N = B * H * W
    S = H * W
    D = d_model
    Dh = D // nhead
    n_stem = stem_w_ref.shape[0]
    eps = 1e-5

    def layer_norm(v, g, b):
        mu = jnp.mean(v, axis=-1, keepdims=True)
        var = jnp.mean(v * v, axis=-1, keepdims=True) - mu * mu   # one-pass
        return (v - mu) * jax.lax.rsqrt(var + eps) * g + b

    # ---------------- CNN stem: 3 x (conv3x3 -> ReLU -> BatchNorm eval) -------
    # Only the top/bottom padding rows of pad_ref must stay zero across layers;
    # interior rows are fully overwritten each layer, so zero it exactly once.
    pad_ref[...] = jnp.zeros_like(pad_ref)
    x = x_ref[...]                                     # (N, cmax), channel zero-padded
    for l in range(n_stem):
        pad_ref[pad_rows:pad_rows + N, :] = x
        # Build the im2col matrix (N, 9*cmax); every column range is written each layer.
        for tap in range(9):
            dh, dw = divmod(tap, 3)
            shift = (dh - 1) * W + (dw - 1)
            patch = pad_ref[pad_rows + shift:pad_rows + shift + N, :]
            col_ref[:, tap * cmax:(tap + 1) * cmax] = patch * masks_ref[tap]
        y = jnp.dot(col_ref[...], stem_w_ref[l],
                    preferred_element_type=jnp.float32)            # one K=9*cmax matmul
        y = jnp.maximum(y + vec_ref[3 * l:3 * l + 1, :cmax], 0.0)   # Conv -> ReLU
        x = (y * vec_ref[3 * l + 1:3 * l + 2, :cmax]                # -> BatchNorm (eval)
             + vec_ref[3 * l + 2:3 * l + 3, :cmax])
    if cmax > D:
        x = x[:, :D]

    # ---------------- TransformerEncoder (post-norm, ReLU FFN) ----------------
    vbase = 3 * n_stem
    for l in range(num_layers):
        r = vbase + 8 * l
        # fused QKV projection; 1/sqrt(Dh) already folded into the Q columns/bias.
        qkv = (jnp.dot(x, wqkv_ref[l], preferred_element_type=jnp.float32)
               + vec_ref[r:r + 1, :3 * D])
        for h in range(nhead):
            q = qkv[:, h * Dh:(h + 1) * Dh].reshape(B, S, Dh)
            k = qkv[:, D + h * Dh:D + (h + 1) * Dh].reshape(B, S, Dh)
            v = qkv[:, 2 * D + h * Dh:2 * D + (h + 1) * Dh].reshape(B, S, Dh)
            sc = jnp.einsum("bqd,bkd->bqk", q, k,
                            preferred_element_type=jnp.float32)
            sc = sc - jnp.max(sc, axis=-1, keepdims=True)
            p = jnp.exp(sc)
            p = p * pl.reciprocal(jnp.sum(p, axis=-1, keepdims=True), approx=True)
            o = jnp.einsum("bqk,bkd->bqd", p, v,
                           preferred_element_type=jnp.float32)
            # lane-contiguous head concat in VMEM -> single K=D out-projection below
            attn_ref[:, h * Dh:(h + 1) * Dh] = o.reshape(N, Dh)
        attn = (jnp.dot(attn_ref[...], wo_ref[l],
                        preferred_element_type=jnp.float32)
                + vec_ref[r + 1:r + 2, :D])
        x = layer_norm(x + attn, vec_ref[r + 2:r + 3, :D], vec_ref[r + 3:r + 4, :D])

        ff = (jnp.dot(x, w1_ref[l], preferred_element_type=jnp.float32)
              + vec_ref[r + 4:r + 5, :dim_ff])
        ff = jnp.maximum(ff, 0.0)
        ff = (jnp.dot(ff, w2_ref[l], preferred_element_type=jnp.float32)
              + vec_ref[r + 5:r + 6, :D])
        x = layer_norm(x + ff, vec_ref[r + 6:r + 7, :D], vec_ref[r + 7:r + 8, :D])

    # ---------------- mean pool (sublane reduce) + concatenated heads ---------
    pooled = jnp.mean(x.reshape(B, S, D), axis=1)                   # (B, D)
    n_pad = out_ref.shape[1]
    hb_row = vbase + 8 * num_layers
    out_ref[...] = (jnp.dot(pooled, head_w_ref[...],
                            preferred_element_type=jnp.float32)
                    + vec_ref[hb_row:hb_row + 1, :n_pad])


# ------------------------------ call wrapper ---------------------------------

def _full_spec(shape):
    n = len(shape)
    return pl.BlockSpec(shape, lambda i, _n=n: (0,) * _n)


@functools.lru_cache(maxsize=8)
def _conv_masks_np(B, H, W, cmax):
    """(9, B*H*W, cmax) 0/1 masks: tap (dh,dw) valid at (h,w) iff it stays in-image."""
    h = np.arange(H).reshape(1, H, 1)
    w = np.arange(W).reshape(1, 1, W)
    masks = np.zeros((9, B, H, W), np.float32)
    for tap in range(9):
        dh, dw = divmod(tap, 3)
        ok = ((h + dh - 1 >= 0) & (h + dh - 1 < H) &
              (w + dw - 1 >= 0) & (w + dw - 1 < W))
        masks[tap] = np.broadcast_to(ok, (B, H, W)).astype(np.float32)
    m = masks.reshape(9, B * H * W, 1)
    return np.ascontiguousarray(np.broadcast_to(m, (9, B * H * W, cmax)))


def tak_transformer_forward(src_nchw, params, *, input_channels, nhead):
    """Returns the padded (B, Npad) logits of the 9 concatenated output heads."""
    if src_nchw.shape[1] != input_channels:
        raise ValueError(
            f"Input tensor has {src_nchw.shape[1]} channels, "
            f"but model expects {input_channels}")
    B, C, H, W = src_nchw.shape
    N = B * H * W

    cmax = params["stem_w"].shape[2]
    d_model = params["wo"].shape[1]
    dim_ff = params["w1"].shape[2]
    num_layers = params["wqkv"].shape[0]
    n_pad = params["head_w"].shape[1]
    pad_rows = max(8, ((W + 1 + 7) // 8) * 8)

    # NCHW -> (b, h, w) token rows, channels zero-padded to cmax (lane-dense writes).
    x = jnp.transpose(src_nchw, (0, 2, 3, 1)).reshape(N, C)
    if cmax > C:
        x = jnp.pad(x, ((0, 0), (0, cmax - C)))
    masks = jnp.asarray(_conv_masks_np(B, H, W, cmax))

    args = [x, masks, params["stem_w"], params["wqkv"], params["wo"],
            params["w1"], params["w2"], params["head_w"], params["vecs"]]
    out_shape = jax.ShapeDtypeStruct((B, n_pad), jnp.float32)

    kernel = functools.partial(
        _tak_forward_kernel, B=B, H=H, W=W, cmax=cmax, d_model=d_model,
        nhead=nhead, num_layers=num_layers, dim_ff=dim_ff, pad_rows=pad_rows)

    return pl.pallas_call(
        kernel,
        grid=(1,),
        in_specs=[_full_spec(a.shape) for a in args],
        out_specs=_full_spec(out_shape.shape),
        out_shape=out_shape,
        scratch_shapes=[
            pltpu.VMEM((N + 2 * pad_rows, cmax), jnp.float32),   # zero-padded activations
            pltpu.VMEM((N, 9 * cmax), jnp.float32),              # im2col buffer
            pltpu.VMEM((N, d_model), jnp.float32),               # concatenated head outputs
        ],
        compiler_params=pltpu.CompilerParams(
            dimension_semantics=("arbitrary",)),
    )(*args)


def split_head_logits(logits, head_dims):
    outs, off = [], 0
    for dim in head_dims:
        outs.append(logits[:, off:off + dim])
        off += dim
    return outs


# --------------------------- parameter creation ------------------------------

def init_torch_params(key, board_size, input_channels, d_model, nhead, num_layers, dim_ff):
    """Parameters laid out exactly like the PyTorch module."""
    keys = iter(jax.random.split(key, 256))

    def nrm(shape, s=0.02):
        return jax.random.normal(next(keys), shape, jnp.float32) * s

    stem = []
    chans = [input_channels, d_model // 4, d_model // 2, d_model]
    for cin, cout in zip(chans[:-1], chans[1:]):
        stem.append(dict(weight=nrm((cout, cin, 3, 3)), bias=nrm((cout,)),
                         bn_gamma=1.0 + nrm((cout,)), bn_beta=nrm((cout,))))

    layers = []
    for _ in range(num_layers):
        layers.append(dict(
            in_proj_w=nrm((3 * d_model, d_model)), in_proj_b=nrm((3 * d_model,)),
            out_proj_w=nrm((d_model, d_model)), out_proj_b=nrm((d_model,)),
            lin1_w=nrm((dim_ff, d_model)), lin1_b=nrm((dim_ff,)),
            lin2_w=nrm((d_model, dim_ff)), lin2_b=nrm((d_model,)),
            norm1_g=1.0 + nrm((d_model,)), norm1_b=nrm((d_model,)),
            norm2_g=1.0 + nrm((d_model,)), norm2_b=nrm((d_model,))))

    output_dims = [2, board_size + 1, board_size, board_size, 4,
                   board_size + 1, board_size + 1, board_size + 1, board_size + 1]
    heads = []
    for dim in output_dims:
        hw = jax.random.uniform(next(keys), (dim, d_model), jnp.float32, -0.1, 0.1)
        hb = jnp.zeros((dim,), jnp.float32)          # init_weights(): bias zeroed
        heads.append((hw, hb))

    return dict(stem=stem, layers=layers, heads=heads), output_dims


def prepare_params(raw, *, input_channels, d_model, nhead, dim_ff):
    """One-time prep: transpose + pack all weights into a handful of DMA slabs."""
    cmax = max(input_channels, d_model)
    L = len(raw["layers"])
    n_stem = len(raw["stem"])
    head_dims = [int(hw.shape[0]) for hw, _ in raw["heads"]]
    total = sum(head_dims)
    n_pad = max(128, ((total + 127) // 128) * 128)          # lane-dense output slab
    vec_w = max(128, 3 * d_model, dim_ff, n_pad)

    # ---- stem: im2col weight slab + bias / BN(eval) fold vectors ----
    stem_w = np.zeros((n_stem, 9 * cmax, cmax), np.float32)
    vecs = np.zeros((3 * n_stem + 8 * L + 1, vec_w), np.float32)
    for l, p in enumerate(raw["stem"]):
        w = np.asarray(p["weight"], np.float32)              # torch (Cout, Cin, 3, 3)
        cout, cin = w.shape[0], w.shape[1]
        wt = np.transpose(w, (2, 3, 1, 0)).reshape(9, cin, cout)
        for t in range(9):
            stem_w[l, t * cmax:t * cmax + cin, :cout] = wt[t]
        vecs[3 * l, :cout] = np.asarray(p["bias"])
        vecs[3 * l + 1, :cout] = np.asarray(p["bn_gamma"]) / np.sqrt(1.0 + 1e-5)
        vecs[3 * l + 2, :cout] = np.asarray(p["bn_beta"])

    # ---- encoder: stacked (L, ...) weight slabs, vectors into the shared slab ----
    wqkv = np.zeros((L, d_model, 3 * d_model), np.float32)
    wo = np.zeros((L, d_model, d_model), np.float32)
    w1 = np.zeros((L, d_model, dim_ff), np.float32)
    w2 = np.zeros((L, dim_ff, d_model), np.float32)
    scale = 1.0 / math.sqrt(d_model // nhead)
    for l, p in enumerate(raw["layers"]):
        wq = np.asarray(p["in_proj_w"], np.float32).T.copy()  # (D, 3D)
        bq = np.asarray(p["in_proj_b"], np.float32).copy()
        wq[:, :d_model] *= scale                               # fold attention scale into Q
        bq[:d_model] *= scale
        wqkv[l] = wq
        wo[l] = np.asarray(p["out_proj_w"]).T
        w1[l] = np.asarray(p["lin1_w"]).T
        w2[l] = np.asarray(p["lin2_w"]).T
        r = 3 * n_stem + 8 * l
        vecs[r, :3 * d_model] = bq
        vecs[r + 1, :d_model] = np.asarray(p["out_proj_b"])
        vecs[r + 2, :d_model] = np.asarray(p["norm1_g"])
        vecs[r + 3, :d_model] = np.asarray(p["norm1_b"])
        vecs[r + 4, :dim_ff] = np.asarray(p["lin1_b"])
        vecs[r + 5, :d_model] = np.asarray(p["lin2_b"])
        vecs[r + 6, :d_model] = np.asarray(p["norm2_g"])
        vecs[r + 7, :d_model] = np.asarray(p["norm2_b"])

    # ---- output heads: concatenated + zero-padded lane-dense slab ----
    head_w = np.zeros((d_model, n_pad), np.float32)
    off = 0
    for (hw, hb) in raw["heads"]:
        dim = hw.shape[0]
        head_w[:, off:off + dim] = np.asarray(hw).T
        vecs[3 * n_stem + 8 * L, off:off + dim] = np.asarray(hb)
        off += dim

    params = dict(stem_w=jnp.asarray(stem_w), wqkv=jnp.asarray(wqkv),
                  wo=jnp.asarray(wo), w1=jnp.asarray(w1), w2=jnp.asarray(w2),
                  head_w=jnp.asarray(head_w), vecs=jnp.asarray(vecs))
    return params, head_dims


# ----------------------------------- main ------------------------------------

if __name__ == "__main__":
    board_size = 4
    input_channels = 4
    d_model = 32
    nhead = 4
    num_layers = 2
    dim_ff = 64
    batch = 2

    key = jax.random.PRNGKey(0)
    pkey, xkey = jax.random.split(key)
    raw, output_dims = init_torch_params(pkey, board_size, input_channels,
                                         d_model, nhead, num_layers, dim_ff)
    params, head_dims = prepare_params(raw, input_channels=input_channels,
                                       d_model=d_model, nhead=nhead, dim_ff=dim_ff)
    src = jax.random.normal(
        xkey, (batch, input_channels, board_size, board_size), jnp.float32)

    forward = jax.jit(functools.partial(
        tak_transformer_forward, input_channels=input_channels, nhead=nhead))
    logits = jax.block_until_ready(forward(src, params))     # (batch, 128) padded logits
    outs = split_head_logits(logits, head_dims)

    assert len(outs) == len(output_dims)
    for o, d in zip(outs, output_dims):
        assert o.shape == (batch, d), (o.shape, d)
    assert bool(jnp.all(jnp.isfinite(logits)))

    print("KERNEL_OK")
</pallas_src>

<mosaic_0001>
module attributes {stable_mosaic.version = 11 : i64} {
  func.func @_tak_forward_kernel(%arg0: i32, %arg1: memref<32x32xf32, #tpu.memory_space<vmem>>, %arg2: memref<9x32x32xf32, #tpu.memory_space<vmem>>, %arg3: memref<3x288x32xf32, #tpu.memory_space<vmem>>, %arg4: memref<2x32x96xf32, #tpu.memory_space<vmem>>, %arg5: memref<2x32x32xf32, #tpu.memory_space<vmem>>, %arg6: memref<2x32x64xf32, #tpu.memory_space<vmem>>, %arg7: memref<2x64x32xf32, #tpu.memory_space<vmem>>, %arg8: memref<32x128xf32, #tpu.memory_space<vmem>>, %arg9: memref<26x128xf32, #tpu.memory_space<vmem>>, %arg10: memref<2x128xf32, #tpu.memory_space<vmem>>, %arg11: memref<48x32xf32, #tpu.memory_space<vmem>>, %arg12: memref<32x288xf32, #tpu.memory_space<vmem>>, %arg13: memref<32x32xf32, #tpu.memory_space<vmem>>) attributes {dimension_semantics = [#tpu.dimension_semantics<arbitrary>], iteration_bounds = array<i64: 1>, scalar_prefetch = 0 : i64, scratch_operands = 3 : i64, tpu.core_type = #tpu.core_type<tc>, window_params = [{pipeline_mode = #tpu.pipeline_mode<synchronous>, transform_indices = @transform_0, window_bounds = array<i64: 32, 32>}, {pipeline_mode = #tpu.pipeline_mode<synchronous>, transform_indices = @transform_1, window_bounds = array<i64: 9, 32, 32>}, {pipeline_mode = #tpu.pipeline_mode<synchronous>, transform_indices = @transform_2, window_bounds = array<i64: 3, 288, 32>}, {pipeline_mode = #tpu.pipeline_mode<synchronous>, transform_indices = @transform_3, window_bounds = array<i64: 2, 32, 96>}, {pipeline_mode = #tpu.pipeline_mode<synchronous>, transform_indices = @transform_4, window_bounds = array<i64: 2, 32, 32>}, {pipeline_mode = #tpu.pipeline_mode<synchronous>, transform_indices = @transform_5, window_bounds = array<i64: 2, 32, 64>}, {pipeline_mode = #tpu.pipeline_mode<synchronous>, transform_indices = @transform_6, window_bounds = array<i64: 2, 64, 32>}, {pipeline_mode = #tpu.pipeline_mode<synchronous>, transform_indices = @transform_7, window_bounds = array<i64: 32, 128>}, {pipeline_mode = #tpu.pipeline_mode<synchronous>, transform_indices = @transform_8, window_bounds = array<i64: 26, 128>}, {pipeline_mode = #tpu.pipeline_mode<synchronous>, transform_indices = @transform_9, window_bounds = array<i64: 2, 128>}]} {
    %cst = arith.constant 0.000000e+00 : f32
    %0 = vector.broadcast %cst : f32 to vector<48x32xf32>
    %c0 = arith.constant 0 : index
    %c0_0 = arith.constant 0 : index
    %1 = vector.load %arg11[%c0, %c0_0] : memref<48x32xf32, #tpu.memory_space<vmem>>, vector<48x32xf32>
    tpu.vector_store %arg11[%c0, %c0_0], %0 {strides = array<i32>} : memref<48x32xf32, #tpu.memory_space<vmem>>, vector<48x32xf32>,
    %c0_1 = arith.constant 0 : index
    %c0_2 = arith.constant 0 : index
    %2 = vector.load %arg1[%c0_1, %c0_2] : memref<32x32xf32, #tpu.memory_space<vmem>>, vector<32x32xf32>
    %c8 = arith.constant 8 : index
    %c0_3 = arith.constant 0 : index
    %3 = vector.load %arg11[%c8, %c0_3] : memref<48x32xf32, #tpu.memory_space<vmem>>, vector<32x32xf32>
    tpu.vector_store %arg11[%c8, %c0_3], %2 {strides = array<i32>} : memref<48x32xf32, #tpu.memory_space<vmem>>, vector<32x32xf32>,
    %c3 = arith.constant 3 : index
    %c0_4 = arith.constant 0 : index
    %4 = vector.load %arg11[%c3, %c0_4] : memref<48x32xf32, #tpu.memory_space<vmem>>, vector<32x32xf32>
    %c0_5 = arith.constant 0 : index
    %c0_6 = arith.constant 0 : index
    %c0_7 = arith.constant 0 : index
    %5 = vector.load %arg2[%c0_5, %c0_6, %c0_7] : memref<9x32x32xf32, #tpu.memory_space<vmem>>, vector<1x32x32xf32>
    %6 = vector.shape_cast %5 : vector<1x32x32xf32> to vector<32x32xf32>
    %7 = arith.mulf %4, %6 : vector<32x32xf32>
    %c0_8 = arith.constant 0 : index
    %c0_9 = arith.constant 0 : index
    %8 = vector.load %arg12[%c0_8, %c0_9] : memref<32x288xf32, #tpu.memory_space<vmem>>, vector<32x32xf32>
    tpu.vector_store %arg12[%c0_8, %c0_9], %7 {strides = array<i32>} : memref<32x288xf32, #tpu.memory_space<vmem>>, vector<32x32xf32>,
    %c4 = arith.constant 4 : index
    %c0_10 = arith.constant 0 : index
    %9 = vector.load %arg11[%c4, %c0_10] : memref<48x32xf32, #tpu.memory_space<vmem>>, vector<32x32xf32>
    %c1 = arith.constant 1 : index
    %c0_11 = arith.constant 0 : index
    %c0_12 = arith.constant 0 : index
    %10 = vector.load %arg2[%c1, %c0_11, %c0_12] : memref<9x32x32xf32, #tpu.memory_space<vmem>>, vector<1x32x32xf32>
    %11 = vector.shape_cast %10 : vector<1x32x32xf32> to vector<32x32xf32>
    %12 = arith.mulf %9, %11 : vector<32x32xf32>
    %c0_13 = arith.constant 0 : index
    %c32 = arith.constant 32 : index
    %13 = vector.load %arg12[%c0_13, %c32] : memref<32x288xf32, #tpu.memory_space<vmem>>, vector<32x32xf32>
    tpu.vector_store %arg12[%c0_13, %c32], %12 {strides = array<i32>} : memref<32x288xf32, #tpu.memory_space<vmem>>, vector<32x32xf32>,
    %c5 = arith.constant 5 : index
    %c0_14 = arith.constant 0 : index
    %14 = vector.load %arg11[%c5, %c0_14] : memref<48x32xf32, #tpu.memory_space<vmem>>, vector<32x32xf32>
    %c2 = arith.constant 2 : index
    %c0_15 = arith.constant 0 : index
    %c0_16 = arith.constant 0 : index
    %15 = vector.load %arg2[%c2, %c0_15, %c0_16] : memref<9x32x32xf32, #tpu.memory_space<vmem>>, vector<1x32x32xf32>
    %16 = vector.shape_cast %15 : vector<1x32x32xf32> to vector<32x32xf32>
    %17 = arith.mulf %14, %16 : vector<32x32xf32>
    %c0_17 = arith.constant 0 : index
    %c64 = arith.constant 64 : index
    %18 = vector.load %arg12[%c0_17, %c64] : memref<32x288xf32, #tpu.memory_space<vmem>>, vector<32x32xf32>
    tpu.vector_store %arg12[%c0_17, %c64], %17 {strides = array<i32>} : memref<32x288xf32, #tpu.memory_space<vmem>>, vector<32x32xf32>,
    %c7 = arith.constant 7 : index
    %c0_18 = arith.constant 0 : index
    %19 = vector.load %arg11[%c7, %c0_18] : memref<48x32xf32, #tpu.memory_space<vmem>>, vector<32x32xf32>
    %c3_19 = arith.constant 3 : index
    %c0_20 = arith.constant 0 : index
    %c0_21 = arith.constant 0 : index
    %20 = vector.load %arg2[%c3_19, %c0_20, %c0_21] : memref<9x32x32xf32, #tpu.memory_space<vmem>>, vector<1x32x32xf32>
    %21 = vector.shape_cast %20 : vector<1x32x32xf32> to vector<32x32xf32>
    %22 = arith.mulf %19, %21 : vector<32x32xf32>
    %c0_22 = arith.constant 0 : index
    %c96 = arith.constant 96 : index
    %23 = vector.load %arg12[%c0_22, %c96] : memref<32x288xf32, #tpu.memory_space<vmem>>, vector<32x32xf32>
    tpu.vector_store %arg12[%c0_22, %c96], %22 {strides = array<i32>} : memref<32x288xf32, #tpu.memory_space<vmem>>, vector<32x32xf32>,
    %c8_23 = arith.constant 8 : index
    %c0_24 = arith.constant 0 : index
    %24 = vector.load %arg11[%c8_23, %c0_24] : memref<48x32xf32, #tpu.memory_space<vmem>>, vector<32x32xf32>
    %c4_25 = arith.constant 4 : index
    %c0_26 = arith.constant 0 : index
    %c0_27 = arith.constant 0 : index
    %25 = vector.load %arg2[%c4_25, %c0_26, %c0_27] : memref<9x32x32xf32, #tpu.memory_space<vmem>>, vector<1x32x32xf32>
    %26 = vector.shape_cast %25 : vector<1x32x32xf32> to vector<32x32xf32>
    %27 = arith.mulf %24, %26 : vector<32x32xf32>
    %c0_28 = arith.constant 0 : index
    %c128 = arith.constant 128 : index
    %28 = vector.load %arg12[%c0_28, %c128] : memref<32x288xf32, #tpu.memory_space<vmem>>, vector<32x32xf32>
    tpu.vector_store %arg12[%c0_28, %c128], %27 {strides = array<i32>} : memref<32x288xf32, #tpu.memory_space<vmem>>, vector<32x32xf32>,
    %c9 = arith.constant 9 : index
    %c0_29 = arith.constant 0 : index
    %29 = vector.load %arg11[%c9, %c0_29] : memref<48x32xf32, #tpu.memory_space<vmem>>, vector<32x32xf32>
    %c5_30 = arith.constant 5 : index
    %c0_31 = arith.constant 0 : index
    %c0_32 = arith.constant 0 : index
    %30 = vector.load %arg2[%c5_30, %c0_31, %c0_32] : memref<9x32x32xf32, #tpu.memory_space<vmem>>, vector<1x32x32xf32>
    %31 = vector.shape_cast %30 : vector<1x32x32xf32> to vector<32x32xf32>
    %32 = arith.mulf %29, %31 : vector<32x32xf32>
    %c0_33 = arith.constant 0 : index
    %c160 = arith.constant 160 : index
    %33 = vector.load %arg12[%c0_33, %c160] : memref<32x288xf32, #tpu.memory_space<vmem>>, vector<32x32xf32>
    tpu.vector_store %arg12[%c0_33, %c160], %32 {strides = array<i32>} : memref<32x288xf32, #tpu.memory_space<vmem>>, vector<32x32xf32>,
    %c11 = arith.constant 11 : index
    %c0_34 = arith.constant 0 : index
    %34 = vector.load %arg11[%c11, %c0_34] : memref<48x32xf32, #tpu.memory_space<vmem>>, vector<32x32xf32>
    %c6 = arith.constant 6 : index
    %c0_35 = arith.constant 0 : index
    %c0_36 = arith.constant 0 : index
    %35 = vector.load %arg2[%c6, %c0_35, %c0_36] : memref<9x32x32xf32, #tpu.memory_space<vmem>>, vector<1x32x32xf32>
    %36 = vector.shape_cast %35 : vector<1x32x32xf32> to vector<32x32xf32>
    %37 = arith.mulf %34, %36 : vector<32x32xf32>
    %c0_37 = arith.constant 0 : index
    %c192 = arith.constant 192 : index
    %38 = vector.load %arg12[%c0_37, %c192] : memref<32x288xf32, #tpu.memory_space<vmem>>, vector<32x32xf32>
    tpu.vector_store %arg12[%c0_37, %c192], %37 {strides = array<i32>} : memref<32x288xf32, #tpu.memory_space<vmem>>, vector<32x32xf32>,
    %c12 = arith.constant 12 : index
    %c0_38 = arith.constant 0 : index
    %39 = vector.load %arg11[%c12, %c0_38] : memref<48x32xf32, #tpu.memory_space<vmem>>, vector<32x32xf32>
    %c7_39 = arith.constant 7 : index
    %c0_40 = arith.constant 0 : index
    %c0_41 = arith.constant 0 : index
    %40 = vector.load %arg2[%c7_39, %c0_40, %c0_41] : memref<9x32x32xf32, #tpu.memory_space<vmem>>, vector<1x32x32xf32>
    %41 = vector.shape_cast %40 : vector<1x32x32xf32> to vector<32x32xf32>
    %42 = arith.mulf %39, %41 : vector<32x32xf32>
    %c0_42 = arith.constant 0 : index
    %c224 = arith.constant 224 : index
    %43 = vector.load %arg12[%c0_42, %c224] : memref<32x288xf32, #tpu.memory_space<vmem>>, vector<32x32xf32>
    tpu.vector_store %arg12[%c0_42, %c224], %42 {strides = array<i32>} : memref<32x288xf32, #tpu.memory_space<vmem>>, vector<32x32xf32>,
    %c13 = arith.constant 13 : index
    %c0_43 = arith.constant 0 : index
    %44 = vector.load %arg11[%c13, %c0_43] : memref<48x32xf32, #tpu.memory_space<vmem>>, vector<32x32xf32>
    %c8_44 = arith.constant 8 : index
    %c0_45 = arith.constant 0 : index
    %c0_46 = arith.constant 0 : index
    %45 = vector.load %arg2[%c8_44, %c0_45, %c0_46] : memref<9x32x32xf32, #tpu.memory_space<vmem>>, vector<1x32x32xf32>
    %46 = vector.shape_cast %45 : vector<1x32x32xf32> to vector<32x32xf32>
    %47 = arith.mulf %44, %46 : vector<32x32xf32>
    %c0_47 = arith.constant 0 : index
    %c256 = arith.constant 256 : index
    %48 = vector.load %arg12[%c0_47, %c256] : memref<32x288xf32, #tpu.memory_space<vmem>>, vector<32x32xf32>
    tpu.vector_store %arg12[%c0_47, %c256], %47 {strides = array<i32>} : memref<32x288xf32, #tpu.memory_space<vmem>>, vector<32x32xf32>,
    %c0_48 = arith.constant 0 : index
    %c0_49 = arith.constant 0 : index
    %49 = vector.load %arg12[%c0_48, %c0_49] : memref<32x288xf32, #tpu.memory_space<vmem>>, vector<32x288xf32>
    %c0_50 = arith.constant 0 : index
    %c0_51 = arith.constant 0 : index
    %c0_52 = arith.constant 0 : index
    %50 = vector.load %arg3[%c0_50, %c0_51, %c0_52] : memref<3x288x32xf32, #tpu.memory_space<vmem>>, vector<1x288x32xf32>
    %51 = vector.shape_cast %50 : vector<1x288x32xf32> to vector<288x32xf32>
    %cst_53 = arith.constant dense<0.000000e+00> : vector<32x32xf32>
    %52 = tpu.matmul %49, %51, %cst_53 {dimension_numbers = #tpu.dot_dimension_numbers<[1], [0], [0], [1], [0, 0, 1, 1], [], []>} : vector<32x288xf32>, vector<288x32xf32>, vector<32x32xf32> -> vector<32x32xf32>
    %c0_54 = arith.constant 0 : index
    %c0_55 = arith.constant 0 : index
    %53 = vector.load %arg9[%c0_54, %c0_55] : memref<26x128xf32, #tpu.memory_space<vmem>>, vector<1x32xf32>
    %54 = vector.broadcast %53 : vector<1x32xf32> to vector<32x32xf32>
    %55 = arith.addf %52, %54 : vector<32x32xf32>
    %cst_56 = arith.constant 0.000000e+00 : f32
    %56 = vector.broadcast %cst_56 : f32 to vector<32x32xf32>
    %57 = arith.maximumf %55, %56 : vector<32x32xf32>
    %c1_57 = arith.constant 1 : index
    %c0_58 = arith.constant 0 : index
    %58 = vector.load %arg9[%c1_57, %c0_58] : memref<26x128xf32, #tpu.memory_space<vmem>>, vector<1x32xf32>
    %59 = vector.broadcast %58 : vector<1x32xf32> to vector<32x32xf32>
    %60 = arith.mulf %57, %59 : vector<32x32xf32>
    %c2_59 = arith.constant 2 : index
    %c0_60 = arith.constant 0 : index
    %61 = vector.load %arg9[%c2_59, %c0_60] : memref<26x128xf32, #tpu.memory_space<vmem>>, vector<1x32xf32>
    %62 = vector.broadcast %61 : vector<1x32xf32> to vector<32x32xf32>
    %63 = arith.addf %60, %62 : vector<32x32xf32>
    %c8_61 = arith.constant 8 : index
    %c0_62 = arith.constant 0 : index
    %64 = vector.load %arg11[%c8_61, %c0_62] : memref<48x32xf32, #tpu.memory_space<vmem>>, vector<32x32xf32>
    tpu.vector_store %arg11[%c8_61, %c0_62], %63 {strides = array<i32>} : memref<48x32xf32, #tpu.memory_space<vmem>>, vector<32x32xf32>,
    %c3_63 = arith.constant 3 : index
    %c0_64 = arith.constant 0 : index
    %65 = vector.load %arg11[%c3_63, %c0_64] : memref<48x32xf32, #tpu.memory_space<vmem>>, vector<32x32xf32>
    %c0_65 = arith.constant 0 : index
    %c0_66 = arith.constant 0 : index
    %c0_67 = arith.constant 0 : index
    %66 = vector.load %arg2[%c0_65, %c0_66, %c0_67] : memref<9x32x32xf32, #tpu.memory_space<vmem>>, vector<1x32x32xf32>
    %67 = vector.shape_cast %66 : vector<1x32x32xf32> to vector<32x32xf32>
    %68 = arith.mulf %65, %67 : vector<32x32xf32>
    %c0_68 = arith.constant 0 : index
    %c0_69 = arith.constant 0 : index
    %69 = vector.load %arg12[%c0_68, %c0_69] : memref<32x288xf32, #tpu.memory_space<vmem>>, vector<32x32xf32>
    tpu.vector_store %arg12[%c0_68, %c0_69], %68 {strides = array<i32>} : memref<32x288xf32, #tpu.memory_space<vmem>>, vector<32x32xf32>,
    %c4_70 = arith.constant 4 : index
    %c0_71 = arith.constant 0 : index
    %70 = vector.load %arg11[%c4_70, %c0_71] : memref<48x32xf32, #tpu.memory_space<vmem>>, vector<32x32xf32>
    %c1_72 = arith.constant 1 : index
    %c0_73 = arith.constant 0 : index
    %c0_74 = arith.constant 0 : index
    %71 = vector.load %arg2[%c1_72, %c0_73, %c0_74] : memref<9x32x32xf32, #tpu.memory_space<vmem>>, vector<1x32x32xf32>
    %72 = vector.shape_cast %71 : vector<1x32x32xf32> to vector<32x32xf32>
    %73 = arith.mulf %70, %72 : vector<32x32xf32>
    %c0_75 = arith.constant 0 : index
    %c32_76 = arith.constant 32 : index
    %74 = vector.load %arg12[%c0_75, %c32_76] : memref<32x288xf32, #tpu.memory_space<vmem>>, vector<32x32xf32>
    tpu.vector_store %arg12[%c0_75, %c32_76], %73 {strides = array<i32>} : memref<32x288xf32, #tpu.memory_space<vmem>>, vector<32x32xf32>,
    %c5_77 = arith.constant 5 : index
    %c0_78 = arith.constant 0 : index
    %75 = vector.load %arg11[%c5_77, %c0_78] : memref<48x32xf32, #tpu.memory_space<vmem>>, vector<32x32xf32>
    %c2_79 = arith.constant 2 : index
    %c0_80 = arith.constant 0 : index
    %c0_81 = arith.constant 0 : index
    %76 = vector.load %arg2[%c2_79, %c0_80, %c0_81] : memref<9x32x32xf32, #tpu.memory_space<vmem>>, vector<1x32x32xf32>
    %77 = vector.shape_cast %76 : vector<1x32x32xf32> to vector<32x32xf32>
    %78 = arith.mulf %75, %77 : vector<32x32xf32>
    %c0_82 = arith.constant 0 : index
    %c64_83 = arith.constant 64 : index
    %79 = vector.load %arg12[%c0_82, %c64_83] : memref<32x288xf32, #tpu.memory_space<vmem>>, vector<32x32xf32>
    tpu.vector_store %arg12[%c0_82, %c64_83], %78 {strides = array<i32>} : memref<32x288xf32, #tpu.memory_space<vmem>>, vector<32x32xf32>,
    %c7_84 = arith.constant 7 : index
    %c0_85 = arith.constant 0 : index
    %80 = vector.load %arg11[%c7_84, %c0_85] : memref<48x32xf32, #tpu.memory_space<vmem>>, vector<32x32xf32>
    %c3_86 = arith.constant 3 : index
    %c0_87 = arith.constant 0 : index
    %c0_88 = arith.constant 0 : index
    %81 = vector.load %arg2[%c3_86, %c0_87, %c0_88] : memref<9x32x32xf32, #tpu.memory_space<vmem>>, vector<1x32x32xf32>
    %82 = vector.shape_cast %81 : vector<1x32x32xf32> to vector<32x32xf32>
    %83 = arith.mulf %80, %82 : vector<32x32xf32>
    %c0_89 = arith.constant 0 : index
    %c96_90 = arith.constant 96 : index
    %84 = vector.load %arg12[%c0_89, %c96_90] : memref<32x288xf32, #tpu.memory_space<vmem>>, vector<32x32xf32>
    tpu.vector_store %arg12[%c0_89, %c96_90], %83 {strides = array<i32>} : memref<32x288xf32, #tpu.memory_space<vmem>>, vector<32x32xf32>,
    %c8_91 = arith.constant 8 : index
    %c0_92 = arith.constant 0 : index
    %85 = vector.load %arg11[%c8_91, %c0_92] : memref<48x32xf32, #tpu.memory_space<vmem>>, vector<32x32xf32>
    %c4_93 = arith.constant 4 : index
    %c0_94 = arith.constant 0 : index
    %c0_95 = arith.constant 0 : index
    %86 = vector.load %arg2[%c4_93, %c0_94, %c0_95] : memref<9x32x32xf32, #tpu.memory_space<vmem>>, vector<1x32x32xf32>
    %87 = vector.shape_cast %86 : vector<1x32x32xf32> to vector<32x32xf32>
    %88 = arith.mulf %85, %87 : vector<32x32xf32>
    %c0_96 = arith.constant 0 : index
    %c128_97 = arith.constant 128 : index
    %89 = vector.load %arg12[%c0_96, %c128_97] : memref<32x288xf32, #tpu.memory_space<vmem>>, vector<32x32xf32>
    tpu.vector_store %arg12[%c0_96, %c128_97], %88 {strides = array<i32>} : memref<32x288xf32, #tpu.memory_space<vmem>>, vector<32x32xf32>,
    %c9_98 = arith.constant 9 : index
    %c0_99 = arith.constant 0 : index
    %90 = vector.load %arg11[%c9_98, %c0_99] : memref<48x32xf32, #tpu.memory_space<vmem>>, vector<32x32xf32>
    %c5_100 = arith.constant 5 : index
    %c0_101 = arith.constant 0 : index
    %c0_102 = arith.constant 0 : index
    %91 = vector.load %arg2[%c5_100, %c0_101, %c0_102] : memref<9x32x32xf32, #tpu.memory_space<vmem>>, vector<1x32x32xf32>
    %92 = vector.shape_cast %91 : vector<1x32x32xf32> to vector<32x32xf32>
    %93 = arith.mulf %90, %92 : vector<32x32xf32>
    %c0_103 = arith.constant 0 : index
    %c160_104 = arith.constant 160 : index
    %94 = vector.load %arg12[%c0_103, %c160_104] : memref<32x288xf32, #tpu.memory_space<vmem>>, vector<32x32xf32>
    tpu.vector_store %arg12[%c0_103, %c160_104], %93 {strides = array<i32>} : memref<32x288xf32, #tpu.memory_space<vmem>>, vector<32x32xf32>,
    %c11_105 = arith.constant 11 : index
    %c0_106 = arith.constant 0 : index
    %95 = vector.load %arg11[%c11_105, %c0_106] : memref<48x32xf32, #tpu.memory_space<vmem>>, vector<32x32xf32>
    %c6_107 = arith.constant 6 : index
    %c0_108 = arith.constant 0 : index
    %c0_109 = arith.constant 0 : index
    %96 = vector.load %arg2[%c6_107, %c0_108, %c0_109] : memref<9x32x32xf32, #tpu.memory_space<vmem>>, vector<1x32x32xf32>
    %97 = vector.shape_cast %96 : vector<1x32x32xf32> to vector<32x32xf32>
    %98 = arith.mulf %95, %97 : vector<32x32xf32>
    %c0_110 = arith.constant 0 : index
    %c192_111 = arith.constant 192 : index
    %99 = vector.load %arg12[%c0_110, %c192_111] : memref<32x288xf32, #tpu.memory_space<vmem>>, vector<32x32xf32>
    tpu.vector_store %arg12[%c0_110, %c192_111], %98 {strides = array<i32>} : memref<32x288xf32, #tpu.memory_space<vmem>>, vector<32x32xf32>,
    %c12_112 = arith.constant 12 : index
    %c0_113 = arith.constant 0 : index
    %100 = vector.load %arg11[%c12_112, %c0_113] : memref<48x32xf32, #tpu.memory_space<vmem>>, vector<32x32xf32>
    %c7_114 = arith.constant 7 : index
    %c0_115 = arith.constant 0 : index
    %c0_116 = arith.constant 0 : index
    %101 = vector.load %arg2[%c7_114, %c0_115, %c0_116] : memref<9x32x32xf32, #tpu.memory_space<vmem>>, vector<1x32x32xf32>
    %102 = vector.shape_cast %101 : vector<1x32x32xf32> to vector<32x32xf32>
    %103 = arith.mulf %100, %102 : vector<32x32xf32>
    %c0_117 = arith.constant 0 : index
    %c224_118 = arith.constant 224 : index
    %104 = vector.load %arg12[%c0_117, %c224_118] : memref<32x288xf32, #tpu.memory_space<vmem>>, vector<32x32xf32>
    tpu.vector_store %arg12[%c0_117, %c224_118], %103 {strides = array<i32>} : memref<32x288xf32, #tpu.memory_space<vmem>>, vector<32x32xf32>,
    %c13_119 = arith.constant 13 : index
    %c0_120 = arith.constant 0 : index
    %105 = vector.load %arg11[%c13_119, %c0_120] : memref<48x32xf32, #tpu.memory_space<vmem>>, vector<32x32xf32>
    %c8_121 = arith.constant 8 : index
    %c0_122 = arith.constant 0 : index
    %c0_123 = arith.constant 0 : index
    %106 = vector.load %arg2[%c8_121, %c0_122, %c0_123] : memref<9x32x32xf32, #tpu.memory_space<vmem>>, vector<1x32x32xf32>
    %107 = vector.shape_cast %106 : vector<1x32x32xf32> to vector<32x32xf32>
    %108 = arith.mulf %105, %107 : vector<32x32xf32>
    %c0_124 = arith.constant 0 : index
    %c256_125 = arith.constant 256 : index
    %109 = vector.load %arg12[%c0_124, %c256_125] : memref<32x288xf32, #tpu.memory_space<vmem>>, vector<32x32xf32>
    tpu.vector_store %arg12[%c0_124, %c256_125], %108 {strides = array<i32>} : memref<32x288xf32, #tpu.memory_space<vmem>>, vector<32x32xf32>,
    %c0_126 = arith.constant 0 : index
    %c0_127 = arith.constant 0 : index
    %110 = vector.load %arg12[%c0_126, %c0_127] : memref<32x288xf32, #tpu.memory_space<vmem>>, vector<32x288xf32>
    %c1_128 = arith.constant 1 : index
    %c0_129 = arith.constant 0 : index
    %c0_130 = arith.constant 0 : index
    %111 = vector.load %arg3[%c1_128, %c0_129, %c0_130] : memref<3x288x32xf32, #tpu.memory_space<vmem>>, vector<1x288x32xf32>
    %112 = vector.shape_cast %111 : vector<1x288x32xf32> to vector<288x32xf32>
    %cst_131 = arith.constant dense<0.000000e+00> : vector<32x32xf32>
    %113 = tpu.matmul %110, %112, %cst_131 {dimension_numbers = #tpu.dot_dimension_numbers<[1], [0], [0], [1], [0, 0, 1, 1], [], []>} : vector<32x288xf32>, vector<288x32xf32>, vector<32x32xf32> -> vector<32x32xf32>
    %c3_132 = arith.constant 3 : index
    %c0_133 = arith.constant 0 : index
    %114 = vector.load %arg9[%c3_132, %c0_133] : memref<26x128xf32, #tpu.memory_space<vmem>>, vector<1x32xf32>
    %115 = vector.broadcast %114 : vector<1x32xf32> to vector<32x32xf32>
    %116 = arith.addf %113, %115 : vector<32x32xf32>
    %cst_134 = arith.constant 0.000000e+00 : f32
    %117 = vector.broadcast %cst_134 : f32 to vector<32x32xf32>
    %118 = arith.maximumf %116, %117 : vector<32x32xf32>
    %c4_135 = arith.constant 4 : index
    %c0_136 = arith.constant 0 : index
    %119 = vector.load %arg9[%c4_135, %c0_136] : memref<26x128xf32, #tpu.memory_space<vmem>>, vector<1x32xf32>
    %120 = vector.broadcast %119 : vector<1x32xf32> to vector<32x32xf32>
    %121 = arith.mulf %118, %120 : vector<32x32xf32>
    %c5_137 = arith.constant 5 : index
    %c0_138 = arith.constant 0 : index
    %122 = vector.load %arg9[%c5_137, %c0_138] : memref<26x128xf32, #tpu.memory_space<vmem>>, vector<1x32xf32>
    %123 = vector.broadcast %122 : vector<1x32xf32> to vector<32x32xf32>
    %124 = arith.addf %121, %123 : vector<32x32xf32>
    %c8_139 = arith.constant 8 : index
    %c0_140 = arith.constant 0 : index
    %125 = vector.load %arg11[%c8_139, %c0_140] : memref<48x32xf32, #tpu.memory_space<vmem>>, vector<32x32xf32>
    tpu.vector_store %arg11[%c8_139, %c0_140], %124 {strides = array<i32>} : memref<48x32xf32, #tpu.memory_space<vmem>>, vector<32x32xf32>,
    %c3_141 = arith.constant 3 : index
    %c0_142 = arith.constant 0 : index
    %126 = vector.load %arg11[%c3_141, %c0_142] : memref<48x32xf32, #tpu.memory_space<vmem>>, vector<32x32xf32>
    %c0_143 = arith.constant 0 : index
    %c0_144 = arith.constant 0 : index
    %c0_145 = arith.constant 0 : index
    %127 = vector.load %arg2[%c0_143, %c0_144, %c0_145] : memref<9x32x32xf32, #tpu.memory_space<vmem>>, vector<1x32x32xf32>
    %128 = vector.shape_cast %127 : vector<1x32x32xf32> to vector<32x32xf32>
    %129 = arith.mulf %126, %128 : vector<32x32xf32>
    %c0_146 = arith.constant 0 : index
    %c0_147 = arith.constant 0 : index
    %130 = vector.load %arg12[%c0_146, %c0_147] : memref<32x288xf32, #tpu.memory_space<vmem>>, vector<32x32xf32>
    tpu.vector_store %arg12[%c0_146, %c0_147], %129 {strides = array<i32>} : memref<32x288xf32, #tpu.memory_space<vmem>>, vector<32x32xf32>,
    %c4_148 = arith.constant 4 : index
    %c0_149 = arith.constant 0 : index
    %131 = vector.load %arg11[%c4_148, %c0_149] : memref<48x32xf32, #tpu.memory_space<vmem>>, vector<32x32xf32>
    %c1_150 = arith.constant 1 : index
    %c0_151 = arith.constant 0 : index
    %c0_152 = arith.constant 0 : index
    %132 = vector.load %arg2[%c1_150, %c0_151, %c0_152] : memref<9x32x32xf32, #tpu.memory_space<vmem>>, vector<1x32x32xf32>
    %133 = vector.shape_cast %132 : vector<1x32x32xf32> to vector<32x32xf32>
    %134 = arith.mulf %131, %133 : vector<32x32xf32>
    %c0_153 = arith.constant 0 : index
    %c32_154 = arith.constant 32 : index
    %135 = vector.load %arg12[%c0_153, %c32_154] : memref<32x288xf32, #tpu.memory_space<vmem>>, vector<32x32xf32>
    tpu.vector_store %arg12[%c0_153, %c32_154], %134 {strides = array<i32>} : memref<32x288xf32, #tpu.memory_space<vmem>>, vector<32x32xf32>,
    %c5_155 = arith.constant 5 : index
    %c0_156 = arith.constant 0 : index
    %136 = vector.load %arg11[%c5_155, %c0_156] : memref<48x32xf32, #tpu.memory_space<vmem>>, vector<32x32xf32>
    %c2_157 = arith.constant 2 : index
    %c0_158 = arith.constant 0 : index
    %c0_159 = arith.constant 0 : index
    %137 = vector.load %arg2[%c2_157, %c0_158, %c0_159] : memref<9x32x32xf32, #tpu.memory_space<vmem>>, vector<1x32x32xf32>
    %138 = vector.shape_cast %137 : vector<1x32x32xf32> to vector<32x32xf32>
    %139 = arith.mulf %136, %138 : vector<32x32xf32>
    %c0_160 = arith.constant 0 : index
    %c64_161 = arith.constant 64 : index
    %140 = vector.load %arg12[%c0_160, %c64_161] : memref<32x288xf32, #tpu.memory_space<vmem>>, vector<32x32xf32>
    tpu.vector_store %arg12[%c0_160, %c64_161], %139 {strides = array<i32>} : memref<32x288xf32, #tpu.memory_space<vmem>>, vector<32x32xf32>,
    %c7_162 = arith.constant 7 : index
    %c0_163 = arith.constant 0 : index
    %141 = vector.load %arg11[%c7_162, %c0_163] : memref<48x32xf32, #tpu.memory_space<vmem>>, vector<32x32xf32>
    %c3_164 = arith.constant 3 : index
    %c0_165 = arith.constant 0 : index
    %c0_166 = arith.constant 0 : index
    %142 = vector.load %arg2[%c3_164, %c0_165, %c0_166] : memref<9x32x32xf32, #tpu.memory_space<vmem>>, vector<1x32x32xf32>
    %143 = vector.shape_cast %142 : vector<1x32x32xf32> to vector<32x32xf32>
    %144 = arith.mulf %141, %143 : vector<32x32xf32>
    %c0_167 = arith.constant 0 : index
    %c96_168 = arith.constant 96 : index
    %145 = vector.load %arg12[%c0_167, %c96_168] : memref<32x288xf32, #tpu.memory_space<vmem>>, vector<32x32xf32>
    tpu.vector_store %arg12[%c0_167, %c96_168], %144 {strides = array<i32>} : memref<32x288xf32, #tpu.memory_space<vmem>>, vector<32x32xf32>,
    %c8_169 = arith.constant 8 : index
    %c0_170 = arith.constant 0 : index
    %146 = vector.load %arg11[%c8_169, %c0_170] : memref<48x32xf32, #tpu.memory_space<vmem>>, vector<32x32xf32>
    %c4_171 = arith.constant 4 : index
    %c0_172 = arith.constant 0 : index
    %c0_173 = arith.constant 0 : index
    %147 = vector.load %arg2[%c4_171, %c0_172, %c0_173] : memref<9x32x32xf32, #tpu.memory_space<vmem>>, vector<1x32x32xf32>
    %148 = vector.shape_cast %147 : vector<1x32x32xf32> to vector<32x32xf32>
    %149 = arith.mulf %146, %148 : vector<32x32xf32>
    %c0_174 = arith.constant 0 : index
    %c128_175 = arith.constant 128 : index
    %150 = vector.load %arg12[%c0_174, %c128_175] : memref<32x288xf32, #tpu.memory_space<vmem>>, vector<32x32xf32>
    tpu.vector_store %arg12[%c0_174, %c128_175], %149 {strides = array<i32>} : memref<32x288xf32, #tpu.memory_space<vmem>>, vector<32x32xf32>,
    %c9_176 = arith.constant 9 : index
    %c0_177 = arith.constant 0 : index
    %151 = vector.load %arg11[%c9_176, %c0_177] : memref<48x32xf32, #tpu.memory_space<vmem>>, vector<32x32xf32>
    %c5_178 = arith.constant 5 : index
    %c0_179 = arith.constant 0 : index
    %c0_180 = arith.constant 0 : index
    %152 = vector.load %arg2[%c5_178, %c0_179, %c0_180] : memref<9x32x32xf32, #tpu.memory_space<vmem>>, vector<1x32x32xf32>
    %153 = vector.shape_cast %152 : vector<1x32x32xf32> to vector<32x32xf32>
    %154 = arith.mulf %151, %153 : vector<32x32xf32>
    %c0_181 = arith.constant 0 : index
    %c160_182 = arith.constant 160 : index
    %155 = vector.load %arg12[%c0_181, %c160_182] : memref<32x288xf32, #tpu.memory_space<vmem>>, vector<32x32xf32>
    tpu.vector_store %arg12[%c0_181, %c160_182], %154 {strides = array<i32>} : memref<32x288xf32, #tpu.memory_space<vmem>>, vector<32x32xf32>,
    %c11_183 = arith.constant 11 : index
    %c0_184 = arith.constant 0 : index
    %156 = vector.load %arg11[%c11_183, %c0_184] : memref<48x32xf32, #tpu.memory_space<vmem>>, vector<32x32xf32>
    %c6_185 = arith.constant 6 : index
    %c0_186 = arith.constant 0 : index
    %c0_187 = arith.constant 0 : index
    %157 = vector.load %arg2[%c6_185, %c0_186, %c0_187] : memref<9x32x32xf32, #tpu.memory_space<vmem>>, vector<1x32x32xf32>
    %158 = vector.shape_cast %157 : vector<1x32x32xf32> to vector<32x32xf32>
    %159 = arith.mulf %156, %158 : vector<32x32xf32>
    %c0_188 = arith.constant 0 : index
    %c192_189 = arith.constant 192 : index
    %160 = vector.load %arg12[%c0_188, %c192_189] : memref<32x288xf32, #tpu.memory_space<vmem>>, vector<32x32xf32>
    tpu.vector_store %arg12[%c0_188, %c192_189], %159 {strides = array<i32>} : memref<32x288xf32, #tpu.memory_space<vmem>>, vector<32x32xf32>,
    %c12_190 = arith.constant 12 : index
    %c0_191 = arith.constant 0 : index
    %161 = vector.load %arg11[%c12_190, %c0_191] : memref<48x32xf32, #tpu.memory_space<vmem>>, vector<32x32xf32>
    %c7_192 = arith.constant 7 : index
    %c0_193 = arith.constant 0 : index
    %c0_194 = arith.constant 0 : index
    %162 = vector.load %arg2[%c7_192, %c0_193, %c0_194] : memref<9x32x32xf32, #tpu.memory_space<vmem>>, vector<1x32x32xf32>
    %163 = vector.shape_cast %162 : vector<1x32x32xf32> to vector<32x32xf32>
    %164 = arith.mulf %161, %163 : vector<32x32xf32>
    %c0_195 = arith.constant 0 : index
    %c224_196 = arith.constant 224 : index
    %165 = vector.load %arg12[%c0_195, %c224_196] : memref<32x288xf32, #tpu.memory_space<vmem>>, vector<32x32xf32>
    tpu.vector_store %arg12[%c0_195, %c224_196], %164 {strides = array<i32>} : memref<32x288xf32, #tpu.memory_space<vmem>>, vector<32x32xf32>,
    %c13_197 = arith.constant 13 : index
    %c0_198 = arith.constant 0 : index
    %166 = vector.load %arg11[%c13_197, %c0_198] : memref<48x32xf32, #tpu.memory_space<vmem>>, vector<32x32xf32>
    %c8_199 = arith.constant 8 : index
    %c0_200 = arith.constant 0 : index
    %c0_201 = arith.constant 0 : index
    %167 = vector.load %arg2[%c8_199, %c0_200, %c0_201] : memref<9x32x32xf32, #tpu.memory_space<vmem>>, vector<1x32x32xf32>
    %168 = vector.shape_cast %167 : vector<1x32x32xf32> to vector<32x32xf32>
    %169 = arith.mulf %166, %168 : vector<32x32xf32>
    %c0_202 = arith.constant 0 : index
    %c256_203 = arith.constant 256 : index
    %170 = vector.load %arg12[%c0_202, %c256_203] : memref<32x288xf32, #tpu.memory_space<vmem>>, vector<32x32xf32>
    tpu.vector_store %arg12[%c0_202, %c256_203], %169 {strides = array<i32>} : memref<32x288xf32, #tpu.memory_space<vmem>>, vector<32x32xf32>,
    %c0_204 = arith.constant 0 : index
    %c0_205 = arith.constant 0 : index
    %171 = vector.load %arg12[%c0_204, %c0_205] : memref<32x288xf32, #tpu.memory_space<vmem>>, vector<32x288xf32>
    %c2_206 = arith.constant 2 : index
    %c0_207 = arith.constant 0 : index
    %c0_208 = arith.constant 0 : index
    %172 = vector.load %arg3[%c2_206, %c0_207, %c0_208] : memref<3x288x32xf32, #tpu.memory_space<vmem>>, vector<1x288x32xf32>
    %173 = vector.shape_cast %172 : vector<1x288x32xf32> to vector<288x32xf32>
    %cst_209 = arith.constant dense<0.000000e+00> : vector<32x32xf32>
    %174 = tpu.matmul %171, %173, %cst_209 {dimension_numbers = #tpu.dot_dimension_numbers<[1], [0], [0], [1], [0, 0, 1, 1], [], []>} : vector<32x288xf32>, vector<288x32xf32>, vector<32x32xf32> -> vector<32x32xf32>
    %c6_210 = arith.constant 6 : index
    %c0_211 = arith.constant 0 : index
    %175 = vector.load %arg9[%c6_210, %c0_211] : memref<26x128xf32, #tpu.memory_space<vmem>>, vector<1x32xf32>
    %176 = vector.broadcast %175 : vector<1x32xf32> to vector<32x32xf32>
    %177 = arith.addf %174, %176 : vector<32x32xf32>
    %cst_212 = arith.constant 0.000000e+00 : f32
    %178 = vector.broadcast %cst_212 : f32 to vector<32x32xf32>
    %179 = arith.maximumf %177, %178 : vector<32x32xf32>
    %c7_213 = arith.constant 7 : index
    %c0_214 = arith.constant 0 : index
    %180 = vector.load %arg9[%c7_213, %c0_214] : memref<26x128xf32, #tpu.memory_space<vmem>>, vector<1x32xf32>
    %181 = vector.broadcast %180 : vector<1x32xf32> to vector<32x32xf32>
    %182 = arith.mulf %179, %181 : vector<32x32xf32>
    %c8_215 = arith.constant 8 : index
    %c0_216 = arith.constant 0 : index
    %183 = vector.load %arg9[%c8_215, %c0_216] : memref<26x128xf32, #tpu.memory_space<vmem>>, vector<1x32xf32>
    %184 = vector.broadcast %183 : vector<1x32xf32> to vector<32x32xf32>
    %185 = arith.addf %182, %184 : vector<32x32xf32>
    %c0_217 = arith.constant 0 : index
    %c0_218 = arith.constant 0 : index
    %c0_219 = arith.constant 0 : index
    %186 = vector.load %arg4[%c0_217, %c0_218, %c0_219] : memref<2x32x96xf32, #tpu.memory_space<vmem>>, vector<1x32x96xf32>
    %187 = vector.shape_cast %186 : vector<1x32x96xf32> to vector<32x96xf32>
    %cst_220 = arith.constant dense<0.000000e+00> : vector<32x96xf32>
    %188 = tpu.matmul %185, %187, %cst_220 {dimension_numbers = #tpu.dot_dimension_numbers<[1], [0], [0], [1], [0, 0, 1, 1], [], []>} : vector<32x32xf32>, vector<32x96xf32>, vector<32x96xf32> -> vector<32x96xf32>
    %c9_221 = arith.constant 9 : index
    %c0_222 = arith.constant 0 : index
    %189 = vector.load %arg9[%c9_221, %c0_222] : memref<26x128xf32, #tpu.memory_space<vmem>>, vector<1x96xf32>
    %190 = vector.broadcast %189 : vector<1x96xf32> to vector<32x96xf32>
    %191 = arith.addf %188, %190 : vector<32x96xf32>
    %192 = vector.extract_strided_slice %191 {offsets = [0, 0], sizes = [32, 8], strides = [1, 1]} : vector<32x96xf32> to vector<32x8xf32>
    %193 = vector.shape_cast %192 : vector<32x8xf32> to vector<2x16x8xf32>
    %194 = vector.extract_strided_slice %191 {offsets = [0, 32], sizes = [32, 8], strides = [1, 1]} : vector<32x96xf32> to vector<32x8xf32>
    %195 = vector.shape_cast %194 : vector<32x8xf32> to vector<2x16x8xf32>
    %196 = vector.extract_strided_slice %191 {offsets = [0, 64], sizes = [32, 8], strides = [1, 1]} : vector<32x96xf32> to vector<32x8xf32>
    %197 = vector.shape_cast %196 : vector<32x8xf32> to vector<2x16x8xf32>
    "tpu.trace_start"() <{level = 10 : i32, message = "bqd,bkd->bqk"}> : () -> ()
    %cst_223 = arith.constant dense<0.000000e+00> : vector<2x16x16xf32>
    %198 = tpu.matmul %193, %195, %cst_223 {dimension_numbers = #tpu.dot_dimension_numbers<[2], [2], [1], [1], [0, 0, 0, 1, 1, 1], [0], [0]>} : vector<2x16x8xf32>, vector<2x16x8xf32>, vector<2x16x16xf32> -> vector<2x16x16xf32>
    "tpu.trace_stop"() : () -> ()
    %cst_224 = arith.constant dense<0xFF800000> : vector<2x16xf32>
    %199 = vector.multi_reduction <maximumf>, %198, %cst_224 [2] : vector<2x16x16xf32> to vector<2x16xf32>
    %200 = vector.shape_cast %199 : vector<2x16xf32> to vector<2x16x1xf32>
    %201 = vector.broadcast %200 : vector<2x16x1xf32> to vector<2x16x16xf32>
    %202 = arith.subf %198, %201 : vector<2x16x16xf32>
    %203 = math.exp %202 : vector<2x16x16xf32>
    %cst_225 = arith.constant dense<0.000000e+00> : vector<2x16xf32>
    %204 = vector.multi_reduction <add>, %203, %cst_225 [2] : vector<2x16x16xf32> to vector<2x16xf32>
    %205 = vector.shape_cast %204 : vector<2x16xf32> to vector<2x16x1xf32>
    %206 = tpu.reciprocal %205 {approx = true} : vector<2x16x1xf32> -> vector<2x16x1xf32>
    %207 = vector.broadcast %206 : vector<2x16x1xf32> to vector<2x16x16xf32>
    %208 = arith.mulf %203, %207 : vector<2x16x16xf32>
    "tpu.trace_start"() <{level = 10 : i32, message = "bqk,bkd->bqd"}> : () -> ()
    %cst_226 = arith.constant dense<0.000000e+00> : vector<2x16x8xf32>
    %209 = tpu.matmul %208, %197, %cst_226 {dimension_numbers = #tpu.dot_dimension_numbers<[2], [1], [1], [2], [0, 0, 0, 1, 1, 2], [0], [0]>} : vector<2x16x16xf32>, vector<2x16x8xf32>, vector<2x16x8xf32> -> vector<2x16x8xf32>
    "tpu.trace_stop"() : () -> ()
    %210 = vector.shape_cast %209 : vector<2x16x8xf32> to vector<32x8xf32>
    %c0_227 = arith.constant 0 : index
    %c0_228 = arith.constant 0 : index
    %211 = vector.load %arg13[%c0_227, %c0_228] : memref<32x32xf32, #tpu.memory_space<vmem>>, vector<32x8xf32>
    tpu.vector_store %arg13[%c0_227, %c0_228], %210 {strides = array<i32>} : memref<32x32xf32, #tpu.memory_space<vmem>>, vector<32x8xf32>,
    %212 = vector.extract_strided_slice %191 {offsets = [0, 8], sizes = [32, 8], strides = [1, 1]} : vector<32x96xf32> to vector<32x8xf32>
    %213 = vector.shape_cast %212 : vector<32x8xf32> to vector<2x16x8xf32>
    %214 = vector.extract_strided_slice %191 {offsets = [0, 40], sizes = [32, 8], strides = [1, 1]} : vector<32x96xf32> to vector<32x8xf32>
    %215 = vector.shape_cast %214 : vector<32x8xf32> to vector<2x16x8xf32>
    %216 = vector.extract_strided_slice %191 {offsets = [0, 72], sizes = [32, 8], strides = [1, 1]} : vector<32x96xf32> to vector<32x8xf32>
    %217 = vector.shape_cast %216 : vector<32x8xf32> to vector<2x16x8xf32>
    "tpu.trace_start"() <{level = 10 : i32, message = "bqd,bkd->bqk"}> : () -> ()
    %cst_229 = arith.constant dense<0.000000e+00> : vector<2x16x16xf32>
    %218 = tpu.matmul %213, %215, %cst_229 {dimension_numbers = #tpu.dot_dimension_numbers<[2], [2], [1], [1], [0, 0, 0, 1, 1, 1], [0], [0]>} : vector<2x16x8xf32>, vector<2x16x8xf32>, vector<2x16x16xf32> -> vector<2x16x16xf32>
    "tpu.trace_stop"() : () -> ()
    %cst_230 = arith.constant dense<0xFF800000> : vector<2x16xf32>
    %219 = vector.multi_reduction <maximumf>, %218, %cst_230 [2] : vector<2x16x16xf32> to vector<2x16xf32>
    %220 = vector.shape_cast %219 : vector<2x16xf32> to vector<2x16x1xf32>
    %221 = vector.broadcast %220 : vector<2x16x1xf32> to vector<2x16x16xf32>
    %222 = arith.subf %218, %221 : vector<2x16x16xf32>
    %223 = math.exp %222 : vector<2x16x16xf32>
    %cst_231 = arith.constant dense<0.000000e+00> : vector<2x16xf32>
    %224 = vector.multi_reduction <add>, %223, %cst_231 [2] : vector<2x16x16xf32> to vector<2x16xf32>
    %225 = vector.shape_cast %224 : vector<2x16xf32> to vector<2x16x1xf32>
    %226 = tpu.reciprocal %225 {approx = true} : vector<2x16x1xf32> -> vector<2x16x1xf32>
    %227 = vector.broadcast %226 : vector<2x16x1xf32> to vector<2x16x16xf32>
    %228 = arith.mulf %223, %227 : vector<2x16x16xf32>
    "tpu.trace_start"() <{level = 10 : i32, message = "bqk,bkd->bqd"}> : () -> ()
    %cst_232 = arith.constant dense<0.000000e+00> : vector<2x16x8xf32>
    %229 = tpu.matmul %228, %217, %cst_232 {dimension_numbers = #tpu.dot_dimension_numbers<[2], [1], [1], [2], [0, 0, 0, 1, 1, 2], [0], [0]>} : vector<2x16x16xf32>, vector<2x16x8xf32>, vector<2x16x8xf32> -> vector<2x16x8xf32>
    "tpu.trace_stop"() : () -> ()
    %230 = vector.shape_cast %229 : vector<2x16x8xf32> to vector<32x8xf32>
    %c0_233 = arith.constant 0 : index
    %c8_234 = arith.constant 8 : index
    %231 = vector.load %arg13[%c0_233, %c8_234] : memref<32x32xf32, #tpu.memory_space<vmem>>, vector<32x8xf32>
    tpu.vector_store %arg13[%c0_233, %c8_234], %230 {strides = array<i32>} : memref<32x32xf32, #tpu.memory_space<vmem>>, vector<32x8xf32>,
    %232 = vector.extract_strided_slice %191 {offsets = [0, 16], sizes = [32, 8], strides = [1, 1]} : vector<32x96xf32> to vector<32x8xf32>
    %233 = vector.shape_cast %232 : vector<32x8xf32> to vector<2x16x8xf32>
    %234 = vector.extract_strided_slice %191 {offsets = [0, 48], sizes = [32, 8], strides = [1, 1]} : vector<32x96xf32> to vector<32x8xf32>
    %235 = vector.shape_cast %234 : vector<32x8xf32> to vector<2x16x8xf32>
    %236 = vector.extract_strided_slice %191 {offsets = [0, 80], sizes = [32, 8], strides = [1, 1]} : vector<32x96xf32> to vector<32x8xf32>
    %237 = vector.shape_cast %236 : vector<32x8xf32> to vector<2x16x8xf32>
    "tpu.trace_start"() <{level = 10 : i32, message = "bqd,bkd->bqk"}> : () -> ()
    %cst_235 = arith.constant dense<0.000000e+00> : vector<2x16x16xf32>
    %238 = tpu.matmul %233, %235, %cst_235 {dimension_numbers = #tpu.dot_dimension_numbers<[2], [2], [1], [1], [0, 0, 0, 1, 1, 1], [0], [0]>} : vector<2x16x8xf32>, vector<2x16x8xf32>, vector<2x16x16xf32> -> vector<2x16x16xf32>
    "tpu.trace_stop"() : () -> ()
    %cst_236 = arith.constant dense<0xFF800000> : vector<2x16xf32>
    %239 = vector.multi_reduction <maximumf>, %238, %cst_236 [2] : vector<2x16x16xf32> to vector<2x16xf32>
    %240 = vector.shape_cast %239 : vector<2x16xf32> to vector<2x16x1xf32>
    %241 = vector.broadcast %240 : vector<2x16x1xf32> to vector<2x16x16xf32>
    %242 = arith.subf %238, %241 : vector<2x16x16xf32>
    %243 = math.exp %242 : vector<2x16x16xf32>
    %cst_237 = arith.constant dense<0.000000e+00> : vector<2x16xf32>
    %244 = vector.multi_reduction <add>, %243, %cst_237 [2] : vector<2x16x16xf32> to vector<2x16xf32>
    %245 = vector.shape_cast %244 : vector<2x16xf32> to vector<2x16x1xf32>
    %246 = tpu.reciprocal %245 {approx = true} : vector<2x16x1xf32> -> vector<2x16x1xf32>
    %247 = vector.broadcast %246 : vector<2x16x1xf32> to vector<2x16x16xf32>
    %248 = arith.mulf %243, %247 : vector<2x16x16xf32>
    "tpu.trace_start"() <{level = 10 : i32, message = "bqk,bkd->bqd"}> : () -> ()
    %cst_238 = arith.constant dense<0.000000e+00> : vector<2x16x8xf32>
    %249 = tpu.matmul %248, %237, %cst_238 {dimension_numbers = #tpu.dot_dimension_numbers<[2], [1], [1], [2], [0, 0, 0, 1, 1, 2], [0], [0]>} : vector<2x16x16xf32>, vector<2x16x8xf32>, vector<2x16x8xf32> -> vector<2x16x8xf32>
    "tpu.trace_stop"() : () -> ()
    %250 = vector.shape_cast %249 : vector<2x16x8xf32> to vector<32x8xf32>
    %c0_239 = arith.constant 0 : index
    %c16 = arith.constant 16 : index
    %251 = vector.load %arg13[%c0_239, %c16] : memref<32x32xf32, #tpu.memory_space<vmem>>, vector<32x8xf32>
    tpu.vector_store %arg13[%c0_239, %c16], %250 {strides = array<i32>} : memref<32x32xf32, #tpu.memory_space<vmem>>, vector<32x8xf32>,
    %252 = vector.extract_strided_slice %191 {offsets = [0, 24], sizes = [32, 8], strides = [1, 1]} : vector<32x96xf32> to vector<32x8xf32>
    %253 = vector.shape_cast %252 : vector<32x8xf32> to vector<2x16x8xf32>
    %254 = vector.extract_strided_slice %191 {offsets = [0, 56], sizes = [32, 8], strides = [1, 1]} : vector<32x96xf32> to vector<32x8xf32>
    %255 = vector.shape_cast %254 : vector<32x8xf32> to vector<2x16x8xf32>
    %256 = vector.extract_strided_slice %191 {offsets = [0, 88], sizes = [32, 8], strides = [1, 1]} : vector<32x96xf32> to vector<32x8xf32>
    %257 = vector.shape_cast %256 : vector<32x8xf32> to vector<2x16x8xf32>
    "tpu.trace_start"() <{level = 10 : i32, message = "bqd,bkd->bqk"}> : () -> ()
    %cst_240 = arith.constant dense<0.000000e+00> : vector<2x16x16xf32>
    %258 = tpu.matmul %253, %255, %cst_240 {dimension_numbers = #tpu.dot_dimension_numbers<[2], [2], [1], [1], [0, 0, 0, 1, 1, 1], [0], [0]>} : vector<2x16x8xf32>, vector<2x16x8xf32>, vector<2x16x16xf32> -> vector<2x16x16xf32>
    "tpu.trace_stop"() : () -> ()
    %cst_241 = arith.constant dense<0xFF800000> : vector<2x16xf32>
    %259 = vector.multi_reduction <maximumf>, %258, %cst_241 [2] : vector<2x16x16xf32> to vector<2x16xf32>
    %260 = vector.shape_cast %259 : vector<2x16xf32> to vector<2x16x1xf32>
    %261 = vector.broadcast %260 : vector<2x16x1xf32> to vector<2x16x16xf32>
    %262 = arith.subf %258, %261 : vector<2x16x16xf32>
    %263 = math.exp %262 : vector<2x16x16xf32>
    %cst_242 = arith.constant dense<0.000000e+00> : vector<2x16xf32>
    %264 = vector.multi_reduction <add>, %263, %cst_242 [2] : vector<2x16x16xf32> to vector<2x16xf32>
    %265 = vector.shape_cast %264 : vector<2x16xf32> to vector<2x16x1xf32>
    %266 = tpu.reciprocal %265 {approx = true} : vector<2x16x1xf32> -> vector<2x16x1xf32>
    %267 = vector.broadcast %266 : vector<2x16x1xf32> to vector<2x16x16xf32>
    %268 = arith.mulf %263, %267 : vector<2x16x16xf32>
    "tpu.trace_start"() <{level = 10 : i32, message = "bqk,bkd->bqd"}> : () -> ()
    %cst_243 = arith.constant dense<0.000000e+00> : vector<2x16x8xf32>
    %269 = tpu.matmul %268, %257, %cst_243 {dimension_numbers = #tpu.dot_dimension_numbers<[2], [1], [1], [2], [0, 0, 0, 1, 1, 2], [0], [0]>} : vector<2x16x16xf32>, vector<2x16x8xf32>, vector<2x16x8xf32> -> vector<2x16x8xf32>
    "tpu.trace_stop"() : () -> ()
    %270 = vector.shape_cast %269 : vector<2x16x8xf32> to vector<32x8xf32>
    %c0_244 = arith.constant 0 : index
    %c24 = arith.constant 24 : index
    %271 = vector.load %arg13[%c0_244, %c24] : memref<32x32xf32, #tpu.memory_space<vmem>>, vector<32x8xf32>
    tpu.vector_store %arg13[%c0_244, %c24], %270 {strides = array<i32>} : memref<32x32xf32, #tpu.memory_space<vmem>>, vector<32x8xf32>,
    %c0_245 = arith.constant 0 : index
    %c0_246 = arith.constant 0 : index
    %272 = vector.load %arg13[%c0_245, %c0_246] : memref<32x32xf32, #tpu.memory_space<vmem>>, vector<32x32xf32>
    %c0_247 = arith.constant 0 : index
    %c0_248 = arith.constant 0 : index
    %c0_249 = arith.constant 0 : index
    %273 = vector.load %arg5[%c0_247, %c0_248, %c0_249] : memref<2x32x32xf32, #tpu.memory_space<vmem>>, vector<1x32x32xf32>
    %274 = vector.shape_cast %273 : vector<1x32x32xf32> to vector<32x32xf32>
    %cst_250 = arith.constant dense<0.000000e+00> : vector<32x32xf32>
    %275 = tpu.matmul %272, %274, %cst_250 {dimension_numbers = #tpu.dot_dimension_numbers<[1], [0], [0], [1], [0, 0, 1, 1], [], []>} : vector<32x32xf32>, vector<32x32xf32>, vector<32x32xf32> -> vector<32x32xf32>
    %c10 = arith.constant 10 : index
    %c0_251 = arith.constant 0 : index
    %276 = vector.load %arg9[%c10, %c0_251] : memref<26x128xf32, #tpu.memory_space<vmem>>, vector<1x32xf32>
    %277 = vector.broadcast %276 : vector<1x32xf32> to vector<32x32xf32>
    %278 = arith.addf %275, %277 : vector<32x32xf32>
    %279 = arith.addf %185, %278 : vector<32x32xf32>
    %c11_252 = arith.constant 11 : index
    %c0_253 = arith.constant 0 : index
    %280 = vector.load %arg9[%c11_252, %c0_253] : memref<26x128xf32, #tpu.memory_space<vmem>>, vector<1x32xf32>
    %c12_254 = arith.constant 12 : index
    %c0_255 = arith.constant 0 : index
    %281 = vector.load %arg9[%c12_254, %c0_255] : memref<26x128xf32, #tpu.memory_space<vmem>>, vector<1x32xf32>
    %cst_256 = arith.constant dense<0.000000e+00> : vector<32xf32>
    %282 = vector.multi_reduction <add>, %279, %cst_256 [1] : vector<32x32xf32> to vector<32xf32>
    %283 = vector.shape_cast %282 : vector<32xf32> to vector<32x1xf32>
    %cst_257 = arith.constant 3.200000e+01 : f32
    %284 = vector.broadcast %cst_257 : f32 to vector<32x1xf32>
    %285 = arith.divf %283, %284 : vector<32x1xf32>
    %286 = arith.mulf %279, %279 : vector<32x32xf32>
    %cst_258 = arith.constant dense<0.000000e+00> : vector<32xf32>
    %287 = vector.multi_reduction <add>, %286, %cst_258 [1] : vector<32x32xf32> to vector<32xf32>
    %288 = vector.shape_cast %287 : vector<32xf32> to vector<32x1xf32>
    %cst_259 = arith.constant 3.200000e+01 : f32
    %289 = vector.broadcast %cst_259 : f32 to vector<32x1xf32>
    %290 = arith.divf %288, %289 : vector<32x1xf32>
    %291 = arith.mulf %285, %285 : vector<32x1xf32>
    %292 = arith.subf %290, %291 : vector<32x1xf32>
    %293 = vector.broadcast %285 : vector<32x1xf32> to vector<32x32xf32>
    %294 = arith.subf %279, %293 : vector<32x32xf32>
    %cst_260 = arith.constant 9.99999974E-6 : f32
    %295 = vector.broadcast %cst_260 : f32 to vector<32x1xf32>
    %296 = arith.addf %292, %295 : vector<32x1xf32>
    %297 = math.rsqrt %296 : vector<32x1xf32>
    %298 = vector.broadcast %297 : vector<32x1xf32> to vector<32x32xf32>
    %299 = arith.mulf %294, %298 : vector<32x32xf32>
    %300 = vector.broadcast %280 : vector<1x32xf32> to vector<32x32xf32>
    %301 = arith.mulf %299, %300 : vector<32x32xf32>
    %302 = vector.broadcast %281 : vector<1x32xf32> to vector<32x32xf32>
    %303 = arith.addf %301, %302 : vector<32x32xf32>
    %c0_261 = arith.constant 0 : index
    %c0_262 = arith.constant 0 : index
    %c0_263 = arith.constant 0 : index
    %304 = vector.load %arg6[%c0_261, %c0_262, %c0_263] : memref<2x32x64xf32, #tpu.memory_space<vmem>>, vector<1x32x64xf32>
    %305 = vector.shape_cast %304 : vector<1x32x64xf32> to vector<32x64xf32>
    %cst_264 = arith.constant dense<0.000000e+00> : vector<32x64xf32>
    %306 = tpu.matmul %303, %305, %cst_264 {dimension_numbers = #tpu.dot_dimension_numbers<[1], [0], [0], [1], [0, 0, 1, 1], [], []>} : vector<32x32xf32>, vector<32x64xf32>, vector<32x64xf32> -> vector<32x64xf32>
    %c13_265 = arith.constant 13 : index
    %c0_266 = arith.constant 0 : index
    %307 = vector.load %arg9[%c13_265, %c0_266] : memref<26x128xf32, #tpu.memory_space<vmem>>, vector<1x64xf32>
    %308 = vector.broadcast %307 : vector<1x64xf32> to vector<32x64xf32>
    %309 = arith.addf %306, %308 : vector<32x64xf32>
    %cst_267 = arith.constant 0.000000e+00 : f32
    %310 = vector.broadcast %cst_267 : f32 to vector<32x64xf32>
    %311 = arith.maximumf %309, %310 : vector<32x64xf32>
    %c0_268 = arith.constant 0 : index
    %c0_269 = arith.constant 0 : index
    %c0_270 = arith.constant 0 : index
    %312 = vector.load %arg7[%c0_268, %c0_269, %c0_270] : memref<2x64x32xf32, #tpu.memory_space<vmem>>, vector<1x64x32xf32>
    %313 = vector.shape_cast %312 : vector<1x64x32xf32> to vector<64x32xf32>
    %cst_271 = arith.constant dense<0.000000e+00> : vector<32x32xf32>
    %314 = tpu.matmul %311, %313, %cst_271 {dimension_numbers = #tpu.dot_dimension_numbers<[1], [0], [0], [1], [0, 0, 1, 1], [], []>} : vector<32x64xf32>, vector<64x32xf32>, vector<32x32xf32> -> vector<32x32xf32>
    %c14 = arith.constant 14 : index
    %c0_272 = arith.constant 0 : index
    %315 = vector.load %arg9[%c14, %c0_272] : memref<26x128xf32, #tpu.memory_space<vmem>>, vector<1x32xf32>
    %316 = vector.broadcast %315 : vector<1x32xf32> to vector<32x32xf32>
    %317 = arith.addf %314, %316 : vector<32x32xf32>
    %318 = arith.addf %303, %317 : vector<32x32xf32>
    %c15 = arith.constant 15 : index
    %c0_273 = arith.constant 0 : index
    %319 = vector.load %arg9[%c15, %c0_273] : memref<26x128xf32, #tpu.memory_space<vmem>>, vector<1x32xf32>
    %c16_274 = arith.constant 16 : index
    %c0_275 = arith.constant 0 : index
    %320 = vector.load %arg9[%c16_274, %c0_275] : memref<26x128xf32, #tpu.memory_space<vmem>>, vector<1x32xf32>
    %cst_276 = arith.constant dense<0.000000e+00> : vector<32xf32>
    %321 = vector.multi_reduction <add>, %318, %cst_276 [1] : vector<32x32xf32> to vector<32xf32>
    %322 = vector.shape_cast %321 : vector<32xf32> to vector<32x1xf32>
    %cst_277 = arith.constant 3.200000e+01 : f32
    %323 = vector.broadcast %cst_277 : f32 to vector<32x1xf32>
    %324 = arith.divf %322, %323 : vector<32x1xf32>
    %325 = arith.mulf %318, %318 : vector<32x32xf32>
    %cst_278 = arith.constant dense<0.000000e+00> : vector<32xf32>
    %326 = vector.multi_reduction <add>, %325, %cst_278 [1] : vector<32x32xf32> to vector<32xf32>
    %327 = vector.shape_cast %326 : vector<32xf32> to vector<32x1xf32>
    %cst_279 = arith.constant 3.200000e+01 : f32
    %328 = vector.broadcast %cst_279 : f32 to vector<32x1xf32>
    %329 = arith.divf %327, %328 : vector<32x1xf32>
    %330 = arith.mulf %324, %324 : vector<32x1xf32>
    %331 = arith.subf %329, %330 : vector<32x1xf32>
    %332 = vector.broadcast %324 : vector<32x1xf32> to vector<32x32xf32>
    %333 = arith.subf %318, %332 : vector<32x32xf32>
    %cst_280 = arith.constant 9.99999974E-6 : f32
    %334 = vector.broadcast %cst_280 : f32 to vector<32x1xf32>
    %335 = arith.addf %331, %334 : vector<32x1xf32>
    %336 = math.rsqrt %335 : vector<32x1xf32>
    %337 = vector.broadcast %336 : vector<32x1xf32> to vector<32x32xf32>
    %338 = arith.mulf %333, %337 : vector<32x32xf32>
    %339 = vector.broadcast %319 : vector<1x32xf32> to vector<32x32xf32>
    %340 = arith.mulf %338, %339 : vector<32x32xf32>
    %341 = vector.broadcast %320 : vector<1x32xf32> to vector<32x32xf32>
    %342 = arith.addf %340, %341 : vector<32x32xf32>
    %c1_281 = arith.constant 1 : index
    %c0_282 = arith.constant 0 : index
    %c0_283 = arith.constant 0 : index
    %343 = vector.load %arg4[%c1_281, %c0_282, %c0_283] : memref<2x32x96xf32, #tpu.memory_space<vmem>>, vector<1x32x96xf32>
    %344 = vector.shape_cast %343 : vector<1x32x96xf32> to vector<32x96xf32>
    %cst_284 = arith.constant dense<0.000000e+00> : vector<32x96xf32>
    %345 = tpu.matmul %342, %344, %cst_284 {dimension_numbers = #tpu.dot_dimension_numbers<[1], [0], [0], [1], [0, 0, 1, 1], [], []>} : vector<32x32xf32>, vector<32x96xf32>, vector<32x96xf32> -> vector<32x96xf32>
    %c17 = arith.constant 17 : index
    %c0_285 = arith.constant 0 : index
    %346 = vector.load %arg9[%c17, %c0_285] : memref<26x128xf32, #tpu.memory_space<vmem>>, vector<1x96xf32>
    %347 = vector.broadcast %346 : vector<1x96xf32> to vector<32x96xf32>
    %348 = arith.addf %345, %347 : vector<32x96xf32>
    %349 = vector.extract_strided_slice %348 {offsets = [0, 0], sizes = [32, 8], strides = [1, 1]} : vector<32x96xf32> to vector<32x8xf32>
    %350 = vector.shape_cast %349 : vector<32x8xf32> to vector<2x16x8xf32>
    %351 = vector.extract_strided_slice %348 {offsets = [0, 32], sizes = [32, 8], strides = [1, 1]} : vector<32x96xf32> to vector<32x8xf32>
    %352 = vector.shape_cast %351 : vector<32x8xf32> to vector<2x16x8xf32>
    %353 = vector.extract_strided_slice %348 {offsets = [0, 64], sizes = [32, 8], strides = [1, 1]} : vector<32x96xf32> to vector<32x8xf32>
    %354 = vector.shape_cast %353 : vector<32x8xf32> to vector<2x16x8xf32>
    "tpu.trace_start"() <{level = 10 : i32, message = "bqd,bkd->bqk"}> : () -> ()
    %cst_286 = arith.constant dense<0.000000e+00> : vector<2x16x16xf32>
    %355 = tpu.matmul %350, %352, %cst_286 {dimension_numbers = #tpu.dot_dimension_numbers<[2], [2], [1], [1], [0, 0, 0, 1, 1, 1], [0], [0]>} : vector<2x16x8xf32>, vector<2x16x8xf32>, vector<2x16x16xf32> -> vector<2x16x16xf32>
    "tpu.trace_stop"() : () -> ()
    %cst_287 = arith.constant dense<0xFF800000> : vector<2x16xf32>
    %356 = vector.multi_reduction <maximumf>, %355, %cst_287 [2] : vector<2x16x16xf32> to vector<2x16xf32>
    %357 = vector.shape_cast %356 : vector<2x16xf32> to vector<2x16x1xf32>
    %358 = vector.broadcast %357 : vector<2x16x1xf32> to vector<2x16x16xf32>
    %359 = arith.subf %355, %358 : vector<2x16x16xf32>
    %360 = math.exp %359 : vector<2x16x16xf32>
    %cst_288 = arith.constant dense<0.000000e+00> : vector<2x16xf32>
    %361 = vector.multi_reduction <add>, %360, %cst_288 [2] : vector<2x16x16xf32> to vector<2x16xf32>
    %362 = vector.shape_cast %361 : vector<2x16xf32> to vector<2x16x1xf32>
    %363 = tpu.reciprocal %362 {approx = true} : vector<2x16x1xf32> -> vector<2x16x1xf32>
    %364 = vector.broadcast %363 : vector<2x16x1xf32> to vector<2x16x16xf32>
    %365 = arith.mulf %360, %364 : vector<2x16x16xf32>
    "tpu.trace_start"() <{level = 10 : i32, message = "bqk,bkd->bqd"}> : () -> ()
    %cst_289 = arith.constant dense<0.000000e+00> : vector<2x16x8xf32>
    %366 = tpu.matmul %365, %354, %cst_289 {dimension_numbers = #tpu.dot_dimension_numbers<[2], [1], [1], [2], [0, 0, 0, 1, 1, 2], [0], [0]>} : vector<2x16x16xf32>, vector<2x16x8xf32>, vector<2x16x8xf32> -> vector<2x16x8xf32>
    "tpu.trace_stop"() : () -> ()
    %367 = vector.shape_cast %366 : vector<2x16x8xf32> to vector<32x8xf32>
    %c0_290 = arith.constant 0 : index
    %c0_291 = arith.constant 0 : index
    %368 = vector.load %arg13[%c0_290, %c0_291] : memref<32x32xf32, #tpu.memory_space<vmem>>, vector<32x8xf32>
    tpu.vector_store %arg13[%c0_290, %c0_291], %367 {strides = array<i32>} : memref<32x32xf32, #tpu.memory_space<vmem>>, vector<32x8xf32>,
    %369 = vector.extract_strided_slice %348 {offsets = [0, 8], sizes = [32, 8], strides = [1, 1]} : vector<32x96xf32> to vector<32x8xf32>
    %370 = vector.shape_cast %369 : vector<32x8xf32> to vector<2x16x8xf32>
    %371 = vector.extract_strided_slice %348 {offsets = [0, 40], sizes = [32, 8], strides = [1, 1]} : vector<32x96xf32> to vector<32x8xf32>
    %372 = vector.shape_cast %371 : vector<32x8xf32> to vector<2x16x8xf32>
    %373 = vector.extract_strided_slice %348 {offsets = [0, 72], sizes = [32, 8], strides = [1, 1]} : vector<32x96xf32> to vector<32x8xf32>
    %374 = vector.shape_cast %373 : vector<32x8xf32> to vector<2x16x8xf32>
    "tpu.trace_start"() <{level = 10 : i32, message = "bqd,bkd->bqk"}> : () -> ()
    %cst_292 = arith.constant dense<0.000000e+00> : vector<2x16x16xf32>
    %375 = tpu.matmul %370, %372, %cst_292 {dimension_numbers = #tpu.dot_dimension_numbers<[2], [2], [1], [1], [0, 0, 0, 1, 1, 1], [0], [0]>} : vector<2x16x8xf32>, vector<2x16x8xf32>, vector<2x16x16xf32> -> vector<2x16x16xf32>
    "tpu.trace_stop"() : () -> ()
    %cst_293 = arith.constant dense<0xFF800000> : vector<2x16xf32>
    %376 = vector.multi_reduction <maximumf>, %375, %cst_293 [2] : vector<2x16x16xf32> to vector<2x16xf32>
    %377 = vector.shape_cast %376 : vector<2x16xf32> to vector<2x16x1xf32>
    %378 = vector.broadcast %377 : vector<2x16x1xf32> to vector<2x16x16xf32>
    %379 = arith.subf %375, %378 : vector<2x16x16xf32>
    %380 = math.exp %379 : vector<2x16x16xf32>
    %cst_294 = arith.constant dense<0.000000e+00> : vector<2x16xf32>
    %381 = vector.multi_reduction <add>, %380, %cst_294 [2] : vector<2x16x16xf32> to vector<2x16xf32>
    %382 = vector.shape_cast %381 : vector<2x16xf32> to vector<2x16x1xf32>
    %383 = tpu.reciprocal %382 {approx = true} : vector<2x16x1xf32> -> vector<2x16x1xf32>
    %384 = vector.broadcast %383 : vector<2x16x1xf32> to vector<2x16x16xf32>
    %385 = arith.mulf %380, %384 : vector<2x16x16xf32>
    "tpu.trace_start"() <{level = 10 : i32, message = "bqk,bkd->bqd"}> : () -> ()
    %cst_295 = arith.constant dense<0.000000e+00> : vector<2x16x8xf32>
    %386 = tpu.matmul %385, %374, %cst_295 {dimension_numbers = #tpu.dot_dimension_numbers<[2], [1], [1], [2], [0, 0, 0, 1, 1, 2], [0], [0]>} : vector<2x16x16xf32>, vector<2x16x8xf32>, vector<2x16x8xf32> -> vector<2x16x8xf32>
    "tpu.trace_stop"() : () -> ()
    %387 = vector.shape_cast %386 : vector<2x16x8xf32> to vector<32x8xf32>
    %c0_296 = arith.constant 0 : index
    %c8_297 = arith.constant 8 : index
    %388 = vector.load %arg13[%c0_296, %c8_297] : memref<32x32xf32, #tpu.memory_space<vmem>>, vector<32x8xf32>
    tpu.vector_store %arg13[%c0_296, %c8_297], %387 {strides = array<i32>} : memref<32x32xf32, #tpu.memory_space<vmem>>, vector<32x8xf32>,
    %389 = vector.extract_strided_slice %348 {offsets = [0, 16], sizes = [32, 8], strides = [1, 1]} : vector<32x96xf32> to vector<32x8xf32>
    %390 = vector.shape_cast %389 : vector<32x8xf32> to vector<2x16x8xf32>
    %391 = vector.extract_strided_slice %348 {offsets = [0, 48], sizes = [32, 8], strides = [1, 1]} : vector<32x96xf32> to vector<32x8xf32>
    %392 = vector.shape_cast %391 : vector<32x8xf32> to vector<2x16x8xf32>
    %393 = vector.extract_strided_slice %348 {offsets = [0, 80], sizes = [32, 8], strides = [1, 1]} : vector<32x96xf32> to vector<32x8xf32>
    %394 = vector.shape_cast %393 : vector<32x8xf32> to vector<2x16x8xf32>
    "tpu.trace_start"() <{level = 10 : i32, message = "bqd,bkd->bqk"}> : () -> ()
    %cst_298 = arith.constant dense<0.000000e+00> : vector<2x16x16xf32>
    %395 = tpu.matmul %390, %392, %cst_298 {dimension_numbers = #tpu.dot_dimension_numbers<[2], [2], [1], [1], [0, 0, 0, 1, 1, 1], [0], [0]>} : vector<2x16x8xf32>, vector<2x16x8xf32>, vector<2x16x16xf32> -> vector<2x16x16xf32>
    "tpu.trace_stop"() : () -> ()
    %cst_299 = arith.constant dense<0xFF800000> : vector<2x16xf32>
    %396 = vector.multi_reduction <maximumf>, %395, %cst_299 [2] : vector<2x16x16xf32> to vector<2x16xf32>
    %397 = vector.shape_cast %396 : vector<2x16xf32> to vector<2x16x1xf32>
    %398 = vector.broadcast %397 : vector<2x16x1xf32> to vector<2x16x16xf32>
    %399 = arith.subf %395, %398 : vector<2x16x16xf32>
    %400 = math.exp %399 : vector<2x16x16xf32>
    %cst_300 = arith.constant dense<0.000000e+00> : vector<2x16xf32>
    %401 = vector.multi_reduction <add>, %400, %cst_300 [2] : vector<2x16x16xf32> to vector<2x16xf32>
    %402 = vector.shape_cast %401 : vector<2x16xf32> to vector<2x16x1xf32>
    %403 = tpu.reciprocal %402 {approx = true} : vector<2x16x1xf32> -> vector<2x16x1xf32>
    %404 = vector.broadcast %403 : vector<2x16x1xf32> to vector<2x16x16xf32>
    %405 = arith.mulf %400, %404 : vector<2x16x16xf32>
    "tpu.trace_start"() <{level = 10 : i32, message = "bqk,bkd->bqd"}> : () -> ()
    %cst_301 = arith.constant dense<0.000000e+00> : vector<2x16x8xf32>
    %406 = tpu.matmul %405, %394, %cst_301 {dimension_numbers = #tpu.dot_dimension_numbers<[2], [1], [1], [2], [0, 0, 0, 1, 1, 2], [0], [0]>} : vector<2x16x16xf32>, vector<2x16x8xf32>, vector<2x16x8xf32> -> vector<2x16x8xf32>
    "tpu.trace_stop"() : () -> ()
    %407 = vector.shape_cast %406 : vector<2x16x8xf32> to vector<32x8xf32>
    %c0_302 = arith.constant 0 : index
    %c16_303 = arith.constant 16 : index
    %408 = vector.load %arg13[%c0_302, %c16_303] : memref<32x32xf32, #tpu.memory_space<vmem>>, vector<32x8xf32>
    tpu.vector_store %arg13[%c0_302, %c16_303], %407 {strides = array<i32>} : memref<32x32xf32, #tpu.memory_space<vmem>>, vector<32x8xf32>,
    %409 = vector.extract_strided_slice %348 {offsets = [0, 24], sizes = [32, 8], strides = [1, 1]} : vector<32x96xf32> to vector<32x8xf32>
    %410 = vector.shape_cast %409 : vector<32x8xf32> to vector<2x16x8xf32>
    %411 = vector.extract_strided_slice %348 {offsets = [0, 56], sizes = [32, 8], strides = [1, 1]} : vector<32x96xf32> to vector<32x8xf32>
    %412 = vector.shape_cast %411 : vector<32x8xf32> to vector<2x16x8xf32>
    %413 = vector.extract_strided_slice %348 {offsets = [0, 88], sizes = [32, 8], strides = [1, 1]} : vector<32x96xf32> to vector<32x8xf32>
    %414 = vector.shape_cast %413 : vector<32x8xf32> to vector<2x16x8xf32>
    "tpu.trace_start"() <{level = 10 : i32, message = "bqd,bkd->bqk"}> : () -> ()
    %cst_304 = arith.constant dense<0.000000e+00> : vector<2x16x16xf32>
    %415 = tpu.matmul %410, %412, %cst_304 {dimension_numbers = #tpu.dot_dimension_numbers<[2], [2], [1], [1], [0, 0, 0, 1, 1, 1], [0], [0]>} : vector<2x16x8xf32>, vector<2x16x8xf32>, vector<2x16x16xf32> -> vector<2x16x16xf32>
    "tpu.trace_stop"() : () -> ()
    %cst_305 = arith.constant dense<0xFF800000> : vector<2x16xf32>
    %416 = vector.multi_reduction <maximumf>, %415, %cst_305 [2] : vector<2x16x16xf32> to vector<2x16xf32>
    %417 = vector.shape_cast %416 : vector<2x16xf32> to vector<2x16x1xf32>
    %418 = vector.broadcast %417 : vector<2x16x1xf32> to vector<2x16x16xf32>
    %419 = arith.subf %415, %418 : vector<2x16x16xf32>
    %420 = math.exp %419 : vector<2x16x16xf32>
    %cst_306 = arith.constant dense<0.000000e+00> : vector<2x16xf32>
    %421 = vector.multi_reduction <add>, %420, %cst_306 [2] : vector<2x16x16xf32> to vector<2x16xf32>
    %422 = vector.shape_cast %421 : vector<2x16xf32> to vector<2x16x1xf32>
    %423 = tpu.reciprocal %422 {approx = true} : vector<2x16x1xf32> -> vector<2x16x1xf32>
    %424 = vector.broadcast %423 : vector<2x16x1xf32> to vector<2x16x16xf32>
    %425 = arith.mulf %420, %424 : vector<2x16x16xf32>
    "tpu.trace_start"() <{level = 10 : i32, message = "bqk,bkd->bqd"}> : () -> ()
    %cst_307 = arith.constant dense<0.000000e+00> : vector<2x16x8xf32>
    %426 = tpu.matmul %425, %414, %cst_307 {dimension_numbers = #tpu.dot_dimension_numbers<[2], [1], [1], [2], [0, 0, 0, 1, 1, 2], [0], [0]>} : vector<2x16x16xf32>, vector<2x16x8xf32>, vector<2x16x8xf32> -> vector<2x16x8xf32>
    "tpu.trace_stop"() : () -> ()
    %427 = vector.shape_cast %426 : vector<2x16x8xf32> to vector<32x8xf32>
    %c0_308 = arith.constant 0 : index
    %c24_309 = arith.constant 24 : index
    %428 = vector.load %arg13[%c0_308, %c24_309] : memref<32x32xf32, #tpu.memory_space<vmem>>, vector<32x8xf32>
    tpu.vector_store %arg13[%c0_308, %c24_309], %427 {strides = array<i32>} : memref<32x32xf32, #tpu.memory_space<vmem>>, vector<32x8xf32>,
    %c0_310 = arith.constant 0 : index
    %c0_311 = arith.constant 0 : index
    %429 = vector.load %arg13[%c0_310, %c0_311] : memref<32x32xf32, #tpu.memory_space<vmem>>, vector<32x32xf32>
    %c1_312 = arith.constant 1 : index
    %c0_313 = arith.constant 0 : index
    %c0_314 = arith.constant 0 : index
    %430 = vector.load %arg5[%c1_312, %c0_313, %c0_314] : memref<2x32x32xf32, #tpu.memory_space<vmem>>, vector<1x32x32xf32>
    %431 = vector.shape_cast %430 : vector<1x32x32xf32> to vector<32x32xf32>
    %cst_315 = arith.constant dense<0.000000e+00> : vector<32x32xf32>
    %432 = tpu.matmul %429, %431, %cst_315 {dimension_numbers = #tpu.dot_dimension_numbers<[1], [0], [0], [1], [0, 0, 1, 1], [], []>} : vector<32x32xf32>, vector<32x32xf32>, vector<32x32xf32> -> vector<32x32xf32>
    %c18 = arith.constant 18 : index
    %c0_316 = arith.constant 0 : index
    %433 = vector.load %arg9[%c18, %c0_316] : memref<26x128xf32, #tpu.memory_space<vmem>>, vector<1x32xf32>
    %434 = vector.broadcast %433 : vector<1x32xf32> to vector<32x32xf32>
    %435 = arith.addf %432, %434 : vector<32x32xf32>
    %436 = arith.addf %342, %435 : vector<32x32xf32>
    %c19 = arith.constant 19 : index
    %c0_317 = arith.constant 0 : index
    %437 = vector.load %arg9[%c19, %c0_317] : memref<26x128xf32, #tpu.memory_space<vmem>>, vector<1x32xf32>
    %c20 = arith.constant 20 : index
    %c0_318 = arith.constant 0 : index
    %438 = vector.load %arg9[%c20, %c0_318] : memref<26x128xf32, #tpu.memory_space<vmem>>, vector<1x32xf32>
    %cst_319 = arith.constant dense<0.000000e+00> : vector<32xf32>
    %439 = vector.multi_reduction <add>, %436, %cst_319 [1] : vector<32x32xf32> to vector<32xf32>
    %440 = vector.shape_cast %439 : vector<32xf32> to vector<32x1xf32>
    %cst_320 = arith.constant 3.200000e+01 : f32
    %441 = vector.broadcast %cst_320 : f32 to vector<32x1xf32>
    %442 = arith.divf %440, %441 : vector<32x1xf32>
    %443 = arith.mulf %436, %436 : vector<32x32xf32>
    %cst_321 = arith.constant dense<0.000000e+00> : vector<32xf32>
    %444 = vector.multi_reduction <add>, %443, %cst_321 [1] : vector<32x32xf32> to vector<32xf32>
    %445 = vector.shape_cast %444 : vector<32xf32> to vector<32x1xf32>
    %cst_322 = arith.constant 3.200000e+01 : f32
    %446 = vector.broadcast %cst_322 : f32 to vector<32x1xf32>
    %447 = arith.divf %445, %446 : vector<32x1xf32>
    %448 = arith.mulf %442, %442 : vector<32x1xf32>
    %449 = arith.subf %447, %448 : vector<32x1xf32>
    %450 = vector.broadcast %442 : vector<32x1xf32> to vector<32x32xf32>
    %451 = arith.subf %436, %450 : vector<32x32xf32>
    %cst_323 = arith.constant 9.99999974E-6 : f32
    %452 = vector.broadcast %cst_323 : f32 to vector<32x1xf32>
    %453 = arith.addf %449, %452 : vector<32x1xf32>
    %454 = math.rsqrt %453 : vector<32x1xf32>
    %455 = vector.broadcast %454 : vector<32x1xf32> to vector<32x32xf32>
    %456 = arith.mulf %451, %455 : vector<32x32xf32>
    %457 = vector.broadcast %437 : vector<1x32xf32> to vector<32x32xf32>
    %458 = arith.mulf %456, %457 : vector<32x32xf32>
    %459 = vector.broadcast %438 : vector<1x32xf32> to vector<32x32xf32>
    %460 = arith.addf %458, %459 : vector<32x32xf32>
    %c1_324 = arith.constant 1 : index
    %c0_325 = arith.constant 0 : index
    %c0_326 = arith.constant 0 : index
    %461 = vector.load %arg6[%c1_324, %c0_325, %c0_326] : memref<2x32x64xf32, #tpu.memory_space<vmem>>, vector<1x32x64xf32>
    %462 = vector.shape_cast %461 : vector<1x32x64xf32> to vector<32x64xf32>
    %cst_327 = arith.constant dense<0.000000e+00> : vector<32x64xf32>
    %463 = tpu.matmul %460, %462, %cst_327 {dimension_numbers = #tpu.dot_dimension_numbers<[1], [0], [0], [1], [0, 0, 1, 1], [], []>} : vector<32x32xf32>, vector<32x64xf32>, vector<32x64xf32> -> vector<32x64xf32>
    %c21 = arith.constant 21 : index
    %c0_328 = arith.constant 0 : index
    %464 = vector.load %arg9[%c21, %c0_328] : memref<26x128xf32, #tpu.memory_space<vmem>>, vector<1x64xf32>
    %465 = vector.broadcast %464 : vector<1x64xf32> to vector<32x64xf32>
    %466 = arith.addf %463, %465 : vector<32x64xf32>
    %cst_329 = arith.constant 0.000000e+00 : f32
    %467 = vector.broadcast %cst_329 : f32 to vector<32x64xf32>
    %468 = arith.maximumf %466, %467 : vector<32x64xf32>
    %c1_330 = arith.constant 1 : index
    %c0_331 = arith.constant 0 : index
    %c0_332 = arith.constant 0 : index
    %469 = vector.load %arg7[%c1_330, %c0_331, %c0_332] : memref<2x64x32xf32, #tpu.memory_space<vmem>>, vector<1x64x32xf32>
    %470 = vector.shape_cast %469 : vector<1x64x32xf32> to vector<64x32xf32>
    %cst_333 = arith.constant dense<0.000000e+00> : vector<32x32xf32>
    %471 = tpu.matmul %468, %470, %cst_333 {dimension_numbers = #tpu.dot_dimension_numbers<[1], [0], [0], [1], [0, 0, 1, 1], [], []>} : vector<32x64xf32>, vector<64x32xf32>, vector<32x32xf32> -> vector<32x32xf32>
    %c22 = arith.constant 22 : index
    %c0_334 = arith.constant 0 : index
    %472 = vector.load %arg9[%c22, %c0_334] : memref<26x128xf32, #tpu.memory_space<vmem>>, vector<1x32xf32>
    %473 = vector.broadcast %472 : vector<1x32xf32> to vector<32x32xf32>
    %474 = arith.addf %471, %473 : vector<32x32xf32>
    %475 = arith.addf %460, %474 : vector<32x32xf32>
    %c23 = arith.constant 23 : index
    %c0_335 = arith.constant 0 : index
    %476 = vector.load %arg9[%c23, %c0_335] : memref<26x128xf32, #tpu.memory_space<vmem>>, vector<1x32xf32>
    %c24_336 = arith.constant 24 : index
    %c0_337 = arith.constant 0 : index
    %477 = vector.load %arg9[%c24_336, %c0_337] : memref<26x128xf32, #tpu.memory_space<vmem>>, vector<1x32xf32>
    %cst_338 = arith.constant dense<0.000000e+00> : vector<32xf32>
    %478 = vector.multi_reduction <add>, %475, %cst_338 [1] : vector<32x32xf32> to vector<32xf32>
    %479 = vector.shape_cast %478 : vector<32xf32> to vector<32x1xf32>
    %cst_339 = arith.constant 3.200000e+01 : f32
    %480 = vector.broadcast %cst_339 : f32 to vector<32x1xf32>
    %481 = arith.divf %479, %480 : vector<32x1xf32>
    %482 = arith.mulf %475, %475 : vector<32x32xf32>
    %cst_340 = arith.constant dense<0.000000e+00> : vector<32xf32>
    %483 = vector.multi_reduction <add>, %482, %cst_340 [1] : vector<32x32xf32> to vector<32xf32>
    %484 = vector.shape_cast %483 : vector<32xf32> to vector<32x1xf32>
    %cst_341 = arith.constant 3.200000e+01 : f32
    %485 = vector.broadcast %cst_341 : f32 to vector<32x1xf32>
    %486 = arith.divf %484, %485 : vector<32x1xf32>
    %487 = arith.mulf %481, %481 : vector<32x1xf32>
    %488 = arith.subf %486, %487 : vector<32x1xf32>
    %489 = vector.broadcast %481 : vector<32x1xf32> to vector<32x32xf32>
    %490 = arith.subf %475, %489 : vector<32x32xf32>
    %cst_342 = arith.constant 9.99999974E-6 : f32
    %491 = vector.broadcast %cst_342 : f32 to vector<32x1xf32>
    %492 = arith.addf %488, %491 : vector<32x1xf32>
    %493 = math.rsqrt %492 : vector<32x1xf32>
    %494 = vector.broadcast %493 : vector<32x1xf32> to vector<32x32xf32>
    %495 = arith.mulf %490, %494 : vector<32x32xf32>
    %496 = vector.broadcast %476 : vector<1x32xf32> to vector<32x32xf32>
    %497 = arith.mulf %495, %496 : vector<32x32xf32>
    %498 = vector.broadcast %477 : vector<1x32xf32> to vector<32x32xf32>
    %499 = arith.addf %497, %498 : vector<32x32xf32>
    %500 = vector.shape_cast %499 : vector<32x32xf32> to vector<2x16x32xf32>
    %cst_343 = arith.constant dense<0.000000e+00> : vector<2x32xf32>
    %501 = vector.multi_reduction <add>, %500, %cst_343 [1] : vector<2x16x32xf32> to vector<2x32xf32>
    %cst_344 = arith.constant 1.600000e+01 : f32
    %502 = vector.broadcast %cst_344 : f32 to vector<2x32xf32>
    %503 = arith.divf %501, %502 : vector<2x32xf32>
    %c0_345 = arith.constant 0 : index
    %c0_346 = arith.constant 0 : index
    %504 = vector.load %arg8[%c0_345, %c0_346] : memref<32x128xf32, #tpu.memory_space<vmem>>, vector<32x128xf32>
    %cst_347 = arith.constant dense<0.000000e+00> : vector<2x128xf32>
    %505 = tpu.matmul %503, %504, %cst_347 {dimension_numbers = #tpu.dot_dimension_numbers<[1], [0], [0], [1], [0, 0, 1, 1], [], []>} : vector<2x32xf32>, vector<32x128xf32>, vector<2x128xf32> -> vector<2x128xf32>
    %c25 = arith.constant 25 : index
    %c0_348 = arith.constant 0 : index
    %506 = vector.load %arg9[%c25, %c0_348] : memref<26x128xf32, #tpu.memory_space<vmem>>, vector<1x128xf32>
    %507 = vector.broadcast %506 : vector<1x128xf32> to vector<2x128xf32>
    %508 = arith.addf %505, %507 : vector<2x128xf32>
    %c0_349 = arith.constant 0 : index
    %c0_350 = arith.constant 0 : index
    %509 = vector.load %arg10[%c0_349, %c0_350] : memref<2x128xf32, #tpu.memory_space<vmem>>, vector<2x128xf32>
    tpu.vector_store %arg10[%c0_349, %c0_350], %508 {strides = array<i32>} : memref<2x128xf32, #tpu.memory_space<vmem>>, vector<2x128xf32>,
    return
  }
  func.func @transform_0(%arg0: i32) -> (i32, i32) {
    %c0_i32 = arith.constant 0 : i32
    %c0_i32_0 = arith.constant 0 : i32
    %c0_i32_1 = arith.constant 0 : i32
    return %c0_i32, %c0_i32_0 : i32, i32
  }
  func.func @transform_1(%arg0: i32) -> (i32, i32, i32) {
    %c0_i32 = arith.constant 0 : i32
    %c0_i32_0 = arith.constant 0 : i32
    %c0_i32_1 = arith.constant 0 : i32
    %c0_i32_2 = arith.constant 0 : i32
    return %c0_i32, %c0_i32_0, %c0_i32_1 : i32, i32, i32
  }
  func.func @transform_2(%arg0: i32) -> (i32, i32, i32) {
    %c0_i32 = arith.constant 0 : i32
    %c0_i32_0 = arith.constant 0 : i32
    %c0_i32_1 = arith.constant 0 : i32
    %c0_i32_2 = arith.constant 0 : i32
    return %c0_i32, %c0_i32_0, %c0_i32_1 : i32, i32, i32
  }
  func.func @transform_3(%arg0: i32) -> (i32, i32, i32) {
    %c0_i32 = arith.constant 0 : i32
    %c0_i32_0 = arith.constant 0 : i32
    %c0_i32_1 = arith.constant 0 : i32
    %c0_i32_2 = arith.constant 0 : i32
    return %c0_i32, %c0_i32_0, %c0_i32_1 : i32, i32, i32
  }
  func.func @transform_4(%arg0: i32) -> (i32, i32, i32) {
    %c0_i32 = arith.constant 0 : i32
    %c0_i32_0 = arith.constant 0 : i32
    %c0_i32_1 = arith.constant 0 : i32
    %c0_i32_2 = arith.constant 0 : i32
    return %c0_i32, %c0_i32_0, %c0_i32_1 : i32, i32, i32
  }
  func.func @transform_5(%arg0: i32) -> (i32, i32, i32) {
    %c0_i32 = arith.constant 0 : i32
    %c0_i32_0 = arith.constant 0 : i32
    %c0_i32_1 = arith.constant 0 : i32
    %c0_i32_2 = arith.constant 0 : i32
    return %c0_i32, %c0_i32_0, %c0_i32_1 : i32, i32, i32
  }
  func.func @transform_6(%arg0: i32) -> (i32, i32, i32) {
    %c0_i32 = arith.constant 0 : i32
    %c0_i32_0 = arith.constant 0 : i32
    %c0_i32_1 = arith.constant 0 : i32
    %c0_i32_2 = arith.constant 0 : i32
    return %c0_i32, %c0_i32_0, %c0_i32_1 : i32, i32, i32
  }
  func.func @transform_7(%arg0: i32) -> (i32, i32) {
    %c0_i32 = arith.constant 0 : i32
    %c0_i32_0 = arith.constant 0 : i32
    %c0_i32_1 = arith.constant 0 : i32
    return %c0_i32, %c0_i32_0 : i32, i32
  }
  func.func @transform_8(%arg0: i32) -> (i32, i32) {
    %c0_i32 = arith.constant 0 : i32
    %c0_i32_0 = arith.constant 0 : i32
    %c0_i32_1 = arith.constant 0 : i32
    return %c0_i32, %c0_i32_0 : i32, i32
  }
  func.func @transform_9(%arg0: i32) -> (i32, i32) {
    %c0_i32 = arith.constant 0 : i32
    %c0_i32_0 = arith.constant 0 : i32
    %c0_i32_1 = arith.constant 0 : i32
    return %c0_i32, %c0_i32_0 : i32, i32
  }
}

</mosaic_0001>

<llo_original>
// kernel: tak_transformer_forward.1
$region0: #{tak_transformer_forward.1}
  #allocation0 [shape = 'u32[]', space=smem, size = 0x4, offset = 0x4, fixed_abs, tag = 'smem constant byte address 0x4 - core index']
  #allocation1 [shape = 'u32[144,128]{1,0:T(1,128)}', space=vmem, size = 0x12000, scoped, tag = 'internal scratch']
  #allocation2 [shape = 'f32[48,32]{1,0:T(8,128)}', space=vmem, size = 0x6000, scoped, tag = 'scratch operand']
  #allocation3 [shape = 'f32[32,288]{1,0:T(8,128)}', space=vmem, size = 0xc000, scoped, tag = 'scratch operand']
  #allocation4 [shape = 'f32[32,32]{1,0:T(8,128)}', space=vmem, size = 0x4000, scoped, tag = 'scratch operand']
  %s0 = inlined_call_operand.vmem [shape: f32[32,32], index: 0, kind: input, shape index: {}]
  %s1 = inlined_call_operand.vmem [shape: f32[9,32,32], index: 1, kind: input, shape index: {}]
  %s2 = inlined_call_operand.vmem [shape: f32[3,288,32], index: 2, kind: input, shape index: {}]
  %s3 = inlined_call_operand.vmem [shape: f32[2,32,96], index: 3, kind: input, shape index: {}]
  %s4 = inlined_call_operand.vmem [shape: f32[2,32,32], index: 4, kind: input, shape index: {}]
  %s5 = inlined_call_operand.vmem [shape: f32[2,32,64], index: 5, kind: input, shape index: {}]
  %s6 = inlined_call_operand.vmem [shape: f32[2,64,32], index: 6, kind: input, shape index: {}]
  %s7 = inlined_call_operand.vmem [shape: f32[32,128], index: 7, kind: input, shape index: {}]
  %s8 = inlined_call_operand.vmem [shape: f32[26,128], index: 8, kind: input, shape index: {}]
  %s9 = inlined_call_operand.hbm [shape: f32[2,128], index: 9, kind: output, shape index: {}]
  %s10 = sld [smem:[#allocation0]]
  $region46: #{tak_transformer_forward.1} parent=0
    _
  %s12 = ssub.s32 1, %s10
  %s13 = scalar_select 0, %s12, %s10
  $region1: #{tak_transformer_forward.1} parent=0
    #allocation5 [shape = 'u8[1024]{0}', space=vmem, size = 0x400, scoped, tag = 'output window, operand 0, single buffered']
    #allocation6 [shape = 's32[1]{0}', space=sflag, size = 0x4, scoped, tag = 'scoped memory for tak_transformer_forward.1']
    %14 = vsyncpa [#allocation6], 0
    // Predicated region
    $region2: #{tak_transformer_forward.1} parent=1 // pred_check
      _
    $region3: #{tak_transformer_forward.1} parent=1 // pred_check_branch
      %16 = sbr.rel (0) target = $region5
    $region4: #{tak_transformer_forward.1} parent=1 // pred_region
      _
    $region5: #{tak_transformer_forward.1} parent=1 // pred_fallthru
      _
    // Predicated region
    $region6: #{tak_transformer_forward.1} parent=1 // pred_check
      _
    $region7: #{tak_transformer_forward.1} parent=1 // pred_check_branch
      %18 = sbr.rel (0) target = $region9
    $region8: #{tak_transformer_forward.1} parent=1 // pred_region
      _
    $region9: #{tak_transformer_forward.1} parent=1 // pred_fallthru
      _
    // Predicated region
    $region10: #{tak_transformer_forward.1} parent=1 // pred_check
      _
    $region11: #{tak_transformer_forward.1} parent=1 // pred_check_branch
      %20 = sbr.rel (0) target = $region13
    $region12: #{tak_transformer_forward.1} parent=1 // pred_region
      _
    $region13: #{tak_transformer_forward.1} parent=1 // pred_fallthru
      _
    // Predicated region
    $region14: #{tak_transformer_forward.1} parent=1 // pred_check
      _
    $region15: #{tak_transformer_forward.1} parent=1 // pred_check_branch
      %22 = sbr.rel (0) target = $region17
    $region16: #{tak_transformer_forward.1} parent=1 // pred_region
      _
    $region17: #{tak_transformer_forward.1} parent=1 // pred_fallthru
      _
    // Predicated region
    $region18: #{tak_transformer_forward.1} parent=1 // pred_check
      _
    $region19: #{tak_transformer_forward.1} parent=1 // pred_check_branch
      %24 = sbr.rel (0) target = $region21
    $region20: #{tak_transformer_forward.1} parent=1 // pred_region
      _
    $region21: #{tak_transformer_forward.1} parent=1 // pred_fallthru
      _
    // Predicated region
    $region22: #{tak_transformer_forward.1} parent=1 // pred_check
      _
    $region23: #{tak_transformer_forward.1} parent=1 // pred_check_branch
      %26 = sbr.rel (0) target = $region25
    $region24: #{tak_transformer_forward.1} parent=1 // pred_region
      _
    $region25: #{tak_transformer_forward.1} parent=1 // pred_fallthru
      _
    // Predicated region
    $region26: #{tak_transformer_forward.1} parent=1 // pred_check
      _
    $region27: #{tak_transformer_forward.1} parent=1 // pred_check_branch
      %28 = sbr.rel (0) target = $region29
    $region28: #{tak_transformer_forward.1} parent=1 // pred_region
      _
    $region29: #{tak_transformer_forward.1} parent=1 // pred_fallthru
      _
    // Predicated region
    $region30: #{tak_transformer_forward.1} parent=1 // pred_check
      _
    $region31: #{tak_transformer_forward.1} parent=1 // pred_check_branch
      %30 = sbr.rel (0) target = $region33
    $region32: #{tak_transformer_forward.1} parent=1 // pred_region
      _
    $region33: #{tak_transformer_forward.1} parent=1 // pred_fallthru
      _
    // Predicated region
    $region34: #{tak_transformer_forward.1} parent=1 // pred_check
      _
    $region35: #{tak_transformer_forward.1} parent=1 // pred_check_branch
      %32 = sbr.rel (0) target = $region37
    $region36: #{tak_transformer_forward.1} parent=1 // pred_region
      _
    $region37: #{tak_transformer_forward.1} parent=1 // pred_fallthru
      _
    %vm33 = vcmask 261120
    %34 = vst.msk [vmem:[#allocation2] sm:$0xff] %vm33, 0.0
    %35 = vst.msk [vmem:[#allocation2 + $0x8] sm:$0xff] %vm33, 0.0
    %36 = vst.msk [vmem:[#allocation2 + $0x10] sm:$0xff] %vm33, 0.0
    %37 = vst.msk [vmem:[#allocation2 + $0x18] sm:$0xff] %vm33, 0.0
    %38 = vst.msk [vmem:[#allocation2 + $0x20] sm:$0xff] %vm33, 0.0
    %39 = vst.msk [vmem:[#allocation2 + $0x28] sm:$0xff] %vm33, 0.0
    %v40 = vld [vmem:[%s0] sm:$0xff]
    %v41 = vld [vmem:[%s0 + $0x8] sm:$0xff]
    %v42 = vld [vmem:[%s0 + $0x10] sm:$0xff]
    %v43 = vld [vmem:[%s0 + $0x18] sm:$0xff]
    %44 = vst.msk [vmem:[#allocation2 + $0x8] sm:$0xff] %vm33, %v40
    %45 = vst.msk [vmem:[#allocation2 + $0x10] sm:$0xff] %vm33, %v41
    %46 = vst.msk [vmem:[#allocation2 + $0x18] sm:$0xff] %vm33, %v42
    %47 = vst.msk [vmem:[#allocation2 + $0x20] sm:$0xff] %vm33, %v43
    %v48 = vld [vmem:[#allocation2 + $0x3] sm:$0xff]
    %v49 = vld [vmem:[#allocation2 + $0xb] sm:$0xff]
    %v50 = vld [vmem:[#allocation2 + $0x13] sm:$0xff]
    %v51 = vld [vmem:[#allocation2 + $0x1b] sm:$0xff]
    %v52 = vld [vmem:[%s1] sm:$0xff]
    %v53 = vld [vmem:[%s1 + $0x8] sm:$0xff]
    %v54 = vld [vmem:[%s1 + $0x10] sm:$0xff]
    %v55 = vld [vmem:[%s1 + $0x18] sm:$0xff]
    %v56 = vmul.f32 %v48, %v52
    %v57 = vmul.f32 %v49, %v53
    %v58 = vmul.f32 %v50, %v54
    %v59 = vmul.f32 %v51, %v55
    %60 = vst.msk [vmem:[#allocation3] sm:$0xff] %vm33, %v56
    %61 = vst.msk [vmem:[#allocation3 + $0x18] sm:$0xff] %vm33, %v57
    %62 = vst.msk [vmem:[#allocation3 + $0x30] sm:$0xff] %vm33, %v58
    %63 = vst.msk [vmem:[#allocation3 + $0x48] sm:$0xff] %vm33, %v59
    %v64 = vld [vmem:[#allocation2 + $0x4] sm:$0xff]
    %v65 = vld [vmem:[#allocation2 + $0xc] sm:$0xff]
    %v66 = vld [vmem:[#allocation2 + $0x14] sm:$0xff]
    %v67 = vld [vmem:[#allocation2 + $0x1c] sm:$0xff]
    %s68 = scalar_lea.vmem %s1, 32
    %v69 = vld [vmem:[%s68] sm:$0xff]
    %v70 = vld [vmem:[%s68 + $0x8] sm:$0xff]
    %v71 = vld [vmem:[%s68 + $0x10] sm:$0xff]
    %v72 = vld [vmem:[%s68 + $0x18] sm:$0xff]
    %v73 = vmul.f32 %v64, %v69
    %v74 = vmul.f32 %v65, %v70
    %v75 = vmul.f32 %v66, %v71
    %v76 = vmul.f32 %v67, %v72
    %81 = vrot.lane.b32.xlu0 %v73, 32
    %v82 = vpop.permute.xlu0 %81
    %83 = vrot.lane.b32.xlu0 %v74, 32
    %v84 = vpop.permute.xlu0 %83
    %85 = vrot.lane.b32.xlu0 %v75, 32
    %v86 = vpop.permute.xlu0 %85
    %87 = vrot.lane.b32.xlu0 %v76, 32
    %v88 = vpop.permute.xlu0 %87
    %vm93 = vcmask 523520
    %94 = vst.msk [vmem:[#allocation3] sm:$0xff] %vm93, %v82
    %95 = vst.msk [vmem:[#allocation3 + $0x18] sm:$0xff] %vm93, %v84
    %96 = vst.msk [vmem:[#allocation3 + $0x30] sm:$0xff] %vm93, %v86
    %97 = vst.msk [vmem:[#allocation3 + $0x48] sm:$0xff] %vm93, %v88
    %v98 = vld [vmem:[#allocation2 + $0x5] sm:$0xff]
    %v99 = vld [vmem:[#allocation2 + $0xd] sm:$0xff]
    %v100 = vld [vmem:[#allocation2 + $0x15] sm:$0xff]
    %v101 = vld [vmem:[#allocation2 + $0x1d] sm:$0xff]
    %s102 = scalar_lea.vmem %s1, 64
    %v103 = vld [vmem:[%s102] sm:$0xff]
    %v104 = vld [vmem:[%s102 + $0x8] sm:$0xff]
    %v105 = vld [vmem:[%s102 + $0x10] sm:$0xff]
    %v106 = vld [vmem:[%s102 + $0x18] sm:$0xff]
    %v107 = vmul.f32 %v98, %v103
    %v108 = vmul.f32 %v99, %v104
    %v109 = vmul.f32 %v100, %v105
    %v110 = vmul.f32 %v101, %v106
    %115 = vrot.lane.b32.xlu0 %v107, 64
    %v116 = vpop.permute.xlu0 %115
    %117 = vrot.lane.b32.xlu0 %v108, 64
    %v118 = vpop.permute.xlu0 %117
    %119 = vrot.lane.b32.xlu0 %v109, 64
    %v120 = vpop.permute.xlu0 %119
    %121 = vrot.lane.b32.xlu0 %v110, 64
    %v122 = vpop.permute.xlu0 %121
    %vm127 = vcmask 785920
    %128 = vst.msk [vmem:[#allocation3] sm:$0xff] %vm127, %v116
    %129 = vst.msk [vmem:[#allocation3 + $0x18] sm:$0xff] %vm127, %v118
    %130 = vst.msk [vmem:[#allocation3 + $0x30] sm:$0xff] %vm127, %v120
    %131 = vst.msk [vmem:[#allocation3 + $0x48] sm:$0xff] %vm127, %v122
    %v132 = vld [vmem:[#allocation2 + $0x7] sm:$0xff]
    %v133 = vld [vmem:[#allocation2 + $0xf] sm:$0xff]
    %v134 = vld [vmem:[#allocation2 + $0x17] sm:$0xff]
    %v135 = vld [vmem:[#allocation2 + $0x1f] sm:$0xff]
    %s136 = scalar_lea.vmem %s1, 96
    %v137 = vld [vmem:[%s136] sm:$0xff]
    %v138 = vld [vmem:[%s136 + $0x8] sm:$0xff]
    %v139 = vld [vmem:[%s136 + $0x10] sm:$0xff]
    %v140 = vld [vmem:[%s136 + $0x18] sm:$0xff]
    %v141 = vmul.f32 %v132, %v137
    %v142 = vmul.f32 %v133, %v138
    %v143 = vmul.f32 %v134, %v139
    %v144 = vmul.f32 %v135, %v140
    %149 = vrot.lane.b32.xlu0 %v141, 96
    %v150 = vpop.permute.xlu0 %149
    %151 = vrot.lane.b32.xlu0 %v142, 96
    %v152 = vpop.permute.xlu0 %151
    %153 = vrot.lane.b32.xlu0 %v143, 96
    %v154 = vpop.permute.xlu0 %153
    %155 = vrot.lane.b32.xlu0 %v144, 96
    %v156 = vpop.permute.xlu0 %155
    %vm161 = vcmask 1048320
    %162 = vst.msk [vmem:[#allocation3] sm:$0xff] %vm161, %v150
    %163 = vst.msk [vmem:[#allocation3 + $0x18] sm:$0xff] %vm161, %v152
    %164 = vst.msk [vmem:[#allocation3 + $0x30] sm:$0xff] %vm161, %v154
    %165 = vst.msk [vmem:[#allocation3 + $0x48] sm:$0xff] %vm161, %v156
    %v166 = vld [vmem:[#allocation2 + $0x8] sm:$0xff]
    %v167 = vld [vmem:[#allocation2 + $0x10] sm:$0xff]
    %v168 = vld [vmem:[#allocation2 + $0x18] sm:$0xff]
    %v169 = vld [vmem:[#allocation2 + $0x20] sm:$0xff]
    %s170 = scalar_lea.vmem %s1, 128
    %v171 = vld [vmem:[%s170] sm:$0xff]
    %v172 = vld [vmem:[%s170 + $0x8] sm:$0xff]
    %v173 = vld [vmem:[%s170 + $0x10] sm:$0xff]
    %v174 = vld [vmem:[%s170 + $0x18] sm:$0xff]
    %v175 = vmul.f32 %v166, %v171
    %v176 = vmul.f32 %v167, %v172
    %v177 = vmul.f32 %v168, %v173
    %v178 = vmul.f32 %v169, %v174
    %179 = vst.msk [vmem:[#allocation3 + $0x8] sm:$0xff] %vm33, %v175
    %180 = vst.msk [vmem:[#allocation3 + $0x20] sm:$0xff] %vm33, %v176
    %181 = vst.msk [vmem:[#allocation3 + $0x38] sm:$0xff] %vm33, %v177
    %182 = vst.msk [vmem:[#allocation3 + $0x50] sm:$0xff] %vm33, %v178
    %v183 = vld [vmem:[#allocation2 + $0x9] sm:$0xff]
    %v184 = vld [vmem:[#allocation2 + $0x11] sm:$0xff]
    %v185 = vld [vmem:[#allocation2 + $0x19] sm:$0xff]
    %v186 = vld [vmem:[#allocation2 + $0x21] sm:$0xff]
    %s187 = scalar_lea.vmem %s1, 160
    %v188 = vld [vmem:[%s187] sm:$0xff]
    %v189 = vld [vmem:[%s187 + $0x8] sm:$0xff]
    %v190 = vld [vmem:[%s187 + $0x10] sm:$0xff]
    %v191 = vld [vmem:[%s187 + $0x18] sm:$0xff]
    %v192 = vmul.f32 %v183, %v188
    %v193 = vmul.f32 %v184, %v189
    %v194 = vmul.f32 %v185, %v190
    %v195 = vmul.f32 %v186, %v191
    %200 = vrot.lane.b32.xlu0 %v192, 32
    %v201 = vpop.permute.xlu0 %200
    %202 = vrot.lane.b32.xlu0 %v193, 32
    %v203 = vpop.permute.xlu0 %202
    %204 = vrot.lane.b32.xlu0 %v194, 32
    %v205 = vpop.permute.xlu0 %204
    %206 = vrot.lane.b32.xlu0 %v195, 32
    %v207 = vpop.permute.xlu0 %206
    %212 = vst.msk [vmem:[#allocation3 + $0x8] sm:$0xff] %vm93, %v201
    %213 = vst.msk [vmem:[#allocation3 + $0x20] sm:$0xff] %vm93, %v203
    %214 = vst.msk [vmem:[#allocation3 + $0x38] sm:$0xff] %vm93, %v205
    %215 = vst.msk [vmem:[#allocation3 + $0x50] sm:$0xff] %vm93, %v207
    %v216 = vld [vmem:[#allocation2 + $0xb] sm:$0xff]
    %v217 = vld [vmem:[#allocation2 + $0x13] sm:$0xff]
    %v218 = vld [vmem:[#allocation2 + $0x1b] sm:$0xff]
    %v219 = vld [vmem:[#allocation2 + $0x23] sm:$0xff]
    %s220 = scalar_lea.vmem %s1, 192
    %v221 = vld [vmem:[%s220] sm:$0xff]
    %v222 = vld [vmem:[%s220 + $0x8] sm:$0xff]
    %v223 = vld [vmem:[%s220 + $0x10] sm:$0xff]
    %v224 = vld [vmem:[%s220 + $0x18] sm:$0xff]
    %v225 = vmul.f32 %v216, %v221
    %v226 = vmul.f32 %v217, %v222
    %v227 = vmul.f32 %v218, %v223
    %v228 = vmul.f32 %v219, %v224
    %233 = vrot.lane.b32.xlu0 %v225, 64
    %v234 = vpop.permute.xlu0 %233
    %235 = vrot.lane.b32.xlu0 %v226, 64
    %v236 = vpop.permute.xlu0 %235
    %237 = vrot.lane.b32.xlu0 %v227, 64
    %v238 = vpop.permute.xlu0 %237
    %239 = vrot.lane.b32.xlu0 %v228, 64
    %v240 = vpop.permute.xlu0 %239
    %245 = vst.msk [vmem:[#allocation3 + $0x8] sm:$0xff] %vm127, %v234
    %246 = vst.msk [vmem:[#allocation3 + $0x20] sm:$0xff] %vm127, %v236
    %247 = vst.msk [vmem:[#allocation3 + $0x38] sm:$0xff] %vm127, %v238
    %248 = vst.msk [vmem:[#allocation3 + $0x50] sm:$0xff] %vm127, %v240
    %v249 = vld [vmem:[#allocation2 + $0xc] sm:$0xff]
    %v250 = vld [vmem:[#allocation2 + $0x14] sm:$0xff]
    %v251 = vld [vmem:[#allocation2 + $0x1c] sm:$0xff]
    %v252 = vld [vmem:[#allocation2 + $0x24] sm:$0xff]
    %s253 = scalar_lea.vmem %s1, 224
    %v254 = vld [vmem:[%s253] sm:$0xff]
    %v255 = vld [vmem:[%s253 + $0x8] sm:$0xff]
    %v256 = vld [vmem:[%s253 + $0x10] sm:$0xff]
    %v257 = vld [vmem:[%s253 + $0x18] sm:$0xff]
    %v258 = vmul.f32 %v249, %v254
    %v259 = vmul.f32 %v250, %v255
    %v260 = vmul.f32 %v251, %v256
    %v261 = vmul.f32 %v252, %v257
    %266 = vrot.lane.b32.xlu0 %v258, 96
    %v267 = vpop.permute.xlu0 %266
    %268 = vrot.lane.b32.xlu0 %v259, 96
    %v269 = vpop.permute.xlu0 %268
    %270 = vrot.lane.b32.xlu0 %v260, 96
    %v271 = vpop.permute.xlu0 %270
    %272 = vrot.lane.b32.xlu0 %v261, 96
    %v273 = vpop.permute.xlu0 %272
    %278 = vst.msk [vmem:[#allocation3 + $0x8] sm:$0xff] %vm161, %v267
    %279 = vst.msk [vmem:[#allocation3 + $0x20] sm:$0xff] %vm161, %v269
    %280 = vst.msk [vmem:[#allocation3 + $0x38] sm:$0xff] %vm161, %v271
    %281 = vst.msk [vmem:[#allocation3 + $0x50] sm:$0xff] %vm161, %v273
    %v282 = vld [vmem:[#allocation2 + $0xd] sm:$0xff]
    %v283 = vld [vmem:[#allocation2 + $0x15] sm:$0xff]
    %v284 = vld [vmem:[#allocation2 + $0x1d] sm:$0xff]
    %v285 = vld [vmem:[#allocation2 + $0x25] sm:$0xff]
    %s286 = scalar_lea.vmem %s1, 256
    %v287 = vld [vmem:[%s286] sm:$0xff]
    %v288 = vld [vmem:[%s286 + $0x8] sm:$0xff]
    %v289 = vld [vmem:[%s286 + $0x10] sm:$0xff]
    %v290 = vld [vmem:[%s286 + $0x18] sm:$0xff]
    %v291 = vmul.f32 %v282, %v287
    %v292 = vmul.f32 %v283, %v288
    %v293 = vmul.f32 %v284, %v289
    %v294 = vmul.f32 %v285, %v290
    %295 = vst.msk [vmem:[#allocation3 + $0x10] sm:$0xff] %vm33, %v291
    %296 = vst.msk [vmem:[#allocation3 + $0x28] sm:$0xff] %vm33, %v292
    %297 = vst.msk [vmem:[#allocation3 + $0x40] sm:$0xff] %vm33, %v293
    %298 = vst.msk [vmem:[#allocation3 + $0x58] sm:$0xff] %vm33, %v294
    %v299 = vld [vmem:[#allocation3] sm:$0xff]
    %v300 = vld [vmem:[#allocation3 + $0x8] sm:$0xff]
    %v301 = vld [vmem:[#allocation3 + $0x10] sm:$0xff]
    %v302 = vld [vmem:[#allocation3 + $0x18] sm:$0xff]
    %v303 = vld [vmem:[#allocation3 + $0x20] sm:$0xff]
    %v304 = vld [vmem:[#allocation3 + $0x28] sm:$0xff]
    %v305 = vld [vmem:[#allocation3 + $0x30] sm:$0xff]
    %v306 = vld [vmem:[#allocation3 + $0x38] sm:$0xff]
    %v307 = vld [vmem:[#allocation3 + $0x40] sm:$0xff]
    %v308 = vld [vmem:[#allocation3 + $0x48] sm:$0xff]
    %v309 = vld [vmem:[#allocation3 + $0x50] sm:$0xff]
    %v310 = vld [vmem:[#allocation3 + $0x58] sm:$0xff]
    %v311 = vld [vmem:[%s2] sm:$0xff]
    %v312 = vld [vmem:[%s2 + $0x8] sm:$0xff]
    %v313 = vld [vmem:[%s2 + $0x10] sm:$0xff]
    %v314 = vld [vmem:[%s2 + $0x18] sm:$0xff]
    %v315 = vld [vmem:[%s2 + $0x20] sm:$0xff]
    %v316 = vld [vmem:[%s2 + $0x28] sm:$0xff]
    %v317 = vld [vmem:[%s2 + $0x30] sm:$0xff]
    %v318 = vld [vmem:[%s2 + $0x38] sm:$0xff]
    %v319 = vld [vmem:[%s2 + $0x40] sm:$0xff]
    %v320 = vld [vmem:[%s2 + $0x48] sm:$0xff]
    %v321 = vld [vmem:[%s2 + $0x50] sm:$0xff]
    %v322 = vld [vmem:[%s2 + $0x58] sm:$0xff]
    %v323 = vld [vmem:[%s2 + $0x60] sm:$0xff]
    %v324 = vld [vmem:[%s2 + $0x68] sm:$0xff]
    %v325 = vld [vmem:[%s2 + $0x70] sm:$0xff]
    %v326 = vld [vmem:[%s2 + $0x78] sm:$0xff]
    %v327 = vld [vmem:[%s2 + $0x80] sm:$0xff]
    %v328 = vld [vmem:[%s2 + $0x88] sm:$0xff]
    %v329 = vld [vmem:[%s2 + $0x90] sm:$0xff]
    %v330 = vld [vmem:[%s2 + $0x98] sm:$0xff]
    %v331 = vld [vmem:[%s2 + $0xa0] sm:$0xff]
    %v332 = vld [vmem:[%s2 + $0xa8] sm:$0xff]
    %v333 = vld [vmem:[%s2 + $0xb0] sm:$0xff]
    %v334 = vld [vmem:[%s2 + $0xb8] sm:$0xff]
    %v335 = vld [vmem:[%s2 + $0xc0] sm:$0xff]
    %v336 = vld [vmem:[%s2 + $0xc8] sm:$0xff]
    %v337 = vld [vmem:[%s2 + $0xd0] sm:$0xff]
    %v338 = vld [vmem:[%s2 + $0xd8] sm:$0xff]
    %v339 = vld [vmem:[%s2 + $0xe0] sm:$0xff]
    %v340 = vld [vmem:[%s2 + $0xe8] sm:$0xff]
    %v341 = vld [vmem:[%s2 + $0xf0] sm:$0xff]
    %v342 = vld [vmem:[%s2 + $0xf8] sm:$0xff]
    %v343 = vld [vmem:[%s2 + $0x100] sm:$0xff]
    %v344 = vld [vmem:[%s2 + $0x108] sm:$0xff]
    %v345 = vld [vmem:[%s2 + $0x110] sm:$0xff]
    %v346 = vld [vmem:[%s2 + $0x118] sm:$0xff]
    %v347 = vld [vmem:[%s8] sm:$0x1]
    %v348 = vlaneseq
    %v349 = vshrl.u32 %v348, 7
    %v350 = vsub.s32 0, %v349
    %v351 = vrot.slane %v347, %v350
    %v353 = vsel %vm33, %v301, 0
    %v356 = vsel %vm33, %v304, 0
    %v359 = vsel %vm33, %v307, 0
    %v362 = vsel %vm33, %v310, 0
    %364 = vmatprep.subr.mxu0 0.0
    %365 = vmatpush1.msra.mxu0 %v326
    %366 = vmatprep.subr.mxu0 0.0
    %367 = vmatpush1.msra.mxu0 %v325
    %368 = vmatprep.subr.mxu0 0.0
    %369 = vmatpush1.msra.mxu0 %v324
    %370 = vmatprep.subr.mxu0 0.0
    %371 = vmatpush1.msra.mxu0 %v323
    %372 = vmatprep.subr.mxu0 0.0
    %373 = vmatpush1.msra.mxu0 %v322
    %374 = vmatprep.subr.mxu0 0.0
    %375 = vmatpush1.msra.mxu0 %v321
    %376 = vmatprep.subr.mxu0 0.0
    %377 = vmatpush1.msra.mxu0 %v320
    %378 = vmatprep.subr.mxu0 0.0
    %379 = vmatpush1.msra.mxu0 %v319
    %380 = vmatprep.subr.mxu0 0.0
    %381 = vmatpush1.msra.mxu0 %v318
    %382 = vmatprep.subr.mxu0 0.0
    %383 = vmatpush1.msra.mxu0 %v317
    %384 = vmatprep.subr.mxu0 0.0
    %385 = vmatpush1.msra.mxu0 %v316
    %386 = vmatprep.subr.mxu0 0.0
    %387 = vmatpush1.msra.mxu0 %v315
    %388 = vmatprep.subr.mxu0 0.0
    %389 = vmatpush1.msra.mxu0 %v314
    %390 = vmatprep.subr.mxu0 0.0
    %391 = vmatpush1.msra.mxu0 %v313
    %392 = vmatprep.subr.mxu0 0.0
    %393 = vmatpush1.msra.mxu0 %v312
    %394 = vmatprep.subr.mxu0 0.0
    %395 = vmatpush1.msra.mxu0 %v311
    %396 = vmatprep.subr.mxu0 0.0
    %397 = vmatpush2.msra.mxu0 %v342
    %398 = vmatprep.subr.mxu0 0.0
    %399 = vmatpush2.msra.mxu0 %v341
    %400 = vmatprep.subr.mxu0 0.0
    %401 = vmatpush2.msra.mxu0 %v340
    %402 = vmatprep.subr.mxu0 0.0
    %403 = vmatpush2.msra.mxu0 %v339
    %404 = vmatprep.subr.mxu0 0.0
    %405 = vmatpush2.msra.mxu0 %v338
    %406 = vmatprep.subr.mxu0 0.0
    %407 = vmatpush2.msra.mxu0 %v337
    %408 = vmatprep.subr.mxu0 0.0
    %409 = vmatpush2.msra.mxu0 %v336
    %410 = vmatprep.subr.mxu0 0.0
    %411 = vmatpush2.msra.mxu0 %v335
    %412 = vmatprep.subr.mxu0 0.0
    %413 = vmatpush2.msra.mxu0 %v334
    %414 = vmatprep.subr.mxu0 0.0
    %415 = vmatpush2.msra.mxu0 %v333
    %416 = vmatprep.subr.mxu0 0.0
    %417 = vmatpush2.msra.mxu0 %v332
    %418 = vmatprep.subr.mxu0 0.0
    %419 = vmatpush2.msra.mxu0 %v331
    %420 = vmatprep.subr.mxu0 0.0
    %421 = vmatpush2.msra.mxu0 %v330
    %422 = vmatprep.subr.mxu0 0.0
    %423 = vmatpush2.msra.mxu0 %v329
    %424 = vmatprep.subr.mxu0 0.0
    %425 = vmatpush2.msra.mxu0 %v328
    %426 = vmatprep.subr.mxu0 0.0
    %427 = vmatpush2.msra.mxu0 %v327
    %428 = vmatprep.mubr.f32.mxu0 %v300
    %429 = vmatmul.mubr.f32.gmra.mxu0 %v299
    %v430 = vpop.f32.mrf.mxu0
    %v431 = vadd.f32 %v351, %v430
    %v432 = vpop.f32.mrf.mxu0
    %433 = vmatprep.mubr.f32.mxu0 %v303
    %434 = vmatmul.mubr.f32.gmra.mxu0 %v302
    %v435 = vpop.f32.mrf.mxu0
    %v436 = vadd.f32 %v351, %v435
    %v437 = vpop.f32.mrf.mxu0
    %438 = vmatprep.mubr.f32.mxu0 %v306
    %439 = vmatmul.mubr.f32.gmra.mxu0 %v305
    %v440 = vpop.f32.mrf.mxu0
    %v441 = vadd.f32 %v351, %v440
    %v442 = vpop.f32.mrf.mxu0
    %443 = vmatprep.mubr.f32.mxu0 %v309
    %444 = vmatmul.mubr.f32.gmra.mxu0 %v308
    %v445 = vpop.f32.mrf.mxu0
    %v446 = vadd.f32 %v351, %v445
    %v447 = vpop.f32.mrf.mxu0
    %448 = vdwg.mxu0
    %449 = vmatprep.subr.mxu0 0.0
    %450 = vmatpush1.msra.mxu0 0.0
    %451 = vmatprep.subr.mxu0 0.0
    %452 = vmatpush1.msra.mxu0 0.0
    %453 = vmatprep.subr.mxu0 0.0
    %454 = vmatpush1.msra.mxu0 0.0
    %455 = vmatprep.subr.mxu0 0.0
    %456 = vmatpush1.msra.mxu0 0.0
    %457 = vmatprep.subr.mxu0 0.0
    %458 = vmatpush1.msra.mxu0 0.0
    %459 = vmatprep.subr.mxu0 0.0
    %460 = vmatpush1.msra.mxu0 0.0
    %461 = vmatprep.subr.mxu0 0.0
    %462 = vmatpush1.msra.mxu0 0.0
    %463 = vmatprep.subr.mxu0 0.0
    %464 = vmatpush1.msra.mxu0 0.0
    %465 = vmatprep.subr.mxu0 0.0
    %466 = vmatpush1.msra.mxu0 0.0
    %467 = vmatprep.subr.mxu0 0.0
    %468 = vmatpush1.msra.mxu0 0.0
    %469 = vmatprep.subr.mxu0 0.0
    %470 = vmatpush1.msra.mxu0 0.0
    %471 = vmatprep.subr.mxu0 0.0
    %472 = vmatpush1.msra.mxu0 0.0
    %473 = vmatprep.subr.mxu0 0.0
    %474 = vmatpush1.msra.mxu0 %v346
    %475 = vmatprep.subr.mxu0 0.0
    %476 = vmatpush1.msra.mxu0 %v345
    %477 = vmatprep.subr.mxu0 0.0
    %478 = vmatpush1.msra.mxu0 %v344
    %479 = vmatprep.subr.mxu0 0.0
    %480 = vmatpush1.msra.mxu0 %v343
    %481 = vmatprep.subr.mxu0 0.0
    %482 = vmatpush2.msra.mxu0 0.0
    %483 = vmatprep.subr.mxu0 0.0
    %484 = vmatpush2.msra.mxu0 0.0
    %485 = vmatprep.subr.mxu0 0.0
    %486 = vmatpush2.msra.mxu0 0.0
    %487 = vmatprep.subr.mxu0 0.0
    %488 = vmatpush2.msra.mxu0 0.0
    %489 = vmatprep.subr.mxu0 0.0
    %490 = vmatpush2.msra.mxu0 0.0
    %491 = vmatprep.subr.mxu0 0.0
    %492 = vmatpush2.msra.mxu0 0.0
    %493 = vmatprep.subr.mxu0 0.0
    %494 = vmatpush2.msra.mxu0 0.0
    %495 = vmatprep.subr.mxu0 0.0
    %496 = vmatpush2.msra.mxu0 0.0
    %497 = vmatprep.subr.mxu0 0.0
    %498 = vmatpush2.msra.mxu0 0.0
    %499 = vmatprep.subr.mxu0 0.0
    %500 = vmatpush2.msra.mxu0 0.0
    %501 = vmatprep.subr.mxu0 0.0
    %502 = vmatpush2.msra.mxu0 0.0
    %503 = vmatprep.subr.mxu0 0.0
    %504 = vmatpush2.msra.mxu0 0.0
    %505 = vmatprep.subr.mxu0 0.0
    %506 = vmatpush2.msra.mxu0 0.0
    %507 = vmatprep.subr.mxu0 0.0
    %508 = vmatpush2.msra.mxu0 0.0
    %509 = vmatprep.subr.mxu0 0.0
    %510 = vmatpush2.msra.mxu0 0.0
    %511 = vmatprep.subr.mxu0 0.0
    %512 = vmatpush2.msra.mxu0 0.0
    %513 = vmatprep.mubr.f32.mxu0 0.0
    %514 = vmatmul.mubr.f32.gmra.mxu0 %v353
    %v515 = vpop.f32.mrf.mxu0
    %v516 = vadd.f32 %v431, %v515
    %v517 = vpop.f32.mrf.mxu0
    %518 = vmatprep.mubr.f32.mxu0 0.0
    %519 = vmatmul.mubr.f32.gmra.mxu0 %v356
    %v520 = vpop.f32.mrf.mxu0
    %v521 = vadd.f32 %v436, %v520
    %v522 = vpop.f32.mrf.mxu0
    %523 = vmatprep.mubr.f32.mxu0 0.0
    %524 = vmatmul.mubr.f32.gmra.mxu0 %v359
    %v525 = vpop.f32.mrf.mxu0
    %v526 = vadd.f32 %v441, %v525
    %v527 = vpop.f32.mrf.mxu0
    %528 = vmatprep.mubr.f32.mxu0 0.0
    %529 = vmatmul.mubr.f32.gmra.mxu0 %v362
    %v530 = vpop.f32.mrf.mxu0
    %v531 = vadd.f32 %v446, %v530
    %v532 = vpop.f32.mrf.mxu0
    %533 = vdwg.mxu0
    %v534 = vmax.f32 %v516, 0.0
    %v535 = vmax.f32 %v521, 0.0
    %v536 = vmax.f32 %v526, 0.0
    %v537 = vmax.f32 %v531, 0.0
    %v538 = vld [vmem:[%s8 + $0x1] sm:$0x1]
    %v539 = vlaneseq
    %v540 = vshrl.u32 %v539, 7
    %v541 = vsub.s32 0, %v540
    %v542 = vrot.slane %v538, %v541
    %v543 = vmul.f32 %v534, %v542
    %v544 = vmul.f32 %v535, %v542
    %v545 = vmul.f32 %v536, %v542
    %v546 = vmul.f32 %v537, %v542
    %v547 = vld [vmem:[%s8 + $0x2] sm:$0x1]
    %v548 = vlaneseq
    %v549 = vshrl.u32 %v548, 7
    %v550 = vsub.s32 0, %v549
    %v551 = vrot.slane %v547, %v550
    %v552 = vadd.f32 %v543, %v551
    %v553 = vadd.f32 %v544, %v551
    %v554 = vadd.f32 %v545, %v551
    %v555 = vadd.f32 %v546, %v551
    %556 = vst.msk [vmem:[#allocation2 + $0x8] sm:$0xff] %vm33, %v552
    %557 = vst.msk [vmem:[#allocation2 + $0x10] sm:$0xff] %vm33, %v553
    %558 = vst.msk [vmem:[#allocation2 + $0x18] sm:$0xff] %vm33, %v554
    %559 = vst.msk [vmem:[#allocation2 + $0x20] sm:$0xff] %vm33, %v555
    %v560 = vld [vmem:[#allocation2 + $0x3] sm:$0xff]
    %v561 = vld [vmem:[#allocation2 + $0xb] sm:$0xff]
    %v562 = vld [vmem:[#allocation2 + $0x13] sm:$0xff]
    %v563 = vld [vmem:[#allocation2 + $0x1b] sm:$0xff]
    %v564 = vld [vmem:[%s1] sm:$0xff]
    %v565 = vld [vmem:[%s1 + $0x8] sm:$0xff]
    %v566 = vld [vmem:[%s1 + $0x10] sm:$0xff]
    %v567 = vld [vmem:[%s1 + $0x18] sm:$0xff]
    %v568 = vmul.f32 %v560, %v564
    %v569 = vmul.f32 %v561, %v565
    %v570 = vmul.f32 %v562, %v566
    %v571 = vmul.f32 %v563, %v567
    %572 = vst.msk [vmem:[#allocation3] sm:$0xff] %vm33, %v568
    %573 = vst.msk [vmem:[#allocation3 + $0x18] sm:$0xff] %vm33, %v569
    %574 = vst.msk [vmem:[#allocation3 + $0x30] sm:$0xff] %vm33, %v570
    %575 = vst.msk [vmem:[#allocation3 + $0x48] sm:$0xff] %vm33, %v571
    %v576 = vld [vmem:[#allocation2 + $0x4] sm:$0xff]
    %v577 = vld [vmem:[#allocation2 + $0xc] sm:$0xff]
    %v578 = vld [vmem:[#allocation2 + $0x14] sm:$0xff]
    %v579 = vld [vmem:[#allocation2 + $0x1c] sm:$0xff]
    %v580 = vld [vmem:[%s68] sm:$0xff]
    %v581 = vld [vmem:[%s68 + $0x8] sm:$0xff]
    %v582 = vld [vmem:[%s68 + $0x10] sm:$0xff]
    %v583 = vld [vmem:[%s68 + $0x18] sm:$0xff]
    %v584 = vmul.f32 %v576, %v580
    %v585 = vmul.f32 %v577, %v581
    %v586 = vmul.f32 %v578, %v582
    %v587 = vmul.f32 %v579, %v583
    %592 = vrot.lane.b32.xlu0 %v584, 32
    %v593 = vpop.permute.xlu0 %592
    %594 = vrot.lane.b32.xlu0 %v585, 32
    %v595 = vpop.permute.xlu0 %594
    %596 = vrot.lane.b32.xlu0 %v586, 32
    %v597 = vpop.permute.xlu0 %596
    %598 = vrot.lane.b32.xlu0 %v587, 32
    %v599 = vpop.permute.xlu0 %598
    %604 = vst.msk [vmem:[#allocation3] sm:$0xff] %vm93, %v593
    %605 = vst.msk [vmem:[#allocation3 + $0x18] sm:$0xff] %vm93, %v595
    %606 = vst.msk [vmem:[#allocation3 + $0x30] sm:$0xff] %vm93, %v597
    %607 = vst.msk [vmem:[#allocation3 + $0x48] sm:$0xff] %vm93, %v599
    %v608 = vld [vmem:[#allocation2 + $0x5] sm:$0xff]
    %v609 = vld [vmem:[#allocation2 + $0xd] sm:$0xff]
    %v610 = vld [vmem:[#allocation2 + $0x15] sm:$0xff]
    %v611 = vld [vmem:[#allocation2 + $0x1d] sm:$0xff]
    %v612 = vld [vmem:[%s102] sm:$0xff]
    %v613 = vld [vmem:[%s102 + $0x8] sm:$0xff]
    %v614 = vld [vmem:[%s102 + $0x10] sm:$0xff]
    %v615 = vld [vmem:[%s102 + $0x18] sm:$0xff]
    %v616 = vmul.f32 %v608, %v612
    %v617 = vmul.f32 %v609, %v613
    %v618 = vmul.f32 %v610, %v614
    %v619 = vmul.f32 %v611, %v615
    %624 = vrot.lane.b32.xlu0 %v616, 64
    %v625 = vpop.permute.xlu0 %624
    %626 = vrot.lane.b32.xlu0 %v617, 64
    %v627 = vpop.permute.xlu0 %626
    %628 = vrot.lane.b32.xlu0 %v618, 64
    %v629 = vpop.permute.xlu0 %628
    %630 = vrot.lane.b32.xlu0 %v619, 64
    %v631 = vpop.permute.xlu0 %630
    %636 = vst.msk [vmem:[#allocation3] sm:$0xff] %vm127, %v625
    %637 = vst.msk [vmem:[#allocation3 + $0x18] sm:$0xff] %vm127, %v627
    %638 = vst.msk [vmem:[#allocation3 + $0x30] sm:$0xff] %vm127, %v629
    %639 = vst.msk [vmem:[#allocation3 + $0x48] sm:$0xff] %vm127, %v631
    %v640 = vld [vmem:[#allocation2 + $0x7] sm:$0xff]
    %v641 = vld [vmem:[#allocation2 + $0xf] sm:$0xff]
    %v642 = vld [vmem:[#allocation2 + $0x17] sm:$0xff]
    %v643 = vld [vmem:[#allocation2 + $0x1f] sm:$0xff]
    %v644 = vld [vmem:[%s136] sm:$0xff]
    %v645 = vld [vmem:[%s136 + $0x8] sm:$0xff]
    %v646 = vld [vmem:[%s136 + $0x10] sm:$0xff]
    %v647 = vld [vmem:[%s136 + $0x18] sm:$0xff]
    %v648 = vmul.f32 %v640, %v644
    %v649 = vmul.f32 %v641, %v645
    %v650 = vmul.f32 %v642, %v646
    %v651 = vmul.f32 %v643, %v647
    %656 = vrot.lane.b32.xlu0 %v648, 96
    %v657 = vpop.permute.xlu0 %656
    %658 = vrot.lane.b32.xlu0 %v649, 96
    %v659 = vpop.permute.xlu0 %658
    %660 = vrot.lane.b32.xlu0 %v650, 96
    %v661 = vpop.permute.xlu0 %660
    %662 = vrot.lane.b32.xlu0 %v651, 96
    %v663 = vpop.permute.xlu0 %662
    %668 = vst.msk [vmem:[#allocation3] sm:$0xff] %vm161, %v657
    %669 = vst.msk [vmem:[#allocation3 + $0x18] sm:$0xff] %vm161, %v659
    %670 = vst.msk [vmem:[#allocation3 + $0x30] sm:$0xff] %vm161, %v661
    %671 = vst.msk [vmem:[#allocation3 + $0x48] sm:$0xff] %vm161, %v663
    %v672 = vld [vmem:[#allocation2 + $0x8] sm:$0xff]
    %v673 = vld [vmem:[#allocation2 + $0x10] sm:$0xff]
    %v674 = vld [vmem:[#allocation2 + $0x18] sm:$0xff]
    %v675 = vld [vmem:[#allocation2 + $0x20] sm:$0xff]
    %v676 = vld [vmem:[%s170] sm:$0xff]
    %v677 = vld [vmem:[%s170 + $0x8] sm:$0xff]
    %v678 = vld [vmem:[%s170 + $0x10] sm:$0xff]
    %v679 = vld [vmem:[%s170 + $0x18] sm:$0xff]
    %v680 = vmul.f32 %v672, %v676
    %v681 = vmul.f32 %v673, %v677
    %v682 = vmul.f32 %v674, %v678
    %v683 = vmul.f32 %v675, %v679
    %684 = vst.msk [vmem:[#allocation3 + $0x8] sm:$0xff] %vm33, %v680
    %685 = vst.msk [vmem:[#allocation3 + $0x20] sm:$0xff] %vm33, %v681
    %686 = vst.msk [vmem:[#allocation3 + $0x38] sm:$0xff] %vm33, %v682
    %687 = vst.msk [vmem:[#allocation3 + $0x50] sm:$0xff] %vm33, %v683
    %v688 = vld [vmem:[#allocation2 + $0x9] sm:$0xff]
    %v689 = vld [vmem:[#allocation2 + $0x11] sm:$0xff]
    %v690 = vld [vmem:[#allocation2 + $0x19] sm:$0xff]
    %v691 = vld [vmem:[#allocation2 + $0x21] sm:$0xff]
    %v692 = vld [vmem:[%s187] sm:$0xff]
    %v693 = vld [vmem:[%s187 + $0x8] sm:$0xff]
    %v694 = vld [vmem:[%s187 + $0x10] sm:$0xff]
    %v695 = vld [vmem:[%s187 + $0x18] sm:$0xff]
    %v696 = vmul.f32 %v688, %v692
    %v697 = vmul.f32 %v689, %v693
    %v698 = vmul.f32 %v690, %v694
    %v699 = vmul.f32 %v691, %v695
    %704 = vrot.lane.b32.xlu0 %v696, 32
    %v705 = vpop.permute.xlu0 %704
    %706 = vrot.lane.b32.xlu0 %v697, 32
    %v707 = vpop.permute.xlu0 %706
    %708 = vrot.lane.b32.xlu0 %v698, 32
    %v709 = vpop.permute.xlu0 %708
    %710 = vrot.lane.b32.xlu0 %v699, 32
    %v711 = vpop.permute.xlu0 %710
    %716 = vst.msk [vmem:[#allocation3 + $0x8] sm:$0xff] %vm93, %v705
    %717 = vst.msk [vmem:[#allocation3 + $0x20] sm:$0xff] %vm93, %v707
    %718 = vst.msk [vmem:[#allocation3 + $0x38] sm:$0xff] %vm93, %v709
    %719 = vst.msk [vmem:[#allocation3 + $0x50] sm:$0xff] %vm93, %v711
    %v720 = vld [vmem:[#allocation2 + $0xb] sm:$0xff]
    %v721 = vld [vmem:[#allocation2 + $0x13] sm:$0xff]
    %v722 = vld [vmem:[#allocation2 + $0x1b] sm:$0xff]
    %v723 = vld [vmem:[#allocation2 + $0x23] sm:$0xff]
    %v724 = vld [vmem:[%s220] sm:$0xff]
    %v725 = vld [vmem:[%s220 + $0x8] sm:$0xff]
    %v726 = vld [vmem:[%s220 + $0x10] sm:$0xff]
    %v727 = vld [vmem:[%s220 + $0x18] sm:$0xff]
    %v728 = vmul.f32 %v720, %v724
    %v729 = vmul.f32 %v721, %v725
    %v730 = vmul.f32 %v722, %v726
    %v731 = vmul.f32 %v723, %v727
    %736 = vrot.lane.b32.xlu0 %v728, 64
    %v737 = vpop.permute.xlu0 %736
    %738 = vrot.lane.b32.xlu0 %v729, 64
    %v739 = vpop.permute.xlu0 %738
    %740 = vrot.lane.b32.xlu0 %v730, 64
    %v741 = vpop.permute.xlu0 %740
    %742 = vrot.lane.b32.xlu0 %v731, 64
    %v743 = vpop.permute.xlu0 %742
    %748 = vst.msk [vmem:[#allocation3 + $0x8] sm:$0xff] %vm127, %v737
    %749 = vst.msk [vmem:[#allocation3 + $0x20] sm:$0xff] %vm127, %v739
    %750 = vst.msk [vmem:[#allocation3 + $0x38] sm:$0xff] %vm127, %v741
    %751 = vst.msk [vmem:[#allocation3 + $0x50] sm:$0xff] %vm127, %v743
    %v752 = vld [vmem:[#allocation2 + $0xc] sm:$0xff]
    %v753 = vld [vmem:[#allocation2 + $0x14] sm:$0xff]
    %v754 = vld [vmem:[#allocation2 + $0x1c] sm:$0xff]
    %v755 = vld [vmem:[#allocation2 + $0x24] sm:$0xff]
    %v756 = vld [vmem:[%s253] sm:$0xff]
    %v757 = vld [vmem:[%s253 + $0x8] sm:$0xff]
    %v758 = vld [vmem:[%s253 + $0x10] sm:$0xff]
    %v759 = vld [vmem:[%s253 + $0x18] sm:$0xff]
    %v760 = vmul.f32 %v752, %v756
    %v761 = vmul.f32 %v753, %v757
    %v762 = vmul.f32 %v754, %v758
    %v763 = vmul.f32 %v755, %v759
    %768 = vrot.lane.b32.xlu0 %v760, 96
    %v769 = vpop.permute.xlu0 %768
    %770 = vrot.lane.b32.xlu0 %v761, 96
    %v771 = vpop.permute.xlu0 %770
    %772 = vrot.lane.b32.xlu0 %v762, 96
    %v773 = vpop.permute.xlu0 %772
    %774 = vrot.lane.b32.xlu0 %v763, 96
    %v775 = vpop.permute.xlu0 %774
    %780 = vst.msk [vmem:[#allocation3 + $0x8] sm:$0xff] %vm161, %v769
    %781 = vst.msk [vmem:[#allocation3 + $0x20] sm:$0xff] %vm161, %v771
    %782 = vst.msk [vmem:[#allocation3 + $0x38] sm:$0xff] %vm161, %v773
    %783 = vst.msk [vmem:[#allocation3 + $0x50] sm:$0xff] %vm161, %v775
    %v784 = vld [vmem:[#allocation2 + $0xd] sm:$0xff]
    %v785 = vld [vmem:[#allocation2 + $0x15] sm:$0xff]
    %v786 = vld [vmem:[#allocation2 + $0x1d] sm:$0xff]
    %v787 = vld [vmem:[#allocation2 + $0x25] sm:$0xff]
    %v788 = vld [vmem:[%s286] sm:$0xff]
    %v789 = vld [vmem:[%s286 + $0x8] sm:$0xff]
    %v790 = vld [vmem:[%s286 + $0x10] sm:$0xff]
    %v791 = vld [vmem:[%s286 + $0x18] sm:$0xff]
    %v792 = vmul.f32 %v784, %v788
    %v793 = vmul.f32 %v785, %v789
    %v794 = vmul.f32 %v786, %v790
    %v795 = vmul.f32 %v787, %v791
    %796 = vst.msk [vmem:[#allocation3 + $0x10] sm:$0xff] %vm33, %v792
    %797 = vst.msk [vmem:[#allocation3 + $0x28] sm:$0xff] %vm33, %v793
    %798 = vst.msk [vmem:[#allocation3 + $0x40] sm:$0xff] %vm33, %v794
    %799 = vst.msk [vmem:[#allocation3 + $0x58] sm:$0xff] %vm33, %v795
    %v800 = vld [vmem:[#allocation3] sm:$0xff]
    %v801 = vld [vmem:[#allocation3 + $0x8] sm:$0xff]
    %v802 = vld [vmem:[#allocation3 + $0x10] sm:$0xff]
    %v803 = vld [vmem:[#allocation3 + $0x18] sm:$0xff]
    %v804 = vld [vmem:[#allocation3 + $0x20] sm:$0xff]
    %v805 = vld [vmem:[#allocation3 + $0x28] sm:$0xff]
    %v806 = vld [vmem:[#allocation3 + $0x30] sm:$0xff]
    %v807 = vld [vmem:[#allocation3 + $0x38] sm:$0xff]
    %v808 = vld [vmem:[#allocation3 + $0x40] sm:$0xff]
    %v809 = vld [vmem:[#allocation3 + $0x48] sm:$0xff]
    %v810 = vld [vmem:[#allocation3 + $0x50] sm:$0xff]
    %v811 = vld [vmem:[#allocation3 + $0x58] sm:$0xff]
    %s812 = scalar_lea.vmem %s2, 288
    %v813 = vld [vmem:[%s812] sm:$0xff]
    %v814 = vld [vmem:[%s812 + $0x8] sm:$0xff]
    %v815 = vld [vmem:[%s812 + $0x10] sm:$0xff]
    %v816 = vld [vmem:[%s812 + $0x18] sm:$0xff]
    %v817 = vld [vmem:[%s812 + $0x20] sm:$0xff]
    %v818 = vld [vmem:[%s812 + $0x28] sm:$0xff]
    %v819 = vld [vmem:[%s812 + $0x30] sm:$0xff]
    %v820 = vld [vmem:[%s812 + $0x38] sm:$0xff]
    %v821 = vld [vmem:[%s812 + $0x40] sm:$0xff]
    %v822 = vld [vmem:[%s812 + $0x48] sm:$0xff]
    %v823 = vld [vmem:[%s812 + $0x50] sm:$0xff]
    %v824 = vld [vmem:[%s812 + $0x58] sm:$0xff]
    %v825 = vld [vmem:[%s812 + $0x60] sm:$0xff]
    %v826 = vld [vmem:[%s812 + $0x68] sm:$0xff]
    %v827 = vld [vmem:[%s812 + $0x70] sm:$0xff]
    %v828 = vld [vmem:[%s812 + $0x78] sm:$0xff]
    %v829 = vld [vmem:[%s812 + $0x80] sm:$0xff]
    %v830 = vld [vmem:[%s812 + $0x88] sm:$0xff]
    %v831 = vld [vmem:[%s812 + $0x90] sm:$0xff]
    %v832 = vld [vmem:[%s812 + $0x98] sm:$0xff]
    %v833 = vld [vmem:[%s812 + $0xa0] sm:$0xff]
    %v834 = vld [vmem:[%s812 + $0xa8] sm:$0xff]
    %v835 = vld [vmem:[%s812 + $0xb0] sm:$0xff]
    %v836 = vld [vmem:[%s812 + $0xb8] sm:$0xff]
    %v837 = vld [vmem:[%s812 + $0xc0] sm:$0xff]
    %v838 = vld [vmem:[%s812 + $0xc8] sm:$0xff]
    %v839 = vld [vmem:[%s812 + $0xd0] sm:$0xff]
    %v840 = vld [vmem:[%s812 + $0xd8] sm:$0xff]
    %v841 = vld [vmem:[%s812 + $0xe0] sm:$0xff]
    %v842 = vld [vmem:[%s812 + $0xe8] sm:$0xff]
    %v843 = vld [vmem:[%s812 + $0xf0] sm:$0xff]
    %v844 = vld [vmem:[%s812 + $0xf8] sm:$0xff]
    %v845 = vld [vmem:[%s812 + $0x100] sm:$0xff]
    %v846 = vld [vmem:[%s812 + $0x108] sm:$0xff]
    %v847 = vld [vmem:[%s812 + $0x110] sm:$0xff]
    %v848 = vld [vmem:[%s812 + $0x118] sm:$0xff]
    %v849 = vld [vmem:[%s8 + $0x3] sm:$0x1]
    %v850 = vlaneseq
    %v851 = vshrl.u32 %v850, 7
    %v852 = vsub.s32 0, %v851
    %v853 = vrot.slane %v849, %v852
    %v855 = vsel %vm33, %v802, 0
    %v858 = vsel %vm33, %v805, 0
    %v861 = vsel %vm33, %v808, 0
    %v864 = vsel %vm33, %v811, 0
    %866 = vmatprep.subr.mxu0 0.0
    %867 = vmatpush1.msra.mxu0 %v828
    %868 = vmatprep.subr.mxu0 0.0
    %869 = vmatpush1.msra.mxu0 %v827
    %870 = vmatprep.subr.mxu0 0.0
    %871 = vmatpush1.msra.mxu0 %v826
    %872 = vmatprep.subr.mxu0 0.0
    %873 = vmatpush1.msra.mxu0 %v825
    %874 = vmatprep.subr.mxu0 0.0
    %875 = vmatpush1.msra.mxu0 %v824
    %876 = vmatprep.subr.mxu0 0.0
    %877 = vmatpush1.msra.mxu0 %v823
    %878 = vmatprep.subr.mxu0 0.0
    %879 = vmatpush1.msra.mxu0 %v822
    %880 = vmatprep.subr.mxu0 0.0
    %881 = vmatpush1.msra.mxu0 %v821
    %882 = vmatprep.subr.mxu0 0.0
    %883 = vmatpush1.msra.mxu0 %v820
    %884 = vmatprep.subr.mxu0 0.0
    %885 = vmatpush1.msra.mxu0 %v819
    %886 = vmatprep.subr.mxu0 0.0
    %887 = vmatpush1.msra.mxu0 %v818
    %888 = vmatprep.subr.mxu0 0.0
    %889 = vmatpush1.msra.mxu0 %v817
    %890 = vmatprep.subr.mxu0 0.0
    %891 = vmatpush1.msra.mxu0 %v816
    %892 = vmatprep.subr.mxu0 0.0
    %893 = vmatpush1.msra.mxu0 %v815
    %894 = vmatprep.subr.mxu0 0.0
    %895 = vmatpush1.msra.mxu0 %v814
    %896 = vmatprep.subr.mxu0 0.0
    %897 = vmatpush1.msra.mxu0 %v813
    %898 = vmatprep.subr.mxu0 0.0
    %899 = vmatpush2.msra.mxu0 %v844
    %900 = vmatprep.subr.mxu0 0.0
    %901 = vmatpush2.msra.mxu0 %v843
    %902 = vmatprep.subr.mxu0 0.0
    %903 = vmatpush2.msra.mxu0 %v842
    %904 = vmatprep.subr.mxu0 0.0
    %905 = vmatpush2.msra.mxu0 %v841
    %906 = vmatprep.subr.mxu0 0.0
    %907 = vmatpush2.msra.mxu0 %v840
    %908 = vmatprep.subr.mxu0 0.0
    %909 = vmatpush2.msra.mxu0 %v839
    %910 = vmatprep.subr.mxu0 0.0
    %911 = vmatpush2.msra.mxu0 %v838
    %912 = vmatprep.subr.mxu0 0.0
    %913 = vmatpush2.msra.mxu0 %v837
    %914 = vmatprep.subr.mxu0 0.0
    %915 = vmatpush2.msra.mxu0 %v836
    %916 = vmatprep.subr.mxu0 0.0
    %917 = vmatpush2.msra.mxu0 %v835
    %918 = vmatprep.subr.mxu0 0.0
    %919 = vmatpush2.msra.mxu0 %v834
    %920 = vmatprep.subr.mxu0 0.0
    %921 = vmatpush2.msra.mxu0 %v833
    %922 = vmatprep.subr.mxu0 0.0
    %923 = vmatpush2.msra.mxu0 %v832
    %924 = vmatprep.subr.mxu0 0.0
    %925 = vmatpush2.msra.mxu0 %v831
    %926 = vmatprep.subr.mxu0 0.0
    %927 = vmatpush2.msra.mxu0 %v830
    %928 = vmatprep.subr.mxu0 0.0
    %929 = vmatpush2.msra.mxu0 %v829
    %930 = vmatprep.mubr.f32.mxu0 %v801
    %931 = vmatmul.mubr.f32.gmra.mxu0 %v800
    %v932 = vpop.f32.mrf.mxu0
    %v933 = vadd.f32 %v853, %v932
    %v934 = vpop.f32.mrf.mxu0
    %935 = vmatprep.mubr.f32.mxu0 %v804
    %936 = vmatmul.mubr.f32.gmra.mxu0 %v803
    %v937 = vpop.f32.mrf.mxu0
    %v938 = vadd.f32 %v853, %v937
    %v939 = vpop.f32.mrf.mxu0
    %940 = vmatprep.mubr.f32.mxu0 %v807
    %941 = vmatmul.mubr.f32.gmra.mxu0 %v806
    %v942 = vpop.f32.mrf.mxu0
    %v943 = vadd.f32 %v853, %v942
    %v944 = vpop.f32.mrf.mxu0
    %945 = vmatprep.mubr.f32.mxu0 %v810
    %946 = vmatmul.mubr.f32.gmra.mxu0 %v809
    %v947 = vpop.f32.mrf.mxu0
    %v948 = vadd.f32 %v853, %v947
    %v949 = vpop.f32.mrf.mxu0
    %950 = vdwg.mxu0
    %951 = vmatprep.subr.mxu0 0.0
    %952 = vmatpush1.msra.mxu0 0.0
    %953 = vmatprep.subr.mxu0 0.0
    %954 = vmatpush1.msra.mxu0 0.0
    %955 = vmatprep.subr.mxu0 0.0
    %956 = vmatpush1.msra.mxu0 0.0
    %957 = vmatprep.subr.mxu0 0.0
    %958 = vmatpush1.msra.mxu0 0.0
    %959 = vmatprep.subr.mxu0 0.0
    %960 = vmatpush1.msra.mxu0 0.0
    %961 = vmatprep.subr.mxu0 0.0
    %962 = vmatpush1.msra.mxu0 0.0
    %963 = vmatprep.subr.mxu0 0.0
    %964 = vmatpush1.msra.mxu0 0.0
    %965 = vmatprep.subr.mxu0 0.0
    %966 = vmatpush1.msra.mxu0 0.0
    %967 = vmatprep.subr.mxu0 0.0
    %968 = vmatpush1.msra.mxu0 0.0
    %969 = vmatprep.subr.mxu0 0.0
    %970 = vmatpush1.msra.mxu0 0.0
    %971 = vmatprep.subr.mxu0 0.0
    %972 = vmatpush1.msra.mxu0 0.0
    %973 = vmatprep.subr.mxu0 0.0
    %974 = vmatpush1.msra.mxu0 0.0
    %975 = vmatprep.subr.mxu0 0.0
    %976 = vmatpush1.msra.mxu0 %v848
    %977 = vmatprep.subr.mxu0 0.0
    %978 = vmatpush1.msra.mxu0 %v847
    %979 = vmatprep.subr.mxu0 0.0
    %980 = vmatpush1.msra.mxu0 %v846
    %981 = vmatprep.subr.mxu0 0.0
    %982 = vmatpush1.msra.mxu0 %v845
    %983 = vmatprep.subr.mxu0 0.0
    %984 = vmatpush2.msra.mxu0 0.0
    %985 = vmatprep.subr.mxu0 0.0
    %986 = vmatpush2.msra.mxu0 0.0
    %987 = vmatprep.subr.mxu0 0.0
    %988 = vmatpush2.msra.mxu0 0.0
    %989 = vmatprep.subr.mxu0 0.0
    %990 = vmatpush2.msra.mxu0 0.0
    %991 = vmatprep.subr.mxu0 0.0
    %992 = vmatpush2.msra.mxu0 0.0
    %993 = vmatprep.subr.mxu0 0.0
    %994 = vmatpush2.msra.mxu0 0.0
    %995 = vmatprep.subr.mxu0 0.0
    %996 = vmatpush2.msra.mxu0 0.0
    %997 = vmatprep.subr.mxu0 0.0
    %998 = vmatpush2.msra.mxu0 0.0
    %999 = vmatprep.subr.mxu0 0.0
    %1000 = vmatpush2.msra.mxu0 0.0
    %1001 = vmatprep.subr.mxu0 0.0
    %1002 = vmatpush2.msra.mxu0 0.0
    %1003 = vmatprep.subr.mxu0 0.0
    %1004 = vmatpush2.msra.mxu0 0.0
    %1005 = vmatprep.subr.mxu0 0.0
    %1006 = vmatpush2.msra.mxu0 0.0
    %1007 = vmatprep.subr.mxu0 0.0
    %1008 = vmatpush2.msra.mxu0 0.0
    %1009 = vmatprep.subr.mxu0 0.0
    %1010 = vmatpush2.msra.mxu0 0.0
    %1011 = vmatprep.subr.mxu0 0.0
    %1012 = vmatpush2.msra.mxu0 0.0
    %1013 = vmatprep.subr.mxu0 0.0
    %1014 = vmatpush2.msra.mxu0 0.0
    %1015 = vmatprep.mubr.f32.mxu0 0.0
    %1016 = vmatmul.mubr.f32.gmra.mxu0 %v855
    %v1017 = vpop.f32.mrf.mxu0
    %v1018 = vadd.f32 %v933, %v1017
    %v1019 = vpop.f32.mrf.mxu0
    %1020 = vmatprep.mubr.f32.mxu0 0.0
    %1021 = vmatmul.mubr.f32.gmra.mxu0 %v858
    %v1022 = vpop.f32.mrf.mxu0
    %v1023 = vadd.f32 %v938, %v1022
    %v1024 = vpop.f32.mrf.mxu0
    %1025 = vmatprep.mubr.f32.mxu0 0.0
    %1026 = vmatmul.mubr.f32.gmra.mxu0 %v861
    %v1027 = vpop.f32.mrf.mxu0
    %v1028 = vadd.f32 %v943, %v1027
    %v1029 = vpop.f32.mrf.mxu0
    %1030 = vmatprep.mubr.f32.mxu0 0.0
    %1031 = vmatmul.mubr.f32.gmra.mxu0 %v864
    %v1032 = vpop.f32.mrf.mxu0
    %v1033 = vadd.f32 %v948, %v1032
    %v1034 = vpop.f32.mrf.mxu0
    %1035 = vdwg.mxu0
    %v1036 = vmax.f32 %v1018, 0.0
    %v1037 = vmax.f32 %v1023, 0.0
    %v1038 = vmax.f32 %v1028, 0.0
    %v1039 = vmax.f32 %v1033, 0.0
    %v1040 = vld [vmem:[%s8 + $0x4] sm:$0x1]
    %v1041 = vlaneseq
    %v1042 = vshrl.u32 %v1041, 7
    %v1043 = vsub.s32 0, %v1042
    %v1044 = vrot.slane %v1040, %v1043
    %v1045 = vmul.f32 %v1036, %v1044
    %v1046 = vmul.f32 %v1037, %v1044
    %v1047 = vmul.f32 %v1038, %v1044
    %v1048 = vmul.f32 %v1039, %v1044
    %v1049 = vld [vmem:[%s8 + $0x5] sm:$0x1]
    %v1050 = vlaneseq
    %v1051 = vshrl.u32 %v1050, 7
    %v1052 = vsub.s32 0, %v1051
    %v1053 = vrot.slane %v1049, %v1052
    %v1054 = vadd.f32 %v1045, %v1053
    %v1055 = vadd.f32 %v1046, %v1053
    %v1056 = vadd.f32 %v1047, %v1053
    %v1057 = vadd.f32 %v1048, %v1053
    %1058 = vst.msk [vmem:[#allocation2 + $0x8] sm:$0xff] %vm33, %v1054
    %1059 = vst.msk [vmem:[#allocation2 + $0x10] sm:$0xff] %vm33, %v1055
    %1060 = vst.msk [vmem:[#allocation2 + $0x18] sm:$0xff] %vm33, %v1056
    %1061 = vst.msk [vmem:[#allocation2 + $0x20] sm:$0xff] %vm33, %v1057
    %v1062 = vld [vmem:[#allocation2 + $0x3] sm:$0xff]
    %v1063 = vld [vmem:[#allocation2 + $0xb] sm:$0xff]
    %v1064 = vld [vmem:[#allocation2 + $0x13] sm:$0xff]
    %v1065 = vld [vmem:[#allocation2 + $0x1b] sm:$0xff]
    %v1066 = vld [vmem:[%s1] sm:$0xff]
    %v1067 = vld [vmem:[%s1 + $0x8] sm:$0xff]
    %v1068 = vld [vmem:[%s1 + $0x10] sm:$0xff]
    %v1069 = vld [vmem:[%s1 + $0x18] sm:$0xff]
    %v1070 = vmul.f32 %v1062, %v1066
    %v1071 = vmul.f32 %v1063, %v1067
    %v1072 = vmul.f32 %v1064, %v1068
    %v1073 = vmul.f32 %v1065, %v1069
    %1074 = vst.msk [vmem:[#allocation3] sm:$0xff] %vm33, %v1070
    %1075 = vst.msk [vmem:[#allocation3 + $0x18] sm:$0xff] %vm33, %v1071
    %1076 = vst.msk [vmem:[#allocation3 + $0x30] sm:$0xff] %vm33, %v1072
    %1077 = vst.msk [vmem:[#allocation3 + $0x48] sm:$0xff] %vm33, %v1073
    %v1078 = vld [vmem:[#allocation2 + $0x4] sm:$0xff]
    %v1079 = vld [vmem:[#allocation2 + $0xc] sm:$0xff]
    %v1080 = vld [vmem:[#allocation2 + $0x14] sm:$0xff]
    %v1081 = vld [vmem:[#allocation2 + $0x1c] sm:$0xff]
    %v1082 = vld [vmem:[%s68] sm:$0xff]
    %v1083 = vld [vmem:[%s68 + $0x8] sm:$0xff]
    %v1084 = vld [vmem:[%s68 + $0x10] sm:$0xff]
    %v1085 = vld [vmem:[%s68 + $0x18] sm:$0xff]
    %v1086 = vmul.f32 %v1078, %v1082
    %v1087 = vmul.f32 %v1079, %v1083
    %v1088 = vmul.f32 %v1080, %v1084
    %v1089 = vmul.f32 %v1081, %v1085
    %1094 = vrot.lane.b32.xlu0 %v1086, 32
    %v1095 = vpop.permute.xlu0 %1094
    %1096 = vrot.lane.b32.xlu0 %v1087, 32
    %v1097 = vpop.permute.xlu0 %1096
    %1098 = vrot.lane.b32.xlu0 %v1088, 32
    %v1099 = vpop.permute.xlu0 %1098
    %1100 = vrot.lane.b32.xlu0 %v1089, 32
    %v1101 = vpop.permute.xlu0 %1100
    %1106 = vst.msk [vmem:[#allocation3] sm:$0xff] %vm93, %v1095
    %1107 = vst.msk [vmem:[#allocation3 + $0x18] sm:$0xff] %vm93, %v1097
    %1108 = vst.msk [vmem:[#allocation3 + $0x30] sm:$0xff] %vm93, %v1099
    %1109 = vst.msk [vmem:[#allocation3 + $0x48] sm:$0xff] %vm93, %v1101
    %v1110 = vld [vmem:[#allocation2 + $0x5] sm:$0xff]
    %v1111 = vld [vmem:[#allocation2 + $0xd] sm:$0xff]
    %v1112 = vld [vmem:[#allocation2 + $0x15] sm:$0xff]
    %v1113 = vld [vmem:[#allocation2 + $0x1d] sm:$0xff]
    %v1114 = vld [vmem:[%s102] sm:$0xff]
    %v1115 = vld [vmem:[%s102 + $0x8] sm:$0xff]
    %v1116 = vld [vmem:[%s102 + $0x10] sm:$0xff]
    %v1117 = vld [vmem:[%s102 + $0x18] sm:$0xff]
    %v1118 = vmul.f32 %v1110, %v1114
    %v1119 = vmul.f32 %v1111, %v1115
    %v1120 = vmul.f32 %v1112, %v1116
    %v1121 = vmul.f32 %v1113, %v1117
    %1126 = vrot.lane.b32.xlu0 %v1118, 64
    %v1127 = vpop.permute.xlu0 %1126
    %1128 = vrot.lane.b32.xlu0 %v1119, 64
    %v1129 = vpop.permute.xlu0 %1128
    %1130 = vrot.lane.b32.xlu0 %v1120, 64
    %v1131 = vpop.permute.xlu0 %1130
    %1132 = vrot.lane.b32.xlu0 %v1121, 64
    %v1133 = vpop.permute.xlu0 %1132
    %1138 = vst.msk [vmem:[#allocation3] sm:$0xff] %vm127, %v1127
    %1139 = vst.msk [vmem:[#allocation3 + $0x18] sm:$0xff] %vm127, %v1129
    %1140 = vst.msk [vmem:[#allocation3 + $0x30] sm:$0xff] %vm127, %v1131
    %1141 = vst.msk [vmem:[#allocation3 + $0x48] sm:$0xff] %vm127, %v1133
    %v1142 = vld [vmem:[#allocation2 + $0x7] sm:$0xff]
    %v1143 = vld [vmem:[#allocation2 + $0xf] sm:$0xff]
    %v1144 = vld [vmem:[#allocation2 + $0x17] sm:$0xff]
    %v1145 = vld [vmem:[#allocation2 + $0x1f] sm:$0xff]
    %v1146 = vld [vmem:[%s136] sm:$0xff]
    %v1147 = vld [vmem:[%s136 + $0x8] sm:$0xff]
    %v1148 = vld [vmem:[%s136 + $0x10] sm:$0xff]
    %v1149 = vld [vmem:[%s136 + $0x18] sm:$0xff]
    %v1150 = vmul.f32 %v1142, %v1146
    %v1151 = vmul.f32 %v1143, %v1147
    %v1152 = vmul.f32 %v1144, %v1148
    %v1153 = vmul.f32 %v1145, %v1149
    %1158 = vrot.lane.b32.xlu0 %v1150, 96
    %v1159 = vpop.permute.xlu0 %1158
    %1160 = vrot.lane.b32.xlu0 %v1151, 96
    %v1161 = vpop.permute.xlu0 %1160
    %1162 = vrot.lane.b32.xlu0 %v1152, 96
    %v1163 = vpop.permute.xlu0 %1162
    %1164 = vrot.lane.b32.xlu0 %v1153, 96
    %v1165 = vpop.permute.xlu0 %1164
    %1170 = vst.msk [vmem:[#allocation3] sm:$0xff] %vm161, %v1159
    %1171 = vst.msk [vmem:[#allocation3 + $0x18] sm:$0xff] %vm161, %v1161
    %1172 = vst.msk [vmem:[#allocation3 + $0x30] sm:$0xff] %vm161, %v1163
    %1173 = vst.msk [vmem:[#allocation3 + $0x48] sm:$0xff] %vm161, %v1165
    %v1174 = vld [vmem:[#allocation2 + $0x8] sm:$0xff]
    %v1175 = vld [vmem:[#allocation2 + $0x10] sm:$0xff]
    %v1176 = vld [vmem:[#allocation2 + $0x18] sm:$0xff]
    %v1177 = vld [vmem:[#allocation2 + $0x20] sm:$0xff]
    %v1178 = vld [vmem:[%s170] sm:$0xff]
    %v1179 = vld [vmem:[%s170 + $0x8] sm:$0xff]
    %v1180 = vld [vmem:[%s170 + $0x10] sm:$0xff]
    %v1181 = vld [vmem:[%s170 + $0x18] sm:$0xff]
    %v1182 = vmul.f32 %v1174, %v1178
    %v1183 = vmul.f32 %v1175, %v1179
    %v1184 = vmul.f32 %v1176, %v1180
    %v1185 = vmul.f32 %v1177, %v1181
    %1186 = vst.msk [vmem:[#allocation3 + $0x8] sm:$0xff] %vm33, %v1182
    %1187 = vst.msk [vmem:[#allocation3 + $0x20] sm:$0xff] %vm33, %v1183
    %1188 = vst.msk [vmem:[#allocation3 + $0x38] sm:$0xff] %vm33, %v1184
    %1189 = vst.msk [vmem:[#allocation3 + $0x50] sm:$0xff] %vm33, %v1185
    %v1190 = vld [vmem:[#allocation2 + $0x9] sm:$0xff]
    %v1191 = vld [vmem:[#allocation2 + $0x11] sm:$0xff]
    %v1192 = vld [vmem:[#allocation2 + $0x19] sm:$0xff]
    %v1193 = vld [vmem:[#allocation2 + $0x21] sm:$0xff]
    %v1194 = vld [vmem:[%s187] sm:$0xff]
    %v1195 = vld [vmem:[%s187 + $0x8] sm:$0xff]
    %v1196 = vld [vmem:[%s187 + $0x10] sm:$0xff]
    %v1197 = vld [vmem:[%s187 + $0x18] sm:$0xff]
    %v1198 = vmul.f32 %v1190, %v1194
    %v1199 = vmul.f32 %v1191, %v1195
    %v1200 = vmul.f32 %v1192, %v1196
    %v1201 = vmul.f32 %v1193, %v1197
    %1206 = vrot.lane.b32.xlu0 %v1198, 32
    %v1207 = vpop.permute.xlu0 %1206
    %1208 = vrot.lane.b32.xlu0 %v1199, 32
    %v1209 = vpop.permute.xlu0 %1208
    %1210 = vrot.lane.b32.xlu0 %v1200, 32
    %v1211 = vpop.permute.xlu0 %1210
    %1212 = vrot.lane.b32.xlu0 %v1201, 32
    %v1213 = vpop.permute.xlu0 %1212
    %1218 = vst.msk [vmem:[#allocation3 + $0x8] sm:$0xff] %vm93, %v1207
    %1219 = vst.msk [vmem:[#allocation3 + $0x20] sm:$0xff] %vm93, %v1209
    %1220 = vst.msk [vmem:[#allocation3 + $0x38] sm:$0xff] %vm93, %v1211
    %1221 = vst.msk [vmem:[#allocation3 + $0x50] sm:$0xff] %vm93, %v1213
    %v1222 = vld [vmem:[#allocation2 + $0xb] sm:$0xff]
    %v1223 = vld [vmem:[#allocation2 + $0x13] sm:$0xff]
    %v1224 = vld [vmem:[#allocation2 + $0x1b] sm:$0xff]
    %v1225 = vld [vmem:[#allocation2 + $0x23] sm:$0xff]
    %v1226 = vld [vmem:[%s220] sm:$0xff]
    %v1227 = vld [vmem:[%s220 + $0x8] sm:$0xff]
    %v1228 = vld [vmem:[%s220 + $0x10] sm:$0xff]
    %v1229 = vld [vmem:[%s220 + $0x18] sm:$0xff]
    %v1230 = vmul.f32 %v1222, %v1226
    %v1231 = vmul.f32 %v1223, %v1227
    %v1232 = vmul.f32 %v1224, %v1228
    %v1233 = vmul.f32 %v1225, %v1229
    %1238 = vrot.lane.b32.xlu0 %v1230, 64
    %v1239 = vpop.permute.xlu0 %1238
    %1240 = vrot.lane.b32.xlu0 %v1231, 64
    %v1241 = vpop.permute.xlu0 %1240
    %1242 = vrot.lane.b32.xlu0 %v1232, 64
    %v1243 = vpop.permute.xlu0 %1242
    %1244 = vrot.lane.b32.xlu0 %v1233, 64
    %v1245 = vpop.permute.xlu0 %1244
    %1250 = vst.msk [vmem:[#allocation3 + $0x8] sm:$0xff] %vm127, %v1239
    %1251 = vst.msk [vmem:[#allocation3 + $0x20] sm:$0xff] %vm127, %v1241
    %1252 = vst.msk [vmem:[#allocation3 + $0x38] sm:$0xff] %vm127, %v1243
    %1253 = vst.msk [vmem:[#allocation3 + $0x50] sm:$0xff] %vm127, %v1245
    %v1254 = vld [vmem:[#allocation2 + $0xc] sm:$0xff]
    %v1255 = vld [vmem:[#allocation2 + $0x14] sm:$0xff]
    %v1256 = vld [vmem:[#allocation2 + $0x1c] sm:$0xff]
    %v1257 = vld [vmem:[#allocation2 + $0x24] sm:$0xff]
    %v1258 = vld [vmem:[%s253] sm:$0xff]
    %v1259 = vld [vmem:[%s253 + $0x8] sm:$0xff]
    %v1260 = vld [vmem:[%s253 + $0x10] sm:$0xff]
    %v1261 = vld [vmem:[%s253 + $0x18] sm:$0xff]
    %v1262 = vmul.f32 %v1254, %v1258
    %v1263 = vmul.f32 %v1255, %v1259
    %v1264 = vmul.f32 %v1256, %v1260
    %v1265 = vmul.f32 %v1257, %v1261
    %1270 = vrot.lane.b32.xlu0 %v1262, 96
    %v1271 = vpop.permute.xlu0 %1270
    %1272 = vrot.lane.b32.xlu0 %v1263, 96
    %v1273 = vpop.permute.xlu0 %1272
    %1274 = vrot.lane.b32.xlu0 %v1264, 96
    %v1275 = vpop.permute.xlu0 %1274
    %1276 = vrot.lane.b32.xlu0 %v1265, 96
    %v1277 = vpop.permute.xlu0 %1276
    %1282 = vst.msk [vmem:[#allocation3 + $0x8] sm:$0xff] %vm161, %v1271
    %1283 = vst.msk [vmem:[#allocation3 + $0x20] sm:$0xff] %vm161, %v1273
    %1284 = vst.msk [vmem:[#allocation3 + $0x38] sm:$0xff] %vm161, %v1275
    %1285 = vst.msk [vmem:[#allocation3 + $0x50] sm:$0xff] %vm161, %v1277
    %v1286 = vld [vmem:[#allocation2 + $0xd] sm:$0xff]
    %v1287 = vld [vmem:[#allocation2 + $0x15] sm:$0xff]
    %v1288 = vld [vmem:[#allocation2 + $0x1d] sm:$0xff]
    %v1289 = vld [vmem:[#allocation2 + $0x25] sm:$0xff]
    %v1290 = vld [vmem:[%s286] sm:$0xff]
    %v1291 = vld [vmem:[%s286 + $0x8] sm:$0xff]
    %v1292 = vld [vmem:[%s286 + $0x10] sm:$0xff]
    %v1293 = vld [vmem:[%s286 + $0x18] sm:$0xff]
    %v1294 = vmul.f32 %v1286, %v1290
    %v1295 = vmul.f32 %v1287, %v1291
    %v1296 = vmul.f32 %v1288, %v1292
    %v1297 = vmul.f32 %v1289, %v1293
    %1298 = vst.msk [vmem:[#allocation3 + $0x10] sm:$0xff] %vm33, %v1294
    %1299 = vst.msk [vmem:[#allocation3 + $0x28] sm:$0xff] %vm33, %v1295
    %1300 = vst.msk [vmem:[#allocation3 + $0x40] sm:$0xff] %vm33, %v1296
    %1301 = vst.msk [vmem:[#allocation3 + $0x58] sm:$0xff] %vm33, %v1297
    %v1302 = vld [vmem:[#allocation3] sm:$0xff]
    %v1303 = vld [vmem:[#allocation3 + $0x8] sm:$0xff]
    %v1304 = vld [vmem:[#allocation3 + $0x10] sm:$0xff]
    %v1305 = vld [vmem:[#allocation3 + $0x18] sm:$0xff]
    %v1306 = vld [vmem:[#allocation3 + $0x20] sm:$0xff]
    %v1307 = vld [vmem:[#allocation3 + $0x28] sm:$0xff]
    %v1308 = vld [vmem:[#allocation3 + $0x30] sm:$0xff]
    %v1309 = vld [vmem:[#allocation3 + $0x38] sm:$0xff]
    %v1310 = vld [vmem:[#allocation3 + $0x40] sm:$0xff]
    %v1311 = vld [vmem:[#allocation3 + $0x48] sm:$0xff]
    %v1312 = vld [vmem:[#allocation3 + $0x50] sm:$0xff]
    %v1313 = vld [vmem:[#allocation3 + $0x58] sm:$0xff]
    %s1314 = scalar_lea.vmem %s2, 576
    %v1315 = vld [vmem:[%s1314] sm:$0xff]
    %v1316 = vld [vmem:[%s1314 + $0x8] sm:$0xff]
    %v1317 = vld [vmem:[%s1314 + $0x10] sm:$0xff]
    %v1318 = vld [vmem:[%s1314 + $0x18] sm:$0xff]
    %v1319 = vld [vmem:[%s1314 + $0x20] sm:$0xff]
    %v1320 = vld [vmem:[%s1314 + $0x28] sm:$0xff]
    %v1321 = vld [vmem:[%s1314 + $0x30] sm:$0xff]
    %v1322 = vld [vmem:[%s1314 + $0x38] sm:$0xff]
    %v1323 = vld [vmem:[%s1314 + $0x40] sm:$0xff]
    %v1324 = vld [vmem:[%s1314 + $0x48] sm:$0xff]
    %v1325 = vld [vmem:[%s1314 + $0x50] sm:$0xff]
    %v1326 = vld [vmem:[%s1314 + $0x58] sm:$0xff]
    %v1327 = vld [vmem:[%s1314 + $0x60] sm:$0xff]
    %v1328 = vld [vmem:[%s1314 + $0x68] sm:$0xff]
    %v1329 = vld [vmem:[%s1314 + $0x70] sm:$0xff]
    %v1330 = vld [vmem:[%s1314 + $0x78] sm:$0xff]
    %v1331 = vld [vmem:[%s1314 + $0x80] sm:$0xff]
    %v1332 = vld [vmem:[%s1314 + $0x88] sm:$0xff]
    %v1333 = vld [vmem:[%s1314 + $0x90] sm:$0xff]
    %v1334 = vld [vmem:[%s1314 + $0x98] sm:$0xff]
    %v1335 = vld [vmem:[%s1314 + $0xa0] sm:$0xff]
    %v1336 = vld [vmem:[%s1314 + $0xa8] sm:$0xff]
    %v1337 = vld [vmem:[%s1314 + $0xb0] sm:$0xff]
    %v1338 = vld [vmem:[%s1314 + $0xb8] sm:$0xff]
    %v1339 = vld [vmem:[%s1314 + $0xc0] sm:$0xff]
    %v1340 = vld [vmem:[%s1314 + $0xc8] sm:$0xff]
    %v1341 = vld [vmem:[%s1314 + $0xd0] sm:$0xff]
    %v1342 = vld [vmem:[%s1314 + $0xd8] sm:$0xff]
    %v1343 = vld [vmem:[%s1314 + $0xe0] sm:$0xff]
    %v1344 = vld [vmem:[%s1314 + $0xe8] sm:$0xff]
    %v1345 = vld [vmem:[%s1314 + $0xf0] sm:$0xff]
    %v1346 = vld [vmem:[%s1314 + $0xf8] sm:$0xff]
    %v1347 = vld [vmem:[%s1314 + $0x100] sm:$0xff]
    %v1348 = vld [vmem:[%s1314 + $0x108] sm:$0xff]
    %v1349 = vld [vmem:[%s1314 + $0x110] sm:$0xff]
    %v1350 = vld [vmem:[%s1314 + $0x118] sm:$0xff]
    %v1351 = vld [vmem:[%s8 + $0x6] sm:$0x1]
    %v1352 = vlaneseq
    %v1353 = vshrl.u32 %v1352, 7
    %v1354 = vsub.s32 0, %v1353
    %v1355 = vrot.slane %v1351, %v1354
    %v1357 = vsel %vm33, %v1304, 0
    %v1360 = vsel %vm33, %v1307, 0
    %v1363 = vsel %vm33, %v1310, 0
    %v1366 = vsel %vm33, %v1313, 0
    %1368 = vmatprep.subr.mxu0 0.0
    %1369 = vmatpush1.msra.mxu0 %v1330
    %1370 = vmatprep.subr.mxu0 0.0
    %1371 = vmatpush1.msra.mxu0 %v1329
    %1372 = vmatprep.subr.mxu0 0.0
    %1373 = vmatpush1.msra.mxu0 %v1328
    %1374 = vmatprep.subr.mxu0 0.0
    %1375 = vmatpush1.msra.mxu0 %v1327
    %1376 = vmatprep.subr.mxu0 0.0
    %1377 = vmatpush1.msra.mxu0 %v1326
    %1378 = vmatprep.subr.mxu0 0.0
    %1379 = vmatpush1.msra.mxu0 %v1325
    %1380 = vmatprep.subr.mxu0 0.0
    %1381 = vmatpush1.msra.mxu0 %v1324
    %1382 = vmatprep.subr.mxu0 0.0
    %1383 = vmatpush1.msra.mxu0 %v1323
    %1384 = vmatprep.subr.mxu0 0.0
    %1385 = vmatpush1.msra.mxu0 %v1322
    %1386 = vmatprep.subr.mxu0 0.0
    %1387 = vmatpush1.msra.mxu0 %v1321
    %1388 = vmatprep.subr.mxu0 0.0
    %1389 = vmatpush1.msra.mxu0 %v1320
    %1390 = vmatprep.subr.mxu0 0.0
    %1391 = vmatpush1.msra.mxu0 %v1319
    %1392 = vmatprep.subr.mxu0 0.0
    %1393 = vmatpush1.msra.mxu0 %v1318
    %1394 = vmatprep.subr.mxu0 0.0
    %1395 = vmatpush1.msra.mxu0 %v1317
    %1396 = vmatprep.subr.mxu0 0.0
    %1397 = vmatpush1.msra.mxu0 %v1316
    %1398 = vmatprep.subr.mxu0 0.0
    %1399 = vmatpush1.msra.mxu0 %v1315
    %1400 = vmatprep.subr.mxu0 0.0
    %1401 = vmatpush2.msra.mxu0 %v1346
    %1402 = vmatprep.subr.mxu0 0.0
    %1403 = vmatpush2.msra.mxu0 %v1345
    %1404 = vmatprep.subr.mxu0 0.0
    %1405 = vmatpush2.msra.mxu0 %v1344
    %1406 = vmatprep.subr.mxu0 0.0
    %1407 = vmatpush2.msra.mxu0 %v1343
    %1408 = vmatprep.subr.mxu0 0.0
    %1409 = vmatpush2.msra.mxu0 %v1342
    %1410 = vmatprep.subr.mxu0 0.0
    %1411 = vmatpush2.msra.mxu0 %v1341
    %1412 = vmatprep.subr.mxu0 0.0
    %1413 = vmatpush2.msra.mxu0 %v1340
    %1414 = vmatprep.subr.mxu0 0.0
    %1415 = vmatpush2.msra.mxu0 %v1339
    %1416 = vmatprep.subr.mxu0 0.0
    %1417 = vmatpush2.msra.mxu0 %v1338
    %1418 = vmatprep.subr.mxu0 0.0
    %1419 = vmatpush2.msra.mxu0 %v1337
    %1420 = vmatprep.subr.mxu0 0.0
    %1421 = vmatpush2.msra.mxu0 %v1336
    %1422 = vmatprep.subr.mxu0 0.0
    %1423 = vmatpush2.msra.mxu0 %v1335
    %1424 = vmatprep.subr.mxu0 0.0
    %1425 = vmatpush2.msra.mxu0 %v1334
    %1426 = vmatprep.subr.mxu0 0.0
    %1427 = vmatpush2.msra.mxu0 %v1333
    %1428 = vmatprep.subr.mxu0 0.0
    %1429 = vmatpush2.msra.mxu0 %v1332
    %1430 = vmatprep.subr.mxu0 0.0
    %1431 = vmatpush2.msra.mxu0 %v1331
    %1432 = vmatprep.mubr.f32.mxu0 %v1303
    %1433 = vmatmul.mubr.f32.gmra.mxu0 %v1302
    %v1434 = vpop.f32.mrf.mxu0
    %v1435 = vadd.f32 %v1355, %v1434
    %v1436 = vpop.f32.mrf.mxu0
    %1437 = vmatprep.mubr.f32.mxu0 %v1306
    %1438 = vmatmul.mubr.f32.gmra.mxu0 %v1305
    %v1439 = vpop.f32.mrf.mxu0
    %v1440 = vadd.f32 %v1355, %v1439
    %v1441 = vpop.f32.mrf.mxu0
    %1442 = vmatprep.mubr.f32.mxu0 %v1309
    %1443 = vmatmul.mubr.f32.gmra.mxu0 %v1308
    %v1444 = vpop.f32.mrf.mxu0
    %v1445 = vadd.f32 %v1355, %v1444
    %v1446 = vpop.f32.mrf.mxu0
    %1447 = vmatprep.mubr.f32.mxu0 %v1312
    %1448 = vmatmul.mubr.f32.gmra.mxu0 %v1311
    %v1449 = vpop.f32.mrf.mxu0
    %v1450 = vadd.f32 %v1355, %v1449
    %v1451 = vpop.f32.mrf.mxu0
    %1452 = vdwg.mxu0
    %1453 = vmatprep.subr.mxu0 0.0
    %1454 = vmatpush1.msra.mxu0 0.0
    %1455 = vmatprep.subr.mxu0 0.0
    %1456 = vmatpush1.msra.mxu0 0.0
    %1457 = vmatprep.subr.mxu0 0.0
    %1458 = vmatpush1.msra.mxu0 0.0
    %1459 = vmatprep.subr.mxu0 0.0
    %1460 = vmatpush1.msra.mxu0 0.0
    %1461 = vmatprep.subr.mxu0 0.0
    %1462 = vmatpush1.msra.mxu0 0.0
    %1463 = vmatprep.subr.mxu0 0.0
    %1464 = vmatpush1.msra.mxu0 0.0
    %1465 = vmatprep.subr.mxu0 0.0
    %1466 = vmatpush1.msra.mxu0 0.0
    %1467 = vmatprep.subr.mxu0 0.0
    %1468 = vmatpush1.msra.mxu0 0.0
    %1469 = vmatprep.subr.mxu0 0.0
    %1470 = vmatpush1.msra.mxu0 0.0
    %1471 = vmatprep.subr.mxu0 0.0
    %1472 = vmatpush1.msra.mxu0 0.0
    %1473 = vmatprep.subr.mxu0 0.0
    %1474 = vmatpush1.msra.mxu0 0.0
    %1475 = vmatprep.subr.mxu0 0.0
    %1476 = vmatpush1.msra.mxu0 0.0
    %1477 = vmatprep.subr.mxu0 0.0
    %1478 = vmatpush1.msra.mxu0 %v1350
    %1479 = vmatprep.subr.mxu0 0.0
    %1480 = vmatpush1.msra.mxu0 %v1349
    %1481 = vmatprep.subr.mxu0 0.0
    %1482 = vmatpush1.msra.mxu0 %v1348
    %1483 = vmatprep.subr.mxu0 0.0
    %1484 = vmatpush1.msra.mxu0 %v1347
    %1485 = vmatprep.subr.mxu0 0.0
    %1486 = vmatpush2.msra.mxu0 0.0
    %1487 = vmatprep.subr.mxu0 0.0
    %1488 = vmatpush2.msra.mxu0 0.0
    %1489 = vmatprep.subr.mxu0 0.0
    %1490 = vmatpush2.msra.mxu0 0.0
    %1491 = vmatprep.subr.mxu0 0.0
    %1492 = vmatpush2.msra.mxu0 0.0
    %1493 = vmatprep.subr.mxu0 0.0
    %1494 = vmatpush2.msra.mxu0 0.0
    %1495 = vmatprep.subr.mxu0 0.0
    %1496 = vmatpush2.msra.mxu0 0.0
    %1497 = vmatprep.subr.mxu0 0.0
    %1498 = vmatpush2.msra.mxu0 0.0
    %1499 = vmatprep.subr.mxu0 0.0
    %1500 = vmatpush2.msra.mxu0 0.0
    %1501 = vmatprep.subr.mxu0 0.0
    %1502 = vmatpush2.msra.mxu0 0.0
    %1503 = vmatprep.subr.mxu0 0.0
    %1504 = vmatpush2.msra.mxu0 0.0
    %1505 = vmatprep.subr.mxu0 0.0
    %1506 = vmatpush2.msra.mxu0 0.0
    %1507 = vmatprep.subr.mxu0 0.0
    %1508 = vmatpush2.msra.mxu0 0.0
    %1509 = vmatprep.subr.mxu0 0.0
    %1510 = vmatpush2.msra.mxu0 0.0
    %1511 = vmatprep.subr.mxu0 0.0
    %1512 = vmatpush2.msra.mxu0 0.0
    %1513 = vmatprep.subr.mxu0 0.0
    %1514 = vmatpush2.msra.mxu0 0.0
    %1515 = vmatprep.subr.mxu0 0.0
    %1516 = vmatpush2.msra.mxu0 0.0
    %1517 = vmatprep.mubr.f32.mxu0 0.0
    %1518 = vmatmul.mubr.f32.gmra.mxu0 %v1357
    %v1519 = vpop.f32.mrf.mxu0
    %v1520 = vadd.f32 %v1435, %v1519
    %v1521 = vpop.f32.mrf.mxu0
    %1522 = vmatprep.mubr.f32.mxu0 0.0
    %1523 = vmatmul.mubr.f32.gmra.mxu0 %v1360
    %v1524 = vpop.f32.mrf.mxu0
    %v1525 = vadd.f32 %v1440, %v1524
    %v1526 = vpop.f32.mrf.mxu0
    %1527 = vmatprep.mubr.f32.mxu0 0.0
    %1528 = vmatmul.mubr.f32.gmra.mxu0 %v1363
    %v1529 = vpop.f32.mrf.mxu0
    %v1530 = vadd.f32 %v1445, %v1529
    %v1531 = vpop.f32.mrf.mxu0
    %1532 = vmatprep.mubr.f32.mxu0 0.0
    %1533 = vmatmul.mubr.f32.gmra.mxu0 %v1366
    %v1534 = vpop.f32.mrf.mxu0
    %v1535 = vadd.f32 %v1450, %v1534
    %v1536 = vpop.f32.mrf.mxu0
    %1537 = vdwg.mxu0
    %v1538 = vmax.f32 %v1520, 0.0
    %v1539 = vmax.f32 %v1525, 0.0
    %v1540 = vmax.f32 %v1530, 0.0
    %v1541 = vmax.f32 %v1535, 0.0
    %v1542 = vld [vmem:[%s8 + $0x7] sm:$0x1]
    %v1543 = vlaneseq
    %v1544 = vshrl.u32 %v1543, 7
    %v1545 = vsub.s32 0, %v1544
    %v1546 = vrot.slane %v1542, %v1545
    %v1547 = vmul.f32 %v1538, %v1546
    %v1548 = vmul.f32 %v1539, %v1546
    %v1549 = vmul.f32 %v1540, %v1546
    %v1550 = vmul.f32 %v1541, %v1546
    %v1551 = vld [vmem:[%s8 + $0x8] sm:$0x1]
    %v1552 = vlaneseq
    %v1553 = vshrl.u32 %v1552, 7
    %v1554 = vsub.s32 0, %v1553
    %v1555 = vrot.slane %v1551, %v1554
    %v1556 = vadd.f32 %v1547, %v1555
    %v1557 = vadd.f32 %v1548, %v1555
    %v1558 = vadd.f32 %v1549, %v1555
    %v1559 = vadd.f32 %v1550, %v1555
    %v1560 = vld [vmem:[%s3] sm:$0xff]
    %v1561 = vld [vmem:[%s3 + $0x8] sm:$0xff]
    %v1562 = vld [vmem:[%s3 + $0x10] sm:$0xff]
    %v1563 = vld [vmem:[%s3 + $0x18] sm:$0xff]
    %v1564 = vld [vmem:[%s8 + $0x9] sm:$0x1]
    %v1565 = vlaneseq
    %v1566 = vshrl.u32 %v1565, 7
    %v1567 = vsub.s32 0, %v1566
    %v1568 = vrot.slane %v1564, %v1567
    %v1570 = vsel %vm33, %v1556, 0
    %v1573 = vsel %vm33, %v1557, 0
    %v1576 = vsel %vm33, %v1558, 0
    %v1579 = vsel %vm33, %v1559, 0
    %1581 = vmatprep.subr.mxu0 0.0
    %1582 = vmatpush1.msra.mxu0 0.0
    %1583 = vmatprep.subr.mxu0 0.0
    %1584 = vmatpush1.msra.mxu0 0.0
    %1585 = vmatprep.subr.mxu0 0.0
    %1586 = vmatpush1.msra.mxu0 0.0
    %1587 = vmatprep.subr.mxu0 0.0
    %1588 = vmatpush1.msra.mxu0 0.0
    %1589 = vmatprep.subr.mxu0 0.0
    %1590 = vmatpush1.msra.mxu0 0.0
    %1591 = vmatprep.subr.mxu0 0.0
    %1592 = vmatpush1.msra.mxu0 0.0
    %1593 = vmatprep.subr.mxu0 0.0
    %1594 = vmatpush1.msra.mxu0 0.0
    %1595 = vmatprep.subr.mxu0 0.0
    %1596 = vmatpush1.msra.mxu0 0.0
    %1597 = vmatprep.subr.mxu0 0.0
    %1598 = vmatpush1.msra.mxu0 0.0
    %1599 = vmatprep.subr.mxu0 0.0
    %1600 = vmatpush1.msra.mxu0 0.0
    %1601 = vmatprep.subr.mxu0 0.0
    %1602 = vmatpush1.msra.mxu0 0.0
    %1603 = vmatprep.subr.mxu0 0.0
    %1604 = vmatpush1.msra.mxu0 0.0
    %1605 = vmatprep.subr.mxu0 0.0
    %1606 = vmatpush1.msra.mxu0 %v1563
    %1607 = vmatprep.subr.mxu0 0.0
    %1608 = vmatpush1.msra.mxu0 %v1562
    %1609 = vmatprep.subr.mxu0 0.0
    %1610 = vmatpush1.msra.mxu0 %v1561
    %1611 = vmatprep.subr.mxu0 0.0
    %1612 = vmatpush1.msra.mxu0 %v1560
    %1613 = vmatprep.subr.mxu0 0.0
    %1614 = vmatpush2.msra.mxu0 0.0
    %1615 = vmatprep.subr.mxu0 0.0
    %1616 = vmatpush2.msra.mxu0 0.0
    %1617 = vmatprep.subr.mxu0 0.0
    %1618 = vmatpush2.msra.mxu0 0.0
    %1619 = vmatprep.subr.mxu0 0.0
    %1620 = vmatpush2.msra.mxu0 0.0
    %1621 = vmatprep.subr.mxu0 0.0
    %1622 = vmatpush2.msra.mxu0 0.0
    %1623 = vmatprep.subr.mxu0 0.0
    %1624 = vmatpush2.msra.mxu0 0.0
    %1625 = vmatprep.subr.mxu0 0.0
    %1626 = vmatpush2.msra.mxu0 0.0
    %1627 = vmatprep.subr.mxu0 0.0
    %1628 = vmatpush2.msra.mxu0 0.0
    %1629 = vmatprep.subr.mxu0 0.0
    %1630 = vmatpush2.msra.mxu0 0.0
    %1631 = vmatprep.subr.mxu0 0.0
    %1632 = vmatpush2.msra.mxu0 0.0
    %1633 = vmatprep.subr.mxu0 0.0
    %1634 = vmatpush2.msra.mxu0 0.0
    %1635 = vmatprep.subr.mxu0 0.0
    %1636 = vmatpush2.msra.mxu0 0.0
    %1637 = vmatprep.subr.mxu0 0.0
    %1638 = vmatpush2.msra.mxu0 0.0
    %1639 = vmatprep.subr.mxu0 0.0
    %1640 = vmatpush2.msra.mxu0 0.0
    %1641 = vmatprep.subr.mxu0 0.0
    %1642 = vmatpush2.msra.mxu0 0.0
    %1643 = vmatprep.subr.mxu0 0.0
    %1644 = vmatpush2.msra.mxu0 0.0
    %1645 = vmatprep.mubr.f32.mxu0 0.0
    %1646 = vmatmul.mubr.f32.gmra.mxu0 %v1570
    %v1647 = vpop.f32.mrf.mxu0
    %v1648 = vadd.f32 %v1568, %v1647
    %v1649 = vpop.f32.mrf.mxu0
    %1650 = vmatprep.mubr.f32.mxu0 0.0
    %1651 = vmatmul.mubr.f32.gmra.mxu0 %v1573
    %v1652 = vpop.f32.mrf.mxu0
    %v1653 = vadd.f32 %v1568, %v1652
    %v1654 = vpop.f32.mrf.mxu0
    %1655 = vmatprep.mubr.f32.mxu0 0.0
    %1656 = vmatmul.mubr.f32.gmra.mxu0 %v1576
    %v1657 = vpop.f32.mrf.mxu0
    %v1658 = vadd.f32 %v1568, %v1657
    %v1659 = vpop.f32.mrf.mxu0
    %1660 = vmatprep.mubr.f32.mxu0 0.0
    %1661 = vmatmul.mubr.f32.gmra.mxu0 %v1579
    %v1662 = vpop.f32.mrf.mxu0
    %v1663 = vadd.f32 %v1568, %v1662
    %v1664 = vpop.f32.mrf.mxu0
    %1665 = vdwg.mxu0
    %1668 = vrot.lane.b32.xlu0 %v1648, 96
    %v1669 = vpop.permute.xlu0 %1668
    %1670 = vrot.lane.b32.xlu0 %v1653, 96
    %v1671 = vpop.permute.xlu0 %1670
    %vm1672 = vcmask 64512
    %v1673 = vsel %vm1672, %v1648, 0
    %v1675 = vsel %vm1672, %v1653, 0
    %v1677 = vsel %vm1672, %v1669, 0
    %v1679 = vsel %vm1672, %v1671, 0
    %1681 = vmatprep.subr.mxu0 0.0
    %1682 = vmatpush1.xpose.msra.mxu0 0.0
    %1683 = vmatprep.subr.mxu0 0.0
    %1684 = vmatpush1.xpose.msra.mxu0 0.0
    %1685 = vmatprep.subr.mxu0 0.0
    %1686 = vmatpush1.xpose.msra.mxu0 0.0
    %1687 = vmatprep.subr.mxu0 0.0
    %1688 = vmatpush1.xpose.msra.mxu0 0.0
    %1689 = vmatprep.subr.mxu0 0.0
    %1690 = vmatpush1.xpose.msra.mxu0 0.0
    %1691 = vmatprep.subr.mxu0 0.0
    %1692 = vmatpush1.xpose.msra.mxu0 0.0
    %1693 = vmatprep.subr.mxu0 0.0
    %1694 = vmatpush1.xpose.msra.mxu0 0.0
    %1695 = vmatprep.subr.mxu0 0.0
    %1696 = vmatpush1.xpose.msra.mxu0 0.0
    %1697 = vmatprep.subr.mxu0 0.0
    %1698 = vmatpush1.xpose.msra.mxu0 0.0
    %1699 = vmatprep.subr.mxu0 0.0
    %1700 = vmatpush1.xpose.msra.mxu0 0.0
    %1701 = vmatprep.subr.mxu0 0.0
    %1702 = vmatpush1.xpose.msra.mxu0 0.0
    %1703 = vmatprep.subr.mxu0 0.0
    %1704 = vmatpush1.xpose.msra.mxu0 0.0
    %1705 = vmatprep.subr.mxu0 0.0
    %1706 = vmatpush1.xpose.msra.mxu0 0.0
    %1707 = vmatprep.subr.mxu0 0.0
    %1708 = vmatpush1.xpose.msra.mxu0 0.0
    %1709 = vmatprep.subr.mxu0 0.0
    %1710 = vmatpush1.xpose.msra.mxu0 %v1679
    %1711 = vmatprep.subr.mxu0 0.0
    %1712 = vmatpush1.xpose.msra.mxu0 %v1677
    %1713 = vmatprep.subr.mxu0 0.0
    %1714 = vmatpush2.xpose.msra.mxu0 0.0
    %1715 = vmatprep.subr.mxu0 0.0
    %1716 = vmatpush2.xpose.msra.mxu0 0.0
    %1717 = vmatprep.subr.mxu0 0.0
    %1718 = vmatpush2.xpose.msra.mxu0 0.0
    %1719 = vmatprep.subr.mxu0 0.0
    %1720 = vmatpush2.xpose.msra.mxu0 0.0
    %1721 = vmatprep.subr.mxu0 0.0
    %1722 = vmatpush2.xpose.msra.mxu0 0.0
    %1723 = vmatprep.subr.mxu0 0.0
    %1724 = vmatpush2.xpose.msra.mxu0 0.0
    %1725 = vmatprep.subr.mxu0 0.0
    %1726 = vmatpush2.xpose.msra.mxu0 0.0
    %1727 = vmatprep.subr.mxu0 0.0
    %1728 = vmatpush2.xpose.msra.mxu0 0.0
    %1729 = vmatprep.subr.mxu0 0.0
    %1730 = vmatpush2.xpose.msra.mxu0 0.0
    %1731 = vmatprep.subr.mxu0 0.0
    %1732 = vmatpush2.xpose.msra.mxu0 0.0
    %1733 = vmatprep.subr.mxu0 0.0
    %1734 = vmatpush2.xpose.msra.mxu0 0.0
    %1735 = vmatprep.subr.mxu0 0.0
    %1736 = vmatpush2.xpose.msra.mxu0 0.0
    %1737 = vmatprep.subr.mxu0 0.0
    %1738 = vmatpush2.xpose.msra.mxu0 0.0
    %1739 = vmatprep.subr.mxu0 0.0
    %1740 = vmatpush2.xpose.msra.mxu0 0.0
    %1741 = vmatprep.subr.mxu0 0.0
    %1742 = vmatpush2.xpose.msra.mxu0 0.0
    %1743 = vmatprep.subr.mxu0 0.0
    %1744 = vmatpush2.xpose.msra.mxu0 0.0
    %1745 = vmatprep.mubr.f32.mxu0 0.0
    %1746 = vmatmul.mubr.f32.gmra.mxu0 %v1673
    %v1747 = vpop.f32.mrf.mxu0
    %v1748 = vadd.f32 0.0, %v1747
    %v1749 = vpop.f32.mrf.mxu0
    %1750 = vmatprep.mubr.f32.mxu0 0.0
    %1751 = vmatmul.mubr.f32.gmra.mxu0 %v1675
    %v1752 = vpop.f32.mrf.mxu0
    %v1753 = vadd.f32 0.0, %v1752
    %v1754 = vpop.f32.mrf.mxu0
    %1755 = vdwg.mxu0
    %1758 = vrot.lane.b32.xlu0 %v1658, 96
    %v1759 = vpop.permute.xlu0 %1758
    %1760 = vrot.lane.b32.xlu0 %v1663, 96
    %v1761 = vpop.permute.xlu0 %1760
    %v1762 = vsel %vm1672, %v1658, 0
    %v1764 = vsel %vm1672, %v1663, 0
    %v1766 = vsel %vm1672, %v1759, 0
    %v1768 = vsel %vm1672, %v1761, 0
    %1770 = vmatprep.subr.mxu0 0.0
    %1771 = vmatpush1.xpose.msra.mxu0 0.0
    %1772 = vmatprep.subr.mxu0 0.0
    %1773 = vmatpush1.xpose.msra.mxu0 0.0
    %1774 = vmatprep.subr.mxu0 0.0
    %1775 = vmatpush1.xpose.msra.mxu0 0.0
    %1776 = vmatprep.subr.mxu0 0.0
    %1777 = vmatpush1.xpose.msra.mxu0 0.0
    %1778 = vmatprep.subr.mxu0 0.0
    %1779 = vmatpush1.xpose.msra.mxu0 0.0
    %1780 = vmatprep.subr.mxu0 0.0
    %1781 = vmatpush1.xpose.msra.mxu0 0.0
    %1782 = vmatprep.subr.mxu0 0.0
    %1783 = vmatpush1.xpose.msra.mxu0 0.0
    %1784 = vmatprep.subr.mxu0 0.0
    %1785 = vmatpush1.xpose.msra.mxu0 0.0
    %1786 = vmatprep.subr.mxu0 0.0
    %1787 = vmatpush1.xpose.msra.mxu0 0.0
    %1788 = vmatprep.subr.mxu0 0.0
    %1789 = vmatpush1.xpose.msra.mxu0 0.0
    %1790 = vmatprep.subr.mxu0 0.0
    %1791 = vmatpush1.xpose.msra.mxu0 0.0
    %1792 = vmatprep.subr.mxu0 0.0
    %1793 = vmatpush1.xpose.msra.mxu0 0.0
    %1794 = vmatprep.subr.mxu0 0.0
    %1795 = vmatpush1.xpose.msra.mxu0 0.0
    %1796 = vmatprep.subr.mxu0 0.0
    %1797 = vmatpush1.xpose.msra.mxu0 0.0
    %1798 = vmatprep.subr.mxu0 0.0
    %1799 = vmatpush1.xpose.msra.mxu0 %v1768
    %1800 = vmatprep.subr.mxu0 0.0
    %1801 = vmatpush1.xpose.msra.mxu0 %v1766
    %1802 = vmatprep.subr.mxu0 0.0
    %1803 = vmatpush2.xpose.msra.mxu0 0.0
    %1804 = vmatprep.subr.mxu0 0.0
    %1805 = vmatpush2.xpose.msra.mxu0 0.0
    %1806 = vmatprep.subr.mxu0 0.0
    %1807 = vmatpush2.xpose.msra.mxu0 0.0
    %1808 = vmatprep.subr.mxu0 0.0
    %1809 = vmatpush2.xpose.msra.mxu0 0.0
    %1810 = vmatprep.subr.mxu0 0.0
    %1811 = vmatpush2.xpose.msra.mxu0 0.0
    %1812 = vmatprep.subr.mxu0 0.0
    %1813 = vmatpush2.xpose.msra.mxu0 0.0
    %1814 = vmatprep.subr.mxu0 0.0
    %1815 = vmatpush2.xpose.msra.mxu0 0.0
    %1816 = vmatprep.subr.mxu0 0.0
    %1817 = vmatpush2.xpose.msra.mxu0 0.0
    %1818 = vmatprep.subr.mxu0 0.0
    %1819 = vmatpush2.xpose.msra.mxu0 0.0
    %1820 = vmatprep.subr.mxu0 0.0
    %1821 = vmatpush2.xpose.msra.mxu0 0.0
    %1822 = vmatprep.subr.mxu0 0.0
    %1823 = vmatpush2.xpose.msra.mxu0 0.0
    %1824 = vmatprep.subr.mxu0 0.0
    %1825 = vmatpush2.xpose.msra.mxu0 0.0
    %1826 = vmatprep.subr.mxu0 0.0
    %1827 = vmatpush2.xpose.msra.mxu0 0.0
    %1828 = vmatprep.subr.mxu0 0.0
    %1829 = vmatpush2.xpose.msra.mxu0 0.0
    %1830 = vmatprep.subr.mxu0 0.0
    %1831 = vmatpush2.xpose.msra.mxu0 0.0
    %1832 = vmatprep.subr.mxu0 0.0
    %1833 = vmatpush2.xpose.msra.mxu0 0.0
    %1834 = vmatprep.mubr.f32.mxu0 0.0
    %1835 = vmatmul.mubr.f32.gmra.mxu0 %v1762
    %v1836 = vpop.f32.mrf.mxu0
    %v1837 = vadd.f32 0.0, %v1836
    %v1838 = vpop.f32.mrf.mxu0
    %1839 = vmatprep.mubr.f32.mxu0 0.0
    %1840 = vmatmul.mubr.f32.gmra.mxu0 %v1764
    %v1841 = vpop.f32.mrf.mxu0
    %v1842 = vadd.f32 0.0, %v1841
    %v1843 = vpop.f32.mrf.mxu0
    %1844 = vdwg.mxu0
    %vm1845 = vcmask 130048
    %v1846 = vsel %vm1845, %v1748, -inf
    %1847 = vmax.xlane.f32.xlu0 %v1846
    %v1848 = vpop.xlane.xlu0 %1847
    %v1849 = vsel %vm1845, %v1753, -inf
    %1850 = vmax.xlane.f32.xlu0 %v1849
    %v1851 = vpop.xlane.xlu0 %1850
    %v1852 = vsel %vm1845, %v1837, -inf
    %1853 = vmax.xlane.f32.xlu0 %v1852
    %v1854 = vpop.xlane.xlu0 %1853
    %v1855 = vsel %vm1845, %v1842, -inf
    %1856 = vmax.xlane.f32.xlu0 %v1855
    %v1857 = vpop.xlane.xlu0 %1856
    %v1858 = vsub.f32 %v1748, %v1848
    %v1859 = vsub.f32 %v1753, %v1851
    %v1860 = vsub.f32 %v1837, %v1854
    %v1861 = vsub.f32 %v1842, %v1857
    %v1862 = vmul.f32 %v1858, 1.442695
    %v1863 = vpow.pop %v1862
    %v1864 = vmul.f32 %v1859, 1.442695
    %v1865 = vpow.pop %v1864
    %v1866 = vmul.f32 %v1860, 1.442695
    %v1867 = vpow.pop %v1866
    %v1868 = vmul.f32 %v1861, 1.442695
    %v1869 = vpow.pop %v1868
    %v1870 = vsel %vm1845, %v1863, 0.0
    %1871 = vadd.xlane.f32.xlu0 %v1870
    %v1872 = vpop.xlane.xlu0 %1871
    %v1873 = vsel %vm1845, %v1865, 0.0
    %1874 = vadd.xlane.f32.xlu0 %v1873
    %v1875 = vpop.xlane.xlu0 %1874
    %v1876 = vsel %vm1845, %v1867, 0.0
    %1877 = vadd.xlane.f32.xlu0 %v1876
    %v1878 = vpop.xlane.xlu0 %1877
    %v1879 = vsel %vm1845, %v1869, 0.0
    %1880 = vadd.xlane.f32.xlu0 %v1879
    %v1881 = vpop.xlane.xlu0 %1880
    %v1882 = vrcp.pop %v1872
    %v1883 = vrcp.pop %v1875
    %v1884 = vrcp.pop %v1878
    %v1885 = vrcp.pop %v1881
    %v1886 = vmul.f32 %v1863, %v1882
    %v1887 = vmul.f32 %v1865, %v1883
    %v1888 = vmul.f32 %v1867, %v1884
    %v1889 = vmul.f32 %v1869, %v1885
    %1890 = vrot.lane.b32.xlu0 %v1648, 64
    %v1891 = vpop.permute.xlu0 %1890
    %1892 = vrot.lane.b32.xlu0 %v1653, 64
    %v1893 = vpop.permute.xlu0 %1892
    %v1897 = vsel %vm1845, %v1886, 0
    %v1900 = vsel %vm1845, %v1887, 0
    %1902 = vmatprep.subr.mxu0 0.0
    %1903 = vmatpush1.msra.mxu0 0.0
    %1904 = vmatprep.subr.mxu0 0.0
    %1905 = vmatpush1.msra.mxu0 0.0
    %1906 = vmatprep.subr.mxu0 0.0
    %1907 = vmatpush1.msra.mxu0 0.0
    %1908 = vmatprep.subr.mxu0 0.0
    %1909 = vmatpush1.msra.mxu0 0.0
    %1910 = vmatprep.subr.mxu0 0.0
    %1911 = vmatpush1.msra.mxu0 0.0
    %1912 = vmatprep.subr.mxu0 0.0
    %1913 = vmatpush1.msra.mxu0 0.0
    %1914 = vmatprep.subr.mxu0 0.0
    %1915 = vmatpush1.msra.mxu0 0.0
    %1916 = vmatprep.subr.mxu0 0.0
    %1917 = vmatpush1.msra.mxu0 0.0
    %1918 = vmatprep.subr.mxu0 0.0
    %1919 = vmatpush1.msra.mxu0 0.0
    %1920 = vmatprep.subr.mxu0 0.0
    %1921 = vmatpush1.msra.mxu0 0.0
    %1922 = vmatprep.subr.mxu0 0.0
    %1923 = vmatpush1.msra.mxu0 0.0
    %1924 = vmatprep.subr.mxu0 0.0
    %1925 = vmatpush1.msra.mxu0 0.0
    %1926 = vmatprep.subr.mxu0 0.0
    %1927 = vmatpush1.msra.mxu0 0.0
    %1928 = vmatprep.subr.mxu0 0.0
    %1929 = vmatpush1.msra.mxu0 0.0
    %1930 = vmatprep.subr.mxu0 0.0
    %1931 = vmatpush1.msra.mxu0 %v1893
    %1932 = vmatprep.subr.mxu0 0.0
    %1933 = vmatpush1.msra.mxu0 %v1891
    %1934 = vmatprep.subr.mxu0 0.0
    %1935 = vmatpush2.msra.mxu0 0.0
    %1936 = vmatprep.subr.mxu0 0.0
    %1937 = vmatpush2.msra.mxu0 0.0
    %1938 = vmatprep.subr.mxu0 0.0
    %1939 = vmatpush2.msra.mxu0 0.0
    %1940 = vmatprep.subr.mxu0 0.0
    %1941 = vmatpush2.msra.mxu0 0.0
    %1942 = vmatprep.subr.mxu0 0.0
    %1943 = vmatpush2.msra.mxu0 0.0
    %1944 = vmatprep.subr.mxu0 0.0
    %1945 = vmatpush2.msra.mxu0 0.0
    %1946 = vmatprep.subr.mxu0 0.0
    %1947 = vmatpush2.msra.mxu0 0.0
    %1948 = vmatprep.subr.mxu0 0.0
    %1949 = vmatpush2.msra.mxu0 0.0
    %1950 = vmatprep.subr.mxu0 0.0
    %1951 = vmatpush2.msra.mxu0 0.0
    %1952 = vmatprep.subr.mxu0 0.0
    %1953 = vmatpush2.msra.mxu0 0.0
    %1954 = vmatprep.subr.mxu0 0.0
    %1955 = vmatpush2.msra.mxu0 0.0
    %1956 = vmatprep.subr.mxu0 0.0
    %1957 = vmatpush2.msra.mxu0 0.0
    %1958 = vmatprep.subr.mxu0 0.0
    %1959 = vmatpush2.msra.mxu0 0.0
    %1960 = vmatprep.subr.mxu0 0.0
    %1961 = vmatpush2.msra.mxu0 0.0
    %1962 = vmatprep.subr.mxu0 0.0
    %1963 = vmatpush2.msra.mxu0 0.0
    %1964 = vmatprep.subr.mxu0 0.0
    %1965 = vmatpush2.msra.mxu0 0.0
    %1966 = vmatprep.mubr.f32.mxu0 0.0
    %1967 = vmatmul.mubr.f32.gmra.mxu0 %v1897
    %v1968 = vpop.f32.mrf.mxu0
    %v1969 = vadd.f32 0.0, %v1968
    %v1970 = vpop.f32.mrf.mxu0
    %1971 = vmatprep.mubr.f32.mxu0 0.0
    %1972 = vmatmul.mubr.f32.gmra.mxu0 %v1900
    %v1973 = vpop.f32.mrf.mxu0
    %v1974 = vadd.f32 0.0, %v1973
    %v1975 = vpop.f32.mrf.mxu0
    %1976 = vdwg.mxu0
    %1977 = vrot.lane.b32.xlu0 %v1658, 64
    %v1978 = vpop.permute.xlu0 %1977
    %1979 = vrot.lane.b32.xlu0 %v1663, 64
    %v1980 = vpop.permute.xlu0 %1979
    %v1984 = vsel %vm1845, %v1888, 0
    %v1987 = vsel %vm1845, %v1889, 0
    %1989 = vmatprep.subr.mxu0 0.0
    %1990 = vmatpush1.msra.mxu0 0.0
    %1991 = vmatprep.subr.mxu0 0.0
    %1992 = vmatpush1.msra.mxu0 0.0
    %1993 = vmatprep.subr.mxu0 0.0
    %1994 = vmatpush1.msra.mxu0 0.0
    %1995 = vmatprep.subr.mxu0 0.0
    %1996 = vmatpush1.msra.mxu0 0.0
    %1997 = vmatprep.subr.mxu0 0.0
    %1998 = vmatpush1.msra.mxu0 0.0
    %1999 = vmatprep.subr.mxu0 0.0
    %2000 = vmatpush1.msra.mxu0 0.0
    %2001 = vmatprep.subr.mxu0 0.0
    %2002 = vmatpush1.msra.mxu0 0.0
    %2003 = vmatprep.subr.mxu0 0.0
    %2004 = vmatpush1.msra.mxu0 0.0
    %2005 = vmatprep.subr.mxu0 0.0
    %2006 = vmatpush1.msra.mxu0 0.0
    %2007 = vmatprep.subr.mxu0 0.0
    %2008 = vmatpush1.msra.mxu0 0.0
    %2009 = vmatprep.subr.mxu0 0.0
    %2010 = vmatpush1.msra.mxu0 0.0
    %2011 = vmatprep.subr.mxu0 0.0
    %2012 = vmatpush1.msra.mxu0 0.0
    %2013 = vmatprep.subr.mxu0 0.0
    %2014 = vmatpush1.msra.mxu0 0.0
    %2015 = vmatprep.subr.mxu0 0.0
    %2016 = vmatpush1.msra.mxu0 0.0
    %2017 = vmatprep.subr.mxu0 0.0
    %2018 = vmatpush1.msra.mxu0 %v1980
    %2019 = vmatprep.subr.mxu0 0.0
    %2020 = vmatpush1.msra.mxu0 %v1978
    %2021 = vmatprep.subr.mxu0 0.0
    %2022 = vmatpush2.msra.mxu0 0.0
    %2023 = vmatprep.subr.mxu0 0.0
    %2024 = vmatpush2.msra.mxu0 0.0
    %2025 = vmatprep.subr.mxu0 0.0
    %2026 = vmatpush2.msra.mxu0 0.0
    %2027 = vmatprep.subr.mxu0 0.0
    %2028 = vmatpush2.msra.mxu0 0.0
    %2029 = vmatprep.subr.mxu0 0.0
    %2030 = vmatpush2.msra.mxu0 0.0
    %2031 = vmatprep.subr.mxu0 0.0
    %2032 = vmatpush2.msra.mxu0 0.0
    %2033 = vmatprep.subr.mxu0 0.0
    %2034 = vmatpush2.msra.mxu0 0.0
    %2035 = vmatprep.subr.mxu0 0.0
    %2036 = vmatpush2.msra.mxu0 0.0
    %2037 = vmatprep.subr.mxu0 0.0
    %2038 = vmatpush2.msra.mxu0 0.0
    %2039 = vmatprep.subr.mxu0 0.0
    %2040 = vmatpush2.msra.mxu0 0.0
    %2041 = vmatprep.subr.mxu0 0.0
    %2042 = vmatpush2.msra.mxu0 0.0
    %2043 = vmatprep.subr.mxu0 0.0
    %2044 = vmatpush2.msra.mxu0 0.0
    %2045 = vmatprep.subr.mxu0 0.0
    %2046 = vmatpush2.msra.mxu0 0.0
    %2047 = vmatprep.subr.mxu0 0.0
    %2048 = vmatpush2.msra.mxu0 0.0
    %2049 = vmatprep.subr.mxu0 0.0
    %2050 = vmatpush2.msra.mxu0 0.0
    %2051 = vmatprep.subr.mxu0 0.0
    %2052 = vmatpush2.msra.mxu0 0.0
    %2053 = vmatprep.mubr.f32.mxu0 0.0
    %2054 = vmatmul.mubr.f32.gmra.mxu0 %v1984
    %v2055 = vpop.f32.mrf.mxu0
    %v2056 = vadd.f32 0.0, %v2055
    %v2057 = vpop.f32.mrf.mxu0
    %2058 = vmatprep.mubr.f32.mxu0 0.0
    %2059 = vmatmul.mubr.f32.gmra.mxu0 %v1987
    %v2060 = vpop.f32.mrf.mxu0
    %v2061 = vadd.f32 0.0, %v2060
    %v2062 = vpop.f32.mrf.mxu0
    %2063 = vdwg.mxu0
    %2064 = vst.msk [vmem:[#allocation4] sm:$0xff] %vm1672, %v1969
    %2065 = vst.msk [vmem:[#allocation4 + $0x8] sm:$0xff] %vm1672, %v1974
    %2066 = vst.msk [vmem:[#allocation4 + $0x10] sm:$0xff] %vm1672, %v2056
    %2067 = vst.msk [vmem:[#allocation4 + $0x18] sm:$0xff] %vm1672, %v2061
    %2068 = vrot.lane.b32.xlu0 %v1648, 120
    %v2069 = vpop.permute.xlu0 %2068
    %2070 = vrot.lane.b32.xlu0 %v1653, 120
    %v2071 = vpop.permute.xlu0 %2070
    %2072 = vrot.lane.b32.xlu0 %v1648, 88
    %v2073 = vpop.permute.xlu0 %2072
    %2074 = vrot.lane.b32.xlu0 %v1653, 88
    %v2075 = vpop.permute.xlu0 %2074
    %v2076 = vsel %vm1672, %v2069, 0
    %v2078 = vsel %vm1672, %v2071, 0
    %v2080 = vsel %vm1672, %v2073, 0
    %v2082 = vsel %vm1672, %v2075, 0
    %2084 = vmatprep.subr.mxu0 0.0
    %2085 = vmatpush1.xpose.msra.mxu0 0.0
    %2086 = vmatprep.subr.mxu0 0.0
    %2087 = vmatpush1.xpose.msra.mxu0 0.0
    %2088 = vmatprep.subr.mxu0 0.0
    %2089 = vmatpush1.xpose.msra.mxu0 0.0
    %2090 = vmatprep.subr.mxu0 0.0
    %2091 = vmatpush1.xpose.msra.mxu0 0.0
    %2092 = vmatprep.subr.mxu0 0.0
    %2093 = vmatpush1.xpose.msra.mxu0 0.0
    %2094 = vmatprep.subr.mxu0 0.0
    %2095 = vmatpush1.xpose.msra.mxu0 0.0
    %2096 = vmatprep.subr.mxu0 0.0
    %2097 = vmatpush1.xpose.msra.mxu0 0.0
    %2098 = vmatprep.subr.mxu0 0.0
    %2099 = vmatpush1.xpose.msra.mxu0 0.0
    %2100 = vmatprep.subr.mxu0 0.0
    %2101 = vmatpush1.xpose.msra.mxu0 0.0
    %2102 = vmatprep.subr.mxu0 0.0
    %2103 = vmatpush1.xpose.msra.mxu0 0.0
    %2104 = vmatprep.subr.mxu0 0.0
    %2105 = vmatpush1.xpose.msra.mxu0 0.0
    %2106 = vmatprep.subr.mxu0 0.0
    %2107 = vmatpush1.xpose.msra.mxu0 0.0
    %2108 = vmatprep.subr.mxu0 0.0
    %2109 = vmatpush1.xpose.msra.mxu0 0.0
    %2110 = vmatprep.subr.mxu0 0.0
    %2111 = vmatpush1.xpose.msra.mxu0 0.0
    %2112 = vmatprep.subr.mxu0 0.0
    %2113 = vmatpush1.xpose.msra.mxu0 %v2082
    %2114 = vmatprep.subr.mxu0 0.0
    %2115 = vmatpush1.xpose.msra.mxu0 %v2080
    %2116 = vmatprep.subr.mxu0 0.0
    %2117 = vmatpush2.xpose.msra.mxu0 0.0
    %2118 = vmatprep.subr.mxu0 0.0
    %2119 = vmatpush2.xpose.msra.mxu0 0.0
    %2120 = vmatprep.subr.mxu0 0.0
    %2121 = vmatpush2.xpose.msra.mxu0 0.0
    %2122 = vmatprep.subr.mxu0 0.0
    %2123 = vmatpush2.xpose.msra.mxu0 0.0
    %2124 = vmatprep.subr.mxu0 0.0
    %2125 = vmatpush2.xpose.msra.mxu0 0.0
    %2126 = vmatprep.subr.mxu0 0.0
    %2127 = vmatpush2.xpose.msra.mxu0 0.0
    %2128 = vmatprep.subr.mxu0 0.0
    %2129 = vmatpush2.xpose.msra.mxu0 0.0
    %2130 = vmatprep.subr.mxu0 0.0
    %2131 = vmatpush2.xpose.msra.mxu0 0.0
    %2132 = vmatprep.subr.mxu0 0.0
    %2133 = vmatpush2.xpose.msra.mxu0 0.0
    %2134 = vmatprep.subr.mxu0 0.0
    %2135 = vmatpush2.xpose.msra.mxu0 0.0
    %2136 = vmatprep.subr.mxu0 0.0
    %2137 = vmatpush2.xpose.msra.mxu0 0.0
    %2138 = vmatprep.subr.mxu0 0.0
    %2139 = vmatpush2.xpose.msra.mxu0 0.0
    %2140 = vmatprep.subr.mxu0 0.0
    %2141 = vmatpush2.xpose.msra.mxu0 0.0
    %2142 = vmatprep.subr.mxu0 0.0
    %2143 = vmatpush2.xpose.msra.mxu0 0.0
    %2144 = vmatprep.subr.mxu0 0.0
    %2145 = vmatpush2.xpose.msra.mxu0 0.0
    %2146 = vmatprep.subr.mxu0 0.0
    %2147 = vmatpush2.xpose.msra.mxu0 0.0
    %2148 = vmatprep.mubr.f32.mxu0 0.0
    %2149 = vmatmul.mubr.f32.gmra.mxu0 %v2076
    %v2150 = vpop.f32.mrf.mxu0
    %v2151 = vadd.f32 0.0, %v2150
    %v2152 = vpop.f32.mrf.mxu0
    %2153 = vmatprep.mubr.f32.mxu0 0.0
    %2154 = vmatmul.mubr.f32.gmra.mxu0 %v2078
    %v2155 = vpop.f32.mrf.mxu0
    %v2156 = vadd.f32 0.0, %v2155
    %v2157 = vpop.f32.mrf.mxu0
    %2158 = vdwg.mxu0
    %2159 = vrot.lane.b32.xlu0 %v1658, 120
    %v2160 = vpop.permute.xlu0 %2159
    %2161 = vrot.lane.b32.xlu0 %v1663, 120
    %v2162 = vpop.permute.xlu0 %2161
    %2163 = vrot.lane.b32.xlu0 %v1658, 88
    %v2164 = vpop.permute.xlu0 %2163
    %2165 = vrot.lane.b32.xlu0 %v1663, 88
    %v2166 = vpop.permute.xlu0 %2165
    %v2167 = vsel %vm1672, %v2160, 0
    %v2169 = vsel %vm1672, %v2162, 0
    %v2171 = vsel %vm1672, %v2164, 0
    %v2173 = vsel %vm1672, %v2166, 0
    %2175 = vmatprep.subr.mxu0 0.0
    %2176 = vmatpush1.xpose.msra.mxu0 0.0
    %2177 = vmatprep.subr.mxu0 0.0
    %2178 = vmatpush1.xpose.msra.mxu0 0.0
    %2179 = vmatprep.subr.mxu0 0.0
    %2180 = vmatpush1.xpose.msra.mxu0 0.0
    %2181 = vmatprep.subr.mxu0 0.0
    %2182 = vmatpush1.xpose.msra.mxu0 0.0
    %2183 = vmatprep.subr.mxu0 0.0
    %2184 = vmatpush1.xpose.msra.mxu0 0.0
    %2185 = vmatprep.subr.mxu0 0.0
    %2186 = vmatpush1.xpose.msra.mxu0 0.0
    %2187 = vmatprep.subr.mxu0 0.0
    %2188 = vmatpush1.xpose.msra.mxu0 0.0
    %2189 = vmatprep.subr.mxu0 0.0
    %2190 = vmatpush1.xpose.msra.mxu0 0.0
    %2191 = vmatprep.subr.mxu0 0.0
    %2192 = vmatpush1.xpose.msra.mxu0 0.0
    %2193 = vmatprep.subr.mxu0 0.0
    %2194 = vmatpush1.xpose.msra.mxu0 0.0
    %2195 = vmatprep.subr.mxu0 0.0
    %2196 = vmatpush1.xpose.msra.mxu0 0.0
    %2197 = vmatprep.subr.mxu0 0.0
    %2198 = vmatpush1.xpose.msra.mxu0 0.0
    %2199 = vmatprep.subr.mxu0 0.0
    %2200 = vmatpush1.xpose.msra.mxu0 0.0
    %2201 = vmatprep.subr.mxu0 0.0
    %2202 = vmatpush1.xpose.msra.mxu0 0.0
    %2203 = vmatprep.subr.mxu0 0.0
    %2204 = vmatpush1.xpose.msra.mxu0 %v2173
    %2205 = vmatprep.subr.mxu0 0.0
    %2206 = vmatpush1.xpose.msra.mxu0 %v2171
    %2207 = vmatprep.subr.mxu0 0.0
    %2208 = vmatpush2.xpose.msra.mxu0 0.0
    %2209 = vmatprep.subr.mxu0 0.0
    %2210 = vmatpush2.xpose.msra.mxu0 0.0
    %2211 = vmatprep.subr.mxu0 0.0
    %2212 = vmatpush2.xpose.msra.mxu0 0.0
    %2213 = vmatprep.subr.mxu0 0.0
    %2214 = vmatpush2.xpose.msra.mxu0 0.0
    %2215 = vmatprep.subr.mxu0 0.0
    %2216 = vmatpush2.xpose.msra.mxu0 0.0
    %2217 = vmatprep.subr.mxu0 0.0
    %2218 = vmatpush2.xpose.msra.mxu0 0.0
    %2219 = vmatprep.subr.mxu0 0.0
    %2220 = vmatpush2.xpose.msra.mxu0 0.0
    %2221 = vmatprep.subr.mxu0 0.0
    %2222 = vmatpush2.xpose.msra.mxu0 0.0
    %2223 = vmatprep.subr.mxu0 0.0
    %2224 = vmatpush2.xpose.msra.mxu0 0.0
    %2225 = vmatprep.subr.mxu0 0.0
    %2226 = vmatpush2.xpose.msra.mxu0 0.0
    %2227 = vmatprep.subr.mxu0 0.0
    %2228 = vmatpush2.xpose.msra.mxu0 0.0
    %2229 = vmatprep.subr.mxu0 0.0
    %2230 = vmatpush2.xpose.msra.mxu0 0.0
    %2231 = vmatprep.subr.mxu0 0.0
    %2232 = vmatpush2.xpose.msra.mxu0 0.0
    %2233 = vmatprep.subr.mxu0 0.0
    %2234 = vmatpush2.xpose.msra.mxu0 0.0
    %2235 = vmatprep.subr.mxu0 0.0
    %2236 = vmatpush2.xpose.msra.mxu0 0.0
    %2237 = vmatprep.subr.mxu0 0.0
    %2238 = vmatpush2.xpose.msra.mxu0 0.0
    %2239 = vmatprep.mubr.f32.mxu0 0.0
    %2240 = vmatmul.mubr.f32.gmra.mxu0 %v2167
    %v2241 = vpop.f32.mrf.mxu0
    %v2242 = vadd.f32 0.0, %v2241
    %v2243 = vpop.f32.mrf.mxu0
    %2244 = vmatprep.mubr.f32.mxu0 0.0
    %2245 = vmatmul.mubr.f32.gmra.mxu0 %v2169
    %v2246 = vpop.f32.mrf.mxu0
    %v2247 = vadd.f32 0.0, %v2246
    %v2248 = vpop.f32.mrf.mxu0
    %2249 = vdwg.mxu0
    %v2250 = vsel %vm1845, %v2151, -inf
    %2251 = vmax.xlane.f32.xlu0 %v2250
    %v2252 = vpop.xlane.xlu0 %2251
    %v2253 = vsel %vm1845, %v2156, -inf
    %2254 = vmax.xlane.f32.xlu0 %v2253
    %v2255 = vpop.xlane.xlu0 %2254
    %v2256 = vsel %vm1845, %v2242, -inf
    %2257 = vmax.xlane.f32.xlu0 %v2256
    %v2258 = vpop.xlane.xlu0 %2257
    %v2259 = vsel %vm1845, %v2247, -inf
    %2260 = vmax.xlane.f32.xlu0 %v2259
    %v2261 = vpop.xlane.xlu0 %2260
    %v2262 = vsub.f32 %v2151, %v2252
    %v2263 = vsub.f32 %v2156, %v2255
    %v2264 = vsub.f32 %v2242, %v2258
    %v2265 = vsub.f32 %v2247, %v2261
    %v2266 = vmul.f32 %v2262, 1.442695
    %v2267 = vpow.pop %v2266
    %v2268 = vmul.f32 %v2263, 1.442695
    %v2269 = vpow.pop %v2268
    %v2270 = vmul.f32 %v2264, 1.442695
    %v2271 = vpow.pop %v2270
    %v2272 = vmul.f32 %v2265, 1.442695
    %v2273 = vpow.pop %v2272
    %v2274 = vsel %vm1845, %v2267, 0.0
    %2275 = vadd.xlane.f32.xlu0 %v2274
    %v2276 = vpop.xlane.xlu0 %2275
    %v2277 = vsel %vm1845, %v2269, 0.0
    %2278 = vadd.xlane.f32.xlu0 %v2277
    %v2279 = vpop.xlane.xlu0 %2278
    %v2280 = vsel %vm1845, %v2271, 0.0
    %2281 = vadd.xlane.f32.xlu0 %v2280
    %v2282 = vpop.xlane.xlu0 %2281
    %v2283 = vsel %vm1845, %v2273, 0.0
    %2284 = vadd.xlane.f32.xlu0 %v2283
    %v2285 = vpop.xlane.xlu0 %2284
    %v2286 = vrcp.pop %v2276
    %v2287 = vrcp.pop %v2279
    %v2288 = vrcp.pop %v2282
    %v2289 = vrcp.pop %v2285
    %v2290 = vmul.f32 %v2267, %v2286
    %v2291 = vmul.f32 %v2269, %v2287
    %v2292 = vmul.f32 %v2271, %v2288
    %v2293 = vmul.f32 %v2273, %v2289
    %2294 = vrot.lane.b32.xlu0 %v1648, 56
    %v2295 = vpop.permute.xlu0 %2294
    %2296 = vrot.lane.b32.xlu0 %v1653, 56
    %v2297 = vpop.permute.xlu0 %2296
    %v2301 = vsel %vm1845, %v2290, 0
    %v2304 = vsel %vm1845, %v2291, 0
    %2306 = vmatprep.subr.mxu0 0.0
    %2307 = vmatpush1.msra.mxu0 0.0
    %2308 = vmatprep.subr.mxu0 0.0
    %2309 = vmatpush1.msra.mxu0 0.0
    %2310 = vmatprep.subr.mxu0 0.0
    %2311 = vmatpush1.msra.mxu0 0.0
    %2312 = vmatprep.subr.mxu0 0.0
    %2313 = vmatpush1.msra.mxu0 0.0
    %2314 = vmatprep.subr.mxu0 0.0
    %2315 = vmatpush1.msra.mxu0 0.0
    %2316 = vmatprep.subr.mxu0 0.0
    %2317 = vmatpush1.msra.mxu0 0.0
    %2318 = vmatprep.subr.mxu0 0.0
    %2319 = vmatpush1.msra.mxu0 0.0
    %2320 = vmatprep.subr.mxu0 0.0
    %2321 = vmatpush1.msra.mxu0 0.0
    %2322 = vmatprep.subr.mxu0 0.0
    %2323 = vmatpush1.msra.mxu0 0.0
    %2324 = vmatprep.subr.mxu0 0.0
    %2325 = vmatpush1.msra.mxu0 0.0
    %2326 = vmatprep.subr.mxu0 0.0
    %2327 = vmatpush1.msra.mxu0 0.0
    %2328 = vmatprep.subr.mxu0 0.0
    %2329 = vmatpush1.msra.mxu0 0.0
    %2330 = vmatprep.subr.mxu0 0.0
    %2331 = vmatpush1.msra.mxu0 0.0
    %2332 = vmatprep.subr.mxu0 0.0
    %2333 = vmatpush1.msra.mxu0 0.0
    %2334 = vmatprep.subr.mxu0 0.0
    %2335 = vmatpush1.msra.mxu0 %v2297
    %2336 = vmatprep.subr.mxu0 0.0
    %2337 = vmatpush1.msra.mxu0 %v2295
    %2338 = vmatprep.subr.mxu0 0.0
    %2339 = vmatpush2.msra.mxu0 0.0
    %2340 = vmatprep.subr.mxu0 0.0
    %2341 = vmatpush2.msra.mxu0 0.0
    %2342 = vmatprep.subr.mxu0 0.0
    %2343 = vmatpush2.msra.mxu0 0.0
    %2344 = vmatprep.subr.mxu0 0.0
    %2345 = vmatpush2.msra.mxu0 0.0
    %2346 = vmatprep.subr.mxu0 0.0
    %2347 = vmatpush2.msra.mxu0 0.0
    %2348 = vmatprep.subr.mxu0 0.0
    %2349 = vmatpush2.msra.mxu0 0.0
    %2350 = vmatprep.subr.mxu0 0.0
    %2351 = vmatpush2.msra.mxu0 0.0
    %2352 = vmatprep.subr.mxu0 0.0
    %2353 = vmatpush2.msra.mxu0 0.0
    %2354 = vmatprep.subr.mxu0 0.0
    %2355 = vmatpush2.msra.mxu0 0.0
    %2356 = vmatprep.subr.mxu0 0.0
    %2357 = vmatpush2.msra.mxu0 0.0
    %2358 = vmatprep.subr.mxu0 0.0
    %2359 = vmatpush2.msra.mxu0 0.0
    %2360 = vmatprep.subr.mxu0 0.0
    %2361 = vmatpush2.msra.mxu0 0.0
    %2362 = vmatprep.subr.mxu0 0.0
    %2363 = vmatpush2.msra.mxu0 0.0
    %2364 = vmatprep.subr.mxu0 0.0
    %2365 = vmatpush2.msra.mxu0 0.0
    %2366 = vmatprep.subr.mxu0 0.0
    %2367 = vmatpush2.msra.mxu0 0.0
    %2368 = vmatprep.subr.mxu0 0.0
    %2369 = vmatpush2.msra.mxu0 0.0
    %2370 = vmatprep.mubr.f32.mxu0 0.0
    %2371 = vmatmul.mubr.f32.gmra.mxu0 %v2301
    %v2372 = vpop.f32.mrf.mxu0
    %v2373 = vadd.f32 0.0, %v2372
    %v2374 = vpop.f32.mrf.mxu0
    %2375 = vmatprep.mubr.f32.mxu0 0.0
    %2376 = vmatmul.mubr.f32.gmra.mxu0 %v2304
    %v2377 = vpop.f32.mrf.mxu0
    %v2378 = vadd.f32 0.0, %v2377
    %v2379 = vpop.f32.mrf.mxu0
    %2380 = vdwg.mxu0
    %2381 = vrot.lane.b32.xlu0 %v1658, 56
    %v2382 = vpop.permute.xlu0 %2381
    %2383 = vrot.lane.b32.xlu0 %v1663, 56
    %v2384 = vpop.permute.xlu0 %2383
    %v2388 = vsel %vm1845, %v2292, 0
    %v2391 = vsel %vm1845, %v2293, 0
    %2393 = vmatprep.subr.mxu0 0.0
    %2394 = vmatpush1.msra.mxu0 0.0
    %2395 = vmatprep.subr.mxu0 0.0
    %2396 = vmatpush1.msra.mxu0 0.0
    %2397 = vmatprep.subr.mxu0 0.0
    %2398 = vmatpush1.msra.mxu0 0.0
    %2399 = vmatprep.subr.mxu0 0.0
    %2400 = vmatpush1.msra.mxu0 0.0
    %2401 = vmatprep.subr.mxu0 0.0
    %2402 = vmatpush1.msra.mxu0 0.0
    %2403 = vmatprep.subr.mxu0 0.0
    %2404 = vmatpush1.msra.mxu0 0.0
    %2405 = vmatprep.subr.mxu0 0.0
    %2406 = vmatpush1.msra.mxu0 0.0
    %2407 = vmatprep.subr.mxu0 0.0
    %2408 = vmatpush1.msra.mxu0 0.0
    %2409 = vmatprep.subr.mxu0 0.0
    %2410 = vmatpush1.msra.mxu0 0.0
    %2411 = vmatprep.subr.mxu0 0.0
    %2412 = vmatpush1.msra.mxu0 0.0
    %2413 = vmatprep.subr.mxu0 0.0
    %2414 = vmatpush1.msra.mxu0 0.0
    %2415 = vmatprep.subr.mxu0 0.0
    %2416 = vmatpush1.msra.mxu0 0.0
    %2417 = vmatprep.subr.mxu0 0.0
    %2418 = vmatpush1.msra.mxu0 0.0
    %2419 = vmatprep.subr.mxu0 0.0
    %2420 = vmatpush1.msra.mxu0 0.0
    %2421 = vmatprep.subr.mxu0 0.0
    %2422 = vmatpush1.msra.mxu0 %v2384
    %2423 = vmatprep.subr.mxu0 0.0
    %2424 = vmatpush1.msra.mxu0 %v2382
    %2425 = vmatprep.subr.mxu0 0.0
    %2426 = vmatpush2.msra.mxu0 0.0
    %2427 = vmatprep.subr.mxu0 0.0
    %2428 = vmatpush2.msra.mxu0 0.0
    %2429 = vmatprep.subr.mxu0 0.0
    %2430 = vmatpush2.msra.mxu0 0.0
    %2431 = vmatprep.subr.mxu0 0.0
    %2432 = vmatpush2.msra.mxu0 0.0
    %2433 = vmatprep.subr.mxu0 0.0
    %2434 = vmatpush2.msra.mxu0 0.0
    %2435 = vmatprep.subr.mxu0 0.0
    %2436 = vmatpush2.msra.mxu0 0.0
    %2437 = vmatprep.subr.mxu0 0.0
    %2438 = vmatpush2.msra.mxu0 0.0
    %2439 = vmatprep.subr.mxu0 0.0
    %2440 = vmatpush2.msra.mxu0 0.0
    %2441 = vmatprep.subr.mxu0 0.0
    %2442 = vmatpush2.msra.mxu0 0.0
    %2443 = vmatprep.subr.mxu0 0.0
    %2444 = vmatpush2.msra.mxu0 0.0
    %2445 = vmatprep.subr.mxu0 0.0
    %2446 = vmatpush2.msra.mxu0 0.0
    %2447 = vmatprep.subr.mxu0 0.0
    %2448 = vmatpush2.msra.mxu0 0.0
    %2449 = vmatprep.subr.mxu0 0.0
    %2450 = vmatpush2.msra.mxu0 0.0
    %2451 = vmatprep.subr.mxu0 0.0
    %2452 = vmatpush2.msra.mxu0 0.0
    %2453 = vmatprep.subr.mxu0 0.0
    %2454 = vmatpush2.msra.mxu0 0.0
    %2455 = vmatprep.subr.mxu0 0.0
    %2456 = vmatpush2.msra.mxu0 0.0
    %2457 = vmatprep.mubr.f32.mxu0 0.0
    %2458 = vmatmul.mubr.f32.gmra.mxu0 %v2388
    %v2459 = vpop.f32.mrf.mxu0
    %v2460 = vadd.f32 0.0, %v2459
    %v2461 = vpop.f32.mrf.mxu0
    %2462 = vmatprep.mubr.f32.mxu0 0.0
    %2463 = vmatmul.mubr.f32.gmra.mxu0 %v2391
    %v2464 = vpop.f32.mrf.mxu0
    %v2465 = vadd.f32 0.0, %v2464
    %v2466 = vpop.f32.mrf.mxu0
    %2467 = vdwg.mxu0
    %2472 = vrot.lane.b32.xlu0 %v2373, 8
    %v2473 = vpop.permute.xlu0 %2472
    %2474 = vrot.lane.b32.xlu0 %v2378, 8
    %v2475 = vpop.permute.xlu0 %2474
    %2476 = vrot.lane.b32.xlu0 %v2460, 8
    %v2477 = vpop.permute.xlu0 %2476
    %2478 = vrot.lane.b32.xlu0 %v2465, 8
    %v2479 = vpop.permute.xlu0 %2478
    %vm2484 = vcmask 130112
    %2485 = vst.msk [vmem:[#allocation4] sm:$0xff] %vm2484, %v2473
    %2486 = vst.msk [vmem:[#allocation4 + $0x8] sm:$0xff] %vm2484, %v2475
    %2487 = vst.msk [vmem:[#allocation4 + $0x10] sm:$0xff] %vm2484, %v2477
    %2488 = vst.msk [vmem:[#allocation4 + $0x18] sm:$0xff] %vm2484, %v2479
    %2489 = vrot.lane.b32.xlu0 %v1648, 112
    %v2490 = vpop.permute.xlu0 %2489
    %2491 = vrot.lane.b32.xlu0 %v1653, 112
    %v2492 = vpop.permute.xlu0 %2491
    %2493 = vrot.lane.b32.xlu0 %v1648, 80
    %v2494 = vpop.permute.xlu0 %2493
    %2495 = vrot.lane.b32.xlu0 %v1653, 80
    %v2496 = vpop.permute.xlu0 %2495
    %v2497 = vsel %vm1672, %v2490, 0
    %v2499 = vsel %vm1672, %v2492, 0
    %v2501 = vsel %vm1672, %v2494, 0
    %v2503 = vsel %vm1672, %v2496, 0
    %2505 = vmatprep.subr.mxu0 0.0
    %2506 = vmatpush1.xpose.msra.mxu0 0.0
    %2507 = vmatprep.subr.mxu0 0.0
    %2508 = vmatpush1.xpose.msra.mxu0 0.0
    %2509 = vmatprep.subr.mxu0 0.0
    %2510 = vmatpush1.xpose.msra.mxu0 0.0
    %2511 = vmatprep.subr.mxu0 0.0
    %2512 = vmatpush1.xpose.msra.mxu0 0.0
    %2513 = vmatprep.subr.mxu0 0.0
    %2514 = vmatpush1.xpose.msra.mxu0 0.0
    %2515 = vmatprep.subr.mxu0 0.0
    %2516 = vmatpush1.xpose.msra.mxu0 0.0
    %2517 = vmatprep.subr.mxu0 0.0
    %2518 = vmatpush1.xpose.msra.mxu0 0.0
    %2519 = vmatprep.subr.mxu0 0.0
    %2520 = vmatpush1.xpose.msra.mxu0 0.0
    %2521 = vmatprep.subr.mxu0 0.0
    %2522 = vmatpush1.xpose.msra.mxu0 0.0
    %2523 = vmatprep.subr.mxu0 0.0
    %2524 = vmatpush1.xpose.msra.mxu0 0.0
    %2525 = vmatprep.subr.mxu0 0.0
    %2526 = vmatpush1.xpose.msra.mxu0 0.0
    %2527 = vmatprep.subr.mxu0 0.0
    %2528 = vmatpush1.xpose.msra.mxu0 0.0
    %2529 = vmatprep.subr.mxu0 0.0
    %2530 = vmatpush1.xpose.msra.mxu0 0.0
    %2531 = vmatprep.subr.mxu0 0.0
    %2532 = vmatpush1.xpose.msra.mxu0 0.0
    %2533 = vmatprep.subr.mxu0 0.0
    %2534 = vmatpush1.xpose.msra.mxu0 %v2503
    %2535 = vmatprep.subr.mxu0 0.0
    %2536 = vmatpush1.xpose.msra.mxu0 %v2501
    %2537 = vmatprep.subr.mxu0 0.0
    %2538 = vmatpush2.xpose.msra.mxu0 0.0
    %2539 = vmatprep.subr.mxu0 0.0
    %2540 = vmatpush2.xpose.msra.mxu0 0.0
    %2541 = vmatprep.subr.mxu0 0.0
    %2542 = vmatpush2.xpose.msra.mxu0 0.0
    %2543 = vmatprep.subr.mxu0 0.0
    %2544 = vmatpush2.xpose.msra.mxu0 0.0
    %2545 = vmatprep.subr.mxu0 0.0
    %2546 = vmatpush2.xpose.msra.mxu0 0.0
    %2547 = vmatprep.subr.mxu0 0.0
    %2548 = vmatpush2.xpose.msra.mxu0 0.0
    %2549 = vmatprep.subr.mxu0 0.0
    %2550 = vmatpush2.xpose.msra.mxu0 0.0
    %2551 = vmatprep.subr.mxu0 0.0
    %2552 = vmatpush2.xpose.msra.mxu0 0.0
    %2553 = vmatprep.subr.mxu0 0.0
    %2554 = vmatpush2.xpose.msra.mxu0 0.0
    %2555 = vmatprep.subr.mxu0 0.0
    %2556 = vmatpush2.xpose.msra.mxu0 0.0
    %2557 = vmatprep.subr.mxu0 0.0
    %2558 = vmatpush2.xpose.msra.mxu0 0.0
    %2559 = vmatprep.subr.mxu0 0.0
    %2560 = vmatpush2.xpose.msra.mxu0 0.0
    %2561 = vmatprep.subr.mxu0 0.0
    %2562 = vmatpush2.xpose.msra.mxu0 0.0
    %2563 = vmatprep.subr.mxu0 0.0
    %2564 = vmatpush2.xpose.msra.mxu0 0.0
    %2565 = vmatprep.subr.mxu0 0.0
    %2566 = vmatpush2.xpose.msra.mxu0 0.0
    %2567 = vmatprep.subr.mxu0 0.0
    %2568 = vmatpush2.xpose.msra.mxu0 0.0
    %2569 = vmatprep.mubr.f32.mxu0 0.0
    %2570 = vmatmul.mubr.f32.gmra.mxu0 %v2497
    %v2571 = vpop.f32.mrf.mxu0
    %v2572 = vadd.f32 0.0, %v2571
    %v2573 = vpop.f32.mrf.mxu0
    %2574 = vmatprep.mubr.f32.mxu0 0.0
    %2575 = vmatmul.mubr.f32.gmra.mxu0 %v2499
    %v2576 = vpop.f32.mrf.mxu0
    %v2577 = vadd.f32 0.0, %v2576
    %v2578 = vpop.f32.mrf.mxu0
    %2579 = vdwg.mxu0
    %2580 = vrot.lane.b32.xlu0 %v1658, 112
    %v2581 = vpop.permute.xlu0 %2580
    %2582 = vrot.lane.b32.xlu0 %v1663, 112
    %v2583 = vpop.permute.xlu0 %2582
    %2584 = vrot.lane.b32.xlu0 %v1658, 80
    %v2585 = vpop.permute.xlu0 %2584
    %2586 = vrot.lane.b32.xlu0 %v1663, 80
    %v2587 = vpop.permute.xlu0 %2586
    %v2588 = vsel %vm1672, %v2581, 0
    %v2590 = vsel %vm1672, %v2583, 0
    %v2592 = vsel %vm1672, %v2585, 0
    %v2594 = vsel %vm1672, %v2587, 0
    %2596 = vmatprep.subr.mxu0 0.0
    %2597 = vmatpush1.xpose.msra.mxu0 0.0
    %2598 = vmatprep.subr.mxu0 0.0
    %2599 = vmatpush1.xpose.msra.mxu0 0.0
    %2600 = vmatprep.subr.mxu0 0.0
    %2601 = vmatpush1.xpose.msra.mxu0 0.0
    %2602 = vmatprep.subr.mxu0 0.0
    %2603 = vmatpush1.xpose.msra.mxu0 0.0
    %2604 = vmatprep.subr.mxu0 0.0
    %2605 = vmatpush1.xpose.msra.mxu0 0.0
    %2606 = vmatprep.subr.mxu0 0.0
    %2607 = vmatpush1.xpose.msra.mxu0 0.0
    %2608 = vmatprep.subr.mxu0 0.0
    %2609 = vmatpush1.xpose.msra.mxu0 0.0
    %2610 = vmatprep.subr.mxu0 0.0
    %2611 = vmatpush1.xpose.msra.mxu0 0.0
    %2612 = vmatprep.subr.mxu0 0.0
    %2613 = vmatpush1.xpose.msra.mxu0 0.0
    %2614 = vmatprep.subr.mxu0 0.0
    %2615 = vmatpush1.xpose.msra.mxu0 0.0
    %2616 = vmatprep.subr.mxu0 0.0
    %2617 = vmatpush1.xpose.msra.mxu0 0.0
    %2618 = vmatprep.subr.mxu0 0.0
    %2619 = vmatpush1.xpose.msra.mxu0 0.0
    %2620 = vmatprep.subr.mxu0 0.0
    %2621 = vmatpush1.xpose.msra.mxu0 0.0
    %2622 = vmatprep.subr.mxu0 0.0
    %2623 = vmatpush1.xpose.msra.mxu0 0.0
    %2624 = vmatprep.subr.mxu0 0.0
    %2625 = vmatpush1.xpose.msra.mxu0 %v2594
    %2626 = vmatprep.subr.mxu0 0.0
    %2627 = vmatpush1.xpose.msra.mxu0 %v2592
    %2628 = vmatprep.subr.mxu0 0.0
    %2629 = vmatpush2.xpose.msra.mxu0 0.0
    %2630 = vmatprep.subr.mxu0 0.0
    %2631 = vmatpush2.xpose.msra.mxu0 0.0
    %2632 = vmatprep.subr.mxu0 0.0
    %2633 = vmatpush2.xpose.msra.mxu0 0.0
    %2634 = vmatprep.subr.mxu0 0.0
    %2635 = vmatpush2.xpose.msra.mxu0 0.0
    %2636 = vmatprep.subr.mxu0 0.0
    %2637 = vmatpush2.xpose.msra.mxu0 0.0
    %2638 = vmatprep.subr.mxu0 0.0
    %2639 = vmatpush2.xpose.msra.mxu0 0.0
    %2640 = vmatprep.subr.mxu0 0.0
    %2641 = vmatpush2.xpose.msra.mxu0 0.0
    %2642 = vmatprep.subr.mxu0 0.0
    %2643 = vmatpush2.xpose.msra.mxu0 0.0
    %2644 = vmatprep.subr.mxu0 0.0
    %2645 = vmatpush2.xpose.msra.mxu0 0.0
    %2646 = vmatprep.subr.mxu0 0.0
    %2647 = vmatpush2.xpose.msra.mxu0 0.0
    %2648 = vmatprep.subr.mxu0 0.0
    %2649 = vmatpush2.xpose.msra.mxu0 0.0
    %2650 = vmatprep.subr.mxu0 0.0
    %2651 = vmatpush2.xpose.msra.mxu0 0.0
    %2652 = vmatprep.subr.mxu0 0.0
    %2653 = vmatpush2.xpose.msra.mxu0 0.0
    %2654 = vmatprep.subr.mxu0 0.0
    %2655 = vmatpush2.xpose.msra.mxu0 0.0
    %2656 = vmatprep.subr.mxu0 0.0
    %2657 = vmatpush2.xpose.msra.mxu0 0.0
    %2658 = vmatprep.subr.mxu0 0.0
    %2659 = vmatpush2.xpose.msra.mxu0 0.0
    %2660 = vmatprep.mubr.f32.mxu0 0.0
    %2661 = vmatmul.mubr.f32.gmra.mxu0 %v2588
    %v2662 = vpop.f32.mrf.mxu0
    %v2663 = vadd.f32 0.0, %v2662
    %v2664 = vpop.f32.mrf.mxu0
    %2665 = vmatprep.mubr.f32.mxu0 0.0
    %2666 = vmatmul.mubr.f32.gmra.mxu0 %v2590
    %v2667 = vpop.f32.mrf.mxu0
    %v2668 = vadd.f32 0.0, %v2667
    %v2669 = vpop.f32.mrf.mxu0
    %2670 = vdwg.mxu0
    %v2671 = vsel %vm1845, %v2572, -inf
    %2672 = vmax.xlane.f32.xlu0 %v2671
    %v2673 = vpop.xlane.xlu0 %2672
    %v2674 = vsel %vm1845, %v2577, -inf
    %2675 = vmax.xlane.f32.xlu0 %v2674
    %v2676 = vpop.xlane.xlu0 %2675
    %v2677 = vsel %vm1845, %v2663, -inf
    %2678 = vmax.xlane.f32.xlu0 %v2677
    %v2679 = vpop.xlane.xlu0 %2678
    %v2680 = vsel %vm1845, %v2668, -inf
    %2681 = vmax.xlane.f32.xlu0 %v2680
    %v2682 = vpop.xlane.xlu0 %2681
    %v2683 = vsub.f32 %v2572, %v2673
    %v2684 = vsub.f32 %v2577, %v2676
    %v2685 = vsub.f32 %v2663, %v2679
    %v2686 = vsub.f32 %v2668, %v2682
    %v2687 = vmul.f32 %v2683, 1.442695
    %v2688 = vpow.pop %v2687
    %v2689 = vmul.f32 %v2684, 1.442695
    %v2690 = vpow.pop %v2689
    %v2691 = vmul.f32 %v2685, 1.442695
    %v2692 = vpow.pop %v2691
    %v2693 = vmul.f32 %v2686, 1.442695
    %v2694 = vpow.pop %v2693
    %v2695 = vsel %vm1845, %v2688, 0.0
    %2696 = vadd.xlane.f32.xlu0 %v2695
    %v2697 = vpop.xlane.xlu0 %2696
    %v2698 = vsel %vm1845, %v2690, 0.0
    %2699 = vadd.xlane.f32.xlu0 %v2698
    %v2700 = vpop.xlane.xlu0 %2699
    %v2701 = vsel %vm1845, %v2692, 0.0
    %2702 = vadd.xlane.f32.xlu0 %v2701
    %v2703 = vpop.xlane.xlu0 %2702
    %v2704 = vsel %vm1845, %v2694, 0.0
    %2705 = vadd.xlane.f32.xlu0 %v2704
    %v2706 = vpop.xlane.xlu0 %2705
    %v2707 = vrcp.pop %v2697
    %v2708 = vrcp.pop %v2700
    %v2709 = vrcp.pop %v2703
    %v2710 = vrcp.pop %v2706
    %v2711 = vmul.f32 %v2688, %v2707
    %v2712 = vmul.f32 %v2690, %v2708
    %v2713 = vmul.f32 %v2692, %v2709
    %v2714 = vmul.f32 %v2694, %v2710
    %2715 = vrot.lane.b32.xlu0 %v1648, 48
    %v2716 = vpop.permute.xlu0 %2715
    %2717 = vrot.lane.b32.xlu0 %v1653, 48
    %v2718 = vpop.permute.xlu0 %2717
    %v2722 = vsel %vm1845, %v2711, 0
    %v2725 = vsel %vm1845, %v2712, 0
    %2727 = vmatprep.subr.mxu0 0.0
    %2728 = vmatpush1.msra.mxu0 0.0
    %2729 = vmatprep.subr.mxu0 0.0
    %2730 = vmatpush1.msra.mxu0 0.0
    %2731 = vmatprep.subr.mxu0 0.0
    %2732 = vmatpush1.msra.mxu0 0.0
    %2733 = vmatprep.subr.mxu0 0.0
    %2734 = vmatpush1.msra.mxu0 0.0
    %2735 = vmatprep.subr.mxu0 0.0
    %2736 = vmatpush1.msra.mxu0 0.0
    %2737 = vmatprep.subr.mxu0 0.0
    %2738 = vmatpush1.msra.mxu0 0.0
    %2739 = vmatprep.subr.mxu0 0.0
    %2740 = vmatpush1.msra.mxu0 0.0
    %2741 = vmatprep.subr.mxu0 0.0
    %2742 = vmatpush1.msra.mxu0 0.0
    %2743 = vmatprep.subr.mxu0 0.0
    %2744 = vmatpush1.msra.mxu0 0.0
    %2745 = vmatprep.subr.mxu0 0.0
    %2746 = vmatpush1.msra.mxu0 0.0
    %2747 = vmatprep.subr.mxu0 0.0
    %2748 = vmatpush1.msra.mxu0 0.0
    %2749 = vmatprep.subr.mxu0 0.0
    %2750 = vmatpush1.msra.mxu0 0.0
    %2751 = vmatprep.subr.mxu0 0.0
    %2752 = vmatpush1.msra.mxu0 0.0
    %2753 = vmatprep.subr.mxu0 0.0
    %2754 = vmatpush1.msra.mxu0 0.0
    %2755 = vmatprep.subr.mxu0 0.0
    %2756 = vmatpush1.msra.mxu0 %v2718
    %2757 = vmatprep.subr.mxu0 0.0
    %2758 = vmatpush1.msra.mxu0 %v2716
    %2759 = vmatprep.subr.mxu0 0.0
    %2760 = vmatpush2.msra.mxu0 0.0
    %2761 = vmatprep.subr.mxu0 0.0
    %2762 = vmatpush2.msra.mxu0 0.0
    %2763 = vmatprep.subr.mxu0 0.0
    %2764 = vmatpush2.msra.mxu0 0.0
    %2765 = vmatprep.subr.mxu0 0.0
    %2766 = vmatpush2.msra.mxu0 0.0
    %2767 = vmatprep.subr.mxu0 0.0
    %2768 = vmatpush2.msra.mxu0 0.0
    %2769 = vmatprep.subr.mxu0 0.0
    %2770 = vmatpush2.msra.mxu0 0.0
    %2771 = vmatprep.subr.mxu0 0.0
    %2772 = vmatpush2.msra.mxu0 0.0
    %2773 = vmatprep.subr.mxu0 0.0
    %2774 = vmatpush2.msra.mxu0 0.0
    %2775 = vmatprep.subr.mxu0 0.0
    %2776 = vmatpush2.msra.mxu0 0.0
    %2777 = vmatprep.subr.mxu0 0.0
    %2778 = vmatpush2.msra.mxu0 0.0
    %2779 = vmatprep.subr.mxu0 0.0
    %2780 = vmatpush2.msra.mxu0 0.0
    %2781 = vmatprep.subr.mxu0 0.0
    %2782 = vmatpush2.msra.mxu0 0.0
    %2783 = vmatprep.subr.mxu0 0.0
    %2784 = vmatpush2.msra.mxu0 0.0
    %2785 = vmatprep.subr.mxu0 0.0
    %2786 = vmatpush2.msra.mxu0 0.0
    %2787 = vmatprep.subr.mxu0 0.0
    %2788 = vmatpush2.msra.mxu0 0.0
    %2789 = vmatprep.subr.mxu0 0.0
    %2790 = vmatpush2.msra.mxu0 0.0
    %2791 = vmatprep.mubr.f32.mxu0 0.0
    %2792 = vmatmul.mubr.f32.gmra.mxu0 %v2722
    %v2793 = vpop.f32.mrf.mxu0
    %v2794 = vadd.f32 0.0, %v2793
    %v2795 = vpop.f32.mrf.mxu0
    %2796 = vmatprep.mubr.f32.mxu0 0.0
    %2797 = vmatmul.mubr.f32.gmra.mxu0 %v2725
    %v2798 = vpop.f32.mrf.mxu0
    %v2799 = vadd.f32 0.0, %v2798
    %v2800 = vpop.f32.mrf.mxu0
    %2801 = vdwg.mxu0
    %2802 = vrot.lane.b32.xlu0 %v1658, 48
    %v2803 = vpop.permute.xlu0 %2802
    %2804 = vrot.lane.b32.xlu0 %v1663, 48
    %v2805 = vpop.permute.xlu0 %2804
    %v2809 = vsel %vm1845, %v2713, 0
    %v2812 = vsel %vm1845, %v2714, 0
    %2814 = vmatprep.subr.mxu0 0.0
    %2815 = vmatpush1.msra.mxu0 0.0
    %2816 = vmatprep.subr.mxu0 0.0
    %2817 = vmatpush1.msra.mxu0 0.0
    %2818 = vmatprep.subr.mxu0 0.0
    %2819 = vmatpush1.msra.mxu0 0.0
    %2820 = vmatprep.subr.mxu0 0.0
    %2821 = vmatpush1.msra.mxu0 0.0
    %2822 = vmatprep.subr.mxu0 0.0
    %2823 = vmatpush1.msra.mxu0 0.0
    %2824 = vmatprep.subr.mxu0 0.0
    %2825 = vmatpush1.msra.mxu0 0.0
    %2826 = vmatprep.subr.mxu0 0.0
    %2827 = vmatpush1.msra.mxu0 0.0
    %2828 = vmatprep.subr.mxu0 0.0
    %2829 = vmatpush1.msra.mxu0 0.0
    %2830 = vmatprep.subr.mxu0 0.0
    %2831 = vmatpush1.msra.mxu0 0.0
    %2832 = vmatprep.subr.mxu0 0.0
    %2833 = vmatpush1.msra.mxu0 0.0
    %2834 = vmatprep.subr.mxu0 0.0
    %2835 = vmatpush1.msra.mxu0 0.0
    %2836 = vmatprep.subr.mxu0 0.0
    %2837 = vmatpush1.msra.mxu0 0.0
    %2838 = vmatprep.subr.mxu0 0.0
    %2839 = vmatpush1.msra.mxu0 0.0
    %2840 = vmatprep.subr.mxu0 0.0
    %2841 = vmatpush1.msra.mxu0 0.0
    %2842 = vmatprep.subr.mxu0 0.0
    %2843 = vmatpush1.msra.mxu0 %v2805
    %2844 = vmatprep.subr.mxu0 0.0
    %2845 = vmatpush1.msra.mxu0 %v2803
    %2846 = vmatprep.subr.mxu0 0.0
    %2847 = vmatpush2.msra.mxu0 0.0
    %2848 = vmatprep.subr.mxu0 0.0
    %2849 = vmatpush2.msra.mxu0 0.0
    %2850 = vmatprep.subr.mxu0 0.0
    %2851 = vmatpush2.msra.mxu0 0.0
    %2852 = vmatprep.subr.mxu0 0.0
    %2853 = vmatpush2.msra.mxu0 0.0
    %2854 = vmatprep.subr.mxu0 0.0
    %2855 = vmatpush2.msra.mxu0 0.0
    %2856 = vmatprep.subr.mxu0 0.0
    %2857 = vmatpush2.msra.mxu0 0.0
    %2858 = vmatprep.subr.mxu0 0.0
    %2859 = vmatpush2.msra.mxu0 0.0
    %2860 = vmatprep.subr.mxu0 0.0
    %2861 = vmatpush2.msra.mxu0 0.0
    %2862 = vmatprep.subr.mxu0 0.0
    %2863 = vmatpush2.msra.mxu0 0.0
    %2864 = vmatprep.subr.mxu0 0.0
    %2865 = vmatpush2.msra.mxu0 0.0
    %2866 = vmatprep.subr.mxu0 0.0
    %2867 = vmatpush2.msra.mxu0 0.0
    %2868 = vmatprep.subr.mxu0 0.0
    %2869 = vmatpush2.msra.mxu0 0.0
    %2870 = vmatprep.subr.mxu0 0.0
    %2871 = vmatpush2.msra.mxu0 0.0
    %2872 = vmatprep.subr.mxu0 0.0
    %2873 = vmatpush2.msra.mxu0 0.0
    %2874 = vmatprep.subr.mxu0 0.0
    %2875 = vmatpush2.msra.mxu0 0.0
    %2876 = vmatprep.subr.mxu0 0.0
    %2877 = vmatpush2.msra.mxu0 0.0
    %2878 = vmatprep.mubr.f32.mxu0 0.0
    %2879 = vmatmul.mubr.f32.gmra.mxu0 %v2809
    %v2880 = vpop.f32.mrf.mxu0
    %v2881 = vadd.f32 0.0, %v2880
    %v2882 = vpop.f32.mrf.mxu0
    %2883 = vmatprep.mubr.f32.mxu0 0.0
    %2884 = vmatmul.mubr.f32.gmra.mxu0 %v2812
    %v2885 = vpop.f32.mrf.mxu0
    %v2886 = vadd.f32 0.0, %v2885
    %v2887 = vpop.f32.mrf.mxu0
    %2888 = vdwg.mxu0
    %2893 = vrot.lane.b32.xlu0 %v2794, 16
    %v2894 = vpop.permute.xlu0 %2893
    %2895 = vrot.lane.b32.xlu0 %v2799, 16
    %v2896 = vpop.permute.xlu0 %2895
    %2897 = vrot.lane.b32.xlu0 %v2881, 16
    %v2898 = vpop.permute.xlu0 %2897
    %2899 = vrot.lane.b32.xlu0 %v2886, 16
    %v2900 = vpop.permute.xlu0 %2899
    %vm2905 = vcmask 195712
    %2906 = vst.msk [vmem:[#allocation4] sm:$0xff] %vm2905, %v2894
    %2907 = vst.msk [vmem:[#allocation4 + $0x8] sm:$0xff] %vm2905, %v2896
    %2908 = vst.msk [vmem:[#allocation4 + $0x10] sm:$0xff] %vm2905, %v2898
    %2909 = vst.msk [vmem:[#allocation4 + $0x18] sm:$0xff] %vm2905, %v2900
    %2910 = vrot.lane.b32.xlu0 %v1648, 104
    %v2911 = vpop.permute.xlu0 %2910
    %2912 = vrot.lane.b32.xlu0 %v1653, 104
    %v2913 = vpop.permute.xlu0 %2912
    %2914 = vrot.lane.b32.xlu0 %v1648, 72
    %v2915 = vpop.permute.xlu0 %2914
    %2916 = vrot.lane.b32.xlu0 %v1653, 72
    %v2917 = vpop.permute.xlu0 %2916
    %v2918 = vsel %vm1672, %v2911, 0
    %v2920 = vsel %vm1672, %v2913, 0
    %v2922 = vsel %vm1672, %v2915, 0
    %v2924 = vsel %vm1672, %v2917, 0
    %2926 = vmatprep.subr.mxu0 0.0
    %2927 = vmatpush1.xpose.msra.mxu0 0.0
    %2928 = vmatprep.subr.mxu0 0.0
    %2929 = vmatpush1.xpose.msra.mxu0 0.0
    %2930 = vmatprep.subr.mxu0 0.0
    %2931 = vmatpush1.xpose.msra.mxu0 0.0
    %2932 = vmatprep.subr.mxu0 0.0
    %2933 = vmatpush1.xpose.msra.mxu0 0.0
    %2934 = vmatprep.subr.mxu0 0.0
    %2935 = vmatpush1.xpose.msra.mxu0 0.0
    %2936 = vmatprep.subr.mxu0 0.0
    %2937 = vmatpush1.xpose.msra.mxu0 0.0
    %2938 = vmatprep.subr.mxu0 0.0
    %2939 = vmatpush1.xpose.msra.mxu0 0.0
    %2940 = vmatprep.subr.mxu0 0.0
    %2941 = vmatpush1.xpose.msra.mxu0 0.0
    %2942 = vmatprep.subr.mxu0 0.0
    %2943 = vmatpush1.xpose.msra.mxu0 0.0
    %2944 = vmatprep.subr.mxu0 0.0
    %2945 = vmatpush1.xpose.msra.mxu0 0.0
    %2946 = vmatprep.subr.mxu0 0.0
    %2947 = vmatpush1.xpose.msra.mxu0 0.0
    %2948 = vmatprep.subr.mxu0 0.0
    %2949 = vmatpush1.xpose.msra.mxu0 0.0
    %2950 = vmatprep.subr.mxu0 0.0
    %2951 = vmatpush1.xpose.msra.mxu0 0.0
    %2952 = vmatprep.subr.mxu0 0.0
    %2953 = vmatpush1.xpose.msra.mxu0 0.0
    %2954 = vmatprep.subr.mxu0 0.0
    %2955 = vmatpush1.xpose.msra.mxu0 %v2924
    %2956 = vmatprep.subr.mxu0 0.0
    %2957 = vmatpush1.xpose.msra.mxu0 %v2922
    %2958 = vmatprep.subr.mxu0 0.0
    %2959 = vmatpush2.xpose.msra.mxu0 0.0
    %2960 = vmatprep.subr.mxu0 0.0
    %2961 = vmatpush2.xpose.msra.mxu0 0.0
    %2962 = vmatprep.subr.mxu0 0.0
    %2963 = vmatpush2.xpose.msra.mxu0 0.0
    %2964 = vmatprep.subr.mxu0 0.0
    %2965 = vmatpush2.xpose.msra.mxu0 0.0
    %2966 = vmatprep.subr.mxu0 0.0
    %2967 = vmatpush2.xpose.msra.mxu0 0.0
    %2968 = vmatprep.subr.mxu0 0.0
    %2969 = vmatpush2.xpose.msra.mxu0 0.0
    %2970 = vmatprep.subr.mxu0 0.0
    %2971 = vmatpush2.xpose.msra.mxu0 0.0
    %2972 = vmatprep.subr.mxu0 0.0
    %2973 = vmatpush2.xpose.msra.mxu0 0.0
    %2974 = vmatprep.subr.mxu0 0.0
    %2975 = vmatpush2.xpose.msra.mxu0 0.0
    %2976 = vmatprep.subr.mxu0 0.0
    %2977 = vmatpush2.xpose.msra.mxu0 0.0
    %2978 = vmatprep.subr.mxu0 0.0
    %2979 = vmatpush2.xpose.msra.mxu0 0.0
    %2980 = vmatprep.subr.mxu0 0.0
    %2981 = vmatpush2.xpose.msra.mxu0 0.0
    %2982 = vmatprep.subr.mxu0 0.0
    %2983 = vmatpush2.xpose.msra.mxu0 0.0
    %2984 = vmatprep.subr.mxu0 0.0
    %2985 = vmatpush2.xpose.msra.mxu0 0.0
    %2986 = vmatprep.subr.mxu0 0.0
    %2987 = vmatpush2.xpose.msra.mxu0 0.0
    %2988 = vmatprep.subr.mxu0 0.0
    %2989 = vmatpush2.xpose.msra.mxu0 0.0
    %2990 = vmatprep.mubr.f32.mxu0 0.0
    %2991 = vmatmul.mubr.f32.gmra.mxu0 %v2918
    %v2992 = vpop.f32.mrf.mxu0
    %v2993 = vadd.f32 0.0, %v2992
    %v2994 = vpop.f32.mrf.mxu0
    %2995 = vmatprep.mubr.f32.mxu0 0.0
    %2996 = vmatmul.mubr.f32.gmra.mxu0 %v2920
    %v2997 = vpop.f32.mrf.mxu0
    %v2998 = vadd.f32 0.0, %v2997
    %v2999 = vpop.f32.mrf.mxu0
    %3000 = vdwg.mxu0
    %3001 = vrot.lane.b32.xlu0 %v1658, 104
    %v3002 = vpop.permute.xlu0 %3001
    %3003 = vrot.lane.b32.xlu0 %v1663, 104
    %v3004 = vpop.permute.xlu0 %3003
    %3005 = vrot.lane.b32.xlu0 %v1658, 72
    %v3006 = vpop.permute.xlu0 %3005
    %3007 = vrot.lane.b32.xlu0 %v1663, 72
    %v3008 = vpop.permute.xlu0 %3007
    %v3009 = vsel %vm1672, %v3002, 0
    %v3011 = vsel %vm1672, %v3004, 0
    %v3013 = vsel %vm1672, %v3006, 0
    %v3015 = vsel %vm1672, %v3008, 0
    %3017 = vmatprep.subr.mxu0 0.0
    %3018 = vmatpush1.xpose.msra.mxu0 0.0
    %3019 = vmatprep.subr.mxu0 0.0
    %3020 = vmatpush1.xpose.msra.mxu0 0.0
    %3021 = vmatprep.subr.mxu0 0.0
    %3022 = vmatpush1.xpose.msra.mxu0 0.0
    %3023 = vmatprep.subr.mxu0 0.0
    %3024 = vmatpush1.xpose.msra.mxu0 0.0
    %3025 = vmatprep.subr.mxu0 0.0
    %3026 = vmatpush1.xpose.msra.mxu0 0.0
    %3027 = vmatprep.subr.mxu0 0.0
    %3028 = vmatpush1.xpose.msra.mxu0 0.0
    %3029 = vmatprep.subr.mxu0 0.0
    %3030 = vmatpush1.xpose.msra.mxu0 0.0
    %3031 = vmatprep.subr.mxu0 0.0
    %3032 = vmatpush1.xpose.msra.mxu0 0.0
    %3033 = vmatprep.subr.mxu0 0.0
    %3034 = vmatpush1.xpose.msra.mxu0 0.0
    %3035 = vmatprep.subr.mxu0 0.0
    %3036 = vmatpush1.xpose.msra.mxu0 0.0
    %3037 = vmatprep.subr.mxu0 0.0
    %3038 = vmatpush1.xpose.msra.mxu0 0.0
    %3039 = vmatprep.subr.mxu0 0.0
    %3040 = vmatpush1.xpose.msra.mxu0 0.0
    %3041 = vmatprep.subr.mxu0 0.0
    %3042 = vmatpush1.xpose.msra.mxu0 0.0
    %3043 = vmatprep.subr.mxu0 0.0
    %3044 = vmatpush1.xpose.msra.mxu0 0.0
    %3045 = vmatprep.subr.mxu0 0.0
    %3046 = vmatpush1.xpose.msra.mxu0 %v3015
    %3047 = vmatprep.subr.mxu0 0.0
    %3048 = vmatpush1.xpose.msra.mxu0 %v3013
    %3049 = vmatprep.subr.mxu0 0.0
    %3050 = vmatpush2.xpose.msra.mxu0 0.0
    %3051 = vmatprep.subr.mxu0 0.0
    %3052 = vmatpush2.xpose.msra.mxu0 0.0
    %3053 = vmatprep.subr.mxu0 0.0
    %3054 = vmatpush2.xpose.msra.mxu0 0.0
    %3055 = vmatprep.subr.mxu0 0.0
    %3056 = vmatpush2.xpose.msra.mxu0 0.0
    %3057 = vmatprep.subr.mxu0 0.0
    %3058 = vmatpush2.xpose.msra.mxu0 0.0
    %3059 = vmatprep.subr.mxu0 0.0
    %3060 = vmatpush2.xpose.msra.mxu0 0.0
    %3061 = vmatprep.subr.mxu0 0.0
    %3062 = vmatpush2.xpose.msra.mxu0 0.0
    %3063 = vmatprep.subr.mxu0 0.0
    %3064 = vmatpush2.xpose.msra.mxu0 0.0
    %3065 = vmatprep.subr.mxu0 0.0
    %3066 = vmatpush2.xpose.msra.mxu0 0.0
    %3067 = vmatprep.subr.mxu0 0.0
    %3068 = vmatpush2.xpose.msra.mxu0 0.0
    %3069 = vmatprep.subr.mxu0 0.0
    %3070 = vmatpush2.xpose.msra.mxu0 0.0
    %3071 = vmatprep.subr.mxu0 0.0
    %3072 = vmatpush2.xpose.msra.mxu0 0.0
    %3073 = vmatprep.subr.mxu0 0.0
    %3074 = vmatpush2.xpose.msra.mxu0 0.0
    %3075 = vmatprep.subr.mxu0 0.0
    %3076 = vmatpush2.xpose.msra.mxu0 0.0
    %3077 = vmatprep.subr.mxu0 0.0
    %3078 = vmatpush2.xpose.msra.mxu0 0.0
    %3079 = vmatprep.subr.mxu0 0.0
    %3080 = vmatpush2.xpose.msra.mxu0 0.0
    %3081 = vmatprep.mubr.f32.mxu0 0.0
    %3082 = vmatmul.mubr.f32.gmra.mxu0 %v3009
    %v3083 = vpop.f32.mrf.mxu0
    %v3084 = vadd.f32 0.0, %v3083
    %v3085 = vpop.f32.mrf.mxu0
    %3086 = vmatprep.mubr.f32.mxu0 0.0
    %3087 = vmatmul.mubr.f32.gmra.mxu0 %v3011
    %v3088 = vpop.f32.mrf.mxu0
    %v3089 = vadd.f32 0.0, %v3088
    %v3090 = vpop.f32.mrf.mxu0
    %3091 = vdwg.mxu0
    %v3092 = vsel %vm1845, %v2993, -inf
    %3093 = vmax.xlane.f32.xlu0 %v3092
    %v3094 = vpop.xlane.xlu0 %3093
    %v3095 = vsel %vm1845, %v2998, -inf
    %3096 = vmax.xlane.f32.xlu0 %v3095
    %v3097 = vpop.xlane.xlu0 %3096
    %v3098 = vsel %vm1845, %v3084, -inf
    %3099 = vmax.xlane.f32.xlu0 %v3098
    %v3100 = vpop.xlane.xlu0 %3099
    %v3101 = vsel %vm1845, %v3089, -inf
    %3102 = vmax.xlane.f32.xlu0 %v3101
    %v3103 = vpop.xlane.xlu0 %3102
    %v3104 = vsub.f32 %v2993, %v3094
    %v3105 = vsub.f32 %v2998, %v3097
    %v3106 = vsub.f32 %v3084, %v3100
    %v3107 = vsub.f32 %v3089, %v3103
    %v3108 = vmul.f32 %v3104, 1.442695
    %v3109 = vpow.pop %v3108
    %v3110 = vmul.f32 %v3105, 1.442695
    %v3111 = vpow.pop %v3110
    %v3112 = vmul.f32 %v3106, 1.442695
    %v3113 = vpow.pop %v3112
    %v3114 = vmul.f32 %v3107, 1.442695
    %v3115 = vpow.pop %v3114
    %v3116 = vsel %vm1845, %v3109, 0.0
    %3117 = vadd.xlane.f32.xlu0 %v3116
    %v3118 = vpop.xlane.xlu0 %3117
    %v3119 = vsel %vm1845, %v3111, 0.0
    %3120 = vadd.xlane.f32.xlu0 %v3119
    %v3121 = vpop.xlane.xlu0 %3120
    %v3122 = vsel %vm1845, %v3113, 0.0
    %3123 = vadd.xlane.f32.xlu0 %v3122
    %v3124 = vpop.xlane.xlu0 %3123
    %v3125 = vsel %vm1845, %v3115, 0.0
    %3126 = vadd.xlane.f32.xlu0 %v3125
    %v3127 = vpop.xlane.xlu0 %3126
    %v3128 = vrcp.pop %v3118
    %v3129 = vrcp.pop %v3121
    %v3130 = vrcp.pop %v3124
    %v3131 = vrcp.pop %v3127
    %v3132 = vmul.f32 %v3109, %v3128
    %v3133 = vmul.f32 %v3111, %v3129
    %v3134 = vmul.f32 %v3113, %v3130
    %v3135 = vmul.f32 %v3115, %v3131
    %3136 = vrot.lane.b32.xlu0 %v1648, 40
    %v3137 = vpop.permute.xlu0 %3136
    %3138 = vrot.lane.b32.xlu0 %v1653, 40
    %v3139 = vpop.permute.xlu0 %3138
    %v3143 = vsel %vm1845, %v3132, 0
    %v3146 = vsel %vm1845, %v3133, 0
    %3148 = vmatprep.subr.mxu0 0.0
    %3149 = vmatpush1.msra.mxu0 0.0
    %3150 = vmatprep.subr.mxu0 0.0
    %3151 = vmatpush1.msra.mxu0 0.0
    %3152 = vmatprep.subr.mxu0 0.0
    %3153 = vmatpush1.msra.mxu0 0.0
    %3154 = vmatprep.subr.mxu0 0.0
    %3155 = vmatpush1.msra.mxu0 0.0
    %3156 = vmatprep.subr.mxu0 0.0
    %3157 = vmatpush1.msra.mxu0 0.0
    %3158 = vmatprep.subr.mxu0 0.0
    %3159 = vmatpush1.msra.mxu0 0.0
    %3160 = vmatprep.subr.mxu0 0.0
    %3161 = vmatpush1.msra.mxu0 0.0
    %3162 = vmatprep.subr.mxu0 0.0
    %3163 = vmatpush1.msra.mxu0 0.0
    %3164 = vmatprep.subr.mxu0 0.0
    %3165 = vmatpush1.msra.mxu0 0.0
    %3166 = vmatprep.subr.mxu0 0.0
    %3167 = vmatpush1.msra.mxu0 0.0
    %3168 = vmatprep.subr.mxu0 0.0
    %3169 = vmatpush1.msra.mxu0 0.0
    %3170 = vmatprep.subr.mxu0 0.0
    %3171 = vmatpush1.msra.mxu0 0.0
    %3172 = vmatprep.subr.mxu0 0.0
    %3173 = vmatpush1.msra.mxu0 0.0
    %3174 = vmatprep.subr.mxu0 0.0
    %3175 = vmatpush1.msra.mxu0 0.0
    %3176 = vmatprep.subr.mxu0 0.0
    %3177 = vmatpush1.msra.mxu0 %v3139
    %3178 = vmatprep.subr.mxu0 0.0
    %3179 = vmatpush1.msra.mxu0 %v3137
    %3180 = vmatprep.subr.mxu0 0.0
    %3181 = vmatpush2.msra.mxu0 0.0
    %3182 = vmatprep.subr.mxu0 0.0
    %3183 = vmatpush2.msra.mxu0 0.0
    %3184 = vmatprep.subr.mxu0 0.0
    %3185 = vmatpush2.msra.mxu0 0.0
    %3186 = vmatprep.subr.mxu0 0.0
    %3187 = vmatpush2.msra.mxu0 0.0
    %3188 = vmatprep.subr.mxu0 0.0
    %3189 = vmatpush2.msra.mxu0 0.0
    %3190 = vmatprep.subr.mxu0 0.0
    %3191 = vmatpush2.msra.mxu0 0.0
    %3192 = vmatprep.subr.mxu0 0.0
    %3193 = vmatpush2.msra.mxu0 0.0
    %3194 = vmatprep.subr.mxu0 0.0
    %3195 = vmatpush2.msra.mxu0 0.0
    %3196 = vmatprep.subr.mxu0 0.0
    %3197 = vmatpush2.msra.mxu0 0.0
    %3198 = vmatprep.subr.mxu0 0.0
    %3199 = vmatpush2.msra.mxu0 0.0
    %3200 = vmatprep.subr.mxu0 0.0
    %3201 = vmatpush2.msra.mxu0 0.0
    %3202 = vmatprep.subr.mxu0 0.0
    %3203 = vmatpush2.msra.mxu0 0.0
    %3204 = vmatprep.subr.mxu0 0.0
    %3205 = vmatpush2.msra.mxu0 0.0
    %3206 = vmatprep.subr.mxu0 0.0
    %3207 = vmatpush2.msra.mxu0 0.0
    %3208 = vmatprep.subr.mxu0 0.0
    %3209 = vmatpush2.msra.mxu0 0.0
    %3210 = vmatprep.subr.mxu0 0.0
    %3211 = vmatpush2.msra.mxu0 0.0
    %3212 = vmatprep.mubr.f32.mxu0 0.0
    %3213 = vmatmul.mubr.f32.gmra.mxu0 %v3143
    %v3214 = vpop.f32.mrf.mxu0
    %v3215 = vadd.f32 0.0, %v3214
    %v3216 = vpop.f32.mrf.mxu0
    %3217 = vmatprep.mubr.f32.mxu0 0.0
    %3218 = vmatmul.mubr.f32.gmra.mxu0 %v3146
    %v3219 = vpop.f32.mrf.mxu0
    %v3220 = vadd.f32 0.0, %v3219
    %v3221 = vpop.f32.mrf.mxu0
    %3222 = vdwg.mxu0
    %3223 = vrot.lane.b32.xlu0 %v1658, 40
    %v3224 = vpop.permute.xlu0 %3223
    %3225 = vrot.lane.b32.xlu0 %v1663, 40
    %v3226 = vpop.permute.xlu0 %3225
    %v3230 = vsel %vm1845, %v3134, 0
    %v3233 = vsel %vm1845, %v3135, 0
    %3235 = vmatprep.subr.mxu0 0.0
    %3236 = vmatpush1.msra.mxu0 0.0
    %3237 = vmatprep.subr.mxu0 0.0
    %3238 = vmatpush1.msra.mxu0 0.0
    %3239 = vmatprep.subr.mxu0 0.0
    %3240 = vmatpush1.msra.mxu0 0.0
    %3241 = vmatprep.subr.mxu0 0.0
    %3242 = vmatpush1.msra.mxu0 0.0
    %3243 = vmatprep.subr.mxu0 0.0
    %3244 = vmatpush1.msra.mxu0 0.0
    %3245 = vmatprep.subr.mxu0 0.0
    %3246 = vmatpush1.msra.mxu0 0.0
    %3247 = vmatprep.subr.mxu0 0.0
    %3248 = vmatpush1.msra.mxu0 0.0
    %3249 = vmatprep.subr.mxu0 0.0
    %3250 = vmatpush1.msra.mxu0 0.0
    %3251 = vmatprep.subr.mxu0 0.0
    %3252 = vmatpush1.msra.mxu0 0.0
    %3253 = vmatprep.subr.mxu0 0.0
    %3254 = vmatpush1.msra.mxu0 0.0
    %3255 = vmatprep.subr.mxu0 0.0
    %3256 = vmatpush1.msra.mxu0 0.0
    %3257 = vmatprep.subr.mxu0 0.0
    %3258 = vmatpush1.msra.mxu0 0.0
    %3259 = vmatprep.subr.mxu0 0.0
    %3260 = vmatpush1.msra.mxu0 0.0
    %3261 = vmatprep.subr.mxu0 0.0
    %3262 = vmatpush1.msra.mxu0 0.0
    %3263 = vmatprep.subr.mxu0 0.0
    %3264 = vmatpush1.msra.mxu0 %v3226
    %3265 = vmatprep.subr.mxu0 0.0
    %3266 = vmatpush1.msra.mxu0 %v3224
    %3267 = vmatprep.subr.mxu0 0.0
    %3268 = vmatpush2.msra.mxu0 0.0
    %3269 = vmatprep.subr.mxu0 0.0
    %3270 = vmatpush2.msra.mxu0 0.0
    %3271 = vmatprep.subr.mxu0 0.0
    %3272 = vmatpush2.msra.mxu0 0.0
    %3273 = vmatprep.subr.mxu0 0.0
    %3274 = vmatpush2.msra.mxu0 0.0
    %3275 = vmatprep.subr.mxu0 0.0
    %3276 = vmatpush2.msra.mxu0 0.0
    %3277 = vmatprep.subr.mxu0 0.0
    %3278 = vmatpush2.msra.mxu0 0.0
    %3279 = vmatprep.subr.mxu0 0.0
    %3280 = vmatpush2.msra.mxu0 0.0
    %3281 = vmatprep.subr.mxu0 0.0
    %3282 = vmatpush2.msra.mxu0 0.0
    %3283 = vmatprep.subr.mxu0 0.0
    %3284 = vmatpush2.msra.mxu0 0.0
    %3285 = vmatprep.subr.mxu0 0.0
    %3286 = vmatpush2.msra.mxu0 0.0
    %3287 = vmatprep.subr.mxu0 0.0
    %3288 = vmatpush2.msra.mxu0 0.0
    %3289 = vmatprep.subr.mxu0 0.0
    %3290 = vmatpush2.msra.mxu0 0.0
    %3291 = vmatprep.subr.mxu0 0.0
    %3292 = vmatpush2.msra.mxu0 0.0
    %3293 = vmatprep.subr.mxu0 0.0
    %3294 = vmatpush2.msra.mxu0 0.0
    %3295 = vmatprep.subr.mxu0 0.0
    %3296 = vmatpush2.msra.mxu0 0.0
    %3297 = vmatprep.subr.mxu0 0.0
    %3298 = vmatpush2.msra.mxu0 0.0
    %3299 = vmatprep.mubr.f32.mxu0 0.0
    %3300 = vmatmul.mubr.f32.gmra.mxu0 %v3230
    %v3301 = vpop.f32.mrf.mxu0
    %v3302 = vadd.f32 0.0, %v3301
    %v3303 = vpop.f32.mrf.mxu0
    %3304 = vmatprep.mubr.f32.mxu0 0.0
    %3305 = vmatmul.mubr.f32.gmra.mxu0 %v3233
    %v3306 = vpop.f32.mrf.mxu0
    %v3307 = vadd.f32 0.0, %v3306
    %v3308 = vpop.f32.mrf.mxu0
    %3309 = vdwg.mxu0
    %3314 = vrot.lane.b32.xlu0 %v3215, 24
    %v3315 = vpop.permute.xlu0 %3314
    %3316 = vrot.lane.b32.xlu0 %v3220, 24
    %v3317 = vpop.permute.xlu0 %3316
    %3318 = vrot.lane.b32.xlu0 %v3302, 24
    %v3319 = vpop.permute.xlu0 %3318
    %3320 = vrot.lane.b32.xlu0 %v3307, 24
    %v3321 = vpop.permute.xlu0 %3320
    %vm3326 = vcmask 261312
    %3327 = vst.msk [vmem:[#allocation4] sm:$0xff] %vm3326, %v3315
    %3328 = vst.msk [vmem:[#allocation4 + $0x8] sm:$0xff] %vm3326, %v3317
    %3329 = vst.msk [vmem:[#allocation4 + $0x10] sm:$0xff] %vm3326, %v3319
    %3330 = vst.msk [vmem:[#allocation4 + $0x18] sm:$0xff] %vm3326, %v3321
    %v3331 = vld [vmem:[#allocation4] sm:$0xff]
    %v3332 = vld [vmem:[#allocation4 + $0x8] sm:$0xff]
    %v3333 = vld [vmem:[#allocation4 + $0x10] sm:$0xff]
    %v3334 = vld [vmem:[#allocation4 + $0x18] sm:$0xff]
    %v3335 = vld [vmem:[%s4] sm:$0xff]
    %v3336 = vld [vmem:[%s4 + $0x8] sm:$0xff]
    %v3337 = vld [vmem:[%s4 + $0x10] sm:$0xff]
    %v3338 = vld [vmem:[%s4 + $0x18] sm:$0xff]
    %v3339 = vld [vmem:[%s8 + $0xa] sm:$0x1]
    %v3340 = vlaneseq
    %v3341 = vshrl.u32 %v3340, 7
    %v3342 = vsub.s32 0, %v3341
    %v3343 = vrot.slane %v3339, %v3342
    %v3345 = vsel %vm33, %v3331, 0
    %v3348 = vsel %vm33, %v3332, 0
    %v3351 = vsel %vm33, %v3333, 0
    %v3354 = vsel %vm33, %v3334, 0
    %3356 = vmatprep.subr.mxu0 0.0
    %3357 = vmatpush1.msra.mxu0 0.0
    %3358 = vmatprep.subr.mxu0 0.0
    %3359 = vmatpush1.msra.mxu0 0.0
    %3360 = vmatprep.subr.mxu0 0.0
    %3361 = vmatpush1.msra.mxu0 0.0
    %3362 = vmatprep.subr.mxu0 0.0
    %3363 = vmatpush1.msra.mxu0 0.0
    %3364 = vmatprep.subr.mxu0 0.0
    %3365 = vmatpush1.msra.mxu0 0.0
    %3366 = vmatprep.subr.mxu0 0.0
    %3367 = vmatpush1.msra.mxu0 0.0
    %3368 = vmatprep.subr.mxu0 0.0
    %3369 = vmatpush1.msra.mxu0 0.0
    %3370 = vmatprep.subr.mxu0 0.0
    %3371 = vmatpush1.msra.mxu0 0.0
    %3372 = vmatprep.subr.mxu0 0.0
    %3373 = vmatpush1.msra.mxu0 0.0
    %3374 = vmatprep.subr.mxu0 0.0
    %3375 = vmatpush1.msra.mxu0 0.0
    %3376 = vmatprep.subr.mxu0 0.0
    %3377 = vmatpush1.msra.mxu0 0.0
    %3378 = vmatprep.subr.mxu0 0.0
    %3379 = vmatpush1.msra.mxu0 0.0
    %3380 = vmatprep.subr.mxu0 0.0
    %3381 = vmatpush1.msra.mxu0 %v3338
    %3382 = vmatprep.subr.mxu0 0.0
    %3383 = vmatpush1.msra.mxu0 %v3337
    %3384 = vmatprep.subr.mxu0 0.0
    %3385 = vmatpush1.msra.mxu0 %v3336
    %3386 = vmatprep.subr.mxu0 0.0
    %3387 = vmatpush1.msra.mxu0 %v3335
    %3388 = vmatprep.subr.mxu0 0.0
    %3389 = vmatpush2.msra.mxu0 0.0
    %3390 = vmatprep.subr.mxu0 0.0
    %3391 = vmatpush2.msra.mxu0 0.0
    %3392 = vmatprep.subr.mxu0 0.0
    %3393 = vmatpush2.msra.mxu0 0.0
    %3394 = vmatprep.subr.mxu0 0.0
    %3395 = vmatpush2.msra.mxu0 0.0
    %3396 = vmatprep.subr.mxu0 0.0
    %3397 = vmatpush2.msra.mxu0 0.0
    %3398 = vmatprep.subr.mxu0 0.0
    %3399 = vmatpush2.msra.mxu0 0.0
    %3400 = vmatprep.subr.mxu0 0.0
    %3401 = vmatpush2.msra.mxu0 0.0
    %3402 = vmatprep.subr.mxu0 0.0
    %3403 = vmatpush2.msra.mxu0 0.0
    %3404 = vmatprep.subr.mxu0 0.0
    %3405 = vmatpush2.msra.mxu0 0.0
    %3406 = vmatprep.subr.mxu0 0.0
    %3407 = vmatpush2.msra.mxu0 0.0
    %3408 = vmatprep.subr.mxu0 0.0
    %3409 = vmatpush2.msra.mxu0 0.0
    %3410 = vmatprep.subr.mxu0 0.0
    %3411 = vmatpush2.msra.mxu0 0.0
    %3412 = vmatprep.subr.mxu0 0.0
    %3413 = vmatpush2.msra.mxu0 0.0
    %3414 = vmatprep.subr.mxu0 0.0
    %3415 = vmatpush2.msra.mxu0 0.0
    %3416 = vmatprep.subr.mxu0 0.0
    %3417 = vmatpush2.msra.mxu0 0.0
    %3418 = vmatprep.subr.mxu0 0.0
    %3419 = vmatpush2.msra.mxu0 0.0
    %3420 = vmatprep.mubr.f32.mxu0 0.0
    %3421 = vmatmul.mubr.f32.gmra.mxu0 %v3345
    %v3422 = vpop.f32.mrf.mxu0
    %v3423 = vadd.f32 %v3343, %v3422
    %v3424 = vpop.f32.mrf.mxu0
    %3425 = vmatprep.mubr.f32.mxu0 0.0
    %3426 = vmatmul.mubr.f32.gmra.mxu0 %v3348
    %v3427 = vpop.f32.mrf.mxu0
    %v3428 = vadd.f32 %v3343, %v3427
    %v3429 = vpop.f32.mrf.mxu0
    %3430 = vmatprep.mubr.f32.mxu0 0.0
    %3431 = vmatmul.mubr.f32.gmra.mxu0 %v3351
    %v3432 = vpop.f32.mrf.mxu0
    %v3433 = vadd.f32 %v3343, %v3432
    %v3434 = vpop.f32.mrf.mxu0
    %3435 = vmatprep.mubr.f32.mxu0 0.0
    %3436 = vmatmul.mubr.f32.gmra.mxu0 %v3354
    %v3437 = vpop.f32.mrf.mxu0
    %v3438 = vadd.f32 %v3343, %v3437
    %v3439 = vpop.f32.mrf.mxu0
    %3440 = vdwg.mxu0
    %v3441 = vadd.f32 %v1556, %v3423
    %v3442 = vadd.f32 %v1557, %v3428
    %v3443 = vadd.f32 %v1558, %v3433
    %v3444 = vadd.f32 %v1559, %v3438
    %v3445 = vld [vmem:[%s8 + $0xb] sm:$0x1]
    %v3446 = vld [vmem:[%s8 + $0xc] sm:$0x1]
    %v3447 = vsel %vm33, %v3441, 0.0
    %3448 = vadd.xlane.f32.xlu0 %v3447
    %v3449 = vpop.xlane.xlu0 %3448
    %v3450 = vsel %vm33, %v3442, 0.0
    %3451 = vadd.xlane.f32.xlu0 %v3450
    %v3452 = vpop.xlane.xlu0 %3451
    %v3453 = vsel %vm33, %v3443, 0.0
    %3454 = vadd.xlane.f32.xlu0 %v3453
    %v3455 = vpop.xlane.xlu0 %3454
    %v3456 = vsel %vm33, %v3444, 0.0
    %3457 = vadd.xlane.f32.xlu0 %v3456
    %v3458 = vpop.xlane.xlu0 %3457
    %v3459 = vrcp.pop 32.0
    %v3460 = vmul.f32 %v3449, %v3459
    %v3461 = vmul.f32 %v3452, %v3459
    %v3462 = vmul.f32 %v3455, %v3459
    %v3463 = vmul.f32 %v3458, %v3459
    %v3464 = vmul.f32 %v3441, %v3441
    %v3465 = vmul.f32 %v3442, %v3442
    %v3466 = vmul.f32 %v3443, %v3443
    %v3467 = vmul.f32 %v3444, %v3444
    %v3468 = vsel %vm33, %v3464, 0.0
    %3469 = vadd.xlane.f32.xlu0 %v3468
    %v3470 = vpop.xlane.xlu0 %3469
    %v3471 = vsel %vm33, %v3465, 0.0
    %3472 = vadd.xlane.f32.xlu0 %v3471
    %v3473 = vpop.xlane.xlu0 %3472
    %v3474 = vsel %vm33, %v3466, 0.0
    %3475 = vadd.xlane.f32.xlu0 %v3474
    %v3476 = vpop.xlane.xlu0 %3475
    %v3477 = vsel %vm33, %v3467, 0.0
    %3478 = vadd.xlane.f32.xlu0 %v3477
    %v3479 = vpop.xlane.xlu0 %3478
    %v3480 = vmul.f32 %v3470, %v3459
    %v3481 = vmul.f32 %v3473, %v3459
    %v3482 = vmul.f32 %v3476, %v3459
    %v3483 = vmul.f32 %v3479, %v3459
    %v3484 = vmul.f32 %v3460, %v3460
    %v3485 = vmul.f32 %v3461, %v3461
    %v3486 = vmul.f32 %v3462, %v3462
    %v3487 = vmul.f32 %v3463, %v3463
    %v3488 = vsub.f32 %v3480, %v3484
    %v3489 = vsub.f32 %v3481, %v3485
    %v3490 = vsub.f32 %v3482, %v3486
    %v3491 = vsub.f32 %v3483, %v3487
    %v3492 = vsub.f32 %v3441, %v3460
    %v3493 = vsub.f32 %v3442, %v3461
    %v3494 = vsub.f32 %v3443, %v3462
    %v3495 = vsub.f32 %v3444, %v3463
    %v3496 = vadd.f32 %v3488, 1e-05
    %v3497 = vadd.f32 %v3489, 1e-05
    %v3498 = vadd.f32 %v3490, 1e-05
    %v3499 = vadd.f32 %v3491, 1e-05
    %v3500 = vrsqrt.pop %v3496
    %v3501 = vrsqrt.pop %v3497
    %v3502 = vrsqrt.pop %v3498
    %v3503 = vrsqrt.pop %v3499
    %v3504 = vmul.f32 %v3492, %v3500
    %v3505 = vmul.f32 %v3493, %v3501
    %v3506 = vmul.f32 %v3494, %v3502
    %v3507 = vmul.f32 %v3495, %v3503
    %v3508 = vlaneseq
    %v3509 = vshrl.u32 %v3508, 7
    %v3510 = vsub.s32 0, %v3509
    %v3511 = vrot.slane %v3445, %v3510
    %v3512 = vmul.f32 %v3504, %v3511
    %v3513 = vmul.f32 %v3505, %v3511
    %v3514 = vmul.f32 %v3506, %v3511
    %v3515 = vmul.f32 %v3507, %v3511
    %v3516 = vlaneseq
    %v3517 = vshrl.u32 %v3516, 7
    %v3518 = vsub.s32 0, %v3517
    %v3519 = vrot.slane %v3446, %v3518
    %v3520 = vadd.f32 %v3512, %v3519
    %v3521 = vadd.f32 %v3513, %v3519
    %v3522 = vadd.f32 %v3514, %v3519
    %v3523 = vadd.f32 %v3515, %v3519
    %v3524 = vld [vmem:[%s5] sm:$0xff]
    %v3525 = vld [vmem:[%s5 + $0x8] sm:$0xff]
    %v3526 = vld [vmem:[%s5 + $0x10] sm:$0xff]
    %v3527 = vld [vmem:[%s5 + $0x18] sm:$0xff]
    %v3528 = vld [vmem:[%s8 + $0xd] sm:$0x1]
    %v3529 = vlaneseq
    %v3530 = vshrl.u32 %v3529, 7
    %v3531 = vsub.s32 0, %v3530
    %v3532 = vrot.slane %v3528, %v3531
    %v3534 = vsel %vm33, %v3520, 0
    %v3537 = vsel %vm33, %v3521, 0
    %v3540 = vsel %vm33, %v3522, 0
    %v3543 = vsel %vm33, %v3523, 0
    %3545 = vmatprep.subr.mxu0 0.0
    %3546 = vmatpush1.msra.mxu0 0.0
    %3547 = vmatprep.subr.mxu0 0.0
    %3548 = vmatpush1.msra.mxu0 0.0
    %3549 = vmatprep.subr.mxu0 0.0
    %3550 = vmatpush1.msra.mxu0 0.0
    %3551 = vmatprep.subr.mxu0 0.0
    %3552 = vmatpush1.msra.mxu0 0.0
    %3553 = vmatprep.subr.mxu0 0.0
    %3554 = vmatpush1.msra.mxu0 0.0
    %3555 = vmatprep.subr.mxu0 0.0
    %3556 = vmatpush1.msra.mxu0 0.0
    %3557 = vmatprep.subr.mxu0 0.0
    %3558 = vmatpush1.msra.mxu0 0.0
    %3559 = vmatprep.subr.mxu0 0.0
    %3560 = vmatpush1.msra.mxu0 0.0
    %3561 = vmatprep.subr.mxu0 0.0
    %3562 = vmatpush1.msra.mxu0 0.0
    %3563 = vmatprep.subr.mxu0 0.0
    %3564 = vmatpush1.msra.mxu0 0.0
    %3565 = vmatprep.subr.mxu0 0.0
    %3566 = vmatpush1.msra.mxu0 0.0
    %3567 = vmatprep.subr.mxu0 0.0
    %3568 = vmatpush1.msra.mxu0 0.0
    %3569 = vmatprep.subr.mxu0 0.0
    %3570 = vmatpush1.msra.mxu0 %v3527
    %3571 = vmatprep.subr.mxu0 0.0
    %3572 = vmatpush1.msra.mxu0 %v3526
    %3573 = vmatprep.subr.mxu0 0.0
    %3574 = vmatpush1.msra.mxu0 %v3525
    %3575 = vmatprep.subr.mxu0 0.0
    %3576 = vmatpush1.msra.mxu0 %v3524
    %3577 = vmatprep.subr.mxu0 0.0
    %3578 = vmatpush2.msra.mxu0 0.0
    %3579 = vmatprep.subr.mxu0 0.0
    %3580 = vmatpush2.msra.mxu0 0.0
    %3581 = vmatprep.subr.mxu0 0.0
    %3582 = vmatpush2.msra.mxu0 0.0
    %3583 = vmatprep.subr.mxu0 0.0
    %3584 = vmatpush2.msra.mxu0 0.0
    %3585 = vmatprep.subr.mxu0 0.0
    %3586 = vmatpush2.msra.mxu0 0.0
    %3587 = vmatprep.subr.mxu0 0.0
    %3588 = vmatpush2.msra.mxu0 0.0
    %3589 = vmatprep.subr.mxu0 0.0
    %3590 = vmatpush2.msra.mxu0 0.0
    %3591 = vmatprep.subr.mxu0 0.0
    %3592 = vmatpush2.msra.mxu0 0.0
    %3593 = vmatprep.subr.mxu0 0.0
    %3594 = vmatpush2.msra.mxu0 0.0
    %3595 = vmatprep.subr.mxu0 0.0
    %3596 = vmatpush2.msra.mxu0 0.0
    %3597 = vmatprep.subr.mxu0 0.0
    %3598 = vmatpush2.msra.mxu0 0.0
    %3599 = vmatprep.subr.mxu0 0.0
    %3600 = vmatpush2.msra.mxu0 0.0
    %3601 = vmatprep.subr.mxu0 0.0
    %3602 = vmatpush2.msra.mxu0 0.0
    %3603 = vmatprep.subr.mxu0 0.0
    %3604 = vmatpush2.msra.mxu0 0.0
    %3605 = vmatprep.subr.mxu0 0.0
    %3606 = vmatpush2.msra.mxu0 0.0
    %3607 = vmatprep.subr.mxu0 0.0
    %3608 = vmatpush2.msra.mxu0 0.0
    %3609 = vmatprep.mubr.f32.mxu0 0.0
    %3610 = vmatmul.mubr.f32.gmra.mxu0 %v3534
    %v3611 = vpop.f32.mrf.mxu0
    %v3612 = vadd.f32 %v3532, %v3611
    %v3613 = vpop.f32.mrf.mxu0
    %3614 = vmatprep.mubr.f32.mxu0 0.0
    %3615 = vmatmul.mubr.f32.gmra.mxu0 %v3537
    %v3616 = vpop.f32.mrf.mxu0
    %v3617 = vadd.f32 %v3532, %v3616
    %v3618 = vpop.f32.mrf.mxu0
    %3619 = vmatprep.mubr.f32.mxu0 0.0
    %3620 = vmatmul.mubr.f32.gmra.mxu0 %v3540
    %v3621 = vpop.f32.mrf.mxu0
    %v3622 = vadd.f32 %v3532, %v3621
    %v3623 = vpop.f32.mrf.mxu0
    %3624 = vmatprep.mubr.f32.mxu0 0.0
    %3625 = vmatmul.mubr.f32.gmra.mxu0 %v3543
    %v3626 = vpop.f32.mrf.mxu0
    %v3627 = vadd.f32 %v3532, %v3626
    %v3628 = vpop.f32.mrf.mxu0
    %3629 = vdwg.mxu0
    %v3630 = vmax.f32 %v3612, 0.0
    %v3631 = vmax.f32 %v3617, 0.0
    %v3632 = vmax.f32 %v3622, 0.0
    %v3633 = vmax.f32 %v3627, 0.0
    %v3634 = vld [vmem:[%s6] sm:$0xff]
    %v3635 = vld [vmem:[%s6 + $0x8] sm:$0xff]
    %v3636 = vld [vmem:[%s6 + $0x10] sm:$0xff]
    %v3637 = vld [vmem:[%s6 + $0x18] sm:$0xff]
    %v3638 = vld [vmem:[%s6 + $0x20] sm:$0xff]
    %v3639 = vld [vmem:[%s6 + $0x28] sm:$0xff]
    %v3640 = vld [vmem:[%s6 + $0x30] sm:$0xff]
    %v3641 = vld [vmem:[%s6 + $0x38] sm:$0xff]
    %v3642 = vld [vmem:[%s8 + $0xe] sm:$0x1]
    %v3643 = vlaneseq
    %v3644 = vshrl.u32 %v3643, 7
    %v3645 = vsub.s32 0, %v3644
    %v3646 = vrot.slane %v3642, %v3645
    %vm3647 = vcmask 523264
    %v3649 = vsel %vm3647, %v3630, 0
    %v3652 = vsel %vm3647, %v3631, 0
    %v3655 = vsel %vm3647, %v3632, 0
    %v3658 = vsel %vm3647, %v3633, 0
    %3660 = vmatprep.subr.mxu0 0.0
    %3661 = vmatpush1.msra.mxu0 0.0
    %3662 = vmatprep.subr.mxu0 0.0
    %3663 = vmatpush1.msra.mxu0 0.0
    %3664 = vmatprep.subr.mxu0 0.0
    %3665 = vmatpush1.msra.mxu0 0.0
    %3666 = vmatprep.subr.mxu0 0.0
    %3667 = vmatpush1.msra.mxu0 0.0
    %3668 = vmatprep.subr.mxu0 0.0
    %3669 = vmatpush1.msra.mxu0 0.0
    %3670 = vmatprep.subr.mxu0 0.0
    %3671 = vmatpush1.msra.mxu0 0.0
    %3672 = vmatprep.subr.mxu0 0.0
    %3673 = vmatpush1.msra.mxu0 0.0
    %3674 = vmatprep.subr.mxu0 0.0
    %3675 = vmatpush1.msra.mxu0 0.0
    %3676 = vmatprep.subr.mxu0 0.0
    %3677 = vmatpush1.msra.mxu0 %v3641
    %3678 = vmatprep.subr.mxu0 0.0
    %3679 = vmatpush1.msra.mxu0 %v3640
    %3680 = vmatprep.subr.mxu0 0.0
    %3681 = vmatpush1.msra.mxu0 %v3639
    %3682 = vmatprep.subr.mxu0 0.0
    %3683 = vmatpush1.msra.mxu0 %v3638
    %3684 = vmatprep.subr.mxu0 0.0
    %3685 = vmatpush1.msra.mxu0 %v3637
    %3686 = vmatprep.subr.mxu0 0.0
    %3687 = vmatpush1.msra.mxu0 %v3636
    %3688 = vmatprep.subr.mxu0 0.0
    %3689 = vmatpush1.msra.mxu0 %v3635
    %3690 = vmatprep.subr.mxu0 0.0
    %3691 = vmatpush1.msra.mxu0 %v3634
    %3692 = vmatprep.subr.mxu0 0.0
    %3693 = vmatpush2.msra.mxu0 0.0
    %3694 = vmatprep.subr.mxu0 0.0
    %3695 = vmatpush2.msra.mxu0 0.0
    %3696 = vmatprep.subr.mxu0 0.0
    %3697 = vmatpush2.msra.mxu0 0.0
    %3698 = vmatprep.subr.mxu0 0.0
    %3699 = vmatpush2.msra.mxu0 0.0
    %3700 = vmatprep.subr.mxu0 0.0
    %3701 = vmatpush2.msra.mxu0 0.0
    %3702 = vmatprep.subr.mxu0 0.0
    %3703 = vmatpush2.msra.mxu0 0.0
    %3704 = vmatprep.subr.mxu0 0.0
    %3705 = vmatpush2.msra.mxu0 0.0
    %3706 = vmatprep.subr.mxu0 0.0
    %3707 = vmatpush2.msra.mxu0 0.0
    %3708 = vmatprep.subr.mxu0 0.0
    %3709 = vmatpush2.msra.mxu0 0.0
    %3710 = vmatprep.subr.mxu0 0.0
    %3711 = vmatpush2.msra.mxu0 0.0
    %3712 = vmatprep.subr.mxu0 0.0
    %3713 = vmatpush2.msra.mxu0 0.0
    %3714 = vmatprep.subr.mxu0 0.0
    %3715 = vmatpush2.msra.mxu0 0.0
    %3716 = vmatprep.subr.mxu0 0.0
    %3717 = vmatpush2.msra.mxu0 0.0
    %3718 = vmatprep.subr.mxu0 0.0
    %3719 = vmatpush2.msra.mxu0 0.0
    %3720 = vmatprep.subr.mxu0 0.0
    %3721 = vmatpush2.msra.mxu0 0.0
    %3722 = vmatprep.subr.mxu0 0.0
    %3723 = vmatpush2.msra.mxu0 0.0
    %3724 = vmatprep.mubr.f32.mxu0 0.0
    %3725 = vmatmul.mubr.f32.gmra.mxu0 %v3649
    %v3726 = vpop.f32.mrf.mxu0
    %v3727 = vadd.f32 %v3646, %v3726
    %v3728 = vpop.f32.mrf.mxu0
    %3729 = vmatprep.mubr.f32.mxu0 0.0
    %3730 = vmatmul.mubr.f32.gmra.mxu0 %v3652
    %v3731 = vpop.f32.mrf.mxu0
    %v3732 = vadd.f32 %v3646, %v3731
    %v3733 = vpop.f32.mrf.mxu0
    %3734 = vmatprep.mubr.f32.mxu0 0.0
    %3735 = vmatmul.mubr.f32.gmra.mxu0 %v3655
    %v3736 = vpop.f32.mrf.mxu0
    %v3737 = vadd.f32 %v3646, %v3736
    %v3738 = vpop.f32.mrf.mxu0
    %3739 = vmatprep.mubr.f32.mxu0 0.0
    %3740 = vmatmul.mubr.f32.gmra.mxu0 %v3658
    %v3741 = vpop.f32.mrf.mxu0
    %v3742 = vadd.f32 %v3646, %v3741
    %v3743 = vpop.f32.mrf.mxu0
    %3744 = vdwg.mxu0
    %v3745 = vadd.f32 %v3520, %v3727
    %v3746 = vadd.f32 %v3521, %v3732
    %v3747 = vadd.f32 %v3522, %v3737
    %v3748 = vadd.f32 %v3523, %v3742
    %v3749 = vld [vmem:[%s8 + $0xf] sm:$0x1]
    %v3750 = vld [vmem:[%s8 + $0x10] sm:$0x1]
    %v3751 = vsel %vm33, %v3745, 0.0
    %3752 = vadd.xlane.f32.xlu0 %v3751
    %v3753 = vpop.xlane.xlu0 %3752
    %v3754 = vsel %vm33, %v3746, 0.0
    %3755 = vadd.xlane.f32.xlu0 %v3754
    %v3756 = vpop.xlane.xlu0 %3755
    %v3757 = vsel %vm33, %v3747, 0.0
    %3758 = vadd.xlane.f32.xlu0 %v3757
    %v3759 = vpop.xlane.xlu0 %3758
    %v3760 = vsel %vm33, %v3748, 0.0
    %3761 = vadd.xlane.f32.xlu0 %v3760
    %v3762 = vpop.xlane.xlu0 %3761
    %v3763 = vmul.f32 %v3753, %v3459
    %v3764 = vmul.f32 %v3756, %v3459
    %v3765 = vmul.f32 %v3759, %v3459
    %v3766 = vmul.f32 %v3762, %v3459
    %v3767 = vmul.f32 %v3745, %v3745
    %v3768 = vmul.f32 %v3746, %v3746
    %v3769 = vmul.f32 %v3747, %v3747
    %v3770 = vmul.f32 %v3748, %v3748
    %v3771 = vsel %vm33, %v3767, 0.0
    %3772 = vadd.xlane.f32.xlu0 %v3771
    %v3773 = vpop.xlane.xlu0 %3772
    %v3774 = vsel %vm33, %v3768, 0.0
    %3775 = vadd.xlane.f32.xlu0 %v3774
    %v3776 = vpop.xlane.xlu0 %3775
    %v3777 = vsel %vm33, %v3769, 0.0
    %3778 = vadd.xlane.f32.xlu0 %v3777
    %v3779 = vpop.xlane.xlu0 %3778
    %v3780 = vsel %vm33, %v3770, 0.0
    %3781 = vadd.xlane.f32.xlu0 %v3780
    %v3782 = vpop.xlane.xlu0 %3781
    %v3783 = vmul.f32 %v3773, %v3459
    %v3784 = vmul.f32 %v3776, %v3459
    %v3785 = vmul.f32 %v3779, %v3459
    %v3786 = vmul.f32 %v3782, %v3459
    %v3787 = vmul.f32 %v3763, %v3763
    %v3788 = vmul.f32 %v3764, %v3764
    %v3789 = vmul.f32 %v3765, %v3765
    %v3790 = vmul.f32 %v3766, %v3766
    %v3791 = vsub.f32 %v3783, %v3787
    %v3792 = vsub.f32 %v3784, %v3788
    %v3793 = vsub.f32 %v3785, %v3789
    %v3794 = vsub.f32 %v3786, %v3790
    %v3795 = vsub.f32 %v3745, %v3763
    %v3796 = vsub.f32 %v3746, %v3764
    %v3797 = vsub.f32 %v3747, %v3765
    %v3798 = vsub.f32 %v3748, %v3766
    %v3799 = vadd.f32 %v3791, 1e-05
    %v3800 = vadd.f32 %v3792, 1e-05
    %v3801 = vadd.f32 %v3793, 1e-05
    %v3802 = vadd.f32 %v3794, 1e-05
    %v3803 = vrsqrt.pop %v3799
    %v3804 = vrsqrt.pop %v3800
    %v3805 = vrsqrt.pop %v3801
    %v3806 = vrsqrt.pop %v3802
    %v3807 = vmul.f32 %v3795, %v3803
    %v3808 = vmul.f32 %v3796, %v3804
    %v3809 = vmul.f32 %v3797, %v3805
    %v3810 = vmul.f32 %v3798, %v3806
    %v3811 = vlaneseq
    %v3812 = vshrl.u32 %v3811, 7
    %v3813 = vsub.s32 0, %v3812
    %v3814 = vrot.slane %v3749, %v3813
    %v3815 = vmul.f32 %v3807, %v3814
    %v3816 = vmul.f32 %v3808, %v3814
    %v3817 = vmul.f32 %v3809, %v3814
    %v3818 = vmul.f32 %v3810, %v3814
    %v3819 = vlaneseq
    %v3820 = vshrl.u32 %v3819, 7
    %v3821 = vsub.s32 0, %v3820
    %v3822 = vrot.slane %v3750, %v3821
    %v3823 = vadd.f32 %v3815, %v3822
    %v3824 = vadd.f32 %v3816, %v3822
    %v3825 = vadd.f32 %v3817, %v3822
    %v3826 = vadd.f32 %v3818, %v3822
    %s3827 = scalar_lea.vmem %s3, 32
    %v3828 = vld [vmem:[%s3827] sm:$0xff]
    %v3829 = vld [vmem:[%s3827 + $0x8] sm:$0xff]
    %v3830 = vld [vmem:[%s3827 + $0x10] sm:$0xff]
    %v3831 = vld [vmem:[%s3827 + $0x18] sm:$0xff]
    %v3832 = vld [vmem:[%s8 + $0x11] sm:$0x1]
    %v3833 = vlaneseq
    %v3834 = vshrl.u32 %v3833, 7
    %v3835 = vsub.s32 0, %v3834
    %v3836 = vrot.slane %v3832, %v3835
    %v3838 = vsel %vm33, %v3823, 0
    %v3841 = vsel %vm33, %v3824, 0
    %v3844 = vsel %vm33, %v3825, 0
    %v3847 = vsel %vm33, %v3826, 0
    %3849 = vmatprep.subr.mxu0 0.0
    %3850 = vmatpush1.msra.mxu0 0.0
    %3851 = vmatprep.subr.mxu0 0.0
    %3852 = vmatpush1.msra.mxu0 0.0
    %3853 = vmatprep.subr.mxu0 0.0
    %3854 = vmatpush1.msra.mxu0 0.0
    %3855 = vmatprep.subr.mxu0 0.0
    %3856 = vmatpush1.msra.mxu0 0.0
    %3857 = vmatprep.subr.mxu0 0.0
    %3858 = vmatpush1.msra.mxu0 0.0
    %3859 = vmatprep.subr.mxu0 0.0
    %3860 = vmatpush1.msra.mxu0 0.0
    %3861 = vmatprep.subr.mxu0 0.0
    %3862 = vmatpush1.msra.mxu0 0.0
    %3863 = vmatprep.subr.mxu0 0.0
    %3864 = vmatpush1.msra.mxu0 0.0
    %3865 = vmatprep.subr.mxu0 0.0
    %3866 = vmatpush1.msra.mxu0 0.0
    %3867 = vmatprep.subr.mxu0 0.0
    %3868 = vmatpush1.msra.mxu0 0.0
    %3869 = vmatprep.subr.mxu0 0.0
    %3870 = vmatpush1.msra.mxu0 0.0
    %3871 = vmatprep.subr.mxu0 0.0
    %3872 = vmatpush1.msra.mxu0 0.0
    %3873 = vmatprep.subr.mxu0 0.0
    %3874 = vmatpush1.msra.mxu0 %v3831
    %3875 = vmatprep.subr.mxu0 0.0
    %3876 = vmatpush1.msra.mxu0 %v3830
    %3877 = vmatprep.subr.mxu0 0.0
    %3878 = vmatpush1.msra.mxu0 %v3829
    %3879 = vmatprep.subr.mxu0 0.0
    %3880 = vmatpush1.msra.mxu0 %v3828
    %3881 = vmatprep.subr.mxu0 0.0
    %3882 = vmatpush2.msra.mxu0 0.0
    %3883 = vmatprep.subr.mxu0 0.0
    %3884 = vmatpush2.msra.mxu0 0.0
    %3885 = vmatprep.subr.mxu0 0.0
    %3886 = vmatpush2.msra.mxu0 0.0
    %3887 = vmatprep.subr.mxu0 0.0
    %3888 = vmatpush2.msra.mxu0 0.0
    %3889 = vmatprep.subr.mxu0 0.0
    %3890 = vmatpush2.msra.mxu0 0.0
    %3891 = vmatprep.subr.mxu0 0.0
    %3892 = vmatpush2.msra.mxu0 0.0
    %3893 = vmatprep.subr.mxu0 0.0
    %3894 = vmatpush2.msra.mxu0 0.0
    %3895 = vmatprep.subr.mxu0 0.0
    %3896 = vmatpush2.msra.mxu0 0.0
    %3897 = vmatprep.subr.mxu0 0.0
    %3898 = vmatpush2.msra.mxu0 0.0
    %3899 = vmatprep.subr.mxu0 0.0
    %3900 = vmatpush2.msra.mxu0 0.0
    %3901 = vmatprep.subr.mxu0 0.0
    %3902 = vmatpush2.msra.mxu0 0.0
    %3903 = vmatprep.subr.mxu0 0.0
    %3904 = vmatpush2.msra.mxu0 0.0
    %3905 = vmatprep.subr.mxu0 0.0
    %3906 = vmatpush2.msra.mxu0 0.0
    %3907 = vmatprep.subr.mxu0 0.0
    %3908 = vmatpush2.msra.mxu0 0.0
    %3909 = vmatprep.subr.mxu0 0.0
    %3910 = vmatpush2.msra.mxu0 0.0
    %3911 = vmatprep.subr.mxu0 0.0
    %3912 = vmatpush2.msra.mxu0 0.0
    %3913 = vmatprep.mubr.f32.mxu0 0.0
    %3914 = vmatmul.mubr.f32.gmra.mxu0 %v3838
    %v3915 = vpop.f32.mrf.mxu0
    %v3916 = vadd.f32 %v3836, %v3915
    %v3917 = vpop.f32.mrf.mxu0
    %3918 = vmatprep.mubr.f32.mxu0 0.0
    %3919 = vmatmul.mubr.f32.gmra.mxu0 %v3841
    %v3920 = vpop.f32.mrf.mxu0
    %v3921 = vadd.f32 %v3836, %v3920
    %v3922 = vpop.f32.mrf.mxu0
    %3923 = vmatprep.mubr.f32.mxu0 0.0
    %3924 = vmatmul.mubr.f32.gmra.mxu0 %v3844
    %v3925 = vpop.f32.mrf.mxu0
    %v3926 = vadd.f32 %v3836, %v3925
    %v3927 = vpop.f32.mrf.mxu0
    %3928 = vmatprep.mubr.f32.mxu0 0.0
    %3929 = vmatmul.mubr.f32.gmra.mxu0 %v3847
    %v3930 = vpop.f32.mrf.mxu0
    %v3931 = vadd.f32 %v3836, %v3930
    %v3932 = vpop.f32.mrf.mxu0
    %3933 = vdwg.mxu0
    %3936 = vrot.lane.b32.xlu0 %v3916, 96
    %v3937 = vpop.permute.xlu0 %3936
    %3938 = vrot.lane.b32.xlu0 %v3921, 96
    %v3939 = vpop.permute.xlu0 %3938
    %v3940 = vsel %vm1672, %v3916, 0
    %v3942 = vsel %vm1672, %v3921, 0
    %v3944 = vsel %vm1672, %v3937, 0
    %v3946 = vsel %vm1672, %v3939, 0
    %3948 = vmatprep.subr.mxu0 0.0
    %3949 = vmatpush1.xpose.msra.mxu0 0.0
    %3950 = vmatprep.subr.mxu0 0.0
    %3951 = vmatpush1.xpose.msra.mxu0 0.0
    %3952 = vmatprep.subr.mxu0 0.0
    %3953 = vmatpush1.xpose.msra.mxu0 0.0
    %3954 = vmatprep.subr.mxu0 0.0
    %3955 = vmatpush1.xpose.msra.mxu0 0.0
    %3956 = vmatprep.subr.mxu0 0.0
    %3957 = vmatpush1.xpose.msra.mxu0 0.0
    %3958 = vmatprep.subr.mxu0 0.0
    %3959 = vmatpush1.xpose.msra.mxu0 0.0
    %3960 = vmatprep.subr.mxu0 0.0
    %3961 = vmatpush1.xpose.msra.mxu0 0.0
    %3962 = vmatprep.subr.mxu0 0.0
    %3963 = vmatpush1.xpose.msra.mxu0 0.0
    %3964 = vmatprep.subr.mxu0 0.0
    %3965 = vmatpush1.xpose.msra.mxu0 0.0
    %3966 = vmatprep.subr.mxu0 0.0
    %3967 = vmatpush1.xpose.msra.mxu0 0.0
    %3968 = vmatprep.subr.mxu0 0.0
    %3969 = vmatpush1.xpose.msra.mxu0 0.0
    %3970 = vmatprep.subr.mxu0 0.0
    %3971 = vmatpush1.xpose.msra.mxu0 0.0
    %3972 = vmatprep.subr.mxu0 0.0
    %3973 = vmatpush1.xpose.msra.mxu0 0.0
    %3974 = vmatprep.subr.mxu0 0.0
    %3975 = vmatpush1.xpose.msra.mxu0 0.0
    %3976 = vmatprep.subr.mxu0 0.0
    %3977 = vmatpush1.xpose.msra.mxu0 %v3946
    %3978 = vmatprep.subr.mxu0 0.0
    %3979 = vmatpush1.xpose.msra.mxu0 %v3944
    %3980 = vmatprep.subr.mxu0 0.0
    %3981 = vmatpush2.xpose.msra.mxu0 0.0
    %3982 = vmatprep.subr.mxu0 0.0
    %3983 = vmatpush2.xpose.msra.mxu0 0.0
    %3984 = vmatprep.subr.mxu0 0.0
    %3985 = vmatpush2.xpose.msra.mxu0 0.0
    %3986 = vmatprep.subr.mxu0 0.0
    %3987 = vmatpush2.xpose.msra.mxu0 0.0
    %3988 = vmatprep.subr.mxu0 0.0
    %3989 = vmatpush2.xpose.msra.mxu0 0.0
    %3990 = vmatprep.subr.mxu0 0.0
    %3991 = vmatpush2.xpose.msra.mxu0 0.0
    %3992 = vmatprep.subr.mxu0 0.0
    %3993 = vmatpush2.xpose.msra.mxu0 0.0
    %3994 = vmatprep.subr.mxu0 0.0
    %3995 = vmatpush2.xpose.msra.mxu0 0.0
    %3996 = vmatprep.subr.mxu0 0.0
    %3997 = vmatpush2.xpose.msra.mxu0 0.0
    %3998 = vmatprep.subr.mxu0 0.0
    %3999 = vmatpush2.xpose.msra.mxu0 0.0
    %4000 = vmatprep.subr.mxu0 0.0
    %4001 = vmatpush2.xpose.msra.mxu0 0.0
    %4002 = vmatprep.subr.mxu0 0.0
    %4003 = vmatpush2.xpose.msra.mxu0 0.0
    %4004 = vmatprep.subr.mxu0 0.0
    %4005 = vmatpush2.xpose.msra.mxu0 0.0
    %4006 = vmatprep.subr.mxu0 0.0
    %4007 = vmatpush2.xpose.msra.mxu0 0.0
    %4008 = vmatprep.subr.mxu0 0.0
    %4009 = vmatpush2.xpose.msra.mxu0 0.0
    %4010 = vmatprep.subr.mxu0 0.0
    %4011 = vmatpush2.xpose.msra.mxu0 0.0
    %4012 = vmatprep.mubr.f32.mxu0 0.0
    %4013 = vmatmul.mubr.f32.gmra.mxu0 %v3940
    %v4014 = vpop.f32.mrf.mxu0
    %v4015 = vadd.f32 0.0, %v4014
    %v4016 = vpop.f32.mrf.mxu0
    %4017 = vmatprep.mubr.f32.mxu0 0.0
    %4018 = vmatmul.mubr.f32.gmra.mxu0 %v3942
    %v4019 = vpop.f32.mrf.mxu0
    %v4020 = vadd.f32 0.0, %v4019
    %v4021 = vpop.f32.mrf.mxu0
    %4022 = vdwg.mxu0
    %4025 = vrot.lane.b32.xlu0 %v3926, 96
    %v4026 = vpop.permute.xlu0 %4025
    %4027 = vrot.lane.b32.xlu0 %v3931, 96
    %v4028 = vpop.permute.xlu0 %4027
    %v4029 = vsel %vm1672, %v3926, 0
    %v4031 = vsel %vm1672, %v3931, 0
    %v4033 = vsel %vm1672, %v4026, 0
    %v4035 = vsel %vm1672, %v4028, 0
    %4037 = vmatprep.subr.mxu0 0.0
    %4038 = vmatpush1.xpose.msra.mxu0 0.0
    %4039 = vmatprep.subr.mxu0 0.0
    %4040 = vmatpush1.xpose.msra.mxu0 0.0
    %4041 = vmatprep.subr.mxu0 0.0
    %4042 = vmatpush1.xpose.msra.mxu0 0.0
    %4043 = vmatprep.subr.mxu0 0.0
    %4044 = vmatpush1.xpose.msra.mxu0 0.0
    %4045 = vmatprep.subr.mxu0 0.0
    %4046 = vmatpush1.xpose.msra.mxu0 0.0
    %4047 = vmatprep.subr.mxu0 0.0
    %4048 = vmatpush1.xpose.msra.mxu0 0.0
    %4049 = vmatprep.subr.mxu0 0.0
    %4050 = vmatpush1.xpose.msra.mxu0 0.0
    %4051 = vmatprep.subr.mxu0 0.0
    %4052 = vmatpush1.xpose.msra.mxu0 0.0
    %4053 = vmatprep.subr.mxu0 0.0
    %4054 = vmatpush1.xpose.msra.mxu0 0.0
    %4055 = vmatprep.subr.mxu0 0.0
    %4056 = vmatpush1.xpose.msra.mxu0 0.0
    %4057 = vmatprep.subr.mxu0 0.0
    %4058 = vmatpush1.xpose.msra.mxu0 0.0
    %4059 = vmatprep.subr.mxu0 0.0
    %4060 = vmatpush1.xpose.msra.mxu0 0.0
    %4061 = vmatprep.subr.mxu0 0.0
    %4062 = vmatpush1.xpose.msra.mxu0 0.0
    %4063 = vmatprep.subr.mxu0 0.0
    %4064 = vmatpush1.xpose.msra.mxu0 0.0
    %4065 = vmatprep.subr.mxu0 0.0
    %4066 = vmatpush1.xpose.msra.mxu0 %v4035
    %4067 = vmatprep.subr.mxu0 0.0
    %4068 = vmatpush1.xpose.msra.mxu0 %v4033
    %4069 = vmatprep.subr.mxu0 0.0
    %4070 = vmatpush2.xpose.msra.mxu0 0.0
    %4071 = vmatprep.subr.mxu0 0.0
    %4072 = vmatpush2.xpose.msra.mxu0 0.0
    %4073 = vmatprep.subr.mxu0 0.0
    %4074 = vmatpush2.xpose.msra.mxu0 0.0
    %4075 = vmatprep.subr.mxu0 0.0
    %4076 = vmatpush2.xpose.msra.mxu0 0.0
    %4077 = vmatprep.subr.mxu0 0.0
    %4078 = vmatpush2.xpose.msra.mxu0 0.0
    %4079 = vmatprep.subr.mxu0 0.0
    %4080 = vmatpush2.xpose.msra.mxu0 0.0
    %4081 = vmatprep.subr.mxu0 0.0
    %4082 = vmatpush2.xpose.msra.mxu0 0.0
    %4083 = vmatprep.subr.mxu0 0.0
    %4084 = vmatpush2.xpose.msra.mxu0 0.0
    %4085 = vmatprep.subr.mxu0 0.0
    %4086 = vmatpush2.xpose.msra.mxu0 0.0
    %4087 = vmatprep.subr.mxu0 0.0
    %4088 = vmatpush2.xpose.msra.mxu0 0.0
    %4089 = vmatprep.subr.mxu0 0.0
    %4090 = vmatpush2.xpose.msra.mxu0 0.0
    %4091 = vmatprep.subr.mxu0 0.0
    %4092 = vmatpush2.xpose.msra.mxu0 0.0
    %4093 = vmatprep.subr.mxu0 0.0
    %4094 = vmatpush2.xpose.msra.mxu0 0.0
    %4095 = vmatprep.subr.mxu0 0.0
    %4096 = vmatpush2.xpose.msra.mxu0 0.0
    %4097 = vmatprep.subr.mxu0 0.0
    %4098 = vmatpush2.xpose.msra.mxu0 0.0
    %4099 = vmatprep.subr.mxu0 0.0
    %4100 = vmatpush2.xpose.msra.mxu0 0.0
    %4101 = vmatprep.mubr.f32.mxu0 0.0
    %4102 = vmatmul.mubr.f32.gmra.mxu0 %v4029
    %v4103 = vpop.f32.mrf.mxu0
    %v4104 = vadd.f32 0.0, %v4103
    %v4105 = vpop.f32.mrf.mxu0
    %4106 = vmatprep.mubr.f32.mxu0 0.0
    %4107 = vmatmul.mubr.f32.gmra.mxu0 %v4031
    %v4108 = vpop.f32.mrf.mxu0
    %v4109 = vadd.f32 0.0, %v4108
    %v4110 = vpop.f32.mrf.mxu0
    %4111 = vdwg.mxu0
    %v4112 = vsel %vm1845, %v4015, -inf
    %4113 = vmax.xlane.f32.xlu0 %v4112
    %v4114 = vpop.xlane.xlu0 %4113
    %v4115 = vsel %vm1845, %v4020, -inf
    %4116 = vmax.xlane.f32.xlu0 %v4115
    %v4117 = vpop.xlane.xlu0 %4116
    %v4118 = vsel %vm1845, %v4104, -inf
    %4119 = vmax.xlane.f32.xlu0 %v4118
    %v4120 = vpop.xlane.xlu0 %4119
    %v4121 = vsel %vm1845, %v4109, -inf
    %4122 = vmax.xlane.f32.xlu0 %v4121
    %v4123 = vpop.xlane.xlu0 %4122
    %v4124 = vsub.f32 %v4015, %v4114
    %v4125 = vsub.f32 %v4020, %v4117
    %v4126 = vsub.f32 %v4104, %v4120
    %v4127 = vsub.f32 %v4109, %v4123
    %v4128 = vmul.f32 %v4124, 1.442695
    %v4129 = vpow.pop %v4128
    %v4130 = vmul.f32 %v4125, 1.442695
    %v4131 = vpow.pop %v4130
    %v4132 = vmul.f32 %v4126, 1.442695
    %v4133 = vpow.pop %v4132
    %v4134 = vmul.f32 %v4127, 1.442695
    %v4135 = vpow.pop %v4134
    %v4136 = vsel %vm1845, %v4129, 0.0
    %4137 = vadd.xlane.f32.xlu0 %v4136
    %v4138 = vpop.xlane.xlu0 %4137
    %v4139 = vsel %vm1845, %v4131, 0.0
    %4140 = vadd.xlane.f32.xlu0 %v4139
    %v4141 = vpop.xlane.xlu0 %4140
    %v4142 = vsel %vm1845, %v4133, 0.0
    %4143 = vadd.xlane.f32.xlu0 %v4142
    %v4144 = vpop.xlane.xlu0 %4143
    %v4145 = vsel %vm1845, %v4135, 0.0
    %4146 = vadd.xlane.f32.xlu0 %v4145
    %v4147 = vpop.xlane.xlu0 %4146
    %v4148 = vrcp.pop %v4138
    %v4149 = vrcp.pop %v4141
    %v4150 = vrcp.pop %v4144
    %v4151 = vrcp.pop %v4147
    %v4152 = vmul.f32 %v4129, %v4148
    %v4153 = vmul.f32 %v4131, %v4149
    %v4154 = vmul.f32 %v4133, %v4150
    %v4155 = vmul.f32 %v4135, %v4151
    %4156 = vrot.lane.b32.xlu0 %v3916, 64
    %v4157 = vpop.permute.xlu0 %4156
    %4158 = vrot.lane.b32.xlu0 %v3921, 64
    %v4159 = vpop.permute.xlu0 %4158
    %v4163 = vsel %vm1845, %v4152, 0
    %v4166 = vsel %vm1845, %v4153, 0
    %4168 = vmatprep.subr.mxu0 0.0
    %4169 = vmatpush1.msra.mxu0 0.0
    %4170 = vmatprep.subr.mxu0 0.0
    %4171 = vmatpush1.msra.mxu0 0.0
    %4172 = vmatprep.subr.mxu0 0.0
    %4173 = vmatpush1.msra.mxu0 0.0
    %4174 = vmatprep.subr.mxu0 0.0
    %4175 = vmatpush1.msra.mxu0 0.0
    %4176 = vmatprep.subr.mxu0 0.0
    %4177 = vmatpush1.msra.mxu0 0.0
    %4178 = vmatprep.subr.mxu0 0.0
    %4179 = vmatpush1.msra.mxu0 0.0
    %4180 = vmatprep.subr.mxu0 0.0
    %4181 = vmatpush1.msra.mxu0 0.0
    %4182 = vmatprep.subr.mxu0 0.0
    %4183 = vmatpush1.msra.mxu0 0.0
    %4184 = vmatprep.subr.mxu0 0.0
    %4185 = vmatpush1.msra.mxu0 0.0
    %4186 = vmatprep.subr.mxu0 0.0
    %4187 = vmatpush1.msra.mxu0 0.0
    %4188 = vmatprep.subr.mxu0 0.0
    %4189 = vmatpush1.msra.mxu0 0.0
    %4190 = vmatprep.subr.mxu0 0.0
    %4191 = vmatpush1.msra.mxu0 0.0
    %4192 = vmatprep.subr.mxu0 0.0
    %4193 = vmatpush1.msra.mxu0 0.0
    %4194 = vmatprep.subr.mxu0 0.0
    %4195 = vmatpush1.msra.mxu0 0.0
    %4196 = vmatprep.subr.mxu0 0.0
    %4197 = vmatpush1.msra.mxu0 %v4159
    %4198 = vmatprep.subr.mxu0 0.0
    %4199 = vmatpush1.msra.mxu0 %v4157
    %4200 = vmatprep.subr.mxu0 0.0
    %4201 = vmatpush2.msra.mxu0 0.0
    %4202 = vmatprep.subr.mxu0 0.0
    %4203 = vmatpush2.msra.mxu0 0.0
    %4204 = vmatprep.subr.mxu0 0.0
    %4205 = vmatpush2.msra.mxu0 0.0
    %4206 = vmatprep.subr.mxu0 0.0
    %4207 = vmatpush2.msra.mxu0 0.0
    %4208 = vmatprep.subr.mxu0 0.0
    %4209 = vmatpush2.msra.mxu0 0.0
    %4210 = vmatprep.subr.mxu0 0.0
    %4211 = vmatpush2.msra.mxu0 0.0
    %4212 = vmatprep.subr.mxu0 0.0
    %4213 = vmatpush2.msra.mxu0 0.0
    %4214 = vmatprep.subr.mxu0 0.0
    %4215 = vmatpush2.msra.mxu0 0.0
    %4216 = vmatprep.subr.mxu0 0.0
    %4217 = vmatpush2.msra.mxu0 0.0
    %4218 = vmatprep.subr.mxu0 0.0
    %4219 = vmatpush2.msra.mxu0 0.0
    %4220 = vmatprep.subr.mxu0 0.0
    %4221 = vmatpush2.msra.mxu0 0.0
    %4222 = vmatprep.subr.mxu0 0.0
    %4223 = vmatpush2.msra.mxu0 0.0
    %4224 = vmatprep.subr.mxu0 0.0
    %4225 = vmatpush2.msra.mxu0 0.0
    %4226 = vmatprep.subr.mxu0 0.0
    %4227 = vmatpush2.msra.mxu0 0.0
    %4228 = vmatprep.subr.mxu0 0.0
    %4229 = vmatpush2.msra.mxu0 0.0
    %4230 = vmatprep.subr.mxu0 0.0
    %4231 = vmatpush2.msra.mxu0 0.0
    %4232 = vmatprep.mubr.f32.mxu0 0.0
    %4233 = vmatmul.mubr.f32.gmra.mxu0 %v4163
    %v4234 = vpop.f32.mrf.mxu0
    %v4235 = vadd.f32 0.0, %v4234
    %v4236 = vpop.f32.mrf.mxu0
    %4237 = vmatprep.mubr.f32.mxu0 0.0
    %4238 = vmatmul.mubr.f32.gmra.mxu0 %v4166
    %v4239 = vpop.f32.mrf.mxu0
    %v4240 = vadd.f32 0.0, %v4239
    %v4241 = vpop.f32.mrf.mxu0
    %4242 = vdwg.mxu0
    %4243 = vrot.lane.b32.xlu0 %v3926, 64
    %v4244 = vpop.permute.xlu0 %4243
    %4245 = vrot.lane.b32.xlu0 %v3931, 64
    %v4246 = vpop.permute.xlu0 %4245
    %v4250 = vsel %vm1845, %v4154, 0
    %v4253 = vsel %vm1845, %v4155, 0
    %4255 = vmatprep.subr.mxu0 0.0
    %4256 = vmatpush1.msra.mxu0 0.0
    %4257 = vmatprep.subr.mxu0 0.0
    %4258 = vmatpush1.msra.mxu0 0.0
    %4259 = vmatprep.subr.mxu0 0.0
    %4260 = vmatpush1.msra.mxu0 0.0
    %4261 = vmatprep.subr.mxu0 0.0
    %4262 = vmatpush1.msra.mxu0 0.0
    %4263 = vmatprep.subr.mxu0 0.0
    %4264 = vmatpush1.msra.mxu0 0.0
    %4265 = vmatprep.subr.mxu0 0.0
    %4266 = vmatpush1.msra.mxu0 0.0
    %4267 = vmatprep.subr.mxu0 0.0
    %4268 = vmatpush1.msra.mxu0 0.0
    %4269 = vmatprep.subr.mxu0 0.0
    %4270 = vmatpush1.msra.mxu0 0.0
    %4271 = vmatprep.subr.mxu0 0.0
    %4272 = vmatpush1.msra.mxu0 0.0
    %4273 = vmatprep.subr.mxu0 0.0
    %4274 = vmatpush1.msra.mxu0 0.0
    %4275 = vmatprep.subr.mxu0 0.0
    %4276 = vmatpush1.msra.mxu0 0.0
    %4277 = vmatprep.subr.mxu0 0.0
    %4278 = vmatpush1.msra.mxu0 0.0
    %4279 = vmatprep.subr.mxu0 0.0
    %4280 = vmatpush1.msra.mxu0 0.0
    %4281 = vmatprep.subr.mxu0 0.0
    %4282 = vmatpush1.msra.mxu0 0.0
    %4283 = vmatprep.subr.mxu0 0.0
    %4284 = vmatpush1.msra.mxu0 %v4246
    %4285 = vmatprep.subr.mxu0 0.0
    %4286 = vmatpush1.msra.mxu0 %v4244
    %4287 = vmatprep.subr.mxu0 0.0
    %4288 = vmatpush2.msra.mxu0 0.0
    %4289 = vmatprep.subr.mxu0 0.0
    %4290 = vmatpush2.msra.mxu0 0.0
    %4291 = vmatprep.subr.mxu0 0.0
    %4292 = vmatpush2.msra.mxu0 0.0
    %4293 = vmatprep.subr.mxu0 0.0
    %4294 = vmatpush2.msra.mxu0 0.0
    %4295 = vmatprep.subr.mxu0 0.0
    %4296 = vmatpush2.msra.mxu0 0.0
    %4297 = vmatprep.subr.mxu0 0.0
    %4298 = vmatpush2.msra.mxu0 0.0
    %4299 = vmatprep.subr.mxu0 0.0
    %4300 = vmatpush2.msra.mxu0 0.0
    %4301 = vmatprep.subr.mxu0 0.0
    %4302 = vmatpush2.msra.mxu0 0.0
    %4303 = vmatprep.subr.mxu0 0.0
    %4304 = vmatpush2.msra.mxu0 0.0
    %4305 = vmatprep.subr.mxu0 0.0
    %4306 = vmatpush2.msra.mxu0 0.0
    %4307 = vmatprep.subr.mxu0 0.0
    %4308 = vmatpush2.msra.mxu0 0.0
    %4309 = vmatprep.subr.mxu0 0.0
    %4310 = vmatpush2.msra.mxu0 0.0
    %4311 = vmatprep.subr.mxu0 0.0
    %4312 = vmatpush2.msra.mxu0 0.0
    %4313 = vmatprep.subr.mxu0 0.0
    %4314 = vmatpush2.msra.mxu0 0.0
    %4315 = vmatprep.subr.mxu0 0.0
    %4316 = vmatpush2.msra.mxu0 0.0
    %4317 = vmatprep.subr.mxu0 0.0
    %4318 = vmatpush2.msra.mxu0 0.0
    %4319 = vmatprep.mubr.f32.mxu0 0.0
    %4320 = vmatmul.mubr.f32.gmra.mxu0 %v4250
    %v4321 = vpop.f32.mrf.mxu0
    %v4322 = vadd.f32 0.0, %v4321
    %v4323 = vpop.f32.mrf.mxu0
    %4324 = vmatprep.mubr.f32.mxu0 0.0
    %4325 = vmatmul.mubr.f32.gmra.mxu0 %v4253
    %v4326 = vpop.f32.mrf.mxu0
    %v4327 = vadd.f32 0.0, %v4326
    %v4328 = vpop.f32.mrf.mxu0
    %4329 = vdwg.mxu0
    %4330 = vst.msk [vmem:[#allocation4] sm:$0xff] %vm1672, %v4235
    %4331 = vst.msk [vmem:[#allocation4 + $0x8] sm:$0xff] %vm1672, %v4240
    %4332 = vst.msk [vmem:[#allocation4 + $0x10] sm:$0xff] %vm1672, %v4322
    %4333 = vst.msk [vmem:[#allocation4 + $0x18] sm:$0xff] %vm1672, %v4327
    %4334 = vrot.lane.b32.xlu0 %v3916, 120
    %v4335 = vpop.permute.xlu0 %4334
    %4336 = vrot.lane.b32.xlu0 %v3921, 120
    %v4337 = vpop.permute.xlu0 %4336
    %4338 = vrot.lane.b32.xlu0 %v3916, 88
    %v4339 = vpop.permute.xlu0 %4338
    %4340 = vrot.lane.b32.xlu0 %v3921, 88
    %v4341 = vpop.permute.xlu0 %4340
    %v4342 = vsel %vm1672, %v4335, 0
    %v4344 = vsel %vm1672, %v4337, 0
    %v4346 = vsel %vm1672, %v4339, 0
    %v4348 = vsel %vm1672, %v4341, 0
    %4350 = vmatprep.subr.mxu0 0.0
    %4351 = vmatpush1.xpose.msra.mxu0 0.0
    %4352 = vmatprep.subr.mxu0 0.0
    %4353 = vmatpush1.xpose.msra.mxu0 0.0
    %4354 = vmatprep.subr.mxu0 0.0
    %4355 = vmatpush1.xpose.msra.mxu0 0.0
    %4356 = vmatprep.subr.mxu0 0.0
    %4357 = vmatpush1.xpose.msra.mxu0 0.0
    %4358 = vmatprep.subr.mxu0 0.0
    %4359 = vmatpush1.xpose.msra.mxu0 0.0
    %4360 = vmatprep.subr.mxu0 0.0
    %4361 = vmatpush1.xpose.msra.mxu0 0.0
    %4362 = vmatprep.subr.mxu0 0.0
    %4363 = vmatpush1.xpose.msra.mxu0 0.0
    %4364 = vmatprep.subr.mxu0 0.0
    %4365 = vmatpush1.xpose.msra.mxu0 0.0
    %4366 = vmatprep.subr.mxu0 0.0
    %4367 = vmatpush1.xpose.msra.mxu0 0.0
    %4368 = vmatprep.subr.mxu0 0.0
    %4369 = vmatpush1.xpose.msra.mxu0 0.0
    %4370 = vmatprep.subr.mxu0 0.0
    %4371 = vmatpush1.xpose.msra.mxu0 0.0
    %4372 = vmatprep.subr.mxu0 0.0
    %4373 = vmatpush1.xpose.msra.mxu0 0.0
    %4374 = vmatprep.subr.mxu0 0.0
    %4375 = vmatpush1.xpose.msra.mxu0 0.0
    %4376 = vmatprep.subr.mxu0 0.0
    %4377 = vmatpush1.xpose.msra.mxu0 0.0
    %4378 = vmatprep.subr.mxu0 0.0
    %4379 = vmatpush1.xpose.msra.mxu0 %v4348
    %4380 = vmatprep.subr.mxu0 0.0
    %4381 = vmatpush1.xpose.msra.mxu0 %v4346
    %4382 = vmatprep.subr.mxu0 0.0
    %4383 = vmatpush2.xpose.msra.mxu0 0.0
    %4384 = vmatprep.subr.mxu0 0.0
    %4385 = vmatpush2.xpose.msra.mxu0 0.0
    %4386 = vmatprep.subr.mxu0 0.0
    %4387 = vmatpush2.xpose.msra.mxu0 0.0
    %4388 = vmatprep.subr.mxu0 0.0
    %4389 = vmatpush2.xpose.msra.mxu0 0.0
    %4390 = vmatprep.subr.mxu0 0.0
    %4391 = vmatpush2.xpose.msra.mxu0 0.0
    %4392 = vmatprep.subr.mxu0 0.0
    %4393 = vmatpush2.xpose.msra.mxu0 0.0
    %4394 = vmatprep.subr.mxu0 0.0
    %4395 = vmatpush2.xpose.msra.mxu0 0.0
    %4396 = vmatprep.subr.mxu0 0.0
    %4397 = vmatpush2.xpose.msra.mxu0 0.0
    %4398 = vmatprep.subr.mxu0 0.0
    %4399 = vmatpush2.xpose.msra.mxu0 0.0
    %4400 = vmatprep.subr.mxu0 0.0
    %4401 = vmatpush2.xpose.msra.mxu0 0.0
    %4402 = vmatprep.subr.mxu0 0.0
    %4403 = vmatpush2.xpose.msra.mxu0 0.0
    %4404 = vmatprep.subr.mxu0 0.0
    %4405 = vmatpush2.xpose.msra.mxu0 0.0
    %4406 = vmatprep.subr.mxu0 0.0
    %4407 = vmatpush2.xpose.msra.mxu0 0.0
    %4408 = vmatprep.subr.mxu0 0.0
    %4409 = vmatpush2.xpose.msra.mxu0 0.0
    %4410 = vmatprep.subr.mxu0 0.0
    %4411 = vmatpush2.xpose.msra.mxu0 0.0
    %4412 = vmatprep.subr.mxu0 0.0
    %4413 = vmatpush2.xpose.msra.mxu0 0.0
    %4414 = vmatprep.mubr.f32.mxu0 0.0
    %4415 = vmatmul.mubr.f32.gmra.mxu0 %v4342
    %v4416 = vpop.f32.mrf.mxu0
    %v4417 = vadd.f32 0.0, %v4416
    %v4418 = vpop.f32.mrf.mxu0
    %4419 = vmatprep.mubr.f32.mxu0 0.0
    %4420 = vmatmul.mubr.f32.gmra.mxu0 %v4344
    %v4421 = vpop.f32.mrf.mxu0
    %v4422 = vadd.f32 0.0, %v4421
    %v4423 = vpop.f32.mrf.mxu0
    %4424 = vdwg.mxu0
    %4425 = vrot.lane.b32.xlu0 %v3926, 120
    %v4426 = vpop.permute.xlu0 %4425
    %4427 = vrot.lane.b32.xlu0 %v3931, 120
    %v4428 = vpop.permute.xlu0 %4427
    %4429 = vrot.lane.b32.xlu0 %v3926, 88
    %v4430 = vpop.permute.xlu0 %4429
    %4431 = vrot.lane.b32.xlu0 %v3931, 88
    %v4432 = vpop.permute.xlu0 %4431
    %v4433 = vsel %vm1672, %v4426, 0
    %v4435 = vsel %vm1672, %v4428, 0
    %v4437 = vsel %vm1672, %v4430, 0
    %v4439 = vsel %vm1672, %v4432, 0
    %4441 = vmatprep.subr.mxu0 0.0
    %4442 = vmatpush1.xpose.msra.mxu0 0.0
    %4443 = vmatprep.subr.mxu0 0.0
    %4444 = vmatpush1.xpose.msra.mxu0 0.0
    %4445 = vmatprep.subr.mxu0 0.0
    %4446 = vmatpush1.xpose.msra.mxu0 0.0
    %4447 = vmatprep.subr.mxu0 0.0
    %4448 = vmatpush1.xpose.msra.mxu0 0.0
    %4449 = vmatprep.subr.mxu0 0.0
    %4450 = vmatpush1.xpose.msra.mxu0 0.0
    %4451 = vmatprep.subr.mxu0 0.0
    %4452 = vmatpush1.xpose.msra.mxu0 0.0
    %4453 = vmatprep.subr.mxu0 0.0
    %4454 = vmatpush1.xpose.msra.mxu0 0.0
    %4455 = vmatprep.subr.mxu0 0.0
    %4456 = vmatpush1.xpose.msra.mxu0 0.0
    %4457 = vmatprep.subr.mxu0 0.0
    %4458 = vmatpush1.xpose.msra.mxu0 0.0
    %4459 = vmatprep.subr.mxu0 0.0
    %4460 = vmatpush1.xpose.msra.mxu0 0.0
    %4461 = vmatprep.subr.mxu0 0.0
    %4462 = vmatpush1.xpose.msra.mxu0 0.0
    %4463 = vmatprep.subr.mxu0 0.0
    %4464 = vmatpush1.xpose.msra.mxu0 0.0
    %4465 = vmatprep.subr.mxu0 0.0
    %4466 = vmatpush1.xpose.msra.mxu0 0.0
    %4467 = vmatprep.subr.mxu0 0.0
    %4468 = vmatpush1.xpose.msra.mxu0 0.0
    %4469 = vmatprep.subr.mxu0 0.0
    %4470 = vmatpush1.xpose.msra.mxu0 %v4439
    %4471 = vmatprep.subr.mxu0 0.0
    %4472 = vmatpush1.xpose.msra.mxu0 %v4437
    %4473 = vmatprep.subr.mxu0 0.0
    %4474 = vmatpush2.xpose.msra.mxu0 0.0
    %4475 = vmatprep.subr.mxu0 0.0
    %4476 = vmatpush2.xpose.msra.mxu0 0.0
    %4477 = vmatprep.subr.mxu0 0.0
    %4478 = vmatpush2.xpose.msra.mxu0 0.0
    %4479 = vmatprep.subr.mxu0 0.0
    %4480 = vmatpush2.xpose.msra.mxu0 0.0
    %4481 = vmatprep.subr.mxu0 0.0
    %4482 = vmatpush2.xpose.msra.mxu0 0.0
    %4483 = vmatprep.subr.mxu0 0.0
    %4484 = vmatpush2.xpose.msra.mxu0 0.0
    %4485 = vmatprep.subr.mxu0 0.0
    %4486 = vmatpush2.xpose.msra.mxu0 0.0
    %4487 = vmatprep.subr.mxu0 0.0
    %4488 = vmatpush2.xpose.msra.mxu0 0.0
    %4489 = vmatprep.subr.mxu0 0.0
    %4490 = vmatpush2.xpose.msra.mxu0 0.0
    %4491 = vmatprep.subr.mxu0 0.0
    %4492 = vmatpush2.xpose.msra.mxu0 0.0
    %4493 = vmatprep.subr.mxu0 0.0
    %4494 = vmatpush2.xpose.msra.mxu0 0.0
    %4495 = vmatprep.subr.mxu0 0.0
    %4496 = vmatpush2.xpose.msra.mxu0 0.0
    %4497 = vmatprep.subr.mxu0 0.0
    %4498 = vmatpush2.xpose.msra.mxu0 0.0
    %4499 = vmatprep.subr.mxu0 0.0
    %4500 = vmatpush2.xpose.msra.mxu0 0.0
    %4501 = vmatprep.subr.mxu0 0.0
    %4502 = vmatpush2.xpose.msra.mxu0 0.0
    %4503 = vmatprep.subr.mxu0 0.0
    %4504 = vmatpush2.xpose.msra.mxu0 0.0
    %4505 = vmatprep.mubr.f32.mxu0 0.0
    %4506 = vmatmul.mubr.f32.gmra.mxu0 %v4433
    %v4507 = vpop.f32.mrf.mxu0
    %v4508 = vadd.f32 0.0, %v4507
    %v4509 = vpop.f32.mrf.mxu0
    %4510 = vmatprep.mubr.f32.mxu0 0.0
    %4511 = vmatmul.mubr.f32.gmra.mxu0 %v4435
    %v4512 = vpop.f32.mrf.mxu0
    %v4513 = vadd.f32 0.0, %v4512
    %v4514 = vpop.f32.mrf.mxu0
    %4515 = vdwg.mxu0
    %v4516 = vsel %vm1845, %v4417, -inf
    %4517 = vmax.xlane.f32.xlu0 %v4516
    %v4518 = vpop.xlane.xlu0 %4517
    %v4519 = vsel %vm1845, %v4422, -inf
    %4520 = vmax.xlane.f32.xlu0 %v4519
    %v4521 = vpop.xlane.xlu0 %4520
    %v4522 = vsel %vm1845, %v4508, -inf
    %4523 = vmax.xlane.f32.xlu0 %v4522
    %v4524 = vpop.xlane.xlu0 %4523
    %v4525 = vsel %vm1845, %v4513, -inf
    %4526 = vmax.xlane.f32.xlu0 %v4525
    %v4527 = vpop.xlane.xlu0 %4526
    %v4528 = vsub.f32 %v4417, %v4518
    %v4529 = vsub.f32 %v4422, %v4521
    %v4530 = vsub.f32 %v4508, %v4524
    %v4531 = vsub.f32 %v4513, %v4527
    %v4532 = vmul.f32 %v4528, 1.442695
    %v4533 = vpow.pop %v4532
    %v4534 = vmul.f32 %v4529, 1.442695
    %v4535 = vpow.pop %v4534
    %v4536 = vmul.f32 %v4530, 1.442695
    %v4537 = vpow.pop %v4536
    %v4538 = vmul.f32 %v4531, 1.442695
    %v4539 = vpow.pop %v4538
    %v4540 = vsel %vm1845, %v4533, 0.0
    %4541 = vadd.xlane.f32.xlu0 %v4540
    %v4542 = vpop.xlane.xlu0 %4541
    %v4543 = vsel %vm1845, %v4535, 0.0
    %4544 = vadd.xlane.f32.xlu0 %v4543
    %v4545 = vpop.xlane.xlu0 %4544
    %v4546 = vsel %vm1845, %v4537, 0.0
    %4547 = vadd.xlane.f32.xlu0 %v4546
    %v4548 = vpop.xlane.xlu0 %4547
    %v4549 = vsel %vm1845, %v4539, 0.0
    %4550 = vadd.xlane.f32.xlu0 %v4549
    %v4551 = vpop.xlane.xlu0 %4550
    %v4552 = vrcp.pop %v4542
    %v4553 = vrcp.pop %v4545
    %v4554 = vrcp.pop %v4548
    %v4555 = vrcp.pop %v4551
    %v4556 = vmul.f32 %v4533, %v4552
    %v4557 = vmul.f32 %v4535, %v4553
    %v4558 = vmul.f32 %v4537, %v4554
    %v4559 = vmul.f32 %v4539, %v4555
    %4560 = vrot.lane.b32.xlu0 %v3916, 56
    %v4561 = vpop.permute.xlu0 %4560
    %4562 = vrot.lane.b32.xlu0 %v3921, 56
    %v4563 = vpop.permute.xlu0 %4562
    %v4567 = vsel %vm1845, %v4556, 0
    %v4570 = vsel %vm1845, %v4557, 0
    %4572 = vmatprep.subr.mxu0 0.0
    %4573 = vmatpush1.msra.mxu0 0.0
    %4574 = vmatprep.subr.mxu0 0.0
    %4575 = vmatpush1.msra.mxu0 0.0
    %4576 = vmatprep.subr.mxu0 0.0
    %4577 = vmatpush1.msra.mxu0 0.0
    %4578 = vmatprep.subr.mxu0 0.0
    %4579 = vmatpush1.msra.mxu0 0.0
    %4580 = vmatprep.subr.mxu0 0.0
    %4581 = vmatpush1.msra.mxu0 0.0
    %4582 = vmatprep.subr.mxu0 0.0
    %4583 = vmatpush1.msra.mxu0 0.0
    %4584 = vmatprep.subr.mxu0 0.0
    %4585 = vmatpush1.msra.mxu0 0.0
    %4586 = vmatprep.subr.mxu0 0.0
    %4587 = vmatpush1.msra.mxu0 0.0
    %4588 = vmatprep.subr.mxu0 0.0
    %4589 = vmatpush1.msra.mxu0 0.0
    %4590 = vmatprep.subr.mxu0 0.0
    %4591 = vmatpush1.msra.mxu0 0.0
    %4592 = vmatprep.subr.mxu0 0.0
    %4593 = vmatpush1.msra.mxu0 0.0
    %4594 = vmatprep.subr.mxu0 0.0
    %4595 = vmatpush1.msra.mxu0 0.0
    %4596 = vmatprep.subr.mxu0 0.0
    %4597 = vmatpush1.msra.mxu0 0.0
    %4598 = vmatprep.subr.mxu0 0.0
    %4599 = vmatpush1.msra.mxu0 0.0
    %4600 = vmatprep.subr.mxu0 0.0
    %4601 = vmatpush1.msra.mxu0 %v4563
    %4602 = vmatprep.subr.mxu0 0.0
    %4603 = vmatpush1.msra.mxu0 %v4561
    %4604 = vmatprep.subr.mxu0 0.0
    %4605 = vmatpush2.msra.mxu0 0.0
    %4606 = vmatprep.subr.mxu0 0.0
    %4607 = vmatpush2.msra.mxu0 0.0
    %4608 = vmatprep.subr.mxu0 0.0
    %4609 = vmatpush2.msra.mxu0 0.0
    %4610 = vmatprep.subr.mxu0 0.0
    %4611 = vmatpush2.msra.mxu0 0.0
    %4612 = vmatprep.subr.mxu0 0.0
    %4613 = vmatpush2.msra.mxu0 0.0
    %4614 = vmatprep.subr.mxu0 0.0
    %4615 = vmatpush2.msra.mxu0 0.0
    %4616 = vmatprep.subr.mxu0 0.0
    %4617 = vmatpush2.msra.mxu0 0.0
    %4618 = vmatprep.subr.mxu0 0.0
    %4619 = vmatpush2.msra.mxu0 0.0
    %4620 = vmatprep.subr.mxu0 0.0
    %4621 = vmatpush2.msra.mxu0 0.0
    %4622 = vmatprep.subr.mxu0 0.0
    %4623 = vmatpush2.msra.mxu0 0.0
    %4624 = vmatprep.subr.mxu0 0.0
    %4625 = vmatpush2.msra.mxu0 0.0
    %4626 = vmatprep.subr.mxu0 0.0
    %4627 = vmatpush2.msra.mxu0 0.0
    %4628 = vmatprep.subr.mxu0 0.0
    %4629 = vmatpush2.msra.mxu0 0.0
    %4630 = vmatprep.subr.mxu0 0.0
    %4631 = vmatpush2.msra.mxu0 0.0
    %4632 = vmatprep.subr.mxu0 0.0
    %4633 = vmatpush2.msra.mxu0 0.0
    %4634 = vmatprep.subr.mxu0 0.0
    %4635 = vmatpush2.msra.mxu0 0.0
    %4636 = vmatprep.mubr.f32.mxu0 0.0
    %4637 = vmatmul.mubr.f32.gmra.mxu0 %v4567
    %v4638 = vpop.f32.mrf.mxu0
    %v4639 = vadd.f32 0.0, %v4638
    %v4640 = vpop.f32.mrf.mxu0
    %4641 = vmatprep.mubr.f32.mxu0 0.0
    %4642 = vmatmul.mubr.f32.gmra.mxu0 %v4570
    %v4643 = vpop.f32.mrf.mxu0
    %v4644 = vadd.f32 0.0, %v4643
    %v4645 = vpop.f32.mrf.mxu0
    %4646 = vdwg.mxu0
    %4647 = vrot.lane.b32.xlu0 %v3926, 56
    %v4648 = vpop.permute.xlu0 %4647
    %4649 = vrot.lane.b32.xlu0 %v3931, 56
    %v4650 = vpop.permute.xlu0 %4649
    %v4654 = vsel %vm1845, %v4558, 0
    %v4657 = vsel %vm1845, %v4559, 0
    %4659 = vmatprep.subr.mxu0 0.0
    %4660 = vmatpush1.msra.mxu0 0.0
    %4661 = vmatprep.subr.mxu0 0.0
    %4662 = vmatpush1.msra.mxu0 0.0
    %4663 = vmatprep.subr.mxu0 0.0
    %4664 = vmatpush1.msra.mxu0 0.0
    %4665 = vmatprep.subr.mxu0 0.0
    %4666 = vmatpush1.msra.mxu0 0.0
    %4667 = vmatprep.subr.mxu0 0.0
    %4668 = vmatpush1.msra.mxu0 0.0
    %4669 = vmatprep.subr.mxu0 0.0
    %4670 = vmatpush1.msra.mxu0 0.0
    %4671 = vmatprep.subr.mxu0 0.0
    %4672 = vmatpush1.msra.mxu0 0.0
    %4673 = vmatprep.subr.mxu0 0.0
    %4674 = vmatpush1.msra.mxu0 0.0
    %4675 = vmatprep.subr.mxu0 0.0
    %4676 = vmatpush1.msra.mxu0 0.0
    %4677 = vmatprep.subr.mxu0 0.0
    %4678 = vmatpush1.msra.mxu0 0.0
    %4679 = vmatprep.subr.mxu0 0.0
    %4680 = vmatpush1.msra.mxu0 0.0
    %4681 = vmatprep.subr.mxu0 0.0
    %4682 = vmatpush1.msra.mxu0 0.0
    %4683 = vmatprep.subr.mxu0 0.0
    %4684 = vmatpush1.msra.mxu0 0.0
    %4685 = vmatprep.subr.mxu0 0.0
    %4686 = vmatpush1.msra.mxu0 0.0
    %4687 = vmatprep.subr.mxu0 0.0
    %4688 = vmatpush1.msra.mxu0 %v4650
    %4689 = vmatprep.subr.mxu0 0.0
    %4690 = vmatpush1.msra.mxu0 %v4648
    %4691 = vmatprep.subr.mxu0 0.0
    %4692 = vmatpush2.msra.mxu0 0.0
    %4693 = vmatprep.subr.mxu0 0.0
    %4694 = vmatpush2.msra.mxu0 0.0
    %4695 = vmatprep.subr.mxu0 0.0
    %4696 = vmatpush2.msra.mxu0 0.0
    %4697 = vmatprep.subr.mxu0 0.0
    %4698 = vmatpush2.msra.mxu0 0.0
    %4699 = vmatprep.subr.mxu0 0.0
    %4700 = vmatpush2.msra.mxu0 0.0
    %4701 = vmatprep.subr.mxu0 0.0
    %4702 = vmatpush2.msra.mxu0 0.0
    %4703 = vmatprep.subr.mxu0 0.0
    %4704 = vmatpush2.msra.mxu0 0.0
    %4705 = vmatprep.subr.mxu0 0.0
    %4706 = vmatpush2.msra.mxu0 0.0
    %4707 = vmatprep.subr.mxu0 0.0
    %4708 = vmatpush2.msra.mxu0 0.0
    %4709 = vmatprep.subr.mxu0 0.0
    %4710 = vmatpush2.msra.mxu0 0.0
    %4711 = vmatprep.subr.mxu0 0.0
    %4712 = vmatpush2.msra.mxu0 0.0
    %4713 = vmatprep.subr.mxu0 0.0
    %4714 = vmatpush2.msra.mxu0 0.0
    %4715 = vmatprep.subr.mxu0 0.0
    %4716 = vmatpush2.msra.mxu0 0.0
    %4717 = vmatprep.subr.mxu0 0.0
    %4718 = vmatpush2.msra.mxu0 0.0
    %4719 = vmatprep.subr.mxu0 0.0
    %4720 = vmatpush2.msra.mxu0 0.0
    %4721 = vmatprep.subr.mxu0 0.0
    %4722 = vmatpush2.msra.mxu0 0.0
    %4723 = vmatprep.mubr.f32.mxu0 0.0
    %4724 = vmatmul.mubr.f32.gmra.mxu0 %v4654
    %v4725 = vpop.f32.mrf.mxu0
    %v4726 = vadd.f32 0.0, %v4725
    %v4727 = vpop.f32.mrf.mxu0
    %4728 = vmatprep.mubr.f32.mxu0 0.0
    %4729 = vmatmul.mubr.f32.gmra.mxu0 %v4657
    %v4730 = vpop.f32.mrf.mxu0
    %v4731 = vadd.f32 0.0, %v4730
    %v4732 = vpop.f32.mrf.mxu0
    %4733 = vdwg.mxu0
    %4738 = vrot.lane.b32.xlu0 %v4639, 8
    %v4739 = vpop.permute.xlu0 %4738
    %4740 = vrot.lane.b32.xlu0 %v4644, 8
    %v4741 = vpop.permute.xlu0 %4740
    %4742 = vrot.lane.b32.xlu0 %v4726, 8
    %v4743 = vpop.permute.xlu0 %4742
    %4744 = vrot.lane.b32.xlu0 %v4731, 8
    %v4745 = vpop.permute.xlu0 %4744
    %4750 = vst.msk [vmem:[#allocation4] sm:$0xff] %vm2484, %v4739
    %4751 = vst.msk [vmem:[#allocation4 + $0x8] sm:$0xff] %vm2484, %v4741
    %4752 = vst.msk [vmem:[#allocation4 + $0x10] sm:$0xff] %vm2484, %v4743
    %4753 = vst.msk [vmem:[#allocation4 + $0x18] sm:$0xff] %vm2484, %v4745
    %4754 = vrot.lane.b32.xlu0 %v3916, 112
    %v4755 = vpop.permute.xlu0 %4754
    %4756 = vrot.lane.b32.xlu0 %v3921, 112
    %v4757 = vpop.permute.xlu0 %4756
    %4758 = vrot.lane.b32.xlu0 %v3916, 80
    %v4759 = vpop.permute.xlu0 %4758
    %4760 = vrot.lane.b32.xlu0 %v3921, 80
    %v4761 = vpop.permute.xlu0 %4760
    %v4762 = vsel %vm1672, %v4755, 0
    %v4764 = vsel %vm1672, %v4757, 0
    %v4766 = vsel %vm1672, %v4759, 0
    %v4768 = vsel %vm1672, %v4761, 0
    %4770 = vmatprep.subr.mxu0 0.0
    %4771 = vmatpush1.xpose.msra.mxu0 0.0
    %4772 = vmatprep.subr.mxu0 0.0
    %4773 = vmatpush1.xpose.msra.mxu0 0.0
    %4774 = vmatprep.subr.mxu0 0.0
    %4775 = vmatpush1.xpose.msra.mxu0 0.0
    %4776 = vmatprep.subr.mxu0 0.0
    %4777 = vmatpush1.xpose.msra.mxu0 0.0
    %4778 = vmatprep.subr.mxu0 0.0
    %4779 = vmatpush1.xpose.msra.mxu0 0.0
    %4780 = vmatprep.subr.mxu0 0.0
    %4781 = vmatpush1.xpose.msra.mxu0 0.0
    %4782 = vmatprep.subr.mxu0 0.0
    %4783 = vmatpush1.xpose.msra.mxu0 0.0
    %4784 = vmatprep.subr.mxu0 0.0
    %4785 = vmatpush1.xpose.msra.mxu0 0.0
    %4786 = vmatprep.subr.mxu0 0.0
    %4787 = vmatpush1.xpose.msra.mxu0 0.0
    %4788 = vmatprep.subr.mxu0 0.0
    %4789 = vmatpush1.xpose.msra.mxu0 0.0
    %4790 = vmatprep.subr.mxu0 0.0
    %4791 = vmatpush1.xpose.msra.mxu0 0.0
    %4792 = vmatprep.subr.mxu0 0.0
    %4793 = vmatpush1.xpose.msra.mxu0 0.0
    %4794 = vmatprep.subr.mxu0 0.0
    %4795 = vmatpush1.xpose.msra.mxu0 0.0
    %4796 = vmatprep.subr.mxu0 0.0
    %4797 = vmatpush1.xpose.msra.mxu0 0.0
    %4798 = vmatprep.subr.mxu0 0.0
    %4799 = vmatpush1.xpose.msra.mxu0 %v4768
    %4800 = vmatprep.subr.mxu0 0.0
    %4801 = vmatpush1.xpose.msra.mxu0 %v4766
    %4802 = vmatprep.subr.mxu0 0.0
    %4803 = vmatpush2.xpose.msra.mxu0 0.0
    %4804 = vmatprep.subr.mxu0 0.0
    %4805 = vmatpush2.xpose.msra.mxu0 0.0
    %4806 = vmatprep.subr.mxu0 0.0
    %4807 = vmatpush2.xpose.msra.mxu0 0.0
    %4808 = vmatprep.subr.mxu0 0.0
    %4809 = vmatpush2.xpose.msra.mxu0 0.0
    %4810 = vmatprep.subr.mxu0 0.0
    %4811 = vmatpush2.xpose.msra.mxu0 0.0
    %4812 = vmatprep.subr.mxu0 0.0
    %4813 = vmatpush2.xpose.msra.mxu0 0.0
    %4814 = vmatprep.subr.mxu0 0.0
    %4815 = vmatpush2.xpose.msra.mxu0 0.0
    %4816 = vmatprep.subr.mxu0 0.0
    %4817 = vmatpush2.xpose.msra.mxu0 0.0
    %4818 = vmatprep.subr.mxu0 0.0
    %4819 = vmatpush2.xpose.msra.mxu0 0.0
    %4820 = vmatprep.subr.mxu0 0.0
    %4821 = vmatpush2.xpose.msra.mxu0 0.0
    %4822 = vmatprep.subr.mxu0 0.0
    %4823 = vmatpush2.xpose.msra.mxu0 0.0
    %4824 = vmatprep.subr.mxu0 0.0
    %4825 = vmatpush2.xpose.msra.mxu0 0.0
    %4826 = vmatprep.subr.mxu0 0.0
    %4827 = vmatpush2.xpose.msra.mxu0 0.0
    %4828 = vmatprep.subr.mxu0 0.0
    %4829 = vmatpush2.xpose.msra.mxu0 0.0
    %4830 = vmatprep.subr.mxu0 0.0
    %4831 = vmatpush2.xpose.msra.mxu0 0.0
    %4832 = vmatprep.subr.mxu0 0.0
    %4833 = vmatpush2.xpose.msra.mxu0 0.0
    %4834 = vmatprep.mubr.f32.mxu0 0.0
    %4835 = vmatmul.mubr.f32.gmra.mxu0 %v4762
    %v4836 = vpop.f32.mrf.mxu0
    %v4837 = vadd.f32 0.0, %v4836
    %v4838 = vpop.f32.mrf.mxu0
    %4839 = vmatprep.mubr.f32.mxu0 0.0
    %4840 = vmatmul.mubr.f32.gmra.mxu0 %v4764
    %v4841 = vpop.f32.mrf.mxu0
    %v4842 = vadd.f32 0.0, %v4841
    %v4843 = vpop.f32.mrf.mxu0
    %4844 = vdwg.mxu0
    %4845 = vrot.lane.b32.xlu0 %v3926, 112
    %v4846 = vpop.permute.xlu0 %4845
    %4847 = vrot.lane.b32.xlu0 %v3931, 112
    %v4848 = vpop.permute.xlu0 %4847
    %4849 = vrot.lane.b32.xlu0 %v3926, 80
    %v4850 = vpop.permute.xlu0 %4849
    %4851 = vrot.lane.b32.xlu0 %v3931, 80
    %v4852 = vpop.permute.xlu0 %4851
    %v4853 = vsel %vm1672, %v4846, 0
    %v4855 = vsel %vm1672, %v4848, 0
    %v4857 = vsel %vm1672, %v4850, 0
    %v4859 = vsel %vm1672, %v4852, 0
    %4861 = vmatprep.subr.mxu0 0.0
    %4862 = vmatpush1.xpose.msra.mxu0 0.0
    %4863 = vmatprep.subr.mxu0 0.0
    %4864 = vmatpush1.xpose.msra.mxu0 0.0
    %4865 = vmatprep.subr.mxu0 0.0
    %4866 = vmatpush1.xpose.msra.mxu0 0.0
    %4867 = vmatprep.subr.mxu0 0.0
    %4868 = vmatpush1.xpose.msra.mxu0 0.0
    %4869 = vmatprep.subr.mxu0 0.0
    %4870 = vmatpush1.xpose.msra.mxu0 0.0
    %4871 = vmatprep.subr.mxu0 0.0
    %4872 = vmatpush1.xpose.msra.mxu0 0.0
    %4873 = vmatprep.subr.mxu0 0.0
    %4874 = vmatpush1.xpose.msra.mxu0 0.0
    %4875 = vmatprep.subr.mxu0 0.0
    %4876 = vmatpush1.xpose.msra.mxu0 0.0
    %4877 = vmatprep.subr.mxu0 0.0
    %4878 = vmatpush1.xpose.msra.mxu0 0.0
    %4879 = vmatprep.subr.mxu0 0.0
    %4880 = vmatpush1.xpose.msra.mxu0 0.0
    %4881 = vmatprep.subr.mxu0 0.0
    %4882 = vmatpush1.xpose.msra.mxu0 0.0
    %4883 = vmatprep.subr.mxu0 0.0
    %4884 = vmatpush1.xpose.msra.mxu0 0.0
    %4885 = vmatprep.subr.mxu0 0.0
    %4886 = vmatpush1.xpose.msra.mxu0 0.0
    %4887 = vmatprep.subr.mxu0 0.0
    %4888 = vmatpush1.xpose.msra.mxu0 0.0
    %4889 = vmatprep.subr.mxu0 0.0
    %4890 = vmatpush1.xpose.msra.mxu0 %v4859
    %4891 = vmatprep.subr.mxu0 0.0
    %4892 = vmatpush1.xpose.msra.mxu0 %v4857
    %4893 = vmatprep.subr.mxu0 0.0
    %4894 = vmatpush2.xpose.msra.mxu0 0.0
    %4895 = vmatprep.subr.mxu0 0.0
    %4896 = vmatpush2.xpose.msra.mxu0 0.0
    %4897 = vmatprep.subr.mxu0 0.0
    %4898 = vmatpush2.xpose.msra.mxu0 0.0
    %4899 = vmatprep.subr.mxu0 0.0
    %4900 = vmatpush2.xpose.msra.mxu0 0.0
    %4901 = vmatprep.subr.mxu0 0.0
    %4902 = vmatpush2.xpose.msra.mxu0 0.0
    %4903 = vmatprep.subr.mxu0 0.0
    %4904 = vmatpush2.xpose.msra.mxu0 0.0
    %4905 = vmatprep.subr.mxu0 0.0
    %4906 = vmatpush2.xpose.msra.mxu0 0.0
    %4907 = vmatprep.subr.mxu0 0.0
    %4908 = vmatpush2.xpose.msra.mxu0 0.0
    %4909 = vmatprep.subr.mxu0 0.0
    %4910 = vmatpush2.xpose.msra.mxu0 0.0
    %4911 = vmatprep.subr.mxu0 0.0
    %4912 = vmatpush2.xpose.msra.mxu0 0.0
    %4913 = vmatprep.subr.mxu0 0.0
    %4914 = vmatpush2.xpose.msra.mxu0 0.0
    %4915 = vmatprep.subr.mxu0 0.0
    %4916 = vmatpush2.xpose.msra.mxu0 0.0
    %4917 = vmatprep.subr.mxu0 0.0
    %4918 = vmatpush2.xpose.msra.mxu0 0.0
    %4919 = vmatprep.subr.mxu0 0.0
    %4920 = vmatpush2.xpose.msra.mxu0 0.0
    %4921 = vmatprep.subr.mxu0 0.0
    %4922 = vmatpush2.xpose.msra.mxu0 0.0
    %4923 = vmatprep.subr.mxu0 0.0
    %4924 = vmatpush2.xpose.msra.mxu0 0.0
    %4925 = vmatprep.mubr.f32.mxu0 0.0
    %4926 = vmatmul.mubr.f32.gmra.mxu0 %v4853
    %v4927 = vpop.f32.mrf.mxu0
    %v4928 = vadd.f32 0.0, %v4927
    %v4929 = vpop.f32.mrf.mxu0
    %4930 = vmatprep.mubr.f32.mxu0 0.0
    %4931 = vmatmul.mubr.f32.gmra.mxu0 %v4855
    %v4932 = vpop.f32.mrf.mxu0
    %v4933 = vadd.f32 0.0, %v4932
    %v4934 = vpop.f32.mrf.mxu0
    %4935 = vdwg.mxu0
    %v4936 = vsel %vm1845, %v4837, -inf
    %4937 = vmax.xlane.f32.xlu0 %v4936
    %v4938 = vpop.xlane.xlu0 %4937
    %v4939 = vsel %vm1845, %v4842, -inf
    %4940 = vmax.xlane.f32.xlu0 %v4939
    %v4941 = vpop.xlane.xlu0 %4940
    %v4942 = vsel %vm1845, %v4928, -inf
    %4943 = vmax.xlane.f32.xlu0 %v4942
    %v4944 = vpop.xlane.xlu0 %4943
    %v4945 = vsel %vm1845, %v4933, -inf
    %4946 = vmax.xlane.f32.xlu0 %v4945
    %v4947 = vpop.xlane.xlu0 %4946
    %v4948 = vsub.f32 %v4837, %v4938
    %v4949 = vsub.f32 %v4842, %v4941
    %v4950 = vsub.f32 %v4928, %v4944
    %v4951 = vsub.f32 %v4933, %v4947
    %v4952 = vmul.f32 %v4948, 1.442695
    %v4953 = vpow.pop %v4952
    %v4954 = vmul.f32 %v4949, 1.442695
    %v4955 = vpow.pop %v4954
    %v4956 = vmul.f32 %v4950, 1.442695
    %v4957 = vpow.pop %v4956
    %v4958 = vmul.f32 %v4951, 1.442695
    %v4959 = vpow.pop %v4958
    %v4960 = vsel %vm1845, %v4953, 0.0
    %4961 = vadd.xlane.f32.xlu0 %v4960
    %v4962 = vpop.xlane.xlu0 %4961
    %v4963 = vsel %vm1845, %v4955, 0.0
    %4964 = vadd.xlane.f32.xlu0 %v4963
    %v4965 = vpop.xlane.xlu0 %4964
    %v4966 = vsel %vm1845, %v4957, 0.0
    %4967 = vadd.xlane.f32.xlu0 %v4966
    %v4968 = vpop.xlane.xlu0 %4967
    %v4969 = vsel %vm1845, %v4959, 0.0
    %4970 = vadd.xlane.f32.xlu0 %v4969
    %v4971 = vpop.xlane.xlu0 %4970
    %v4972 = vrcp.pop %v4962
    %v4973 = vrcp.pop %v4965
    %v4974 = vrcp.pop %v4968
    %v4975 = vrcp.pop %v4971
    %v4976 = vmul.f32 %v4953, %v4972
    %v4977 = vmul.f32 %v4955, %v4973
    %v4978 = vmul.f32 %v4957, %v4974
    %v4979 = vmul.f32 %v4959, %v4975
    %4980 = vrot.lane.b32.xlu0 %v3916, 48
    %v4981 = vpop.permute.xlu0 %4980
    %4982 = vrot.lane.b32.xlu0 %v3921, 48
    %v4983 = vpop.permute.xlu0 %4982
    %v4987 = vsel %vm1845, %v4976, 0
    %v4990 = vsel %vm1845, %v4977, 0
    %4992 = vmatprep.subr.mxu0 0.0
    %4993 = vmatpush1.msra.mxu0 0.0
    %4994 = vmatprep.subr.mxu0 0.0
    %4995 = vmatpush1.msra.mxu0 0.0
    %4996 = vmatprep.subr.mxu0 0.0
    %4997 = vmatpush1.msra.mxu0 0.0
    %4998 = vmatprep.subr.mxu0 0.0
    %4999 = vmatpush1.msra.mxu0 0.0
    %5000 = vmatprep.subr.mxu0 0.0
    %5001 = vmatpush1.msra.mxu0 0.0
    %5002 = vmatprep.subr.mxu0 0.0
    %5003 = vmatpush1.msra.mxu0 0.0
    %5004 = vmatprep.subr.mxu0 0.0
    %5005 = vmatpush1.msra.mxu0 0.0
    %5006 = vmatprep.subr.mxu0 0.0
    %5007 = vmatpush1.msra.mxu0 0.0
    %5008 = vmatprep.subr.mxu0 0.0
    %5009 = vmatpush1.msra.mxu0 0.0
    %5010 = vmatprep.subr.mxu0 0.0
    %5011 = vmatpush1.msra.mxu0 0.0
    %5012 = vmatprep.subr.mxu0 0.0
    %5013 = vmatpush1.msra.mxu0 0.0
    %5014 = vmatprep.subr.mxu0 0.0
    %5015 = vmatpush1.msra.mxu0 0.0
    %5016 = vmatprep.subr.mxu0 0.0
    %5017 = vmatpush1.msra.mxu0 0.0
    %5018 = vmatprep.subr.mxu0 0.0
    %5019 = vmatpush1.msra.mxu0 0.0
    %5020 = vmatprep.subr.mxu0 0.0
    %5021 = vmatpush1.msra.mxu0 %v4983
    %5022 = vmatprep.subr.mxu0 0.0
    %5023 = vmatpush1.msra.mxu0 %v4981
    %5024 = vmatprep.subr.mxu0 0.0
    %5025 = vmatpush2.msra.mxu0 0.0
    %5026 = vmatprep.subr.mxu0 0.0
    %5027 = vmatpush2.msra.mxu0 0.0
    %5028 = vmatprep.subr.mxu0 0.0
    %5029 = vmatpush2.msra.mxu0 0.0
    %5030 = vmatprep.subr.mxu0 0.0
    %5031 = vmatpush2.msra.mxu0 0.0
    %5032 = vmatprep.subr.mxu0 0.0
    %5033 = vmatpush2.msra.mxu0 0.0
    %5034 = vmatprep.subr.mxu0 0.0
    %5035 = vmatpush2.msra.mxu0 0.0
    %5036 = vmatprep.subr.mxu0 0.0
    %5037 = vmatpush2.msra.mxu0 0.0
    %5038 = vmatprep.subr.mxu0 0.0
    %5039 = vmatpush2.msra.mxu0 0.0
    %5040 = vmatprep.subr.mxu0 0.0
    %5041 = vmatpush2.msra.mxu0 0.0
    %5042 = vmatprep.subr.mxu0 0.0
    %5043 = vmatpush2.msra.mxu0 0.0
    %5044 = vmatprep.subr.mxu0 0.0
    %5045 = vmatpush2.msra.mxu0 0.0
    %5046 = vmatprep.subr.mxu0 0.0
    %5047 = vmatpush2.msra.mxu0 0.0
    %5048 = vmatprep.subr.mxu0 0.0
    %5049 = vmatpush2.msra.mxu0 0.0
    %5050 = vmatprep.subr.mxu0 0.0
    %5051 = vmatpush2.msra.mxu0 0.0
    %5052 = vmatprep.subr.mxu0 0.0
    %5053 = vmatpush2.msra.mxu0 0.0
    %5054 = vmatprep.subr.mxu0 0.0
    %5055 = vmatpush2.msra.mxu0 0.0
    %5056 = vmatprep.mubr.f32.mxu0 0.0
    %5057 = vmatmul.mubr.f32.gmra.mxu0 %v4987
    %v5058 = vpop.f32.mrf.mxu0
    %v5059 = vadd.f32 0.0, %v5058
    %v5060 = vpop.f32.mrf.mxu0
    %5061 = vmatprep.mubr.f32.mxu0 0.0
    %5062 = vmatmul.mubr.f32.gmra.mxu0 %v4990
    %v5063 = vpop.f32.mrf.mxu0
    %v5064 = vadd.f32 0.0, %v5063
    %v5065 = vpop.f32.mrf.mxu0
    %5066 = vdwg.mxu0
    %5067 = vrot.lane.b32.xlu0 %v3926, 48
    %v5068 = vpop.permute.xlu0 %5067
    %5069 = vrot.lane.b32.xlu0 %v3931, 48
    %v5070 = vpop.permute.xlu0 %5069
    %v5074 = vsel %vm1845, %v4978, 0
    %v5077 = vsel %vm1845, %v4979, 0
    %5079 = vmatprep.subr.mxu0 0.0
    %5080 = vmatpush1.msra.mxu0 0.0
    %5081 = vmatprep.subr.mxu0 0.0
    %5082 = vmatpush1.msra.mxu0 0.0
    %5083 = vmatprep.subr.mxu0 0.0
    %5084 = vmatpush1.msra.mxu0 0.0
    %5085 = vmatprep.subr.mxu0 0.0
    %5086 = vmatpush1.msra.mxu0 0.0
    %5087 = vmatprep.subr.mxu0 0.0
    %5088 = vmatpush1.msra.mxu0 0.0
    %5089 = vmatprep.subr.mxu0 0.0
    %5090 = vmatpush1.msra.mxu0 0.0
    %5091 = vmatprep.subr.mxu0 0.0
    %5092 = vmatpush1.msra.mxu0 0.0
    %5093 = vmatprep.subr.mxu0 0.0
    %5094 = vmatpush1.msra.mxu0 0.0
    %5095 = vmatprep.subr.mxu0 0.0
    %5096 = vmatpush1.msra.mxu0 0.0
    %5097 = vmatprep.subr.mxu0 0.0
    %5098 = vmatpush1.msra.mxu0 0.0
    %5099 = vmatprep.subr.mxu0 0.0
    %5100 = vmatpush1.msra.mxu0 0.0
    %5101 = vmatprep.subr.mxu0 0.0
    %5102 = vmatpush1.msra.mxu0 0.0
    %5103 = vmatprep.subr.mxu0 0.0
    %5104 = vmatpush1.msra.mxu0 0.0
    %5105 = vmatprep.subr.mxu0 0.0
    %5106 = vmatpush1.msra.mxu0 0.0
    %5107 = vmatprep.subr.mxu0 0.0
    %5108 = vmatpush1.msra.mxu0 %v5070
    %5109 = vmatprep.subr.mxu0 0.0
    %5110 = vmatpush1.msra.mxu0 %v5068
    %5111 = vmatprep.subr.mxu0 0.0
    %5112 = vmatpush2.msra.mxu0 0.0
    %5113 = vmatprep.subr.mxu0 0.0
    %5114 = vmatpush2.msra.mxu0 0.0
    %5115 = vmatprep.subr.mxu0 0.0
    %5116 = vmatpush2.msra.mxu0 0.0
    %5117 = vmatprep.subr.mxu0 0.0
    %5118 = vmatpush2.msra.mxu0 0.0
    %5119 = vmatprep.subr.mxu0 0.0
    %5120 = vmatpush2.msra.mxu0 0.0
    %5121 = vmatprep.subr.mxu0 0.0
    %5122 = vmatpush2.msra.mxu0 0.0
    %5123 = vmatprep.subr.mxu0 0.0
    %5124 = vmatpush2.msra.mxu0 0.0
    %5125 = vmatprep.subr.mxu0 0.0
    %5126 = vmatpush2.msra.mxu0 0.0
    %5127 = vmatprep.subr.mxu0 0.0
    %5128 = vmatpush2.msra.mxu0 0.0
    %5129 = vmatprep.subr.mxu0 0.0
    %5130 = vmatpush2.msra.mxu0 0.0
    %5131 = vmatprep.subr.mxu0 0.0
    %5132 = vmatpush2.msra.mxu0 0.0
    %5133 = vmatprep.subr.mxu0 0.0
    %5134 = vmatpush2.msra.mxu0 0.0
    %5135 = vmatprep.subr.mxu0 0.0
    %5136 = vmatpush2.msra.mxu0 0.0
    %5137 = vmatprep.subr.mxu0 0.0
    %5138 = vmatpush2.msra.mxu0 0.0
    %5139 = vmatprep.subr.mxu0 0.0
    %5140 = vmatpush2.msra.mxu0 0.0
    %5141 = vmatprep.subr.mxu0 0.0
    %5142 = vmatpush2.msra.mxu0 0.0
    %5143 = vmatprep.mubr.f32.mxu0 0.0
    %5144 = vmatmul.mubr.f32.gmra.mxu0 %v5074
    %v5145 = vpop.f32.mrf.mxu0
    %v5146 = vadd.f32 0.0, %v5145
    %v5147 = vpop.f32.mrf.mxu0
    %5148 = vmatprep.mubr.f32.mxu0 0.0
    %5149 = vmatmul.mubr.f32.gmra.mxu0 %v5077
    %v5150 = vpop.f32.mrf.mxu0
    %v5151 = vadd.f32 0.0, %v5150
    %v5152 = vpop.f32.mrf.mxu0
    %5153 = vdwg.mxu0
    %5158 = vrot.lane.b32.xlu0 %v5059, 16
    %v5159 = vpop.permute.xlu0 %5158
    %5160 = vrot.lane.b32.xlu0 %v5064, 16
    %v5161 = vpop.permute.xlu0 %5160
    %5162 = vrot.lane.b32.xlu0 %v5146, 16
    %v5163 = vpop.permute.xlu0 %5162
    %5164 = vrot.lane.b32.xlu0 %v5151, 16
    %v5165 = vpop.permute.xlu0 %5164
    %5170 = vst.msk [vmem:[#allocation4] sm:$0xff] %vm2905, %v5159
    %5171 = vst.msk [vmem:[#allocation4 + $0x8] sm:$0xff] %vm2905, %v5161
    %5172 = vst.msk [vmem:[#allocation4 + $0x10] sm:$0xff] %vm2905, %v5163
    %5173 = vst.msk [vmem:[#allocation4 + $0x18] sm:$0xff] %vm2905, %v5165
    %5174 = vrot.lane.b32.xlu0 %v3916, 104
    %v5175 = vpop.permute.xlu0 %5174
    %5176 = vrot.lane.b32.xlu0 %v3921, 104
    %v5177 = vpop.permute.xlu0 %5176
    %5178 = vrot.lane.b32.xlu0 %v3916, 72
    %v5179 = vpop.permute.xlu0 %5178
    %5180 = vrot.lane.b32.xlu0 %v3921, 72
    %v5181 = vpop.permute.xlu0 %5180
    %v5182 = vsel %vm1672, %v5175, 0
    %v5184 = vsel %vm1672, %v5177, 0
    %v5186 = vsel %vm1672, %v5179, 0
    %v5188 = vsel %vm1672, %v5181, 0
    %5190 = vmatprep.subr.mxu0 0.0
    %5191 = vmatpush1.xpose.msra.mxu0 0.0
    %5192 = vmatprep.subr.mxu0 0.0
    %5193 = vmatpush1.xpose.msra.mxu0 0.0
    %5194 = vmatprep.subr.mxu0 0.0
    %5195 = vmatpush1.xpose.msra.mxu0 0.0
    %5196 = vmatprep.subr.mxu0 0.0
    %5197 = vmatpush1.xpose.msra.mxu0 0.0
    %5198 = vmatprep.subr.mxu0 0.0
    %5199 = vmatpush1.xpose.msra.mxu0 0.0
    %5200 = vmatprep.subr.mxu0 0.0
    %5201 = vmatpush1.xpose.msra.mxu0 0.0
    %5202 = vmatprep.subr.mxu0 0.0
    %5203 = vmatpush1.xpose.msra.mxu0 0.0
    %5204 = vmatprep.subr.mxu0 0.0
    %5205 = vmatpush1.xpose.msra.mxu0 0.0
    %5206 = vmatprep.subr.mxu0 0.0
    %5207 = vmatpush1.xpose.msra.mxu0 0.0
    %5208 = vmatprep.subr.mxu0 0.0
    %5209 = vmatpush1.xpose.msra.mxu0 0.0
    %5210 = vmatprep.subr.mxu0 0.0
    %5211 = vmatpush1.xpose.msra.mxu0 0.0
    %5212 = vmatprep.subr.mxu0 0.0
    %5213 = vmatpush1.xpose.msra.mxu0 0.0
    %5214 = vmatprep.subr.mxu0 0.0
    %5215 = vmatpush1.xpose.msra.mxu0 0.0
    %5216 = vmatprep.subr.mxu0 0.0
    %5217 = vmatpush1.xpose.msra.mxu0 0.0
    %5218 = vmatprep.subr.mxu0 0.0
    %5219 = vmatpush1.xpose.msra.mxu0 %v5188
    %5220 = vmatprep.subr.mxu0 0.0
    %5221 = vmatpush1.xpose.msra.mxu0 %v5186
    %5222 = vmatprep.subr.mxu0 0.0
    %5223 = vmatpush2.xpose.msra.mxu0 0.0
    %5224 = vmatprep.subr.mxu0 0.0
    %5225 = vmatpush2.xpose.msra.mxu0 0.0
    %5226 = vmatprep.subr.mxu0 0.0
    %5227 = vmatpush2.xpose.msra.mxu0 0.0
    %5228 = vmatprep.subr.mxu0 0.0
    %5229 = vmatpush2.xpose.msra.mxu0 0.0
    %5230 = vmatprep.subr.mxu0 0.0
    %5231 = vmatpush2.xpose.msra.mxu0 0.0
    %5232 = vmatprep.subr.mxu0 0.0
    %5233 = vmatpush2.xpose.msra.mxu0 0.0
    %5234 = vmatprep.subr.mxu0 0.0
    %5235 = vmatpush2.xpose.msra.mxu0 0.0
    %5236 = vmatprep.subr.mxu0 0.0
    %5237 = vmatpush2.xpose.msra.mxu0 0.0
    %5238 = vmatprep.subr.mxu0 0.0
    %5239 = vmatpush2.xpose.msra.mxu0 0.0
    %5240 = vmatprep.subr.mxu0 0.0
    %5241 = vmatpush2.xpose.msra.mxu0 0.0
    %5242 = vmatprep.subr.mxu0 0.0
    %5243 = vmatpush2.xpose.msra.mxu0 0.0
    %5244 = vmatprep.subr.mxu0 0.0
    %5245 = vmatpush2.xpose.msra.mxu0 0.0
    %5246 = vmatprep.subr.mxu0 0.0
    %5247 = vmatpush2.xpose.msra.mxu0 0.0
    %5248 = vmatprep.subr.mxu0 0.0
    %5249 = vmatpush2.xpose.msra.mxu0 0.0
    %5250 = vmatprep.subr.mxu0 0.0
    %5251 = vmatpush2.xpose.msra.mxu0 0.0
    %5252 = vmatprep.subr.mxu0 0.0
    %5253 = vmatpush2.xpose.msra.mxu0 0.0
    %5254 = vmatprep.mubr.f32.mxu0 0.0
    %5255 = vmatmul.mubr.f32.gmra.mxu0 %v5182
    %v5256 = vpop.f32.mrf.mxu0
    %v5257 = vadd.f32 0.0, %v5256
    %v5258 = vpop.f32.mrf.mxu0
    %5259 = vmatprep.mubr.f32.mxu0 0.0
    %5260 = vmatmul.mubr.f32.gmra.mxu0 %v5184
    %v5261 = vpop.f32.mrf.mxu0
    %v5262 = vadd.f32 0.0, %v5261
    %v5263 = vpop.f32.mrf.mxu0
    %5264 = vdwg.mxu0
    %5265 = vrot.lane.b32.xlu0 %v3926, 104
    %v5266 = vpop.permute.xlu0 %5265
    %5267 = vrot.lane.b32.xlu0 %v3931, 104
    %v5268 = vpop.permute.xlu0 %5267
    %5269 = vrot.lane.b32.xlu0 %v3926, 72
    %v5270 = vpop.permute.xlu0 %5269
    %5271 = vrot.lane.b32.xlu0 %v3931, 72
    %v5272 = vpop.permute.xlu0 %5271
    %v5273 = vsel %vm1672, %v5266, 0
    %v5275 = vsel %vm1672, %v5268, 0
    %v5277 = vsel %vm1672, %v5270, 0
    %v5279 = vsel %vm1672, %v5272, 0
    %5281 = vmatprep.subr.mxu0 0.0
    %5282 = vmatpush1.xpose.msra.mxu0 0.0
    %5283 = vmatprep.subr.mxu0 0.0
    %5284 = vmatpush1.xpose.msra.mxu0 0.0
    %5285 = vmatprep.subr.mxu0 0.0
    %5286 = vmatpush1.xpose.msra.mxu0 0.0
    %5287 = vmatprep.subr.mxu0 0.0
    %5288 = vmatpush1.xpose.msra.mxu0 0.0
    %5289 = vmatprep.subr.mxu0 0.0
    %5290 = vmatpush1.xpose.msra.mxu0 0.0
    %5291 = vmatprep.subr.mxu0 0.0
    %5292 = vmatpush1.xpose.msra.mxu0 0.0
    %5293 = vmatprep.subr.mxu0 0.0
    %5294 = vmatpush1.xpose.msra.mxu0 0.0
    %5295 = vmatprep.subr.mxu0 0.0
    %5296 = vmatpush1.xpose.msra.mxu0 0.0
    %5297 = vmatprep.subr.mxu0 0.0
    %5298 = vmatpush1.xpose.msra.mxu0 0.0
    %5299 = vmatprep.subr.mxu0 0.0
    %5300 = vmatpush1.xpose.msra.mxu0 0.0
    %5301 = vmatprep.subr.mxu0 0.0
    %5302 = vmatpush1.xpose.msra.mxu0 0.0
    %5303 = vmatprep.subr.mxu0 0.0
    %5304 = vmatpush1.xpose.msra.mxu0 0.0
    %5305 = vmatprep.subr.mxu0 0.0
    %5306 = vmatpush1.xpose.msra.mxu0 0.0
    %5307 = vmatprep.subr.mxu0 0.0
    %5308 = vmatpush1.xpose.msra.mxu0 0.0
    %5309 = vmatprep.subr.mxu0 0.0
    %5310 = vmatpush1.xpose.msra.mxu0 %v5279
    %5311 = vmatprep.subr.mxu0 0.0
    %5312 = vmatpush1.xpose.msra.mxu0 %v5277
    %5313 = vmatprep.subr.mxu0 0.0
    %5314 = vmatpush2.xpose.msra.mxu0 0.0
    %5315 = vmatprep.subr.mxu0 0.0
    %5316 = vmatpush2.xpose.msra.mxu0 0.0
    %5317 = vmatprep.subr.mxu0 0.0
    %5318 = vmatpush2.xpose.msra.mxu0 0.0
    %5319 = vmatprep.subr.mxu0 0.0
    %5320 = vmatpush2.xpose.msra.mxu0 0.0
    %5321 = vmatprep.subr.mxu0 0.0
    %5322 = vmatpush2.xpose.msra.mxu0 0.0
    %5323 = vmatprep.subr.mxu0 0.0
    %5324 = vmatpush2.xpose.msra.mxu0 0.0
    %5325 = vmatprep.subr.mxu0 0.0
    %5326 = vmatpush2.xpose.msra.mxu0 0.0
    %5327 = vmatprep.subr.mxu0 0.0
    %5328 = vmatpush2.xpose.msra.mxu0 0.0
    %5329 = vmatprep.subr.mxu0 0.0
    %5330 = vmatpush2.xpose.msra.mxu0 0.0
    %5331 = vmatprep.subr.mxu0 0.0
    %5332 = vmatpush2.xpose.msra.mxu0 0.0
    %5333 = vmatprep.subr.mxu0 0.0
    %5334 = vmatpush2.xpose.msra.mxu0 0.0
    %5335 = vmatprep.subr.mxu0 0.0
    %5336 = vmatpush2.xpose.msra.mxu0 0.0
    %5337 = vmatprep.subr.mxu0 0.0
    %5338 = vmatpush2.xpose.msra.mxu0 0.0
    %5339 = vmatprep.subr.mxu0 0.0
    %5340 = vmatpush2.xpose.msra.mxu0 0.0
    %5341 = vmatprep.subr.mxu0 0.0
    %5342 = vmatpush2.xpose.msra.mxu0 0.0
    %5343 = vmatprep.subr.mxu0 0.0
    %5344 = vmatpush2.xpose.msra.mxu0 0.0
    %5345 = vmatprep.mubr.f32.mxu0 0.0
    %5346 = vmatmul.mubr.f32.gmra.mxu0 %v5273
    %v5347 = vpop.f32.mrf.mxu0
    %v5348 = vadd.f32 0.0, %v5347
    %v5349 = vpop.f32.mrf.mxu0
    %5350 = vmatprep.mubr.f32.mxu0 0.0
    %5351 = vmatmul.mubr.f32.gmra.mxu0 %v5275
    %v5352 = vpop.f32.mrf.mxu0
    %v5353 = vadd.f32 0.0, %v5352
    %v5354 = vpop.f32.mrf.mxu0
    %5355 = vdwg.mxu0
    %v5356 = vsel %vm1845, %v5257, -inf
    %5357 = vmax.xlane.f32.xlu0 %v5356
    %v5358 = vpop.xlane.xlu0 %5357
    %v5359 = vsel %vm1845, %v5262, -inf
    %5360 = vmax.xlane.f32.xlu0 %v5359
    %v5361 = vpop.xlane.xlu0 %5360
    %v5362 = vsel %vm1845, %v5348, -inf
    %5363 = vmax.xlane.f32.xlu0 %v5362
    %v5364 = vpop.xlane.xlu0 %5363
    %v5365 = vsel %vm1845, %v5353, -inf
    %5366 = vmax.xlane.f32.xlu0 %v5365
    %v5367 = vpop.xlane.xlu0 %5366
    %v5368 = vsub.f32 %v5257, %v5358
    %v5369 = vsub.f32 %v5262, %v5361
    %v5370 = vsub.f32 %v5348, %v5364
    %v5371 = vsub.f32 %v5353, %v5367
    %v5372 = vmul.f32 %v5368, 1.442695
    %v5373 = vpow.pop %v5372
    %v5374 = vmul.f32 %v5369, 1.442695
    %v5375 = vpow.pop %v5374
    %v5376 = vmul.f32 %v5370, 1.442695
    %v5377 = vpow.pop %v5376
    %v5378 = vmul.f32 %v5371, 1.442695
    %v5379 = vpow.pop %v5378
    %v5380 = vsel %vm1845, %v5373, 0.0
    %5381 = vadd.xlane.f32.xlu0 %v5380
    %v5382 = vpop.xlane.xlu0 %5381
    %v5383 = vsel %vm1845, %v5375, 0.0
    %5384 = vadd.xlane.f32.xlu0 %v5383
    %v5385 = vpop.xlane.xlu0 %5384
    %v5386 = vsel %vm1845, %v5377, 0.0
    %5387 = vadd.xlane.f32.xlu0 %v5386
    %v5388 = vpop.xlane.xlu0 %5387
    %v5389 = vsel %vm1845, %v5379, 0.0
    %5390 = vadd.xlane.f32.xlu0 %v5389
    %v5391 = vpop.xlane.xlu0 %5390
    %v5392 = vrcp.pop %v5382
    %v5393 = vrcp.pop %v5385
    %v5394 = vrcp.pop %v5388
    %v5395 = vrcp.pop %v5391
    %v5396 = vmul.f32 %v5373, %v5392
    %v5397 = vmul.f32 %v5375, %v5393
    %v5398 = vmul.f32 %v5377, %v5394
    %v5399 = vmul.f32 %v5379, %v5395
    %5400 = vrot.lane.b32.xlu0 %v3916, 40
    %v5401 = vpop.permute.xlu0 %5400
    %5402 = vrot.lane.b32.xlu0 %v3921, 40
    %v5403 = vpop.permute.xlu0 %5402
    %v5407 = vsel %vm1845, %v5396, 0
    %v5410 = vsel %vm1845, %v5397, 0
    %5412 = vmatprep.subr.mxu0 0.0
    %5413 = vmatpush1.msra.mxu0 0.0
    %5414 = vmatprep.subr.mxu0 0.0
    %5415 = vmatpush1.msra.mxu0 0.0
    %5416 = vmatprep.subr.mxu0 0.0
    %5417 = vmatpush1.msra.mxu0 0.0
    %5418 = vmatprep.subr.mxu0 0.0
    %5419 = vmatpush1.msra.mxu0 0.0
    %5420 = vmatprep.subr.mxu0 0.0
    %5421 = vmatpush1.msra.mxu0 0.0
    %5422 = vmatprep.subr.mxu0 0.0
    %5423 = vmatpush1.msra.mxu0 0.0
    %5424 = vmatprep.subr.mxu0 0.0
    %5425 = vmatpush1.msra.mxu0 0.0
    %5426 = vmatprep.subr.mxu0 0.0
    %5427 = vmatpush1.msra.mxu0 0.0
    %5428 = vmatprep.subr.mxu0 0.0
    %5429 = vmatpush1.msra.mxu0 0.0
    %5430 = vmatprep.subr.mxu0 0.0
    %5431 = vmatpush1.msra.mxu0 0.0
    %5432 = vmatprep.subr.mxu0 0.0
    %5433 = vmatpush1.msra.mxu0 0.0
    %5434 = vmatprep.subr.mxu0 0.0
    %5435 = vmatpush1.msra.mxu0 0.0
    %5436 = vmatprep.subr.mxu0 0.0
    %5437 = vmatpush1.msra.mxu0 0.0
    %5438 = vmatprep.subr.mxu0 0.0
    %5439 = vmatpush1.msra.mxu0 0.0
    %5440 = vmatprep.subr.mxu0 0.0
    %5441 = vmatpush1.msra.mxu0 %v5403
    %5442 = vmatprep.subr.mxu0 0.0
    %5443 = vmatpush1.msra.mxu0 %v5401
    %5444 = vmatprep.subr.mxu0 0.0
    %5445 = vmatpush2.msra.mxu0 0.0
    %5446 = vmatprep.subr.mxu0 0.0
    %5447 = vmatpush2.msra.mxu0 0.0
    %5448 = vmatprep.subr.mxu0 0.0
    %5449 = vmatpush2.msra.mxu0 0.0
    %5450 = vmatprep.subr.mxu0 0.0
    %5451 = vmatpush2.msra.mxu0 0.0
    %5452 = vmatprep.subr.mxu0 0.0
    %5453 = vmatpush2.msra.mxu0 0.0
    %5454 = vmatprep.subr.mxu0 0.0
    %5455 = vmatpush2.msra.mxu0 0.0
    %5456 = vmatprep.subr.mxu0 0.0
    %5457 = vmatpush2.msra.mxu0 0.0
    %5458 = vmatprep.subr.mxu0 0.0
    %5459 = vmatpush2.msra.mxu0 0.0
    %5460 = vmatprep.subr.mxu0 0.0
    %5461 = vmatpush2.msra.mxu0 0.0
    %5462 = vmatprep.subr.mxu0 0.0
    %5463 = vmatpush2.msra.mxu0 0.0
    %5464 = vmatprep.subr.mxu0 0.0
    %5465 = vmatpush2.msra.mxu0 0.0
    %5466 = vmatprep.subr.mxu0 0.0
    %5467 = vmatpush2.msra.mxu0 0.0
    %5468 = vmatprep.subr.mxu0 0.0
    %5469 = vmatpush2.msra.mxu0 0.0
    %5470 = vmatprep.subr.mxu0 0.0
    %5471 = vmatpush2.msra.mxu0 0.0
    %5472 = vmatprep.subr.mxu0 0.0
    %5473 = vmatpush2.msra.mxu0 0.0
    %5474 = vmatprep.subr.mxu0 0.0
    %5475 = vmatpush2.msra.mxu0 0.0
    %5476 = vmatprep.mubr.f32.mxu0 0.0
    %5477 = vmatmul.mubr.f32.gmra.mxu0 %v5407
    %v5478 = vpop.f32.mrf.mxu0
    %v5479 = vadd.f32 0.0, %v5478
    %v5480 = vpop.f32.mrf.mxu0
    %5481 = vmatprep.mubr.f32.mxu0 0.0
    %5482 = vmatmul.mubr.f32.gmra.mxu0 %v5410
    %v5483 = vpop.f32.mrf.mxu0
    %v5484 = vadd.f32 0.0, %v5483
    %v5485 = vpop.f32.mrf.mxu0
    %5486 = vdwg.mxu0
    %5487 = vrot.lane.b32.xlu0 %v3926, 40
    %v5488 = vpop.permute.xlu0 %5487
    %5489 = vrot.lane.b32.xlu0 %v3931, 40
    %v5490 = vpop.permute.xlu0 %5489
    %v5494 = vsel %vm1845, %v5398, 0
    %v5497 = vsel %vm1845, %v5399, 0
    %5499 = vmatprep.subr.mxu0 0.0
    %5500 = vmatpush1.msra.mxu0 0.0
    %5501 = vmatprep.subr.mxu0 0.0
    %5502 = vmatpush1.msra.mxu0 0.0
    %5503 = vmatprep.subr.mxu0 0.0
    %5504 = vmatpush1.msra.mxu0 0.0
    %5505 = vmatprep.subr.mxu0 0.0
    %5506 = vmatpush1.msra.mxu0 0.0
    %5507 = vmatprep.subr.mxu0 0.0
    %5508 = vmatpush1.msra.mxu0 0.0
    %5509 = vmatprep.subr.mxu0 0.0
    %5510 = vmatpush1.msra.mxu0 0.0
    %5511 = vmatprep.subr.mxu0 0.0
    %5512 = vmatpush1.msra.mxu0 0.0
    %5513 = vmatprep.subr.mxu0 0.0
    %5514 = vmatpush1.msra.mxu0 0.0
    %5515 = vmatprep.subr.mxu0 0.0
    %5516 = vmatpush1.msra.mxu0 0.0
    %5517 = vmatprep.subr.mxu0 0.0
    %5518 = vmatpush1.msra.mxu0 0.0
    %5519 = vmatprep.subr.mxu0 0.0
    %5520 = vmatpush1.msra.mxu0 0.0
    %5521 = vmatprep.subr.mxu0 0.0
    %5522 = vmatpush1.msra.mxu0 0.0
    %5523 = vmatprep.subr.mxu0 0.0
    %5524 = vmatpush1.msra.mxu0 0.0
    %5525 = vmatprep.subr.mxu0 0.0
    %5526 = vmatpush1.msra.mxu0 0.0
    %5527 = vmatprep.subr.mxu0 0.0
    %5528 = vmatpush1.msra.mxu0 %v5490
    %5529 = vmatprep.subr.mxu0 0.0
    %5530 = vmatpush1.msra.mxu0 %v5488
    %5531 = vmatprep.subr.mxu0 0.0
    %5532 = vmatpush2.msra.mxu0 0.0
    %5533 = vmatprep.subr.mxu0 0.0
    %5534 = vmatpush2.msra.mxu0 0.0
    %5535 = vmatprep.subr.mxu0 0.0
    %5536 = vmatpush2.msra.mxu0 0.0
    %5537 = vmatprep.subr.mxu0 0.0
    %5538 = vmatpush2.msra.mxu0 0.0
    %5539 = vmatprep.subr.mxu0 0.0
    %5540 = vmatpush2.msra.mxu0 0.0
    %5541 = vmatprep.subr.mxu0 0.0
    %5542 = vmatpush2.msra.mxu0 0.0
    %5543 = vmatprep.subr.mxu0 0.0
    %5544 = vmatpush2.msra.mxu0 0.0
    %5545 = vmatprep.subr.mxu0 0.0
    %5546 = vmatpush2.msra.mxu0 0.0
    %5547 = vmatprep.subr.mxu0 0.0
    %5548 = vmatpush2.msra.mxu0 0.0
    %5549 = vmatprep.subr.mxu0 0.0
    %5550 = vmatpush2.msra.mxu0 0.0
    %5551 = vmatprep.subr.mxu0 0.0
    %5552 = vmatpush2.msra.mxu0 0.0
    %5553 = vmatprep.subr.mxu0 0.0
    %5554 = vmatpush2.msra.mxu0 0.0
    %5555 = vmatprep.subr.mxu0 0.0
    %5556 = vmatpush2.msra.mxu0 0.0
    %5557 = vmatprep.subr.mxu0 0.0
    %5558 = vmatpush2.msra.mxu0 0.0
    %5559 = vmatprep.subr.mxu0 0.0
    %5560 = vmatpush2.msra.mxu0 0.0
    %5561 = vmatprep.subr.mxu0 0.0
    %5562 = vmatpush2.msra.mxu0 0.0
    %5563 = vmatprep.mubr.f32.mxu0 0.0
    %5564 = vmatmul.mubr.f32.gmra.mxu0 %v5494
    %v5565 = vpop.f32.mrf.mxu0
    %v5566 = vadd.f32 0.0, %v5565
    %v5567 = vpop.f32.mrf.mxu0
    %5568 = vmatprep.mubr.f32.mxu0 0.0
    %5569 = vmatmul.mubr.f32.gmra.mxu0 %v5497
    %v5570 = vpop.f32.mrf.mxu0
    %v5571 = vadd.f32 0.0, %v5570
    %v5572 = vpop.f32.mrf.mxu0
    %5573 = vdwg.mxu0
    %5578 = vrot.lane.b32.xlu0 %v5479, 24
    %v5579 = vpop.permute.xlu0 %5578
    %5580 = vrot.lane.b32.xlu0 %v5484, 24
    %v5581 = vpop.permute.xlu0 %5580
    %5582 = vrot.lane.b32.xlu0 %v5566, 24
    %v5583 = vpop.permute.xlu0 %5582
    %5584 = vrot.lane.b32.xlu0 %v5571, 24
    %v5585 = vpop.permute.xlu0 %5584
    %5590 = vst.msk [vmem:[#allocation4] sm:$0xff] %vm3326, %v5579
    %5591 = vst.msk [vmem:[#allocation4 + $0x8] sm:$0xff] %vm3326, %v5581
    %5592 = vst.msk [vmem:[#allocation4 + $0x10] sm:$0xff] %vm3326, %v5583
    %5593 = vst.msk [vmem:[#allocation4 + $0x18] sm:$0xff] %vm3326, %v5585
    %v5594 = vld [vmem:[#allocation4] sm:$0xff]
    %v5595 = vld [vmem:[#allocation4 + $0x8] sm:$0xff]
    %v5596 = vld [vmem:[#allocation4 + $0x10] sm:$0xff]
    %v5597 = vld [vmem:[#allocation4 + $0x18] sm:$0xff]
    %s5598 = scalar_lea.vmem %s4, 32
    %v5599 = vld [vmem:[%s5598] sm:$0xff]
    %v5600 = vld [vmem:[%s5598 + $0x8] sm:$0xff]
    %v5601 = vld [vmem:[%s5598 + $0x10] sm:$0xff]
    %v5602 = vld [vmem:[%s5598 + $0x18] sm:$0xff]
    %v5603 = vld [vmem:[%s8 + $0x12] sm:$0x1]
    %v5604 = vlaneseq
    %v5605 = vshrl.u32 %v5604, 7
    %v5606 = vsub.s32 0, %v5605
    %v5607 = vrot.slane %v5603, %v5606
    %v5609 = vsel %vm33, %v5594, 0
    %v5612 = vsel %vm33, %v5595, 0
    %v5615 = vsel %vm33, %v5596, 0
    %v5618 = vsel %vm33, %v5597, 0
    %5620 = vmatprep.subr.mxu0 0.0
    %5621 = vmatpush1.msra.mxu0 0.0
    %5622 = vmatprep.subr.mxu0 0.0
    %5623 = vmatpush1.msra.mxu0 0.0
    %5624 = vmatprep.subr.mxu0 0.0
    %5625 = vmatpush1.msra.mxu0 0.0
    %5626 = vmatprep.subr.mxu0 0.0
    %5627 = vmatpush1.msra.mxu0 0.0
    %5628 = vmatprep.subr.mxu0 0.0
    %5629 = vmatpush1.msra.mxu0 0.0
    %5630 = vmatprep.subr.mxu0 0.0
    %5631 = vmatpush1.msra.mxu0 0.0
    %5632 = vmatprep.subr.mxu0 0.0
    %5633 = vmatpush1.msra.mxu0 0.0
    %5634 = vmatprep.subr.mxu0 0.0
    %5635 = vmatpush1.msra.mxu0 0.0
    %5636 = vmatprep.subr.mxu0 0.0
    %5637 = vmatpush1.msra.mxu0 0.0
    %5638 = vmatprep.subr.mxu0 0.0
    %5639 = vmatpush1.msra.mxu0 0.0
    %5640 = vmatprep.subr.mxu0 0.0
    %5641 = vmatpush1.msra.mxu0 0.0
    %5642 = vmatprep.subr.mxu0 0.0
    %5643 = vmatpush1.msra.mxu0 0.0
    %5644 = vmatprep.subr.mxu0 0.0
    %5645 = vmatpush1.msra.mxu0 %v5602
    %5646 = vmatprep.subr.mxu0 0.0
    %5647 = vmatpush1.msra.mxu0 %v5601
    %5648 = vmatprep.subr.mxu0 0.0
    %5649 = vmatpush1.msra.mxu0 %v5600
    %5650 = vmatprep.subr.mxu0 0.0
    %5651 = vmatpush1.msra.mxu0 %v5599
    %5652 = vmatprep.subr.mxu0 0.0
    %5653 = vmatpush2.msra.mxu0 0.0
    %5654 = vmatprep.subr.mxu0 0.0
    %5655 = vmatpush2.msra.mxu0 0.0
    %5656 = vmatprep.subr.mxu0 0.0
    %5657 = vmatpush2.msra.mxu0 0.0
    %5658 = vmatprep.subr.mxu0 0.0
    %5659 = vmatpush2.msra.mxu0 0.0
    %5660 = vmatprep.subr.mxu0 0.0
    %5661 = vmatpush2.msra.mxu0 0.0
    %5662 = vmatprep.subr.mxu0 0.0
    %5663 = vmatpush2.msra.mxu0 0.0
    %5664 = vmatprep.subr.mxu0 0.0
    %5665 = vmatpush2.msra.mxu0 0.0
    %5666 = vmatprep.subr.mxu0 0.0
    %5667 = vmatpush2.msra.mxu0 0.0
    %5668 = vmatprep.subr.mxu0 0.0
    %5669 = vmatpush2.msra.mxu0 0.0
    %5670 = vmatprep.subr.mxu0 0.0
    %5671 = vmatpush2.msra.mxu0 0.0
    %5672 = vmatprep.subr.mxu0 0.0
    %5673 = vmatpush2.msra.mxu0 0.0
    %5674 = vmatprep.subr.mxu0 0.0
    %5675 = vmatpush2.msra.mxu0 0.0
    %5676 = vmatprep.subr.mxu0 0.0
    %5677 = vmatpush2.msra.mxu0 0.0
    %5678 = vmatprep.subr.mxu0 0.0
    %5679 = vmatpush2.msra.mxu0 0.0
    %5680 = vmatprep.subr.mxu0 0.0
    %5681 = vmatpush2.msra.mxu0 0.0
    %5682 = vmatprep.subr.mxu0 0.0
    %5683 = vmatpush2.msra.mxu0 0.0
    %5684 = vmatprep.mubr.f32.mxu0 0.0
    %5685 = vmatmul.mubr.f32.gmra.mxu0 %v5609
    %v5686 = vpop.f32.mrf.mxu0
    %v5687 = vadd.f32 %v5607, %v5686
    %v5688 = vpop.f32.mrf.mxu0
    %5689 = vmatprep.mubr.f32.mxu0 0.0
    %5690 = vmatmul.mubr.f32.gmra.mxu0 %v5612
    %v5691 = vpop.f32.mrf.mxu0
    %v5692 = vadd.f32 %v5607, %v5691
    %v5693 = vpop.f32.mrf.mxu0
    %5694 = vmatprep.mubr.f32.mxu0 0.0
    %5695 = vmatmul.mubr.f32.gmra.mxu0 %v5615
    %v5696 = vpop.f32.mrf.mxu0
    %v5697 = vadd.f32 %v5607, %v5696
    %v5698 = vpop.f32.mrf.mxu0
    %5699 = vmatprep.mubr.f32.mxu0 0.0
    %5700 = vmatmul.mubr.f32.gmra.mxu0 %v5618
    %v5701 = vpop.f32.mrf.mxu0
    %v5702 = vadd.f32 %v5607, %v5701
    %v5703 = vpop.f32.mrf.mxu0
    %5704 = vdwg.mxu0
    %v5705 = vadd.f32 %v3823, %v5687
    %v5706 = vadd.f32 %v3824, %v5692
    %v5707 = vadd.f32 %v3825, %v5697
    %v5708 = vadd.f32 %v3826, %v5702
    %v5709 = vld [vmem:[%s8 + $0x13] sm:$0x1]
    %v5710 = vld [vmem:[%s8 + $0x14] sm:$0x1]
    %v5711 = vsel %vm33, %v5705, 0.0
    %5712 = vadd.xlane.f32.xlu0 %v5711
    %v5713 = vpop.xlane.xlu0 %5712
    %v5714 = vsel %vm33, %v5706, 0.0
    %5715 = vadd.xlane.f32.xlu0 %v5714
    %v5716 = vpop.xlane.xlu0 %5715
    %v5717 = vsel %vm33, %v5707, 0.0
    %5718 = vadd.xlane.f32.xlu0 %v5717
    %v5719 = vpop.xlane.xlu0 %5718
    %v5720 = vsel %vm33, %v5708, 0.0
    %5721 = vadd.xlane.f32.xlu0 %v5720
    %v5722 = vpop.xlane.xlu0 %5721
    %v5723 = vmul.f32 %v5713, %v3459
    %v5724 = vmul.f32 %v5716, %v3459
    %v5725 = vmul.f32 %v5719, %v3459
    %v5726 = vmul.f32 %v5722, %v3459
    %v5727 = vmul.f32 %v5705, %v5705
    %v5728 = vmul.f32 %v5706, %v5706
    %v5729 = vmul.f32 %v5707, %v5707
    %v5730 = vmul.f32 %v5708, %v5708
    %v5731 = vsel %vm33, %v5727, 0.0
    %5732 = vadd.xlane.f32.xlu0 %v5731
    %v5733 = vpop.xlane.xlu0 %5732
    %v5734 = vsel %vm33, %v5728, 0.0
    %5735 = vadd.xlane.f32.xlu0 %v5734
    %v5736 = vpop.xlane.xlu0 %5735
    %v5737 = vsel %vm33, %v5729, 0.0
    %5738 = vadd.xlane.f32.xlu0 %v5737
    %v5739 = vpop.xlane.xlu0 %5738
    %v5740 = vsel %vm33, %v5730, 0.0
    %5741 = vadd.xlane.f32.xlu0 %v5740
    %v5742 = vpop.xlane.xlu0 %5741
    %v5743 = vmul.f32 %v5733, %v3459
    %v5744 = vmul.f32 %v5736, %v3459
    %v5745 = vmul.f32 %v5739, %v3459
    %v5746 = vmul.f32 %v5742, %v3459
    %v5747 = vmul.f32 %v5723, %v5723
    %v5748 = vmul.f32 %v5724, %v5724
    %v5749 = vmul.f32 %v5725, %v5725
    %v5750 = vmul.f32 %v5726, %v5726
    %v5751 = vsub.f32 %v5743, %v5747
    %v5752 = vsub.f32 %v5744, %v5748
    %v5753 = vsub.f32 %v5745, %v5749
    %v5754 = vsub.f32 %v5746, %v5750
    %v5755 = vsub.f32 %v5705, %v5723
    %v5756 = vsub.f32 %v5706, %v5724
    %v5757 = vsub.f32 %v5707, %v5725
    %v5758 = vsub.f32 %v5708, %v5726
    %v5759 = vadd.f32 %v5751, 1e-05
    %v5760 = vadd.f32 %v5752, 1e-05
    %v5761 = vadd.f32 %v5753, 1e-05
    %v5762 = vadd.f32 %v5754, 1e-05
    %v5763 = vrsqrt.pop %v5759
    %v5764 = vrsqrt.pop %v5760
    %v5765 = vrsqrt.pop %v5761
    %v5766 = vrsqrt.pop %v5762
    %v5767 = vmul.f32 %v5755, %v5763
    %v5768 = vmul.f32 %v5756, %v5764
    %v5769 = vmul.f32 %v5757, %v5765
    %v5770 = vmul.f32 %v5758, %v5766
    %v5771 = vlaneseq
    %v5772 = vshrl.u32 %v5771, 7
    %v5773 = vsub.s32 0, %v5772
    %v5774 = vrot.slane %v5709, %v5773
    %v5775 = vmul.f32 %v5767, %v5774
    %v5776 = vmul.f32 %v5768, %v5774
    %v5777 = vmul.f32 %v5769, %v5774
    %v5778 = vmul.f32 %v5770, %v5774
    %v5779 = vlaneseq
    %v5780 = vshrl.u32 %v5779, 7
    %v5781 = vsub.s32 0, %v5780
    %v5782 = vrot.slane %v5710, %v5781
    %v5783 = vadd.f32 %v5775, %v5782
    %v5784 = vadd.f32 %v5776, %v5782
    %v5785 = vadd.f32 %v5777, %v5782
    %v5786 = vadd.f32 %v5778, %v5782
    %s5787 = scalar_lea.vmem %s5, 32
    %v5788 = vld [vmem:[%s5787] sm:$0xff]
    %v5789 = vld [vmem:[%s5787 + $0x8] sm:$0xff]
    %v5790 = vld [vmem:[%s5787 + $0x10] sm:$0xff]
    %v5791 = vld [vmem:[%s5787 + $0x18] sm:$0xff]
    %v5792 = vld [vmem:[%s8 + $0x15] sm:$0x1]
    %v5793 = vlaneseq
    %v5794 = vshrl.u32 %v5793, 7
    %v5795 = vsub.s32 0, %v5794
    %v5796 = vrot.slane %v5792, %v5795
    %v5798 = vsel %vm33, %v5783, 0
    %v5801 = vsel %vm33, %v5784, 0
    %v5804 = vsel %vm33, %v5785, 0
    %v5807 = vsel %vm33, %v5786, 0
    %5809 = vmatprep.subr.mxu0 0.0
    %5810 = vmatpush1.msra.mxu0 0.0
    %5811 = vmatprep.subr.mxu0 0.0
    %5812 = vmatpush1.msra.mxu0 0.0
    %5813 = vmatprep.subr.mxu0 0.0
    %5814 = vmatpush1.msra.mxu0 0.0
    %5815 = vmatprep.subr.mxu0 0.0
    %5816 = vmatpush1.msra.mxu0 0.0
    %5817 = vmatprep.subr.mxu0 0.0
    %5818 = vmatpush1.msra.mxu0 0.0
    %5819 = vmatprep.subr.mxu0 0.0
    %5820 = vmatpush1.msra.mxu0 0.0
    %5821 = vmatprep.subr.mxu0 0.0
    %5822 = vmatpush1.msra.mxu0 0.0
    %5823 = vmatprep.subr.mxu0 0.0
    %5824 = vmatpush1.msra.mxu0 0.0
    %5825 = vmatprep.subr.mxu0 0.0
    %5826 = vmatpush1.msra.mxu0 0.0
    %5827 = vmatprep.subr.mxu0 0.0
    %5828 = vmatpush1.msra.mxu0 0.0
    %5829 = vmatprep.subr.mxu0 0.0
    %5830 = vmatpush1.msra.mxu0 0.0
    %5831 = vmatprep.subr.mxu0 0.0
    %5832 = vmatpush1.msra.mxu0 0.0
    %5833 = vmatprep.subr.mxu0 0.0
    %5834 = vmatpush1.msra.mxu0 %v5791
    %5835 = vmatprep.subr.mxu0 0.0
    %5836 = vmatpush1.msra.mxu0 %v5790
    %5837 = vmatprep.subr.mxu0 0.0
    %5838 = vmatpush1.msra.mxu0 %v5789
    %5839 = vmatprep.subr.mxu0 0.0
    %5840 = vmatpush1.msra.mxu0 %v5788
    %5841 = vmatprep.subr.mxu0 0.0
    %5842 = vmatpush2.msra.mxu0 0.0
    %5843 = vmatprep.subr.mxu0 0.0
    %5844 = vmatpush2.msra.mxu0 0.0
    %5845 = vmatprep.subr.mxu0 0.0
    %5846 = vmatpush2.msra.mxu0 0.0
    %5847 = vmatprep.subr.mxu0 0.0
    %5848 = vmatpush2.msra.mxu0 0.0
    %5849 = vmatprep.subr.mxu0 0.0
    %5850 = vmatpush2.msra.mxu0 0.0
    %5851 = vmatprep.subr.mxu0 0.0
    %5852 = vmatpush2.msra.mxu0 0.0
    %5853 = vmatprep.subr.mxu0 0.0
    %5854 = vmatpush2.msra.mxu0 0.0
    %5855 = vmatprep.subr.mxu0 0.0
    %5856 = vmatpush2.msra.mxu0 0.0
    %5857 = vmatprep.subr.mxu0 0.0
    %5858 = vmatpush2.msra.mxu0 0.0
    %5859 = vmatprep.subr.mxu0 0.0
    %5860 = vmatpush2.msra.mxu0 0.0
    %5861 = vmatprep.subr.mxu0 0.0
    %5862 = vmatpush2.msra.mxu0 0.0
    %5863 = vmatprep.subr.mxu0 0.0
    %5864 = vmatpush2.msra.mxu0 0.0
    %5865 = vmatprep.subr.mxu0 0.0
    %5866 = vmatpush2.msra.mxu0 0.0
    %5867 = vmatprep.subr.mxu0 0.0
    %5868 = vmatpush2.msra.mxu0 0.0
    %5869 = vmatprep.subr.mxu0 0.0
    %5870 = vmatpush2.msra.mxu0 0.0
    %5871 = vmatprep.subr.mxu0 0.0
    %5872 = vmatpush2.msra.mxu0 0.0
    %5873 = vmatprep.mubr.f32.mxu0 0.0
    %5874 = vmatmul.mubr.f32.gmra.mxu0 %v5798
    %v5875 = vpop.f32.mrf.mxu0
    %v5876 = vadd.f32 %v5796, %v5875
    %v5877 = vpop.f32.mrf.mxu0
    %5878 = vmatprep.mubr.f32.mxu0 0.0
    %5879 = vmatmul.mubr.f32.gmra.mxu0 %v5801
    %v5880 = vpop.f32.mrf.mxu0
    %v5881 = vadd.f32 %v5796, %v5880
    %v5882 = vpop.f32.mrf.mxu0
    %5883 = vmatprep.mubr.f32.mxu0 0.0
    %5884 = vmatmul.mubr.f32.gmra.mxu0 %v5804
    %v5885 = vpop.f32.mrf.mxu0
    %v5886 = vadd.f32 %v5796, %v5885
    %v5887 = vpop.f32.mrf.mxu0
    %5888 = vmatprep.mubr.f32.mxu0 0.0
    %5889 = vmatmul.mubr.f32.gmra.mxu0 %v5807
    %v5890 = vpop.f32.mrf.mxu0
    %v5891 = vadd.f32 %v5796, %v5890
    %v5892 = vpop.f32.mrf.mxu0
    %5893 = vdwg.mxu0
    %v5894 = vmax.f32 %v5876, 0.0
    %v5895 = vmax.f32 %v5881, 0.0
    %v5896 = vmax.f32 %v5886, 0.0
    %v5897 = vmax.f32 %v5891, 0.0
    %s5898 = scalar_lea.vmem %s6, 64
    %v5899 = vld [vmem:[%s5898] sm:$0xff]
    %v5900 = vld [vmem:[%s5898 + $0x8] sm:$0xff]
    %v5901 = vld [vmem:[%s5898 + $0x10] sm:$0xff]
    %v5902 = vld [vmem:[%s5898 + $0x18] sm:$0xff]
    %v5903 = vld [vmem:[%s5898 + $0x20] sm:$0xff]
    %v5904 = vld [vmem:[%s5898 + $0x28] sm:$0xff]
    %v5905 = vld [vmem:[%s5898 + $0x30] sm:$0xff]
    %v5906 = vld [vmem:[%s5898 + $0x38] sm:$0xff]
    %v5907 = vld [vmem:[%s8 + $0x16] sm:$0x1]
    %v5908 = vlaneseq
    %v5909 = vshrl.u32 %v5908, 7
    %v5910 = vsub.s32 0, %v5909
    %v5911 = vrot.slane %v5907, %v5910
    %v5913 = vsel %vm3647, %v5894, 0
    %v5916 = vsel %vm3647, %v5895, 0
    %v5919 = vsel %vm3647, %v5896, 0
    %v5922 = vsel %vm3647, %v5897, 0
    %5924 = vmatprep.subr.mxu0 0.0
    %5925 = vmatpush1.msra.mxu0 0.0
    %5926 = vmatprep.subr.mxu0 0.0
    %5927 = vmatpush1.msra.mxu0 0.0
    %5928 = vmatprep.subr.mxu0 0.0
    %5929 = vmatpush1.msra.mxu0 0.0
    %5930 = vmatprep.subr.mxu0 0.0
    %5931 = vmatpush1.msra.mxu0 0.0
    %5932 = vmatprep.subr.mxu0 0.0
    %5933 = vmatpush1.msra.mxu0 0.0
    %5934 = vmatprep.subr.mxu0 0.0
    %5935 = vmatpush1.msra.mxu0 0.0
    %5936 = vmatprep.subr.mxu0 0.0
    %5937 = vmatpush1.msra.mxu0 0.0
    %5938 = vmatprep.subr.mxu0 0.0
    %5939 = vmatpush1.msra.mxu0 0.0
    %5940 = vmatprep.subr.mxu0 0.0
    %5941 = vmatpush1.msra.mxu0 %v5906
    %5942 = vmatprep.subr.mxu0 0.0
    %5943 = vmatpush1.msra.mxu0 %v5905
    %5944 = vmatprep.subr.mxu0 0.0
    %5945 = vmatpush1.msra.mxu0 %v5904
    %5946 = vmatprep.subr.mxu0 0.0
    %5947 = vmatpush1.msra.mxu0 %v5903
    %5948 = vmatprep.subr.mxu0 0.0
    %5949 = vmatpush1.msra.mxu0 %v5902
    %5950 = vmatprep.subr.mxu0 0.0
    %5951 = vmatpush1.msra.mxu0 %v5901
    %5952 = vmatprep.subr.mxu0 0.0
    %5953 = vmatpush1.msra.mxu0 %v5900
    %5954 = vmatprep.subr.mxu0 0.0
    %5955 = vmatpush1.msra.mxu0 %v5899
    %5956 = vmatprep.subr.mxu0 0.0
    %5957 = vmatpush2.msra.mxu0 0.0
    %5958 = vmatprep.subr.mxu0 0.0
    %5959 = vmatpush2.msra.mxu0 0.0
    %5960 = vmatprep.subr.mxu0 0.0
    %5961 = vmatpush2.msra.mxu0 0.0
    %5962 = vmatprep.subr.mxu0 0.0
    %5963 = vmatpush2.msra.mxu0 0.0
    %5964 = vmatprep.subr.mxu0 0.0
    %5965 = vmatpush2.msra.mxu0 0.0
    %5966 = vmatprep.subr.mxu0 0.0
    %5967 = vmatpush2.msra.mxu0 0.0
    %5968 = vmatprep.subr.mxu0 0.0
    %5969 = vmatpush2.msra.mxu0 0.0
    %5970 = vmatprep.subr.mxu0 0.0
    %5971 = vmatpush2.msra.mxu0 0.0
    %5972 = vmatprep.subr.mxu0 0.0
    %5973 = vmatpush2.msra.mxu0 0.0
    %5974 = vmatprep.subr.mxu0 0.0
    %5975 = vmatpush2.msra.mxu0 0.0
    %5976 = vmatprep.subr.mxu0 0.0
    %5977 = vmatpush2.msra.mxu0 0.0
    %5978 = vmatprep.subr.mxu0 0.0
    %5979 = vmatpush2.msra.mxu0 0.0
    %5980 = vmatprep.subr.mxu0 0.0
    %5981 = vmatpush2.msra.mxu0 0.0
    %5982 = vmatprep.subr.mxu0 0.0
    %5983 = vmatpush2.msra.mxu0 0.0
    %5984 = vmatprep.subr.mxu0 0.0
    %5985 = vmatpush2.msra.mxu0 0.0
    %5986 = vmatprep.subr.mxu0 0.0
    %5987 = vmatpush2.msra.mxu0 0.0
    %5988 = vmatprep.mubr.f32.mxu0 0.0
    %5989 = vmatmul.mubr.f32.gmra.mxu0 %v5913
    %v5990 = vpop.f32.mrf.mxu0
    %v5991 = vadd.f32 %v5911, %v5990
    %v5992 = vpop.f32.mrf.mxu0
    %5993 = vmatprep.mubr.f32.mxu0 0.0
    %5994 = vmatmul.mubr.f32.gmra.mxu0 %v5916
    %v5995 = vpop.f32.mrf.mxu0
    %v5996 = vadd.f32 %v5911, %v5995
    %v5997 = vpop.f32.mrf.mxu0
    %5998 = vmatprep.mubr.f32.mxu0 0.0
    %5999 = vmatmul.mubr.f32.gmra.mxu0 %v5919
    %v6000 = vpop.f32.mrf.mxu0
    %v6001 = vadd.f32 %v5911, %v6000
    %v6002 = vpop.f32.mrf.mxu0
    %6003 = vmatprep.mubr.f32.mxu0 0.0
    %6004 = vmatmul.mubr.f32.gmra.mxu0 %v5922
    %v6005 = vpop.f32.mrf.mxu0
    %v6006 = vadd.f32 %v5911, %v6005
    %v6007 = vpop.f32.mrf.mxu0
    %6008 = vdwg.mxu0
    %v6009 = vadd.f32 %v5783, %v5991
    %v6010 = vadd.f32 %v5784, %v5996
    %v6011 = vadd.f32 %v5785, %v6001
    %v6012 = vadd.f32 %v5786, %v6006
    %v6013 = vld [vmem:[%s8 + $0x17] sm:$0x1]
    %v6014 = vld [vmem:[%s8 + $0x18] sm:$0x1]
    %v6015 = vsel %vm33, %v6009, 0.0
    %6016 = vadd.xlane.f32.xlu0 %v6015
    %v6017 = vpop.xlane.xlu0 %6016
    %v6018 = vsel %vm33, %v6010, 0.0
    %6019 = vadd.xlane.f32.xlu0 %v6018
    %v6020 = vpop.xlane.xlu0 %6019
    %v6021 = vsel %vm33, %v6011, 0.0
    %6022 = vadd.xlane.f32.xlu0 %v6021
    %v6023 = vpop.xlane.xlu0 %6022
    %v6024 = vsel %vm33, %v6012, 0.0
    %6025 = vadd.xlane.f32.xlu0 %v6024
    %v6026 = vpop.xlane.xlu0 %6025
    %v6027 = vmul.f32 %v6017, %v3459
    %v6028 = vmul.f32 %v6020, %v3459
    %v6029 = vmul.f32 %v6023, %v3459
    %v6030 = vmul.f32 %v6026, %v3459
    %v6031 = vmul.f32 %v6009, %v6009
    %v6032 = vmul.f32 %v6010, %v6010
    %v6033 = vmul.f32 %v6011, %v6011
    %v6034 = vmul.f32 %v6012, %v6012
    %v6035 = vsel %vm33, %v6031, 0.0
    %6036 = vadd.xlane.f32.xlu0 %v6035
    %v6037 = vpop.xlane.xlu0 %6036
    %v6038 = vsel %vm33, %v6032, 0.0
    %6039 = vadd.xlane.f32.xlu0 %v6038
    %v6040 = vpop.xlane.xlu0 %6039
    %v6041 = vsel %vm33, %v6033, 0.0
    %6042 = vadd.xlane.f32.xlu0 %v6041
    %v6043 = vpop.xlane.xlu0 %6042
    %v6044 = vsel %vm33, %v6034, 0.0
    %6045 = vadd.xlane.f32.xlu0 %v6044
    %v6046 = vpop.xlane.xlu0 %6045
    %v6047 = vmul.f32 %v6037, %v3459
    %v6048 = vmul.f32 %v6040, %v3459
    %v6049 = vmul.f32 %v6043, %v3459
    %v6050 = vmul.f32 %v6046, %v3459
    %v6051 = vmul.f32 %v6027, %v6027
    %v6052 = vmul.f32 %v6028, %v6028
    %v6053 = vmul.f32 %v6029, %v6029
    %v6054 = vmul.f32 %v6030, %v6030
    %v6055 = vsub.f32 %v6047, %v6051
    %v6056 = vsub.f32 %v6048, %v6052
    %v6057 = vsub.f32 %v6049, %v6053
    %v6058 = vsub.f32 %v6050, %v6054
    %v6059 = vsub.f32 %v6009, %v6027
    %v6060 = vsub.f32 %v6010, %v6028
    %v6061 = vsub.f32 %v6011, %v6029
    %v6062 = vsub.f32 %v6012, %v6030
    %v6063 = vadd.f32 %v6055, 1e-05
    %v6064 = vadd.f32 %v6056, 1e-05
    %v6065 = vadd.f32 %v6057, 1e-05
    %v6066 = vadd.f32 %v6058, 1e-05
    %v6067 = vrsqrt.pop %v6063
    %v6068 = vrsqrt.pop %v6064
    %v6069 = vrsqrt.pop %v6065
    %v6070 = vrsqrt.pop %v6066
    %v6071 = vmul.f32 %v6059, %v6067
    %v6072 = vmul.f32 %v6060, %v6068
    %v6073 = vmul.f32 %v6061, %v6069
    %v6074 = vmul.f32 %v6062, %v6070
    %v6075 = vlaneseq
    %v6076 = vshrl.u32 %v6075, 7
    %v6077 = vsub.s32 0, %v6076
    %v6078 = vrot.slane %v6013, %v6077
    %v6079 = vmul.f32 %v6071, %v6078
    %v6080 = vmul.f32 %v6072, %v6078
    %v6081 = vmul.f32 %v6073, %v6078
    %v6082 = vmul.f32 %v6074, %v6078
    %v6083 = vlaneseq
    %v6084 = vshrl.u32 %v6083, 7
    %v6085 = vsub.s32 0, %v6084
    %v6086 = vrot.slane %v6014, %v6085
    %v6087 = vadd.f32 %v6079, %v6086
    %v6088 = vadd.f32 %v6080, %v6086
    %v6089 = vadd.f32 %v6081, %v6086
    %v6090 = vadd.f32 %v6082, %v6086
    %v6091 = vsel %vm33, %v6087, 0.0
    %v6092 = vsel %vm33, %v6088, 0.0
    %v6093 = vadd.f32 %v6091, %v6092
    %v6094 = vrot.slane %v6093, 4
    %v6095 = vadd.f32 %v6093, %v6094
    %v6096 = vrot.slane %v6095, 2
    %v6097 = vadd.f32 %v6095, %v6096
    %v6098 = vrot.slane %v6097, 1
    %v6099 = vadd.f32 %v6097, %v6098
    %v6100 = vsel %vm33, %v6089, 0.0
    %v6101 = vsel %vm33, %v6090, 0.0
    %v6102 = vadd.f32 %v6100, %v6101
    %v6103 = vrot.slane %v6102, 4
    %v6104 = vadd.f32 %v6102, %v6103
    %v6105 = vrot.slane %v6104, 2
    %v6106 = vadd.f32 %v6104, %v6105
    %v6107 = vrot.slane %v6106, 1
    %v6108 = vadd.f32 %v6106, %v6107
    %v6109 = vrcp.pop 16.0
    %v6110 = vmul.f32 %v6099, %v6109
    %v6111 = vmul.f32 %v6108, %v6109
    %v6112 = vld [vmem:[%s7] sm:$0xff]
    %v6113 = vld [vmem:[%s7 + $0x8] sm:$0xff]
    %v6114 = vld [vmem:[%s7 + $0x10] sm:$0xff]
    %v6115 = vld [vmem:[%s7 + $0x18] sm:$0xff]
    %v6116 = vld [vmem:[%s8 + $0x19] sm:$0x1]
    %v6117 = vlaneseq
    %v6118 = vshrl.u32 %v6117, 7
    %v6119 = vsub.s32 0, %v6118
    %v6120 = vrot.slane %v6116, %v6119
    %vm6123 = vcmask 1041409
    %v6124 = vsel %vm6123, %v6111, %v6110
    %v6125 = vsel %vm33, %v6124, 0
    %6127 = vmatprep.subr.mxu0 0.0
    %6128 = vmatpush1.msra.mxu0 0.0
    %6129 = vmatprep.subr.mxu0 0.0
    %6130 = vmatpush1.msra.mxu0 0.0
    %6131 = vmatprep.subr.mxu0 0.0
    %6132 = vmatpush1.msra.mxu0 0.0
    %6133 = vmatprep.subr.mxu0 0.0
    %6134 = vmatpush1.msra.mxu0 0.0
    %6135 = vmatprep.subr.mxu0 0.0
    %6136 = vmatpush1.msra.mxu0 0.0
    %6137 = vmatprep.subr.mxu0 0.0
    %6138 = vmatpush1.msra.mxu0 0.0
    %6139 = vmatprep.subr.mxu0 0.0
    %6140 = vmatpush1.msra.mxu0 0.0
    %6141 = vmatprep.subr.mxu0 0.0
    %6142 = vmatpush1.msra.mxu0 0.0
    %6143 = vmatprep.subr.mxu0 0.0
    %6144 = vmatpush1.msra.mxu0 0.0
    %6145 = vmatprep.subr.mxu0 0.0
    %6146 = vmatpush1.msra.mxu0 0.0
    %6147 = vmatprep.subr.mxu0 0.0
    %6148 = vmatpush1.msra.mxu0 0.0
    %6149 = vmatprep.subr.mxu0 0.0
    %6150 = vmatpush1.msra.mxu0 0.0
    %6151 = vmatprep.subr.mxu0 0.0
    %6152 = vmatpush1.msra.mxu0 %v6115
    %6153 = vmatprep.subr.mxu0 0.0
    %6154 = vmatpush1.msra.mxu0 %v6114
    %6155 = vmatprep.subr.mxu0 0.0
    %6156 = vmatpush1.msra.mxu0 %v6113
    %6157 = vmatprep.subr.mxu0 0.0
    %6158 = vmatpush1.msra.mxu0 %v6112
    %6159 = vmatprep.subr.mxu0 0.0
    %6160 = vmatpush2.msra.mxu0 0.0
    %6161 = vmatprep.subr.mxu0 0.0
    %6162 = vmatpush2.msra.mxu0 0.0
    %6163 = vmatprep.subr.mxu0 0.0
    %6164 = vmatpush2.msra.mxu0 0.0
    %6165 = vmatprep.subr.mxu0 0.0
    %6166 = vmatpush2.msra.mxu0 0.0
    %6167 = vmatprep.subr.mxu0 0.0
    %6168 = vmatpush2.msra.mxu0 0.0
    %6169 = vmatprep.subr.mxu0 0.0
    %6170 = vmatpush2.msra.mxu0 0.0
    %6171 = vmatprep.subr.mxu0 0.0
    %6172 = vmatpush2.msra.mxu0 0.0
    %6173 = vmatprep.subr.mxu0 0.0
    %6174 = vmatpush2.msra.mxu0 0.0
    %6175 = vmatprep.subr.mxu0 0.0
    %6176 = vmatpush2.msra.mxu0 0.0
    %6177 = vmatprep.subr.mxu0 0.0
    %6178 = vmatpush2.msra.mxu0 0.0
    %6179 = vmatprep.subr.mxu0 0.0
    %6180 = vmatpush2.msra.mxu0 0.0
    %6181 = vmatprep.subr.mxu0 0.0
    %6182 = vmatpush2.msra.mxu0 0.0
    %6183 = vmatprep.subr.mxu0 0.0
    %6184 = vmatpush2.msra.mxu0 0.0
    %6185 = vmatprep.subr.mxu0 0.0
    %6186 = vmatpush2.msra.mxu0 0.0
    %6187 = vmatprep.subr.mxu0 0.0
    %6188 = vmatpush2.msra.mxu0 0.0
    %6189 = vmatprep.subr.mxu0 0.0
    %6190 = vmatpush2.msra.mxu0 0.0
    %6191 = vmatprep.mubr.f32.mxu0 0.0
    %6192 = vmatmul.mubr.f32.gmra.mxu0 %v6125
    %v6193 = vpop.f32.mrf.mxu0
    %v6194 = vadd.f32 %v6120, %v6193
    %v6195 = vpop.f32.mrf.mxu0
    %6196 = vdwg.mxu0
    %6197 = vst [vmem:[#allocation5] sm:$0x3] %v6194
    // Predicated region
    $region38: #{tak_transformer_forward.1} parent=1 // pred_check
      _
    $region39: #{tak_transformer_forward.1} parent=1 // pred_check_branch
      %6199 = sbr.rel (0) target = $region41
    $region40: #{tak_transformer_forward.1} parent=1 // pred_region
      %s6201 = ssub.s32 32, 32
      %6202 = vsyncadd [#allocation6], %s6201
      %s6204 = sshll.u32 [#allocation5], 4
      %s6205 = int_to_ptr.vmem [resolvable:$true] %s6204
      %6207 = dma.vmem_to_hbm [thread:$0]  %s6205, 32, %s9, [#allocation6]
    $region41: #{tak_transformer_forward.1} parent=1 // pred_fallthru
      _
    // Predicated region
    $region42: #{tak_transformer_forward.1} parent=1 // pred_check
      _
    $region43: #{tak_transformer_forward.1} parent=1 // pred_check_branch
      %6209 = sbr.rel (0) target = $region45
    $region44: #{tak_transformer_forward.1} parent=1 // pred_region
      %6210 = dma.done [#allocation6], 32
    $region45: #{tak_transformer_forward.1} parent=1 // pred_fallthru
      _
    %6211 = vsyncpa [#allocation6], 1

</llo_original>
